<compile_context>
chip_gen: v7x
topology: tpu7x:2x2x1
jax: 0.10.0
libtpu: 0.0.40
codegen_flags: <defaults>
</compile_context>

<pallas_src>
import numpy as np
import jax
import jax.numpy as jnp
from jax import lax
from jax.experimental import pallas as pl
from jax.experimental.pallas import tpu as pltpu


# ---------------------------------------------------------------------------
# Module constants (mirror the PyTorch __init__)
# ---------------------------------------------------------------------------
def get_FTPD_bins():
    return np.arange(0, 360 + 0.5, 0.5)


BIN_EDGES = get_FTPD_bins()
BIN_WIDTH = float(np.diff(BIN_EDGES)[0])     # 0.5
INV_BIN_WIDTH = 1.0 / BIN_WIDTH              # 2.0
T_STEP = 5.0
NUM_T = len(np.arange(0, 60, 5))             # 12
NUM_RES_BLOCKS = 6
TILE_B = 256                                 # batch rows per grid step (full MXU M)


# ---------------------------------------------------------------------------
# Pallas kernel: feature build + Linear -> 6x ResBlock -> Linear -> Softmax -> /bw
# ---------------------------------------------------------------------------
def _mlp_kernel(x_ref, means_ref, stds_ref,
                w0a_ref, w0b_ref, w0c_ref, w0d_ref, b0_ref,
                wres_ref, bres_ref, wf_ref, bf_ref, o_ref):
    x = x_ref[...]                                            # (TB, 6) f32

    # t = arange(0, 60, 5) built on-chip (lane iota).
    t = lax.broadcasted_iota(jnp.int32, (1, NUM_T), 1).astype(jnp.float32) * T_STEP

    u0, xb, alpha = x[:, 0:1], x[:, 1:2], x[:, 2:3]
    mu_u, tau_u = x[:, 3:4], x[:, 5:6]                        # sigma_u (col 4) unused

    cell = xb * jnp.exp(alpha * t)                            # (TB, 12)
    added = cell - xb
    noiseless = mu_u + (u0 - mu_u) * jnp.exp(-t / tau_u)

    means = means_ref[...]                                    # (1, 6)
    stds = stds_ref[...]
    x_norm = (x - means) / stds
    m1, s1 = means[:, 1:2], stds[:, 1:2]
    m3, s3 = means[:, 3:4], stds[:, 3:4]
    cell_n = (cell - m1) / s1
    added_n = (added - m1) / s1
    noise_n = (noiseless - m3) / s3

    # First Linear, split over the concatenated feature groups (avoids an
    # in-kernel lane concat; identical to feats @ W0 + b0).  K is tiny, keep f32.
    h = (jnp.dot(x_norm, w0a_ref[...], preferred_element_type=jnp.float32)
         + jnp.dot(cell_n, w0b_ref[...], preferred_element_type=jnp.float32)
         + jnp.dot(added_n, w0c_ref[...], preferred_element_type=jnp.float32)
         + jnp.dot(noise_n, w0d_ref[...], preferred_element_type=jnp.float32)
         + b0_ref[...])

    # 6 residual blocks: relu( relu(L2(relu(L1(h)))) + h )
    # Weights are bf16; activations cast to bf16 only at the dot inputs,
    # accumulation and elementwise math in f32.
    for r in range(NUM_RES_BLOCKS):
        shortcut = h
        h1 = jnp.maximum(
            jnp.dot(h.astype(jnp.bfloat16), wres_ref[2 * r],
                    preferred_element_type=jnp.float32)
            + bres_ref[2 * r:2 * r + 1, :], 0.0)
        h2 = jnp.maximum(
            jnp.dot(h1.astype(jnp.bfloat16), wres_ref[2 * r + 1],
                    preferred_element_type=jnp.float32)
            + bres_ref[2 * r + 1:2 * r + 2, :], 0.0)
        h = jnp.maximum(h2 + shortcut, 0.0)

    # Output Linear + Softmax(dim=-1), with /bin_width folded into the EUP
    # reciprocal of the softmax denominator.
    logits = jnp.dot(h.astype(jnp.bfloat16), wf_ref[...],
                     preferred_element_type=jnp.float32) + bf_ref[...]
    m = jnp.max(logits, axis=-1, keepdims=True)
    e = jnp.exp(logits - m)
    inv = pl.reciprocal(jnp.sum(e, axis=-1, keepdims=True), approx=True) * INV_BIN_WIDTH
    o_ref[...] = (e * inv).astype(o_ref.dtype)


# ---------------------------------------------------------------------------
# Wrapper: pad batch to a multiple of TILE_B, grid over batch tiles,
# weights VMEM-resident across tiles (constant block index).
# ---------------------------------------------------------------------------
def pytorch_mlp_forward(x, params, means, stds, *, tile_b=TILE_B):
    B = x.shape[0]
    W = params["wf"].shape[1]
    n_tiles = max(1, -(-B // tile_b))
    B_pad = n_tiles * tile_b
    if B_pad != B:
        # Edge-pad so padded rows stay numerically benign (they are discarded).
        x = jnp.pad(x, ((0, B_pad - B), (0, 0)), mode="edge")

    means2 = jnp.asarray(means, jnp.float32).reshape(1, -1)
    stds2 = jnp.asarray(stds, jnp.float32).reshape(1, -1)

    const2 = lambda i: (0, 0)
    const3 = lambda i: (0, 0, 0)

    out = pl.pallas_call(
        _mlp_kernel,
        out_shape=jax.ShapeDtypeStruct((B_pad, W), jnp.float32),
        grid=(n_tiles,),
        in_specs=[
            pl.BlockSpec((tile_b, x.shape[1]), lambda i: (i, 0)),   # x tile
            pl.BlockSpec(means2.shape, const2),
            pl.BlockSpec(stds2.shape, const2),
            pl.BlockSpec(params["w0a"].shape, const2),
            pl.BlockSpec(params["w0b"].shape, const2),
            pl.BlockSpec(params["w0c"].shape, const2),
            pl.BlockSpec(params["w0d"].shape, const2),
            pl.BlockSpec(params["b0"].shape, const2),
            pl.BlockSpec(params["wres"].shape, const3),
            pl.BlockSpec(params["bres"].shape, const2),
            pl.BlockSpec(params["wf"].shape, const2),
            pl.BlockSpec(params["bf"].shape, const2),
        ],
        out_specs=pl.BlockSpec((tile_b, W), lambda i: (i, 0)),
        compiler_params=pltpu.CompilerParams(
            dimension_semantics=("parallel",),       # shard batch tiles over TCs (v7x)
            vmem_limit_bytes=32 * 1024 * 1024,
        ),
    )(x, means2, stds2,
      params["w0a"], params["w0b"], params["w0c"], params["w0d"], params["b0"],
      params["wres"], params["bres"], params["wf"], params["bf"])

    return out[:B]


# ---------------------------------------------------------------------------
# Deterministic nn.Linear-style init + pure-JAX reference (same precision choices)
# ---------------------------------------------------------------------------
def init_params(key, f_in, width):
    def linear(k, fan_in, fan_out):
        kw, kb = jax.random.split(k)
        bound = 1.0 / np.sqrt(fan_in)
        w = jax.random.uniform(kw, (fan_in, fan_out), jnp.float32, -bound, bound)
        b = jax.random.uniform(kb, (fan_out,), jnp.float32, -bound, bound)
        return w, b

    nf = f_in - 3 * NUM_T                      # raw num_features (6)
    keys = jax.random.split(key, 2 + 2 * NUM_RES_BLOCKS)
    w0, b0 = linear(keys[0], f_in, width)
    wres, bres = [], []
    for r in range(2 * NUM_RES_BLOCKS):
        w, b = linear(keys[1 + r], width, width)
        wres.append(w)
        bres.append(b)
    wf, bf = linear(keys[-1], width, width)

    return {
        # first Linear kept f32 (tiny K); pre-split along the feature groups
        "w0": w0,
        "w0a": w0[0:nf],
        "w0b": w0[nf:nf + NUM_T],
        "w0c": w0[nf + NUM_T:nf + 2 * NUM_T],
        "w0d": w0[nf + 2 * NUM_T:nf + 3 * NUM_T],
        "b0": b0[None, :],                                   # (1, W) f32
        # hot-path weights in bf16, biases f32, flat layouts
        "wres": jnp.stack(wres, 0).astype(jnp.bfloat16),     # (12, W, W)
        "bres": jnp.stack(bres, 0),                          # (12, W)
        "wf": wf.astype(jnp.bfloat16),                       # (W, W)
        "bf": bf[None, :],                                   # (1, W)
    }


def build_features(x, means, stds):
    t = jnp.arange(0, 60, 5, dtype=jnp.float32)[None, :]
    u0, xb, alpha = x[:, 0:1], x[:, 1:2], x[:, 2:3]
    mu_u, tau_u = x[:, 3:4], x[:, 5:6]
    cell = xb * jnp.exp(alpha * t)
    added = cell - xb
    noiseless = mu_u + (u0 - mu_u) * jnp.exp(-t / tau_u)
    x_norm = (x - means[None, :]) / stds[None, :]
    return jnp.concatenate(
        [x_norm,
         (cell - means[1]) / stds[1],
         (added - means[1]) / stds[1],
         (noiseless - means[3]) / stds[3]], axis=1).astype(jnp.float32)


def reference_forward(x, params, means, stds):
    feats = build_features(x, means, stds)
    h = jnp.dot(feats, params["w0"], preferred_element_type=jnp.float32) + params["b0"]
    for r in range(NUM_RES_BLOCKS):
        sc = h
        h1 = jax.nn.relu(
            jnp.dot(h.astype(jnp.bfloat16), params["wres"][2 * r],
                    preferred_element_type=jnp.float32) + params["bres"][2 * r])
        h2 = jax.nn.relu(
            jnp.dot(h1.astype(jnp.bfloat16), params["wres"][2 * r + 1],
                    preferred_element_type=jnp.float32) + params["bres"][2 * r + 1])
        h = jax.nn.relu(h2 + sc)
    logits = jnp.dot(h.astype(jnp.bfloat16), params["wf"],
                     preferred_element_type=jnp.float32) + params["bf"]
    return jax.nn.softmax(logits, axis=-1) / BIN_WIDTH


# ---------------------------------------------------------------------------
if __name__ == "__main__":
    NUM_FEATURES = 6
    NUM_OUTPUTS = 128              # == intermediateWidth, lane-aligned
    BATCH = 8
    F_IN = NUM_FEATURES + 3 * NUM_T  # 42

    key = jax.random.PRNGKey(0)
    k_x, k_x2, k_p = jax.random.split(key, 3)

    def make_inputs(k, batch):
        ks = jax.random.split(k, 6)
        u0 = jax.random.uniform(ks[0], (batch, 1), jnp.float32, 0.5, 1.5)
        xb = jax.random.uniform(ks[1], (batch, 1), jnp.float32, 1.0, 2.0)
        alpha = jax.random.uniform(ks[2], (batch, 1), jnp.float32, 0.01, 0.03)
        mu_u = jax.random.uniform(ks[3], (batch, 1), jnp.float32, 0.5, 1.5)
        sigma = jax.random.uniform(ks[4], (batch, 1), jnp.float32, 0.1, 0.2)
        tau_u = jax.random.uniform(ks[5], (batch, 1), jnp.float32, 5.0, 20.0)
        return jnp.concatenate([u0, xb, alpha, mu_u, sigma, tau_u], axis=1)

    means = jnp.linspace(0.5, 2.0, NUM_FEATURES).astype(jnp.float32)
    stds = jnp.linspace(1.0, 1.5, NUM_FEATURES).astype(jnp.float32)
    params = init_params(k_p, F_IN, NUM_OUTPUTS)

    fwd = jax.jit(pytorch_mlp_forward)

    # Small-batch path (pads to one 256-row tile, grid=(1,)).
    x = make_inputs(k_x, BATCH)
    hists = jax.block_until_ready(fwd(x, params, means, stds))
    ref = reference_forward(x, params, means, stds)
    np.testing.assert_allclose(np.asarray(hists), np.asarray(ref),
                               rtol=5e-3, atol=1e-4)
    assert hists.shape == (BATCH, NUM_OUTPUTS)

    # Multi-tile path (exercises the batch grid axis + padding, grid=(2,)).
    x2 = make_inputs(k_x2, 300)
    hists2 = jax.block_until_ready(fwd(x2, params, means, stds))
    ref2 = reference_forward(x2, params, means, stds)
    np.testing.assert_allclose(np.asarray(hists2), np.asarray(ref2),
                               rtol=5e-3, atol=1e-4)
    assert hists2.shape == (300, NUM_OUTPUTS)

    print("KERNEL_OK")
</pallas_src>

<mosaic_0001>
module attributes {stable_mosaic.version = 11 : i64} {
  func.func @_mlp_kernel(%arg0: i32, %arg1: memref<256x6xf32, #tpu.memory_space<vmem>>, %arg2: memref<1x6xf32, #tpu.memory_space<vmem>>, %arg3: memref<1x6xf32, #tpu.memory_space<vmem>>, %arg4: memref<6x128xf32, #tpu.memory_space<vmem>>, %arg5: memref<12x128xf32, #tpu.memory_space<vmem>>, %arg6: memref<12x128xf32, #tpu.memory_space<vmem>>, %arg7: memref<12x128xf32, #tpu.memory_space<vmem>>, %arg8: memref<1x128xf32, #tpu.memory_space<vmem>>, %arg9: memref<12x128x128xbf16, #tpu.memory_space<vmem>>, %arg10: memref<12x128xf32, #tpu.memory_space<vmem>>, %arg11: memref<128x128xbf16, #tpu.memory_space<vmem>>, %arg12: memref<1x128xf32, #tpu.memory_space<vmem>>, %arg13: memref<256x128xf32, #tpu.memory_space<vmem>>) attributes {dimension_semantics = [#tpu.dimension_semantics<parallel>], iteration_bounds = array<i64: 1>, scalar_prefetch = 0 : i64, scratch_operands = 0 : i64, tpu.core_type = #tpu.core_type<tc>, window_params = [{transform_indices = @transform_0, window_bounds = array<i64: 256, 6>}, {pipeline_mode = #tpu.pipeline_mode<synchronous>, transform_indices = @transform_1, window_bounds = array<i64: 1, 6>}, {pipeline_mode = #tpu.pipeline_mode<synchronous>, transform_indices = @transform_2, window_bounds = array<i64: 1, 6>}, {pipeline_mode = #tpu.pipeline_mode<synchronous>, transform_indices = @transform_3, window_bounds = array<i64: 6, 128>}, {pipeline_mode = #tpu.pipeline_mode<synchronous>, transform_indices = @transform_4, window_bounds = array<i64: 12, 128>}, {pipeline_mode = #tpu.pipeline_mode<synchronous>, transform_indices = @transform_5, window_bounds = array<i64: 12, 128>}, {pipeline_mode = #tpu.pipeline_mode<synchronous>, transform_indices = @transform_6, window_bounds = array<i64: 12, 128>}, {pipeline_mode = #tpu.pipeline_mode<synchronous>, transform_indices = @transform_7, window_bounds = array<i64: 1, 128>}, {pipeline_mode = #tpu.pipeline_mode<synchronous>, transform_indices = @transform_8, window_bounds = array<i64: 12, 128, 128>}, {pipeline_mode = #tpu.pipeline_mode<synchronous>, transform_indices = @transform_9, window_bounds = array<i64: 12, 128>}, {pipeline_mode = #tpu.pipeline_mode<synchronous>, transform_indices = @transform_10, window_bounds = array<i64: 128, 128>}, {pipeline_mode = #tpu.pipeline_mode<synchronous>, transform_indices = @transform_11, window_bounds = array<i64: 1, 128>}, {transform_indices = @transform_12, window_bounds = array<i64: 256, 128>}]} {
    %c0 = arith.constant 0 : index
    %c0_0 = arith.constant 0 : index
    %0 = vector.load %arg1[%c0, %c0_0] : memref<256x6xf32, #tpu.memory_space<vmem>>, vector<256x6xf32>
    %1 = tpu.iota {dimensions = array<i32: 1>} : vector<1x12xi32>
    %2 = arith.sitofp %1 : vector<1x12xi32> to vector<1x12xf32>
    %cst = arith.constant 5.000000e+00 : f32
    %3 = vector.broadcast %cst : f32 to vector<1x12xf32>
    %4 = arith.mulf %2, %3 : vector<1x12xf32>
    %5 = vector.extract_strided_slice %0 {offsets = [0, 0], sizes = [256, 1], strides = [1, 1]} : vector<256x6xf32> to vector<256x1xf32>
    %6 = vector.extract_strided_slice %0 {offsets = [0, 1], sizes = [256, 1], strides = [1, 1]} : vector<256x6xf32> to vector<256x1xf32>
    %7 = vector.extract_strided_slice %0 {offsets = [0, 2], sizes = [256, 1], strides = [1, 1]} : vector<256x6xf32> to vector<256x1xf32>
    %8 = vector.extract_strided_slice %0 {offsets = [0, 3], sizes = [256, 1], strides = [1, 1]} : vector<256x6xf32> to vector<256x1xf32>
    %9 = vector.extract_strided_slice %0 {offsets = [0, 5], sizes = [256, 1], strides = [1, 1]} : vector<256x6xf32> to vector<256x1xf32>
    %10 = vector.broadcast %7 : vector<256x1xf32> to vector<256x12xf32>
    %11 = vector.broadcast %4 : vector<1x12xf32> to vector<256x12xf32>
    %12 = arith.mulf %10, %11 : vector<256x12xf32>
    %13 = math.exp %12 : vector<256x12xf32>
    %14 = vector.broadcast %6 : vector<256x1xf32> to vector<256x12xf32>
    %15 = arith.mulf %14, %13 : vector<256x12xf32>
    %16 = vector.broadcast %6 : vector<256x1xf32> to vector<256x12xf32>
    %17 = arith.subf %15, %16 : vector<256x12xf32>
    %18 = arith.subf %5, %8 : vector<256x1xf32>
    %cst_1 = arith.constant 0.000000e+00 : f32
    %19 = vector.broadcast %cst_1 : f32 to vector<1x12xf32>
    %20 = arith.subf %19, %4 : vector<1x12xf32>
    %21 = vector.broadcast %20 : vector<1x12xf32> to vector<256x12xf32>
    %22 = vector.broadcast %9 : vector<256x1xf32> to vector<256x12xf32>
    %23 = arith.divf %21, %22 : vector<256x12xf32>
    %24 = math.exp %23 : vector<256x12xf32>
    %25 = vector.broadcast %18 : vector<256x1xf32> to vector<256x12xf32>
    %26 = arith.mulf %25, %24 : vector<256x12xf32>
    %27 = vector.broadcast %8 : vector<256x1xf32> to vector<256x12xf32>
    %28 = arith.addf %27, %26 : vector<256x12xf32>
    %c0_2 = arith.constant 0 : index
    %c0_3 = arith.constant 0 : index
    %29 = vector.load %arg2[%c0_2, %c0_3] : memref<1x6xf32, #tpu.memory_space<vmem>>, vector<1x6xf32>
    %c0_4 = arith.constant 0 : index
    %c0_5 = arith.constant 0 : index
    %30 = vector.load %arg3[%c0_4, %c0_5] : memref<1x6xf32, #tpu.memory_space<vmem>>, vector<1x6xf32>
    %31 = vector.broadcast %29 : vector<1x6xf32> to vector<256x6xf32>
    %32 = arith.subf %0, %31 : vector<256x6xf32>
    %33 = vector.broadcast %30 : vector<1x6xf32> to vector<256x6xf32>
    %34 = arith.divf %32, %33 : vector<256x6xf32>
    %35 = vector.extract_strided_slice %29 {offsets = [0, 1], sizes = [1, 1], strides = [1, 1]} : vector<1x6xf32> to vector<1x1xf32>
    %36 = vector.extract_strided_slice %30 {offsets = [0, 1], sizes = [1, 1], strides = [1, 1]} : vector<1x6xf32> to vector<1x1xf32>
    %37 = vector.extract_strided_slice %29 {offsets = [0, 3], sizes = [1, 1], strides = [1, 1]} : vector<1x6xf32> to vector<1x1xf32>
    %38 = vector.extract_strided_slice %30 {offsets = [0, 3], sizes = [1, 1], strides = [1, 1]} : vector<1x6xf32> to vector<1x1xf32>
    %39 = vector.broadcast %35 : vector<1x1xf32> to vector<256x12xf32>
    %40 = arith.subf %15, %39 : vector<256x12xf32>
    %41 = vector.broadcast %36 : vector<1x1xf32> to vector<256x12xf32>
    %42 = arith.divf %40, %41 : vector<256x12xf32>
    %43 = vector.broadcast %35 : vector<1x1xf32> to vector<256x12xf32>
    %44 = arith.subf %17, %43 : vector<256x12xf32>
    %45 = vector.broadcast %36 : vector<1x1xf32> to vector<256x12xf32>
    %46 = arith.divf %44, %45 : vector<256x12xf32>
    %47 = vector.broadcast %37 : vector<1x1xf32> to vector<256x12xf32>
    %48 = arith.subf %28, %47 : vector<256x12xf32>
    %49 = vector.broadcast %38 : vector<1x1xf32> to vector<256x12xf32>
    %50 = arith.divf %48, %49 : vector<256x12xf32>
    %c0_6 = arith.constant 0 : index
    %c0_7 = arith.constant 0 : index
    %51 = vector.load %arg4[%c0_6, %c0_7] : memref<6x128xf32, #tpu.memory_space<vmem>>, vector<6x128xf32>
    %cst_8 = arith.constant dense<0.000000e+00> : vector<256x128xf32>
    %52 = tpu.matmul %34, %51, %cst_8 {dimension_numbers = #tpu.dot_dimension_numbers<[1], [0], [0], [1], [0, 0, 1, 1], [], []>} : vector<256x6xf32>, vector<6x128xf32>, vector<256x128xf32> -> vector<256x128xf32>
    %c0_9 = arith.constant 0 : index
    %c0_10 = arith.constant 0 : index
    %53 = vector.load %arg5[%c0_9, %c0_10] : memref<12x128xf32, #tpu.memory_space<vmem>>, vector<12x128xf32>
    %cst_11 = arith.constant dense<0.000000e+00> : vector<256x128xf32>
    %54 = tpu.matmul %42, %53, %cst_11 {dimension_numbers = #tpu.dot_dimension_numbers<[1], [0], [0], [1], [0, 0, 1, 1], [], []>} : vector<256x12xf32>, vector<12x128xf32>, vector<256x128xf32> -> vector<256x128xf32>
    %55 = arith.addf %52, %54 : vector<256x128xf32>
    %c0_12 = arith.constant 0 : index
    %c0_13 = arith.constant 0 : index
    %56 = vector.load %arg6[%c0_12, %c0_13] : memref<12x128xf32, #tpu.memory_space<vmem>>, vector<12x128xf32>
    %cst_14 = arith.constant dense<0.000000e+00> : vector<256x128xf32>
    %57 = tpu.matmul %46, %56, %cst_14 {dimension_numbers = #tpu.dot_dimension_numbers<[1], [0], [0], [1], [0, 0, 1, 1], [], []>} : vector<256x12xf32>, vector<12x128xf32>, vector<256x128xf32> -> vector<256x128xf32>
    %58 = arith.addf %55, %57 : vector<256x128xf32>
    %c0_15 = arith.constant 0 : index
    %c0_16 = arith.constant 0 : index
    %59 = vector.load %arg7[%c0_15, %c0_16] : memref<12x128xf32, #tpu.memory_space<vmem>>, vector<12x128xf32>
    %cst_17 = arith.constant dense<0.000000e+00> : vector<256x128xf32>
    %60 = tpu.matmul %50, %59, %cst_17 {dimension_numbers = #tpu.dot_dimension_numbers<[1], [0], [0], [1], [0, 0, 1, 1], [], []>} : vector<256x12xf32>, vector<12x128xf32>, vector<256x128xf32> -> vector<256x128xf32>
    %61 = arith.addf %58, %60 : vector<256x128xf32>
    %c0_18 = arith.constant 0 : index
    %c0_19 = arith.constant 0 : index
    %62 = vector.load %arg8[%c0_18, %c0_19] : memref<1x128xf32, #tpu.memory_space<vmem>>, vector<1x128xf32>
    %63 = vector.broadcast %62 : vector<1x128xf32> to vector<256x128xf32>
    %64 = arith.addf %61, %63 : vector<256x128xf32>
    %65 = arith.truncf %64 : vector<256x128xf32> to vector<256x128xbf16>
    %c0_20 = arith.constant 0 : index
    %c0_21 = arith.constant 0 : index
    %c0_22 = arith.constant 0 : index
    %66 = vector.load %arg9[%c0_20, %c0_21, %c0_22] : memref<12x128x128xbf16, #tpu.memory_space<vmem>>, vector<1x128x128xbf16>
    %67 = vector.shape_cast %66 : vector<1x128x128xbf16> to vector<128x128xbf16>
    %cst_23 = arith.constant dense<0.000000e+00> : vector<256x128xf32>
    %68 = tpu.matmul %65, %67, %cst_23 {dimension_numbers = #tpu.dot_dimension_numbers<[1], [0], [0], [1], [0, 0, 1, 1], [], []>} : vector<256x128xbf16>, vector<128x128xbf16>, vector<256x128xf32> -> vector<256x128xf32>
    %c0_24 = arith.constant 0 : index
    %c0_25 = arith.constant 0 : index
    %69 = vector.load %arg10[%c0_24, %c0_25] : memref<12x128xf32, #tpu.memory_space<vmem>>, vector<1x128xf32>
    %70 = vector.broadcast %69 : vector<1x128xf32> to vector<256x128xf32>
    %71 = arith.addf %68, %70 : vector<256x128xf32>
    %cst_26 = arith.constant 0.000000e+00 : f32
    %72 = vector.broadcast %cst_26 : f32 to vector<256x128xf32>
    %73 = arith.maximumf %71, %72 : vector<256x128xf32>
    %74 = arith.truncf %73 : vector<256x128xf32> to vector<256x128xbf16>
    %c1 = arith.constant 1 : index
    %c0_27 = arith.constant 0 : index
    %c0_28 = arith.constant 0 : index
    %75 = vector.load %arg9[%c1, %c0_27, %c0_28] : memref<12x128x128xbf16, #tpu.memory_space<vmem>>, vector<1x128x128xbf16>
    %76 = vector.shape_cast %75 : vector<1x128x128xbf16> to vector<128x128xbf16>
    %cst_29 = arith.constant dense<0.000000e+00> : vector<256x128xf32>
    %77 = tpu.matmul %74, %76, %cst_29 {dimension_numbers = #tpu.dot_dimension_numbers<[1], [0], [0], [1], [0, 0, 1, 1], [], []>} : vector<256x128xbf16>, vector<128x128xbf16>, vector<256x128xf32> -> vector<256x128xf32>
    %c1_30 = arith.constant 1 : index
    %c0_31 = arith.constant 0 : index
    %78 = vector.load %arg10[%c1_30, %c0_31] : memref<12x128xf32, #tpu.memory_space<vmem>>, vector<1x128xf32>
    %79 = vector.broadcast %78 : vector<1x128xf32> to vector<256x128xf32>
    %80 = arith.addf %77, %79 : vector<256x128xf32>
    %cst_32 = arith.constant 0.000000e+00 : f32
    %81 = vector.broadcast %cst_32 : f32 to vector<256x128xf32>
    %82 = arith.maximumf %80, %81 : vector<256x128xf32>
    %83 = arith.addf %82, %64 : vector<256x128xf32>
    %cst_33 = arith.constant 0.000000e+00 : f32
    %84 = vector.broadcast %cst_33 : f32 to vector<256x128xf32>
    %85 = arith.maximumf %83, %84 : vector<256x128xf32>
    %86 = arith.truncf %85 : vector<256x128xf32> to vector<256x128xbf16>
    %c2 = arith.constant 2 : index
    %c0_34 = arith.constant 0 : index
    %c0_35 = arith.constant 0 : index
    %87 = vector.load %arg9[%c2, %c0_34, %c0_35] : memref<12x128x128xbf16, #tpu.memory_space<vmem>>, vector<1x128x128xbf16>
    %88 = vector.shape_cast %87 : vector<1x128x128xbf16> to vector<128x128xbf16>
    %cst_36 = arith.constant dense<0.000000e+00> : vector<256x128xf32>
    %89 = tpu.matmul %86, %88, %cst_36 {dimension_numbers = #tpu.dot_dimension_numbers<[1], [0], [0], [1], [0, 0, 1, 1], [], []>} : vector<256x128xbf16>, vector<128x128xbf16>, vector<256x128xf32> -> vector<256x128xf32>
    %c2_37 = arith.constant 2 : index
    %c0_38 = arith.constant 0 : index
    %90 = vector.load %arg10[%c2_37, %c0_38] : memref<12x128xf32, #tpu.memory_space<vmem>>, vector<1x128xf32>
    %91 = vector.broadcast %90 : vector<1x128xf32> to vector<256x128xf32>
    %92 = arith.addf %89, %91 : vector<256x128xf32>
    %cst_39 = arith.constant 0.000000e+00 : f32
    %93 = vector.broadcast %cst_39 : f32 to vector<256x128xf32>
    %94 = arith.maximumf %92, %93 : vector<256x128xf32>
    %95 = arith.truncf %94 : vector<256x128xf32> to vector<256x128xbf16>
    %c3 = arith.constant 3 : index
    %c0_40 = arith.constant 0 : index
    %c0_41 = arith.constant 0 : index
    %96 = vector.load %arg9[%c3, %c0_40, %c0_41] : memref<12x128x128xbf16, #tpu.memory_space<vmem>>, vector<1x128x128xbf16>
    %97 = vector.shape_cast %96 : vector<1x128x128xbf16> to vector<128x128xbf16>
    %cst_42 = arith.constant dense<0.000000e+00> : vector<256x128xf32>
    %98 = tpu.matmul %95, %97, %cst_42 {dimension_numbers = #tpu.dot_dimension_numbers<[1], [0], [0], [1], [0, 0, 1, 1], [], []>} : vector<256x128xbf16>, vector<128x128xbf16>, vector<256x128xf32> -> vector<256x128xf32>
    %c3_43 = arith.constant 3 : index
    %c0_44 = arith.constant 0 : index
    %99 = vector.load %arg10[%c3_43, %c0_44] : memref<12x128xf32, #tpu.memory_space<vmem>>, vector<1x128xf32>
    %100 = vector.broadcast %99 : vector<1x128xf32> to vector<256x128xf32>
    %101 = arith.addf %98, %100 : vector<256x128xf32>
    %cst_45 = arith.constant 0.000000e+00 : f32
    %102 = vector.broadcast %cst_45 : f32 to vector<256x128xf32>
    %103 = arith.maximumf %101, %102 : vector<256x128xf32>
    %104 = arith.addf %103, %85 : vector<256x128xf32>
    %cst_46 = arith.constant 0.000000e+00 : f32
    %105 = vector.broadcast %cst_46 : f32 to vector<256x128xf32>
    %106 = arith.maximumf %104, %105 : vector<256x128xf32>
    %107 = arith.truncf %106 : vector<256x128xf32> to vector<256x128xbf16>
    %c4 = arith.constant 4 : index
    %c0_47 = arith.constant 0 : index
    %c0_48 = arith.constant 0 : index
    %108 = vector.load %arg9[%c4, %c0_47, %c0_48] : memref<12x128x128xbf16, #tpu.memory_space<vmem>>, vector<1x128x128xbf16>
    %109 = vector.shape_cast %108 : vector<1x128x128xbf16> to vector<128x128xbf16>
    %cst_49 = arith.constant dense<0.000000e+00> : vector<256x128xf32>
    %110 = tpu.matmul %107, %109, %cst_49 {dimension_numbers = #tpu.dot_dimension_numbers<[1], [0], [0], [1], [0, 0, 1, 1], [], []>} : vector<256x128xbf16>, vector<128x128xbf16>, vector<256x128xf32> -> vector<256x128xf32>
    %c4_50 = arith.constant 4 : index
    %c0_51 = arith.constant 0 : index
    %111 = vector.load %arg10[%c4_50, %c0_51] : memref<12x128xf32, #tpu.memory_space<vmem>>, vector<1x128xf32>
    %112 = vector.broadcast %111 : vector<1x128xf32> to vector<256x128xf32>
    %113 = arith.addf %110, %112 : vector<256x128xf32>
    %cst_52 = arith.constant 0.000000e+00 : f32
    %114 = vector.broadcast %cst_52 : f32 to vector<256x128xf32>
    %115 = arith.maximumf %113, %114 : vector<256x128xf32>
    %116 = arith.truncf %115 : vector<256x128xf32> to vector<256x128xbf16>
    %c5 = arith.constant 5 : index
    %c0_53 = arith.constant 0 : index
    %c0_54 = arith.constant 0 : index
    %117 = vector.load %arg9[%c5, %c0_53, %c0_54] : memref<12x128x128xbf16, #tpu.memory_space<vmem>>, vector<1x128x128xbf16>
    %118 = vector.shape_cast %117 : vector<1x128x128xbf16> to vector<128x128xbf16>
    %cst_55 = arith.constant dense<0.000000e+00> : vector<256x128xf32>
    %119 = tpu.matmul %116, %118, %cst_55 {dimension_numbers = #tpu.dot_dimension_numbers<[1], [0], [0], [1], [0, 0, 1, 1], [], []>} : vector<256x128xbf16>, vector<128x128xbf16>, vector<256x128xf32> -> vector<256x128xf32>
    %c5_56 = arith.constant 5 : index
    %c0_57 = arith.constant 0 : index
    %120 = vector.load %arg10[%c5_56, %c0_57] : memref<12x128xf32, #tpu.memory_space<vmem>>, vector<1x128xf32>
    %121 = vector.broadcast %120 : vector<1x128xf32> to vector<256x128xf32>
    %122 = arith.addf %119, %121 : vector<256x128xf32>
    %cst_58 = arith.constant 0.000000e+00 : f32
    %123 = vector.broadcast %cst_58 : f32 to vector<256x128xf32>
    %124 = arith.maximumf %122, %123 : vector<256x128xf32>
    %125 = arith.addf %124, %106 : vector<256x128xf32>
    %cst_59 = arith.constant 0.000000e+00 : f32
    %126 = vector.broadcast %cst_59 : f32 to vector<256x128xf32>
    %127 = arith.maximumf %125, %126 : vector<256x128xf32>
    %128 = arith.truncf %127 : vector<256x128xf32> to vector<256x128xbf16>
    %c6 = arith.constant 6 : index
    %c0_60 = arith.constant 0 : index
    %c0_61 = arith.constant 0 : index
    %129 = vector.load %arg9[%c6, %c0_60, %c0_61] : memref<12x128x128xbf16, #tpu.memory_space<vmem>>, vector<1x128x128xbf16>
    %130 = vector.shape_cast %129 : vector<1x128x128xbf16> to vector<128x128xbf16>
    %cst_62 = arith.constant dense<0.000000e+00> : vector<256x128xf32>
    %131 = tpu.matmul %128, %130, %cst_62 {dimension_numbers = #tpu.dot_dimension_numbers<[1], [0], [0], [1], [0, 0, 1, 1], [], []>} : vector<256x128xbf16>, vector<128x128xbf16>, vector<256x128xf32> -> vector<256x128xf32>
    %c6_63 = arith.constant 6 : index
    %c0_64 = arith.constant 0 : index
    %132 = vector.load %arg10[%c6_63, %c0_64] : memref<12x128xf32, #tpu.memory_space<vmem>>, vector<1x128xf32>
    %133 = vector.broadcast %132 : vector<1x128xf32> to vector<256x128xf32>
    %134 = arith.addf %131, %133 : vector<256x128xf32>
    %cst_65 = arith.constant 0.000000e+00 : f32
    %135 = vector.broadcast %cst_65 : f32 to vector<256x128xf32>
    %136 = arith.maximumf %134, %135 : vector<256x128xf32>
    %137 = arith.truncf %136 : vector<256x128xf32> to vector<256x128xbf16>
    %c7 = arith.constant 7 : index
    %c0_66 = arith.constant 0 : index
    %c0_67 = arith.constant 0 : index
    %138 = vector.load %arg9[%c7, %c0_66, %c0_67] : memref<12x128x128xbf16, #tpu.memory_space<vmem>>, vector<1x128x128xbf16>
    %139 = vector.shape_cast %138 : vector<1x128x128xbf16> to vector<128x128xbf16>
    %cst_68 = arith.constant dense<0.000000e+00> : vector<256x128xf32>
    %140 = tpu.matmul %137, %139, %cst_68 {dimension_numbers = #tpu.dot_dimension_numbers<[1], [0], [0], [1], [0, 0, 1, 1], [], []>} : vector<256x128xbf16>, vector<128x128xbf16>, vector<256x128xf32> -> vector<256x128xf32>
    %c7_69 = arith.constant 7 : index
    %c0_70 = arith.constant 0 : index
    %141 = vector.load %arg10[%c7_69, %c0_70] : memref<12x128xf32, #tpu.memory_space<vmem>>, vector<1x128xf32>
    %142 = vector.broadcast %141 : vector<1x128xf32> to vector<256x128xf32>
    %143 = arith.addf %140, %142 : vector<256x128xf32>
    %cst_71 = arith.constant 0.000000e+00 : f32
    %144 = vector.broadcast %cst_71 : f32 to vector<256x128xf32>
    %145 = arith.maximumf %143, %144 : vector<256x128xf32>
    %146 = arith.addf %145, %127 : vector<256x128xf32>
    %cst_72 = arith.constant 0.000000e+00 : f32
    %147 = vector.broadcast %cst_72 : f32 to vector<256x128xf32>
    %148 = arith.maximumf %146, %147 : vector<256x128xf32>
    %149 = arith.truncf %148 : vector<256x128xf32> to vector<256x128xbf16>
    %c8 = arith.constant 8 : index
    %c0_73 = arith.constant 0 : index
    %c0_74 = arith.constant 0 : index
    %150 = vector.load %arg9[%c8, %c0_73, %c0_74] : memref<12x128x128xbf16, #tpu.memory_space<vmem>>, vector<1x128x128xbf16>
    %151 = vector.shape_cast %150 : vector<1x128x128xbf16> to vector<128x128xbf16>
    %cst_75 = arith.constant dense<0.000000e+00> : vector<256x128xf32>
    %152 = tpu.matmul %149, %151, %cst_75 {dimension_numbers = #tpu.dot_dimension_numbers<[1], [0], [0], [1], [0, 0, 1, 1], [], []>} : vector<256x128xbf16>, vector<128x128xbf16>, vector<256x128xf32> -> vector<256x128xf32>
    %c8_76 = arith.constant 8 : index
    %c0_77 = arith.constant 0 : index
    %153 = vector.load %arg10[%c8_76, %c0_77] : memref<12x128xf32, #tpu.memory_space<vmem>>, vector<1x128xf32>
    %154 = vector.broadcast %153 : vector<1x128xf32> to vector<256x128xf32>
    %155 = arith.addf %152, %154 : vector<256x128xf32>
    %cst_78 = arith.constant 0.000000e+00 : f32
    %156 = vector.broadcast %cst_78 : f32 to vector<256x128xf32>
    %157 = arith.maximumf %155, %156 : vector<256x128xf32>
    %158 = arith.truncf %157 : vector<256x128xf32> to vector<256x128xbf16>
    %c9 = arith.constant 9 : index
    %c0_79 = arith.constant 0 : index
    %c0_80 = arith.constant 0 : index
    %159 = vector.load %arg9[%c9, %c0_79, %c0_80] : memref<12x128x128xbf16, #tpu.memory_space<vmem>>, vector<1x128x128xbf16>
    %160 = vector.shape_cast %159 : vector<1x128x128xbf16> to vector<128x128xbf16>
    %cst_81 = arith.constant dense<0.000000e+00> : vector<256x128xf32>
    %161 = tpu.matmul %158, %160, %cst_81 {dimension_numbers = #tpu.dot_dimension_numbers<[1], [0], [0], [1], [0, 0, 1, 1], [], []>} : vector<256x128xbf16>, vector<128x128xbf16>, vector<256x128xf32> -> vector<256x128xf32>
    %c9_82 = arith.constant 9 : index
    %c0_83 = arith.constant 0 : index
    %162 = vector.load %arg10[%c9_82, %c0_83] : memref<12x128xf32, #tpu.memory_space<vmem>>, vector<1x128xf32>
    %163 = vector.broadcast %162 : vector<1x128xf32> to vector<256x128xf32>
    %164 = arith.addf %161, %163 : vector<256x128xf32>
    %cst_84 = arith.constant 0.000000e+00 : f32
    %165 = vector.broadcast %cst_84 : f32 to vector<256x128xf32>
    %166 = arith.maximumf %164, %165 : vector<256x128xf32>
    %167 = arith.addf %166, %148 : vector<256x128xf32>
    %cst_85 = arith.constant 0.000000e+00 : f32
    %168 = vector.broadcast %cst_85 : f32 to vector<256x128xf32>
    %169 = arith.maximumf %167, %168 : vector<256x128xf32>
    %170 = arith.truncf %169 : vector<256x128xf32> to vector<256x128xbf16>
    %c10 = arith.constant 10 : index
    %c0_86 = arith.constant 0 : index
    %c0_87 = arith.constant 0 : index
    %171 = vector.load %arg9[%c10, %c0_86, %c0_87] : memref<12x128x128xbf16, #tpu.memory_space<vmem>>, vector<1x128x128xbf16>
    %172 = vector.shape_cast %171 : vector<1x128x128xbf16> to vector<128x128xbf16>
    %cst_88 = arith.constant dense<0.000000e+00> : vector<256x128xf32>
    %173 = tpu.matmul %170, %172, %cst_88 {dimension_numbers = #tpu.dot_dimension_numbers<[1], [0], [0], [1], [0, 0, 1, 1], [], []>} : vector<256x128xbf16>, vector<128x128xbf16>, vector<256x128xf32> -> vector<256x128xf32>
    %c10_89 = arith.constant 10 : index
    %c0_90 = arith.constant 0 : index
    %174 = vector.load %arg10[%c10_89, %c0_90] : memref<12x128xf32, #tpu.memory_space<vmem>>, vector<1x128xf32>
    %175 = vector.broadcast %174 : vector<1x128xf32> to vector<256x128xf32>
    %176 = arith.addf %173, %175 : vector<256x128xf32>
    %cst_91 = arith.constant 0.000000e+00 : f32
    %177 = vector.broadcast %cst_91 : f32 to vector<256x128xf32>
    %178 = arith.maximumf %176, %177 : vector<256x128xf32>
    %179 = arith.truncf %178 : vector<256x128xf32> to vector<256x128xbf16>
    %c11 = arith.constant 11 : index
    %c0_92 = arith.constant 0 : index
    %c0_93 = arith.constant 0 : index
    %180 = vector.load %arg9[%c11, %c0_92, %c0_93] : memref<12x128x128xbf16, #tpu.memory_space<vmem>>, vector<1x128x128xbf16>
    %181 = vector.shape_cast %180 : vector<1x128x128xbf16> to vector<128x128xbf16>
    %cst_94 = arith.constant dense<0.000000e+00> : vector<256x128xf32>
    %182 = tpu.matmul %179, %181, %cst_94 {dimension_numbers = #tpu.dot_dimension_numbers<[1], [0], [0], [1], [0, 0, 1, 1], [], []>} : vector<256x128xbf16>, vector<128x128xbf16>, vector<256x128xf32> -> vector<256x128xf32>
    %c11_95 = arith.constant 11 : index
    %c0_96 = arith.constant 0 : index
    %183 = vector.load %arg10[%c11_95, %c0_96] : memref<12x128xf32, #tpu.memory_space<vmem>>, vector<1x128xf32>
    %184 = vector.broadcast %183 : vector<1x128xf32> to vector<256x128xf32>
    %185 = arith.addf %182, %184 : vector<256x128xf32>
    %cst_97 = arith.constant 0.000000e+00 : f32
    %186 = vector.broadcast %cst_97 : f32 to vector<256x128xf32>
    %187 = arith.maximumf %185, %186 : vector<256x128xf32>
    %188 = arith.addf %187, %169 : vector<256x128xf32>
    %cst_98 = arith.constant 0.000000e+00 : f32
    %189 = vector.broadcast %cst_98 : f32 to vector<256x128xf32>
    %190 = arith.maximumf %188, %189 : vector<256x128xf32>
    %191 = arith.truncf %190 : vector<256x128xf32> to vector<256x128xbf16>
    %c0_99 = arith.constant 0 : index
    %c0_100 = arith.constant 0 : index
    %192 = vector.load %arg11[%c0_99, %c0_100] : memref<128x128xbf16, #tpu.memory_space<vmem>>, vector<128x128xbf16>
    %cst_101 = arith.constant dense<0.000000e+00> : vector<256x128xf32>
    %193 = tpu.matmul %191, %192, %cst_101 {dimension_numbers = #tpu.dot_dimension_numbers<[1], [0], [0], [1], [0, 0, 1, 1], [], []>} : vector<256x128xbf16>, vector<128x128xbf16>, vector<256x128xf32> -> vector<256x128xf32>
    %c0_102 = arith.constant 0 : index
    %c0_103 = arith.constant 0 : index
    %194 = vector.load %arg12[%c0_102, %c0_103] : memref<1x128xf32, #tpu.memory_space<vmem>>, vector<1x128xf32>
    %195 = vector.broadcast %194 : vector<1x128xf32> to vector<256x128xf32>
    %196 = arith.addf %193, %195 : vector<256x128xf32>
    %cst_104 = arith.constant dense<0xFF800000> : vector<256xf32>
    %197 = vector.multi_reduction <maximumf>, %196, %cst_104 [1] : vector<256x128xf32> to vector<256xf32>
    %198 = vector.shape_cast %197 : vector<256xf32> to vector<256x1xf32>
    %199 = vector.broadcast %198 : vector<256x1xf32> to vector<256x128xf32>
    %200 = arith.subf %196, %199 : vector<256x128xf32>
    %201 = math.exp %200 : vector<256x128xf32>
    %cst_105 = arith.constant dense<0.000000e+00> : vector<256xf32>
    %202 = vector.multi_reduction <add>, %201, %cst_105 [1] : vector<256x128xf32> to vector<256xf32>
    %203 = vector.shape_cast %202 : vector<256xf32> to vector<256x1xf32>
    %204 = tpu.reciprocal %203 {approx = true} : vector<256x1xf32> -> vector<256x1xf32>
    %cst_106 = arith.constant 2.000000e+00 : f32
    %205 = vector.broadcast %cst_106 : f32 to vector<256x1xf32>
    %206 = arith.mulf %204, %205 : vector<256x1xf32>
    %207 = vector.broadcast %206 : vector<256x1xf32> to vector<256x128xf32>
    %208 = arith.mulf %201, %207 : vector<256x128xf32>
    %c0_107 = arith.constant 0 : index
    %c0_108 = arith.constant 0 : index
    %209 = vector.load %arg13[%c0_107, %c0_108] : memref<256x128xf32, #tpu.memory_space<vmem>>, vector<256x128xf32>
    tpu.vector_store %arg13[%c0_107, %c0_108], %208 {strides = array<i32>} : memref<256x128xf32, #tpu.memory_space<vmem>>, vector<256x128xf32>,
    return
  }
  func.func @transform_0(%arg0: i32) -> (i32, i32) {
    %c0_i32 = arith.constant 0 : i32
    %c0_i32_0 = arith.constant 0 : i32
    return %arg0, %c0_i32 : i32, i32
  }
  func.func @transform_1(%arg0: i32) -> (i32, i32) {
    %c0_i32 = arith.constant 0 : i32
    %c0_i32_0 = arith.constant 0 : i32
    %c0_i32_1 = arith.constant 0 : i32
    return %c0_i32, %c0_i32_0 : i32, i32
  }
  func.func @transform_2(%arg0: i32) -> (i32, i32) {
    %c0_i32 = arith.constant 0 : i32
    %c0_i32_0 = arith.constant 0 : i32
    %c0_i32_1 = arith.constant 0 : i32
    return %c0_i32, %c0_i32_0 : i32, i32
  }
  func.func @transform_3(%arg0: i32) -> (i32, i32) {
    %c0_i32 = arith.constant 0 : i32
    %c0_i32_0 = arith.constant 0 : i32
    %c0_i32_1 = arith.constant 0 : i32
    return %c0_i32, %c0_i32_0 : i32, i32
  }
  func.func @transform_4(%arg0: i32) -> (i32, i32) {
    %c0_i32 = arith.constant 0 : i32
    %c0_i32_0 = arith.constant 0 : i32
    %c0_i32_1 = arith.constant 0 : i32
    return %c0_i32, %c0_i32_0 : i32, i32
  }
  func.func @transform_5(%arg0: i32) -> (i32, i32) {
    %c0_i32 = arith.constant 0 : i32
    %c0_i32_0 = arith.constant 0 : i32
    %c0_i32_1 = arith.constant 0 : i32
    return %c0_i32, %c0_i32_0 : i32, i32
  }
  func.func @transform_6(%arg0: i32) -> (i32, i32) {
    %c0_i32 = arith.constant 0 : i32
    %c0_i32_0 = arith.constant 0 : i32
    %c0_i32_1 = arith.constant 0 : i32
    return %c0_i32, %c0_i32_0 : i32, i32
  }
  func.func @transform_7(%arg0: i32) -> (i32, i32) {
    %c0_i32 = arith.constant 0 : i32
    %c0_i32_0 = arith.constant 0 : i32
    %c0_i32_1 = arith.constant 0 : i32
    return %c0_i32, %c0_i32_0 : i32, i32
  }
  func.func @transform_8(%arg0: i32) -> (i32, i32, i32) {
    %c0_i32 = arith.constant 0 : i32
    %c0_i32_0 = arith.constant 0 : i32
    %c0_i32_1 = arith.constant 0 : i32
    %c0_i32_2 = arith.constant 0 : i32
    return %c0_i32, %c0_i32_0, %c0_i32_1 : i32, i32, i32
  }
  func.func @transform_9(%arg0: i32) -> (i32, i32) {
    %c0_i32 = arith.constant 0 : i32
    %c0_i32_0 = arith.constant 0 : i32
    %c0_i32_1 = arith.constant 0 : i32
    return %c0_i32, %c0_i32_0 : i32, i32
  }
  func.func @transform_10(%arg0: i32) -> (i32, i32) {
    %c0_i32 = arith.constant 0 : i32
    %c0_i32_0 = arith.constant 0 : i32
    %c0_i32_1 = arith.constant 0 : i32
    return %c0_i32, %c0_i32_0 : i32, i32
  }
  func.func @transform_11(%arg0: i32) -> (i32, i32) {
    %c0_i32 = arith.constant 0 : i32
    %c0_i32_0 = arith.constant 0 : i32
    %c0_i32_1 = arith.constant 0 : i32
    return %c0_i32, %c0_i32_0 : i32, i32
  }
  func.func @transform_12(%arg0: i32) -> (i32, i32) {
    %c0_i32 = arith.constant 0 : i32
    %c0_i32_0 = arith.constant 0 : i32
    return %arg0, %c0_i32 : i32, i32
  }
}

</mosaic_0001>

<llo_original>
// kernel: pytorch_mlp_forward.1
$region0: #{pytorch_mlp_forward.1}
  #allocation0 [shape = 'u32[]', space=smem, size = 0x4, offset = 0x4, fixed_abs, tag = 'smem constant byte address 0x4 - core index']
  #allocation1 [shape = 'u32[144,128]{1,0:T(1,128)}', space=vmem, size = 0x12000, scoped, tag = 'internal scratch']
  %s0 = inlined_call_operand.vmem [shape: f32[256,6], index: 0, kind: input, shape index: {}]
  %s1 = inlined_call_operand.vmem [shape: f32[1,6], index: 1, kind: input, shape index: {}]
  %s2 = inlined_call_operand.vmem [shape: f32[1,6], index: 2, kind: input, shape index: {}]
  %s3 = inlined_call_operand.hbm [shape: f32[6,128], index: 3, kind: input, shape index: {}]
  %s4 = inlined_call_operand.vmem [shape: f32[12,128], index: 4, kind: input, shape index: {}]
  %s5 = inlined_call_operand.vmem [shape: f32[12,128], index: 5, kind: input, shape index: {}]
  %s6 = inlined_call_operand.hbm [shape: f32[12,128], index: 6, kind: input, shape index: {}]
  %s7 = inlined_call_operand.hbm [shape: f32[1,128], index: 7, kind: input, shape index: {}]
  %s8 = inlined_call_operand.vmem [shape: bf16[12,128,128], index: 8, kind: input, shape index: {}]
  %s9 = inlined_call_operand.hbm [shape: f32[12,128], index: 9, kind: input, shape index: {}]
  %s10 = inlined_call_operand.hbm [shape: bf16[128,128], index: 10, kind: input, shape index: {}]
  %s11 = inlined_call_operand.hbm [shape: f32[1,128], index: 11, kind: input, shape index: {}]
  %s12 = inlined_call_operand.vmem [shape: f32[256,128], index: 12, kind: output, shape index: {}]
  %s13 = sld [smem:[#allocation0]]
  $region82: #{pytorch_mlp_forward.1} parent=0
    _
  %s15 = ssub.s32 1, %s13
  %s16 = scalar_select 0, %s15, %s13
  $region1: #{pytorch_mlp_forward.1} parent=0
    #allocation2 [shape = 'u8[4096]{0}', space=vmem, size = 0x1000, scoped, tag = 'input window, operand 3, single buffered']
    #allocation3 [shape = 's32[1]{0}', space=sflag, size = 0x4, scoped, tag = 'scoped memory for pytorch_mlp_forward.1']
    #allocation4 [shape = 'u8[8192]{0}', space=vmem, size = 0x2000, scoped, tag = 'input window, operand 6, single buffered']
    #allocation5 [shape = 's32[1]{0}', space=sflag, size = 0x4, scoped, tag = 'scoped memory for pytorch_mlp_forward.1']
    #allocation6 [shape = 'u8[512]{0}', space=vmem, size = 0x400, scoped, tag = 'input window, operand 7, single buffered']
    #allocation7 [shape = 'u8[8192]{0}', space=vmem, size = 0x2000, scoped, tag = 'input window, operand 9, single buffered']
    #allocation8 [shape = 's32[1]{0}', space=sflag, size = 0x4, scoped, tag = 'scoped memory for pytorch_mlp_forward.1']
    #allocation9 [shape = 'u8[32768]{0}', space=vmem, size = 0x8000, scoped, tag = 'input window, operand 10, single buffered']
    #allocation10 [shape = 'u8[512]{0}', space=vmem, size = 0x400, scoped, tag = 'input window, operand 11, single buffered']
    #allocation11 [shape = 's32[1]{0}', space=sflag, size = 0x4, scoped, tag = 'scoped memory for pytorch_mlp_forward.1']
    %17 = vsyncpa [#allocation3], 0
    %18 = vsyncpa [#allocation5], 0
    %19 = vsyncpa [#allocation8], 0
    %20 = vsyncpa [#allocation11], 0
    // Predicated region
    $region2: #{pytorch_mlp_forward.1} parent=1 // pred_check
      _
    $region3: #{pytorch_mlp_forward.1} parent=1 // pred_check_branch
      %22 = sbr.rel (0) target = $region5
    $region4: #{pytorch_mlp_forward.1} parent=1 // pred_region
      _
    $region5: #{pytorch_mlp_forward.1} parent=1 // pred_fallthru
      _
    // Predicated region
    $region6: #{pytorch_mlp_forward.1} parent=1 // pred_check
      _
    $region7: #{pytorch_mlp_forward.1} parent=1 // pred_check_branch
      %24 = sbr.rel (0) target = $region9
    $region8: #{pytorch_mlp_forward.1} parent=1 // pred_region
      _
    $region9: #{pytorch_mlp_forward.1} parent=1 // pred_fallthru
      _
    // Predicated region
    $region10: #{pytorch_mlp_forward.1} parent=1 // pred_check
      _
    $region11: #{pytorch_mlp_forward.1} parent=1 // pred_check_branch
      %26 = sbr.rel (0) target = $region13
    $region12: #{pytorch_mlp_forward.1} parent=1 // pred_region
      _
    $region13: #{pytorch_mlp_forward.1} parent=1 // pred_fallthru
      _
    // Predicated region
    $region14: #{pytorch_mlp_forward.1} parent=1 // pred_check
      _
    $region15: #{pytorch_mlp_forward.1} parent=1 // pred_check_branch
      %28 = sbr.rel (0) target = $region17
    $region16: #{pytorch_mlp_forward.1} parent=1 // pred_region
      %s30 = ssub.s32 128, 128
      %31 = vsyncadd [#allocation3], %s30
      %s33 = sshll.u32 [#allocation2], 4
      %s34 = int_to_ptr.vmem [resolvable:$true] %s33
      %36 = dma.hbm_to_vmem [thread:$0]  %s3, 128, %s34, [#allocation3]
    $region17: #{pytorch_mlp_forward.1} parent=1 // pred_fallthru
      _
    // Predicated region
    $region18: #{pytorch_mlp_forward.1} parent=1 // pred_check
      _
    $region19: #{pytorch_mlp_forward.1} parent=1 // pred_check_branch
      %38 = sbr.rel (0) target = $region21
    $region20: #{pytorch_mlp_forward.1} parent=1 // pred_region
      _
    $region21: #{pytorch_mlp_forward.1} parent=1 // pred_fallthru
      _
    // Predicated region
    $region22: #{pytorch_mlp_forward.1} parent=1 // pred_check
      _
    $region23: #{pytorch_mlp_forward.1} parent=1 // pred_check_branch
      %40 = sbr.rel (0) target = $region25
    $region24: #{pytorch_mlp_forward.1} parent=1 // pred_region
      _
    $region25: #{pytorch_mlp_forward.1} parent=1 // pred_fallthru
      _
    // Predicated region
    $region26: #{pytorch_mlp_forward.1} parent=1 // pred_check
      _
    $region27: #{pytorch_mlp_forward.1} parent=1 // pred_check_branch
      %42 = sbr.rel (0) target = $region29
    $region28: #{pytorch_mlp_forward.1} parent=1 // pred_region
      %s44 = ssub.s32 256, 256
      %45 = vsyncadd [#allocation5], %s44
      %s46 = sshll.u32 [#allocation4], 4
      %s47 = int_to_ptr.vmem [resolvable:$true] %s46
      %52 = dma.hbm_to_vmem [thread:$0]  %s6, 256, %s47, [#allocation5], 128, 128, 8
    $region29: #{pytorch_mlp_forward.1} parent=1 // pred_fallthru
      _
    // Predicated region
    $region30: #{pytorch_mlp_forward.1} parent=1 // pred_check
      _
    $region31: #{pytorch_mlp_forward.1} parent=1 // pred_check_branch
      %54 = sbr.rel (0) target = $region33
    $region32: #{pytorch_mlp_forward.1} parent=1 // pred_region
      %s56 = ssub.s32 16, 16
      %57 = vsyncadd [#allocation5], %s56
      %s59 = sshll.u32 [#allocation6], 4
      %s60 = int_to_ptr.vmem [resolvable:$true] %s59
      %62 = dma.hbm_to_vmem [thread:$0]  %s7, 16, %s60, [#allocation5]
    $region33: #{pytorch_mlp_forward.1} parent=1 // pred_fallthru
      _
    // Predicated region
    $region34: #{pytorch_mlp_forward.1} parent=1 // pred_check
      _
    $region35: #{pytorch_mlp_forward.1} parent=1 // pred_check_branch
      %64 = sbr.rel (0) target = $region37
    $region36: #{pytorch_mlp_forward.1} parent=1 // pred_region
      _
    $region37: #{pytorch_mlp_forward.1} parent=1 // pred_fallthru
      _
    // Predicated region
    $region38: #{pytorch_mlp_forward.1} parent=1 // pred_check
      _
    $region39: #{pytorch_mlp_forward.1} parent=1 // pred_check_branch
      %66 = sbr.rel (0) target = $region41
    $region40: #{pytorch_mlp_forward.1} parent=1 // pred_region
      %s68 = ssub.s32 256, 256
      %69 = vsyncadd [#allocation8], %s68
      %s70 = sshll.u32 [#allocation7], 4
      %s71 = int_to_ptr.vmem [resolvable:$true] %s70
      %76 = dma.hbm_to_vmem [thread:$0]  %s9, 256, %s71, [#allocation8], 128, 128, 8
    $region41: #{pytorch_mlp_forward.1} parent=1 // pred_fallthru
      _
    // Predicated region
    $region42: #{pytorch_mlp_forward.1} parent=1 // pred_check
      _
    $region43: #{pytorch_mlp_forward.1} parent=1 // pred_check_branch
      %78 = sbr.rel (0) target = $region45
    $region44: #{pytorch_mlp_forward.1} parent=1 // pred_region
      %s80 = ssub.s32 1024, 1024
      %81 = vsyncadd [#allocation8], %s80
      %s82 = sshll.u32 [#allocation9], 4
      %s83 = int_to_ptr.vmem [resolvable:$true] %s82
      %88 = dma.hbm_to_vmem [thread:$0]  %s10, 1024, %s83, [#allocation8], 64, 64, 4
    $region45: #{pytorch_mlp_forward.1} parent=1 // pred_fallthru
      _
    // Predicated region
    $region46: #{pytorch_mlp_forward.1} parent=1 // pred_check
      _
    $region47: #{pytorch_mlp_forward.1} parent=1 // pred_check_branch
      %90 = sbr.rel (0) target = $region49
    $region48: #{pytorch_mlp_forward.1} parent=1 // pred_region
      %s92 = ssub.s32 16, 16
      %93 = vsyncadd [#allocation11], %s92
      %s95 = sshll.u32 [#allocation10], 4
      %s96 = int_to_ptr.vmem [resolvable:$true] %s95
      %98 = dma.hbm_to_vmem [thread:$0]  %s11, 16, %s96, [#allocation11]
    $region49: #{pytorch_mlp_forward.1} parent=1 // pred_fallthru
      _
    // Predicated region
    $region50: #{pytorch_mlp_forward.1} parent=1 // pred_check
      _
    $region51: #{pytorch_mlp_forward.1} parent=1 // pred_check_branch
      %100 = sbr.rel (0) target = $region53
    $region52: #{pytorch_mlp_forward.1} parent=1 // pred_region
      %101 = dma.done [#allocation3], 128
    $region53: #{pytorch_mlp_forward.1} parent=1 // pred_fallthru
      _
    // Predicated region
    $region54: #{pytorch_mlp_forward.1} parent=1 // pred_check
      _
    $region55: #{pytorch_mlp_forward.1} parent=1 // pred_check_branch
      %103 = sbr.rel (0) target = $region57
    $region56: #{pytorch_mlp_forward.1} parent=1 // pred_region
      %104 = dma.done [#allocation5], 256
    $region57: #{pytorch_mlp_forward.1} parent=1 // pred_fallthru
      _
    // Predicated region
    $region58: #{pytorch_mlp_forward.1} parent=1 // pred_check
      _
    $region59: #{pytorch_mlp_forward.1} parent=1 // pred_check_branch
      %106 = sbr.rel (0) target = $region61
    $region60: #{pytorch_mlp_forward.1} parent=1 // pred_region
      %107 = dma.done [#allocation5], 16
    $region61: #{pytorch_mlp_forward.1} parent=1 // pred_fallthru
      _
    // Predicated region
    $region62: #{pytorch_mlp_forward.1} parent=1 // pred_check
      _
    $region63: #{pytorch_mlp_forward.1} parent=1 // pred_check_branch
      %109 = sbr.rel (0) target = $region65
    $region64: #{pytorch_mlp_forward.1} parent=1 // pred_region
      %110 = dma.done [#allocation8], 256
    $region65: #{pytorch_mlp_forward.1} parent=1 // pred_fallthru
      _
    // Predicated region
    $region66: #{pytorch_mlp_forward.1} parent=1 // pred_check
      _
    $region67: #{pytorch_mlp_forward.1} parent=1 // pred_check_branch
      %112 = sbr.rel (0) target = $region69
    $region68: #{pytorch_mlp_forward.1} parent=1 // pred_region
      %113 = dma.done [#allocation8], 1024
    $region69: #{pytorch_mlp_forward.1} parent=1 // pred_fallthru
      _
    // Predicated region
    $region70: #{pytorch_mlp_forward.1} parent=1 // pred_check
      _
    $region71: #{pytorch_mlp_forward.1} parent=1 // pred_check_branch
      %115 = sbr.rel (0) target = $region73
    $region72: #{pytorch_mlp_forward.1} parent=1 // pred_region
      %116 = dma.done [#allocation11], 16
    $region73: #{pytorch_mlp_forward.1} parent=1 // pred_fallthru
      _
    %v118 = vld [vmem:[%s0] sm:$0xff]
    %v119 = vld [vmem:[%s0 + $0x8] sm:$0xff]
    %v120 = vld [vmem:[%s0 + $0x10] sm:$0xff]
    %v121 = vld [vmem:[%s0 + $0x18] sm:$0xff]
    %v122 = vld [vmem:[%s0 + $0x20] sm:$0xff]
    %v123 = vld [vmem:[%s0 + $0x28] sm:$0xff]
    %v124 = vld [vmem:[%s0 + $0x30] sm:$0xff]
    %v125 = vld [vmem:[%s0 + $0x38] sm:$0xff]
    %v126 = vld [vmem:[%s0 + $0x40] sm:$0xff]
    %v127 = vld [vmem:[%s0 + $0x48] sm:$0xff]
    %v128 = vld [vmem:[%s0 + $0x50] sm:$0xff]
    %v129 = vld [vmem:[%s0 + $0x58] sm:$0xff]
    %v130 = vld [vmem:[%s0 + $0x60] sm:$0xff]
    %v131 = vld [vmem:[%s0 + $0x68] sm:$0xff]
    %v132 = vld [vmem:[%s0 + $0x70] sm:$0xff]
    %v133 = vld [vmem:[%s0 + $0x78] sm:$0xff]
    %v134 = vld [vmem:[%s0 + $0x80] sm:$0xff]
    %v135 = vld [vmem:[%s0 + $0x88] sm:$0xff]
    %v136 = vld [vmem:[%s0 + $0x90] sm:$0xff]
    %v137 = vld [vmem:[%s0 + $0x98] sm:$0xff]
    %v138 = vld [vmem:[%s0 + $0xa0] sm:$0xff]
    %v139 = vld [vmem:[%s0 + $0xa8] sm:$0xff]
    %v140 = vld [vmem:[%s0 + $0xb0] sm:$0xff]
    %v141 = vld [vmem:[%s0 + $0xb8] sm:$0xff]
    %v142 = vld [vmem:[%s0 + $0xc0] sm:$0xff]
    %v143 = vld [vmem:[%s0 + $0xc8] sm:$0xff]
    %v144 = vld [vmem:[%s0 + $0xd0] sm:$0xff]
    %v145 = vld [vmem:[%s0 + $0xd8] sm:$0xff]
    %v146 = vld [vmem:[%s0 + $0xe0] sm:$0xff]
    %v147 = vld [vmem:[%s0 + $0xe8] sm:$0xff]
    %v148 = vld [vmem:[%s0 + $0xf0] sm:$0xff]
    %v149 = vld [vmem:[%s0 + $0xf8] sm:$0xff]
    %v150 = vlaneseq
    %v151 = vand.u32 %v150, 127
    %v152 = vcvt.s32.f32 %v151
    %v153 = vmul.f32 %v152, 5.0
    %155 = vset.pattern.permute.xlu0 2
    %156 = vperm.xlu0 %155, %v118
    %v157 = vpop.permute.xlu0 %156
    %160 = vset.pattern.permute.xlu0 2
    %161 = vperm.xlu0 %160, %v119
    %v162 = vpop.permute.xlu0 %161
    %165 = vset.pattern.permute.xlu0 2
    %166 = vperm.xlu0 %165, %v120
    %v167 = vpop.permute.xlu0 %166
    %170 = vset.pattern.permute.xlu0 2
    %171 = vperm.xlu0 %170, %v121
    %v172 = vpop.permute.xlu0 %171
    %175 = vset.pattern.permute.xlu0 2
    %176 = vperm.xlu0 %175, %v122
    %v177 = vpop.permute.xlu0 %176
    %180 = vset.pattern.permute.xlu0 2
    %181 = vperm.xlu0 %180, %v123
    %v182 = vpop.permute.xlu0 %181
    %185 = vset.pattern.permute.xlu0 2
    %186 = vperm.xlu0 %185, %v124
    %v187 = vpop.permute.xlu0 %186
    %190 = vset.pattern.permute.xlu0 2
    %191 = vperm.xlu0 %190, %v125
    %v192 = vpop.permute.xlu0 %191
    %195 = vset.pattern.permute.xlu0 2
    %196 = vperm.xlu0 %195, %v126
    %v197 = vpop.permute.xlu0 %196
    %200 = vset.pattern.permute.xlu0 2
    %201 = vperm.xlu0 %200, %v127
    %v202 = vpop.permute.xlu0 %201
    %205 = vset.pattern.permute.xlu0 2
    %206 = vperm.xlu0 %205, %v128
    %v207 = vpop.permute.xlu0 %206
    %210 = vset.pattern.permute.xlu0 2
    %211 = vperm.xlu0 %210, %v129
    %v212 = vpop.permute.xlu0 %211
    %215 = vset.pattern.permute.xlu0 2
    %216 = vperm.xlu0 %215, %v130
    %v217 = vpop.permute.xlu0 %216
    %220 = vset.pattern.permute.xlu0 2
    %221 = vperm.xlu0 %220, %v131
    %v222 = vpop.permute.xlu0 %221
    %225 = vset.pattern.permute.xlu0 2
    %226 = vperm.xlu0 %225, %v132
    %v227 = vpop.permute.xlu0 %226
    %230 = vset.pattern.permute.xlu0 2
    %231 = vperm.xlu0 %230, %v133
    %v232 = vpop.permute.xlu0 %231
    %235 = vset.pattern.permute.xlu0 2
    %236 = vperm.xlu0 %235, %v134
    %v237 = vpop.permute.xlu0 %236
    %240 = vset.pattern.permute.xlu0 2
    %241 = vperm.xlu0 %240, %v135
    %v242 = vpop.permute.xlu0 %241
    %245 = vset.pattern.permute.xlu0 2
    %246 = vperm.xlu0 %245, %v136
    %v247 = vpop.permute.xlu0 %246
    %250 = vset.pattern.permute.xlu0 2
    %251 = vperm.xlu0 %250, %v137
    %v252 = vpop.permute.xlu0 %251
    %255 = vset.pattern.permute.xlu0 2
    %256 = vperm.xlu0 %255, %v138
    %v257 = vpop.permute.xlu0 %256
    %260 = vset.pattern.permute.xlu0 2
    %261 = vperm.xlu0 %260, %v139
    %v262 = vpop.permute.xlu0 %261
    %265 = vset.pattern.permute.xlu0 2
    %266 = vperm.xlu0 %265, %v140
    %v267 = vpop.permute.xlu0 %266
    %270 = vset.pattern.permute.xlu0 2
    %271 = vperm.xlu0 %270, %v141
    %v272 = vpop.permute.xlu0 %271
    %275 = vset.pattern.permute.xlu0 2
    %276 = vperm.xlu0 %275, %v142
    %v277 = vpop.permute.xlu0 %276
    %280 = vset.pattern.permute.xlu0 2
    %281 = vperm.xlu0 %280, %v143
    %v282 = vpop.permute.xlu0 %281
    %285 = vset.pattern.permute.xlu0 2
    %286 = vperm.xlu0 %285, %v144
    %v287 = vpop.permute.xlu0 %286
    %290 = vset.pattern.permute.xlu0 2
    %291 = vperm.xlu0 %290, %v145
    %v292 = vpop.permute.xlu0 %291
    %295 = vset.pattern.permute.xlu0 2
    %296 = vperm.xlu0 %295, %v146
    %v297 = vpop.permute.xlu0 %296
    %300 = vset.pattern.permute.xlu0 2
    %301 = vperm.xlu0 %300, %v147
    %v302 = vpop.permute.xlu0 %301
    %305 = vset.pattern.permute.xlu0 2
    %306 = vperm.xlu0 %305, %v148
    %v307 = vpop.permute.xlu0 %306
    %310 = vset.pattern.permute.xlu0 2
    %311 = vperm.xlu0 %310, %v149
    %v312 = vpop.permute.xlu0 %311
    %v314 = vmul.f32 %v157, %v153
    %v315 = vmul.f32 %v162, %v153
    %v316 = vmul.f32 %v167, %v153
    %v317 = vmul.f32 %v172, %v153
    %v318 = vmul.f32 %v177, %v153
    %v319 = vmul.f32 %v182, %v153
    %v320 = vmul.f32 %v187, %v153
    %v321 = vmul.f32 %v192, %v153
    %v322 = vmul.f32 %v197, %v153
    %v323 = vmul.f32 %v202, %v153
    %v324 = vmul.f32 %v207, %v153
    %v325 = vmul.f32 %v212, %v153
    %v326 = vmul.f32 %v217, %v153
    %v327 = vmul.f32 %v222, %v153
    %v328 = vmul.f32 %v227, %v153
    %v329 = vmul.f32 %v232, %v153
    %v330 = vmul.f32 %v237, %v153
    %v331 = vmul.f32 %v242, %v153
    %v332 = vmul.f32 %v247, %v153
    %v333 = vmul.f32 %v252, %v153
    %v334 = vmul.f32 %v257, %v153
    %v335 = vmul.f32 %v262, %v153
    %v336 = vmul.f32 %v267, %v153
    %v337 = vmul.f32 %v272, %v153
    %v338 = vmul.f32 %v277, %v153
    %v339 = vmul.f32 %v282, %v153
    %v340 = vmul.f32 %v287, %v153
    %v341 = vmul.f32 %v292, %v153
    %v342 = vmul.f32 %v297, %v153
    %v343 = vmul.f32 %v302, %v153
    %v344 = vmul.f32 %v307, %v153
    %v345 = vmul.f32 %v312, %v153
    %v346 = vmul.f32 %v314, 1.442695
    %v347 = vpow.pop %v346
    %v348 = vmul.f32 %v315, 1.442695
    %v349 = vpow.pop %v348
    %v350 = vmul.f32 %v316, 1.442695
    %v351 = vpow.pop %v350
    %v352 = vmul.f32 %v317, 1.442695
    %v353 = vpow.pop %v352
    %v354 = vmul.f32 %v318, 1.442695
    %v355 = vpow.pop %v354
    %v356 = vmul.f32 %v319, 1.442695
    %v357 = vpow.pop %v356
    %v358 = vmul.f32 %v320, 1.442695
    %v359 = vpow.pop %v358
    %v360 = vmul.f32 %v321, 1.442695
    %v361 = vpow.pop %v360
    %v362 = vmul.f32 %v322, 1.442695
    %v363 = vpow.pop %v362
    %v364 = vmul.f32 %v323, 1.442695
    %v365 = vpow.pop %v364
    %v366 = vmul.f32 %v324, 1.442695
    %v367 = vpow.pop %v366
    %v368 = vmul.f32 %v325, 1.442695
    %v369 = vpow.pop %v368
    %v370 = vmul.f32 %v326, 1.442695
    %v371 = vpow.pop %v370
    %v372 = vmul.f32 %v327, 1.442695
    %v373 = vpow.pop %v372
    %v374 = vmul.f32 %v328, 1.442695
    %v375 = vpow.pop %v374
    %v376 = vmul.f32 %v329, 1.442695
    %v377 = vpow.pop %v376
    %v378 = vmul.f32 %v330, 1.442695
    %v379 = vpow.pop %v378
    %v380 = vmul.f32 %v331, 1.442695
    %v381 = vpow.pop %v380
    %v382 = vmul.f32 %v332, 1.442695
    %v383 = vpow.pop %v382
    %v384 = vmul.f32 %v333, 1.442695
    %v385 = vpow.pop %v384
    %v386 = vmul.f32 %v334, 1.442695
    %v387 = vpow.pop %v386
    %v388 = vmul.f32 %v335, 1.442695
    %v389 = vpow.pop %v388
    %v390 = vmul.f32 %v336, 1.442695
    %v391 = vpow.pop %v390
    %v392 = vmul.f32 %v337, 1.442695
    %v393 = vpow.pop %v392
    %v394 = vmul.f32 %v338, 1.442695
    %v395 = vpow.pop %v394
    %v396 = vmul.f32 %v339, 1.442695
    %v397 = vpow.pop %v396
    %v398 = vmul.f32 %v340, 1.442695
    %v399 = vpow.pop %v398
    %v400 = vmul.f32 %v341, 1.442695
    %v401 = vpow.pop %v400
    %v402 = vmul.f32 %v342, 1.442695
    %v403 = vpow.pop %v402
    %v404 = vmul.f32 %v343, 1.442695
    %v405 = vpow.pop %v404
    %v406 = vmul.f32 %v344, 1.442695
    %v407 = vpow.pop %v406
    %v408 = vmul.f32 %v345, 1.442695
    %v409 = vpow.pop %v408
    %410 = vset.pattern.permute.xlu0 1
    %411 = vperm.xlu0 %410, %v118
    %v412 = vpop.permute.xlu0 %411
    %414 = vset.pattern.permute.xlu0 1
    %415 = vperm.xlu0 %414, %v119
    %v416 = vpop.permute.xlu0 %415
    %418 = vset.pattern.permute.xlu0 1
    %419 = vperm.xlu0 %418, %v120
    %v420 = vpop.permute.xlu0 %419
    %422 = vset.pattern.permute.xlu0 1
    %423 = vperm.xlu0 %422, %v121
    %v424 = vpop.permute.xlu0 %423
    %426 = vset.pattern.permute.xlu0 1
    %427 = vperm.xlu0 %426, %v122
    %v428 = vpop.permute.xlu0 %427
    %430 = vset.pattern.permute.xlu0 1
    %431 = vperm.xlu0 %430, %v123
    %v432 = vpop.permute.xlu0 %431
    %434 = vset.pattern.permute.xlu0 1
    %435 = vperm.xlu0 %434, %v124
    %v436 = vpop.permute.xlu0 %435
    %438 = vset.pattern.permute.xlu0 1
    %439 = vperm.xlu0 %438, %v125
    %v440 = vpop.permute.xlu0 %439
    %442 = vset.pattern.permute.xlu0 1
    %443 = vperm.xlu0 %442, %v126
    %v444 = vpop.permute.xlu0 %443
    %446 = vset.pattern.permute.xlu0 1
    %447 = vperm.xlu0 %446, %v127
    %v448 = vpop.permute.xlu0 %447
    %450 = vset.pattern.permute.xlu0 1
    %451 = vperm.xlu0 %450, %v128
    %v452 = vpop.permute.xlu0 %451
    %454 = vset.pattern.permute.xlu0 1
    %455 = vperm.xlu0 %454, %v129
    %v456 = vpop.permute.xlu0 %455
    %458 = vset.pattern.permute.xlu0 1
    %459 = vperm.xlu0 %458, %v130
    %v460 = vpop.permute.xlu0 %459
    %462 = vset.pattern.permute.xlu0 1
    %463 = vperm.xlu0 %462, %v131
    %v464 = vpop.permute.xlu0 %463
    %466 = vset.pattern.permute.xlu0 1
    %467 = vperm.xlu0 %466, %v132
    %v468 = vpop.permute.xlu0 %467
    %470 = vset.pattern.permute.xlu0 1
    %471 = vperm.xlu0 %470, %v133
    %v472 = vpop.permute.xlu0 %471
    %474 = vset.pattern.permute.xlu0 1
    %475 = vperm.xlu0 %474, %v134
    %v476 = vpop.permute.xlu0 %475
    %478 = vset.pattern.permute.xlu0 1
    %479 = vperm.xlu0 %478, %v135
    %v480 = vpop.permute.xlu0 %479
    %482 = vset.pattern.permute.xlu0 1
    %483 = vperm.xlu0 %482, %v136
    %v484 = vpop.permute.xlu0 %483
    %486 = vset.pattern.permute.xlu0 1
    %487 = vperm.xlu0 %486, %v137
    %v488 = vpop.permute.xlu0 %487
    %490 = vset.pattern.permute.xlu0 1
    %491 = vperm.xlu0 %490, %v138
    %v492 = vpop.permute.xlu0 %491
    %494 = vset.pattern.permute.xlu0 1
    %495 = vperm.xlu0 %494, %v139
    %v496 = vpop.permute.xlu0 %495
    %498 = vset.pattern.permute.xlu0 1
    %499 = vperm.xlu0 %498, %v140
    %v500 = vpop.permute.xlu0 %499
    %502 = vset.pattern.permute.xlu0 1
    %503 = vperm.xlu0 %502, %v141
    %v504 = vpop.permute.xlu0 %503
    %506 = vset.pattern.permute.xlu0 1
    %507 = vperm.xlu0 %506, %v142
    %v508 = vpop.permute.xlu0 %507
    %510 = vset.pattern.permute.xlu0 1
    %511 = vperm.xlu0 %510, %v143
    %v512 = vpop.permute.xlu0 %511
    %514 = vset.pattern.permute.xlu0 1
    %515 = vperm.xlu0 %514, %v144
    %v516 = vpop.permute.xlu0 %515
    %518 = vset.pattern.permute.xlu0 1
    %519 = vperm.xlu0 %518, %v145
    %v520 = vpop.permute.xlu0 %519
    %522 = vset.pattern.permute.xlu0 1
    %523 = vperm.xlu0 %522, %v146
    %v524 = vpop.permute.xlu0 %523
    %526 = vset.pattern.permute.xlu0 1
    %527 = vperm.xlu0 %526, %v147
    %v528 = vpop.permute.xlu0 %527
    %530 = vset.pattern.permute.xlu0 1
    %531 = vperm.xlu0 %530, %v148
    %v532 = vpop.permute.xlu0 %531
    %534 = vset.pattern.permute.xlu0 1
    %535 = vperm.xlu0 %534, %v149
    %v536 = vpop.permute.xlu0 %535
    %v538 = vmul.f32 %v412, %v347
    %v539 = vmul.f32 %v416, %v349
    %v540 = vmul.f32 %v420, %v351
    %v541 = vmul.f32 %v424, %v353
    %v542 = vmul.f32 %v428, %v355
    %v543 = vmul.f32 %v432, %v357
    %v544 = vmul.f32 %v436, %v359
    %v545 = vmul.f32 %v440, %v361
    %v546 = vmul.f32 %v444, %v363
    %v547 = vmul.f32 %v448, %v365
    %v548 = vmul.f32 %v452, %v367
    %v549 = vmul.f32 %v456, %v369
    %v550 = vmul.f32 %v460, %v371
    %v551 = vmul.f32 %v464, %v373
    %v552 = vmul.f32 %v468, %v375
    %v553 = vmul.f32 %v472, %v377
    %v554 = vmul.f32 %v476, %v379
    %v555 = vmul.f32 %v480, %v381
    %v556 = vmul.f32 %v484, %v383
    %v557 = vmul.f32 %v488, %v385
    %v558 = vmul.f32 %v492, %v387
    %v559 = vmul.f32 %v496, %v389
    %v560 = vmul.f32 %v500, %v391
    %v561 = vmul.f32 %v504, %v393
    %v562 = vmul.f32 %v508, %v395
    %v563 = vmul.f32 %v512, %v397
    %v564 = vmul.f32 %v516, %v399
    %v565 = vmul.f32 %v520, %v401
    %v566 = vmul.f32 %v524, %v403
    %v567 = vmul.f32 %v528, %v405
    %v568 = vmul.f32 %v532, %v407
    %v569 = vmul.f32 %v536, %v409
    %v570 = vsub.f32 %v538, %v412
    %v571 = vsub.f32 %v539, %v416
    %v572 = vsub.f32 %v540, %v420
    %v573 = vsub.f32 %v541, %v424
    %v574 = vsub.f32 %v542, %v428
    %v575 = vsub.f32 %v543, %v432
    %v576 = vsub.f32 %v544, %v436
    %v577 = vsub.f32 %v545, %v440
    %v578 = vsub.f32 %v546, %v444
    %v579 = vsub.f32 %v547, %v448
    %v580 = vsub.f32 %v548, %v452
    %v581 = vsub.f32 %v549, %v456
    %v582 = vsub.f32 %v550, %v460
    %v583 = vsub.f32 %v551, %v464
    %v584 = vsub.f32 %v552, %v468
    %v585 = vsub.f32 %v553, %v472
    %v586 = vsub.f32 %v554, %v476
    %v587 = vsub.f32 %v555, %v480
    %v588 = vsub.f32 %v556, %v484
    %v589 = vsub.f32 %v557, %v488
    %v590 = vsub.f32 %v558, %v492
    %v591 = vsub.f32 %v559, %v496
    %v592 = vsub.f32 %v560, %v500
    %v593 = vsub.f32 %v561, %v504
    %v594 = vsub.f32 %v562, %v508
    %v595 = vsub.f32 %v563, %v512
    %v596 = vsub.f32 %v564, %v516
    %v597 = vsub.f32 %v565, %v520
    %v598 = vsub.f32 %v566, %v524
    %v599 = vsub.f32 %v567, %v528
    %v600 = vsub.f32 %v568, %v532
    %v601 = vsub.f32 %v569, %v536
    %602 = vrot.lane.b32.xlu0 %v118, 125
    %v603 = vpop.permute.xlu0 %602
    %604 = vrot.lane.b32.xlu0 %v119, 125
    %v605 = vpop.permute.xlu0 %604
    %606 = vrot.lane.b32.xlu0 %v120, 125
    %v607 = vpop.permute.xlu0 %606
    %608 = vrot.lane.b32.xlu0 %v121, 125
    %v609 = vpop.permute.xlu0 %608
    %610 = vrot.lane.b32.xlu0 %v122, 125
    %v611 = vpop.permute.xlu0 %610
    %612 = vrot.lane.b32.xlu0 %v123, 125
    %v613 = vpop.permute.xlu0 %612
    %614 = vrot.lane.b32.xlu0 %v124, 125
    %v615 = vpop.permute.xlu0 %614
    %616 = vrot.lane.b32.xlu0 %v125, 125
    %v617 = vpop.permute.xlu0 %616
    %618 = vrot.lane.b32.xlu0 %v126, 125
    %v619 = vpop.permute.xlu0 %618
    %620 = vrot.lane.b32.xlu0 %v127, 125
    %v621 = vpop.permute.xlu0 %620
    %622 = vrot.lane.b32.xlu0 %v128, 125
    %v623 = vpop.permute.xlu0 %622
    %624 = vrot.lane.b32.xlu0 %v129, 125
    %v625 = vpop.permute.xlu0 %624
    %626 = vrot.lane.b32.xlu0 %v130, 125
    %v627 = vpop.permute.xlu0 %626
    %628 = vrot.lane.b32.xlu0 %v131, 125
    %v629 = vpop.permute.xlu0 %628
    %630 = vrot.lane.b32.xlu0 %v132, 125
    %v631 = vpop.permute.xlu0 %630
    %632 = vrot.lane.b32.xlu0 %v133, 125
    %v633 = vpop.permute.xlu0 %632
    %634 = vrot.lane.b32.xlu0 %v134, 125
    %v635 = vpop.permute.xlu0 %634
    %636 = vrot.lane.b32.xlu0 %v135, 125
    %v637 = vpop.permute.xlu0 %636
    %638 = vrot.lane.b32.xlu0 %v136, 125
    %v639 = vpop.permute.xlu0 %638
    %640 = vrot.lane.b32.xlu0 %v137, 125
    %v641 = vpop.permute.xlu0 %640
    %642 = vrot.lane.b32.xlu0 %v138, 125
    %v643 = vpop.permute.xlu0 %642
    %644 = vrot.lane.b32.xlu0 %v139, 125
    %v645 = vpop.permute.xlu0 %644
    %646 = vrot.lane.b32.xlu0 %v140, 125
    %v647 = vpop.permute.xlu0 %646
    %648 = vrot.lane.b32.xlu0 %v141, 125
    %v649 = vpop.permute.xlu0 %648
    %650 = vrot.lane.b32.xlu0 %v142, 125
    %v651 = vpop.permute.xlu0 %650
    %652 = vrot.lane.b32.xlu0 %v143, 125
    %v653 = vpop.permute.xlu0 %652
    %654 = vrot.lane.b32.xlu0 %v144, 125
    %v655 = vpop.permute.xlu0 %654
    %656 = vrot.lane.b32.xlu0 %v145, 125
    %v657 = vpop.permute.xlu0 %656
    %658 = vrot.lane.b32.xlu0 %v146, 125
    %v659 = vpop.permute.xlu0 %658
    %660 = vrot.lane.b32.xlu0 %v147, 125
    %v661 = vpop.permute.xlu0 %660
    %662 = vrot.lane.b32.xlu0 %v148, 125
    %v663 = vpop.permute.xlu0 %662
    %664 = vrot.lane.b32.xlu0 %v149, 125
    %v665 = vpop.permute.xlu0 %664
    %v698 = vsub.f32 %v118, %v603
    %v699 = vsub.f32 %v119, %v605
    %v700 = vsub.f32 %v120, %v607
    %v701 = vsub.f32 %v121, %v609
    %v702 = vsub.f32 %v122, %v611
    %v703 = vsub.f32 %v123, %v613
    %v704 = vsub.f32 %v124, %v615
    %v705 = vsub.f32 %v125, %v617
    %v706 = vsub.f32 %v126, %v619
    %v707 = vsub.f32 %v127, %v621
    %v708 = vsub.f32 %v128, %v623
    %v709 = vsub.f32 %v129, %v625
    %v710 = vsub.f32 %v130, %v627
    %v711 = vsub.f32 %v131, %v629
    %v712 = vsub.f32 %v132, %v631
    %v713 = vsub.f32 %v133, %v633
    %v714 = vsub.f32 %v134, %v635
    %v715 = vsub.f32 %v135, %v637
    %v716 = vsub.f32 %v136, %v639
    %v717 = vsub.f32 %v137, %v641
    %v718 = vsub.f32 %v138, %v643
    %v719 = vsub.f32 %v139, %v645
    %v720 = vsub.f32 %v140, %v647
    %v721 = vsub.f32 %v141, %v649
    %v722 = vsub.f32 %v142, %v651
    %v723 = vsub.f32 %v143, %v653
    %v724 = vsub.f32 %v144, %v655
    %v725 = vsub.f32 %v145, %v657
    %v726 = vsub.f32 %v146, %v659
    %v727 = vsub.f32 %v147, %v661
    %v728 = vsub.f32 %v148, %v663
    %v729 = vsub.f32 %v149, %v665
    %v730 = vsub.f32 0.0, %v153
    %731 = vset.pattern.permute.xlu0 5
    %732 = vperm.xlu0 %731, %v118
    %v733 = vpop.permute.xlu0 %732
    %735 = vset.pattern.permute.xlu0 5
    %736 = vperm.xlu0 %735, %v119
    %v737 = vpop.permute.xlu0 %736
    %739 = vset.pattern.permute.xlu0 5
    %740 = vperm.xlu0 %739, %v120
    %v741 = vpop.permute.xlu0 %740
    %743 = vset.pattern.permute.xlu0 5
    %744 = vperm.xlu0 %743, %v121
    %v745 = vpop.permute.xlu0 %744
    %747 = vset.pattern.permute.xlu0 5
    %748 = vperm.xlu0 %747, %v122
    %v749 = vpop.permute.xlu0 %748
    %751 = vset.pattern.permute.xlu0 5
    %752 = vperm.xlu0 %751, %v123
    %v753 = vpop.permute.xlu0 %752
    %755 = vset.pattern.permute.xlu0 5
    %756 = vperm.xlu0 %755, %v124
    %v757 = vpop.permute.xlu0 %756
    %759 = vset.pattern.permute.xlu0 5
    %760 = vperm.xlu0 %759, %v125
    %v761 = vpop.permute.xlu0 %760
    %763 = vset.pattern.permute.xlu0 5
    %764 = vperm.xlu0 %763, %v126
    %v765 = vpop.permute.xlu0 %764
    %767 = vset.pattern.permute.xlu0 5
    %768 = vperm.xlu0 %767, %v127
    %v769 = vpop.permute.xlu0 %768
    %771 = vset.pattern.permute.xlu0 5
    %772 = vperm.xlu0 %771, %v128
    %v773 = vpop.permute.xlu0 %772
    %775 = vset.pattern.permute.xlu0 5
    %776 = vperm.xlu0 %775, %v129
    %v777 = vpop.permute.xlu0 %776
    %779 = vset.pattern.permute.xlu0 5
    %780 = vperm.xlu0 %779, %v130
    %v781 = vpop.permute.xlu0 %780
    %783 = vset.pattern.permute.xlu0 5
    %784 = vperm.xlu0 %783, %v131
    %v785 = vpop.permute.xlu0 %784
    %787 = vset.pattern.permute.xlu0 5
    %788 = vperm.xlu0 %787, %v132
    %v789 = vpop.permute.xlu0 %788
    %791 = vset.pattern.permute.xlu0 5
    %792 = vperm.xlu0 %791, %v133
    %v793 = vpop.permute.xlu0 %792
    %795 = vset.pattern.permute.xlu0 5
    %796 = vperm.xlu0 %795, %v134
    %v797 = vpop.permute.xlu0 %796
    %799 = vset.pattern.permute.xlu0 5
    %800 = vperm.xlu0 %799, %v135
    %v801 = vpop.permute.xlu0 %800
    %803 = vset.pattern.permute.xlu0 5
    %804 = vperm.xlu0 %803, %v136
    %v805 = vpop.permute.xlu0 %804
    %807 = vset.pattern.permute.xlu0 5
    %808 = vperm.xlu0 %807, %v137
    %v809 = vpop.permute.xlu0 %808
    %811 = vset.pattern.permute.xlu0 5
    %812 = vperm.xlu0 %811, %v138
    %v813 = vpop.permute.xlu0 %812
    %815 = vset.pattern.permute.xlu0 5
    %816 = vperm.xlu0 %815, %v139
    %v817 = vpop.permute.xlu0 %816
    %819 = vset.pattern.permute.xlu0 5
    %820 = vperm.xlu0 %819, %v140
    %v821 = vpop.permute.xlu0 %820
    %823 = vset.pattern.permute.xlu0 5
    %824 = vperm.xlu0 %823, %v141
    %v825 = vpop.permute.xlu0 %824
    %827 = vset.pattern.permute.xlu0 5
    %828 = vperm.xlu0 %827, %v142
    %v829 = vpop.permute.xlu0 %828
    %831 = vset.pattern.permute.xlu0 5
    %832 = vperm.xlu0 %831, %v143
    %v833 = vpop.permute.xlu0 %832
    %835 = vset.pattern.permute.xlu0 5
    %836 = vperm.xlu0 %835, %v144
    %v837 = vpop.permute.xlu0 %836
    %839 = vset.pattern.permute.xlu0 5
    %840 = vperm.xlu0 %839, %v145
    %v841 = vpop.permute.xlu0 %840
    %843 = vset.pattern.permute.xlu0 5
    %844 = vperm.xlu0 %843, %v146
    %v845 = vpop.permute.xlu0 %844
    %847 = vset.pattern.permute.xlu0 5
    %848 = vperm.xlu0 %847, %v147
    %v849 = vpop.permute.xlu0 %848
    %851 = vset.pattern.permute.xlu0 5
    %852 = vperm.xlu0 %851, %v148
    %v853 = vpop.permute.xlu0 %852
    %855 = vset.pattern.permute.xlu0 5
    %856 = vperm.xlu0 %855, %v149
    %v857 = vpop.permute.xlu0 %856
    %v859 = vrcp.pop %v733
    %v860 = vmul.f32 %v730, %v859
    %v861 = vrcp.pop %v737
    %v862 = vmul.f32 %v730, %v861
    %v863 = vrcp.pop %v741
    %v864 = vmul.f32 %v730, %v863
    %v865 = vrcp.pop %v745
    %v866 = vmul.f32 %v730, %v865
    %v867 = vrcp.pop %v749
    %v868 = vmul.f32 %v730, %v867
    %v869 = vrcp.pop %v753
    %v870 = vmul.f32 %v730, %v869
    %v871 = vrcp.pop %v757
    %v872 = vmul.f32 %v730, %v871
    %v873 = vrcp.pop %v761
    %v874 = vmul.f32 %v730, %v873
    %v875 = vrcp.pop %v765
    %v876 = vmul.f32 %v730, %v875
    %v877 = vrcp.pop %v769
    %v878 = vmul.f32 %v730, %v877
    %v879 = vrcp.pop %v773
    %v880 = vmul.f32 %v730, %v879
    %v881 = vrcp.pop %v777
    %v882 = vmul.f32 %v730, %v881
    %v883 = vrcp.pop %v781
    %v884 = vmul.f32 %v730, %v883
    %v885 = vrcp.pop %v785
    %v886 = vmul.f32 %v730, %v885
    %v887 = vrcp.pop %v789
    %v888 = vmul.f32 %v730, %v887
    %v889 = vrcp.pop %v793
    %v890 = vmul.f32 %v730, %v889
    %v891 = vrcp.pop %v797
    %v892 = vmul.f32 %v730, %v891
    %v893 = vrcp.pop %v801
    %v894 = vmul.f32 %v730, %v893
    %v895 = vrcp.pop %v805
    %v896 = vmul.f32 %v730, %v895
    %v897 = vrcp.pop %v809
    %v898 = vmul.f32 %v730, %v897
    %v899 = vrcp.pop %v813
    %v900 = vmul.f32 %v730, %v899
    %v901 = vrcp.pop %v817
    %v902 = vmul.f32 %v730, %v901
    %v903 = vrcp.pop %v821
    %v904 = vmul.f32 %v730, %v903
    %v905 = vrcp.pop %v825
    %v906 = vmul.f32 %v730, %v905
    %v907 = vrcp.pop %v829
    %v908 = vmul.f32 %v730, %v907
    %v909 = vrcp.pop %v833
    %v910 = vmul.f32 %v730, %v909
    %v911 = vrcp.pop %v837
    %v912 = vmul.f32 %v730, %v911
    %v913 = vrcp.pop %v841
    %v914 = vmul.f32 %v730, %v913
    %v915 = vrcp.pop %v845
    %v916 = vmul.f32 %v730, %v915
    %v917 = vrcp.pop %v849
    %v918 = vmul.f32 %v730, %v917
    %v919 = vrcp.pop %v853
    %v920 = vmul.f32 %v730, %v919
    %v921 = vrcp.pop %v857
    %v922 = vmul.f32 %v730, %v921
    %v923 = vmul.f32 %v860, 1.442695
    %v924 = vpow.pop %v923
    %v925 = vmul.f32 %v862, 1.442695
    %v926 = vpow.pop %v925
    %v927 = vmul.f32 %v864, 1.442695
    %v928 = vpow.pop %v927
    %v929 = vmul.f32 %v866, 1.442695
    %v930 = vpow.pop %v929
    %v931 = vmul.f32 %v868, 1.442695
    %v932 = vpow.pop %v931
    %v933 = vmul.f32 %v870, 1.442695
    %v934 = vpow.pop %v933
    %v935 = vmul.f32 %v872, 1.442695
    %v936 = vpow.pop %v935
    %v937 = vmul.f32 %v874, 1.442695
    %v938 = vpow.pop %v937
    %v939 = vmul.f32 %v876, 1.442695
    %v940 = vpow.pop %v939
    %v941 = vmul.f32 %v878, 1.442695
    %v942 = vpow.pop %v941
    %v943 = vmul.f32 %v880, 1.442695
    %v944 = vpow.pop %v943
    %v945 = vmul.f32 %v882, 1.442695
    %v946 = vpow.pop %v945
    %v947 = vmul.f32 %v884, 1.442695
    %v948 = vpow.pop %v947
    %v949 = vmul.f32 %v886, 1.442695
    %v950 = vpow.pop %v949
    %v951 = vmul.f32 %v888, 1.442695
    %v952 = vpow.pop %v951
    %v953 = vmul.f32 %v890, 1.442695
    %v954 = vpow.pop %v953
    %v955 = vmul.f32 %v892, 1.442695
    %v956 = vpow.pop %v955
    %v957 = vmul.f32 %v894, 1.442695
    %v958 = vpow.pop %v957
    %v959 = vmul.f32 %v896, 1.442695
    %v960 = vpow.pop %v959
    %v961 = vmul.f32 %v898, 1.442695
    %v962 = vpow.pop %v961
    %v963 = vmul.f32 %v900, 1.442695
    %v964 = vpow.pop %v963
    %v965 = vmul.f32 %v902, 1.442695
    %v966 = vpow.pop %v965
    %v967 = vmul.f32 %v904, 1.442695
    %v968 = vpow.pop %v967
    %v969 = vmul.f32 %v906, 1.442695
    %v970 = vpow.pop %v969
    %v971 = vmul.f32 %v908, 1.442695
    %v972 = vpow.pop %v971
    %v973 = vmul.f32 %v910, 1.442695
    %v974 = vpow.pop %v973
    %v975 = vmul.f32 %v912, 1.442695
    %v976 = vpow.pop %v975
    %v977 = vmul.f32 %v914, 1.442695
    %v978 = vpow.pop %v977
    %v979 = vmul.f32 %v916, 1.442695
    %v980 = vpow.pop %v979
    %v981 = vmul.f32 %v918, 1.442695
    %v982 = vpow.pop %v981
    %v983 = vmul.f32 %v920, 1.442695
    %v984 = vpow.pop %v983
    %v985 = vmul.f32 %v922, 1.442695
    %v986 = vpow.pop %v985
    %988 = vset.pattern.permute.xlu0 0
    %989 = vperm.xlu0 %988, %v698
    %v990 = vpop.permute.xlu0 %989
    %993 = vset.pattern.permute.xlu0 0
    %994 = vperm.xlu0 %993, %v699
    %v995 = vpop.permute.xlu0 %994
    %998 = vset.pattern.permute.xlu0 0
    %999 = vperm.xlu0 %998, %v700
    %v1000 = vpop.permute.xlu0 %999
    %1003 = vset.pattern.permute.xlu0 0
    %1004 = vperm.xlu0 %1003, %v701
    %v1005 = vpop.permute.xlu0 %1004
    %1008 = vset.pattern.permute.xlu0 0
    %1009 = vperm.xlu0 %1008, %v702
    %v1010 = vpop.permute.xlu0 %1009
    %1013 = vset.pattern.permute.xlu0 0
    %1014 = vperm.xlu0 %1013, %v703
    %v1015 = vpop.permute.xlu0 %1014
    %1018 = vset.pattern.permute.xlu0 0
    %1019 = vperm.xlu0 %1018, %v704
    %v1020 = vpop.permute.xlu0 %1019
    %1023 = vset.pattern.permute.xlu0 0
    %1024 = vperm.xlu0 %1023, %v705
    %v1025 = vpop.permute.xlu0 %1024
    %1028 = vset.pattern.permute.xlu0 0
    %1029 = vperm.xlu0 %1028, %v706
    %v1030 = vpop.permute.xlu0 %1029
    %1033 = vset.pattern.permute.xlu0 0
    %1034 = vperm.xlu0 %1033, %v707
    %v1035 = vpop.permute.xlu0 %1034
    %1038 = vset.pattern.permute.xlu0 0
    %1039 = vperm.xlu0 %1038, %v708
    %v1040 = vpop.permute.xlu0 %1039
    %1043 = vset.pattern.permute.xlu0 0
    %1044 = vperm.xlu0 %1043, %v709
    %v1045 = vpop.permute.xlu0 %1044
    %1048 = vset.pattern.permute.xlu0 0
    %1049 = vperm.xlu0 %1048, %v710
    %v1050 = vpop.permute.xlu0 %1049
    %1053 = vset.pattern.permute.xlu0 0
    %1054 = vperm.xlu0 %1053, %v711
    %v1055 = vpop.permute.xlu0 %1054
    %1058 = vset.pattern.permute.xlu0 0
    %1059 = vperm.xlu0 %1058, %v712
    %v1060 = vpop.permute.xlu0 %1059
    %1063 = vset.pattern.permute.xlu0 0
    %1064 = vperm.xlu0 %1063, %v713
    %v1065 = vpop.permute.xlu0 %1064
    %1068 = vset.pattern.permute.xlu0 0
    %1069 = vperm.xlu0 %1068, %v714
    %v1070 = vpop.permute.xlu0 %1069
    %1073 = vset.pattern.permute.xlu0 0
    %1074 = vperm.xlu0 %1073, %v715
    %v1075 = vpop.permute.xlu0 %1074
    %1078 = vset.pattern.permute.xlu0 0
    %1079 = vperm.xlu0 %1078, %v716
    %v1080 = vpop.permute.xlu0 %1079
    %1083 = vset.pattern.permute.xlu0 0
    %1084 = vperm.xlu0 %1083, %v717
    %v1085 = vpop.permute.xlu0 %1084
    %1088 = vset.pattern.permute.xlu0 0
    %1089 = vperm.xlu0 %1088, %v718
    %v1090 = vpop.permute.xlu0 %1089
    %1093 = vset.pattern.permute.xlu0 0
    %1094 = vperm.xlu0 %1093, %v719
    %v1095 = vpop.permute.xlu0 %1094
    %1098 = vset.pattern.permute.xlu0 0
    %1099 = vperm.xlu0 %1098, %v720
    %v1100 = vpop.permute.xlu0 %1099
    %1103 = vset.pattern.permute.xlu0 0
    %1104 = vperm.xlu0 %1103, %v721
    %v1105 = vpop.permute.xlu0 %1104
    %1108 = vset.pattern.permute.xlu0 0
    %1109 = vperm.xlu0 %1108, %v722
    %v1110 = vpop.permute.xlu0 %1109
    %1113 = vset.pattern.permute.xlu0 0
    %1114 = vperm.xlu0 %1113, %v723
    %v1115 = vpop.permute.xlu0 %1114
    %1118 = vset.pattern.permute.xlu0 0
    %1119 = vperm.xlu0 %1118, %v724
    %v1120 = vpop.permute.xlu0 %1119
    %1123 = vset.pattern.permute.xlu0 0
    %1124 = vperm.xlu0 %1123, %v725
    %v1125 = vpop.permute.xlu0 %1124
    %1128 = vset.pattern.permute.xlu0 0
    %1129 = vperm.xlu0 %1128, %v726
    %v1130 = vpop.permute.xlu0 %1129
    %1133 = vset.pattern.permute.xlu0 0
    %1134 = vperm.xlu0 %1133, %v727
    %v1135 = vpop.permute.xlu0 %1134
    %1138 = vset.pattern.permute.xlu0 0
    %1139 = vperm.xlu0 %1138, %v728
    %v1140 = vpop.permute.xlu0 %1139
    %1143 = vset.pattern.permute.xlu0 0
    %1144 = vperm.xlu0 %1143, %v729
    %v1145 = vpop.permute.xlu0 %1144
    %v1147 = vmul.f32 %v990, %v924
    %v1148 = vmul.f32 %v995, %v926
    %v1149 = vmul.f32 %v1000, %v928
    %v1150 = vmul.f32 %v1005, %v930
    %v1151 = vmul.f32 %v1010, %v932
    %v1152 = vmul.f32 %v1015, %v934
    %v1153 = vmul.f32 %v1020, %v936
    %v1154 = vmul.f32 %v1025, %v938
    %v1155 = vmul.f32 %v1030, %v940
    %v1156 = vmul.f32 %v1035, %v942
    %v1157 = vmul.f32 %v1040, %v944
    %v1158 = vmul.f32 %v1045, %v946
    %v1159 = vmul.f32 %v1050, %v948
    %v1160 = vmul.f32 %v1055, %v950
    %v1161 = vmul.f32 %v1060, %v952
    %v1162 = vmul.f32 %v1065, %v954
    %v1163 = vmul.f32 %v1070, %v956
    %v1164 = vmul.f32 %v1075, %v958
    %v1165 = vmul.f32 %v1080, %v960
    %v1166 = vmul.f32 %v1085, %v962
    %v1167 = vmul.f32 %v1090, %v964
    %v1168 = vmul.f32 %v1095, %v966
    %v1169 = vmul.f32 %v1100, %v968
    %v1170 = vmul.f32 %v1105, %v970
    %v1171 = vmul.f32 %v1110, %v972
    %v1172 = vmul.f32 %v1115, %v974
    %v1173 = vmul.f32 %v1120, %v976
    %v1174 = vmul.f32 %v1125, %v978
    %v1175 = vmul.f32 %v1130, %v980
    %v1176 = vmul.f32 %v1135, %v982
    %v1177 = vmul.f32 %v1140, %v984
    %v1178 = vmul.f32 %v1145, %v986
    %1179 = vset.pattern.permute.xlu0 3
    %1180 = vperm.xlu0 %1179, %v118
    %v1181 = vpop.permute.xlu0 %1180
    %1183 = vset.pattern.permute.xlu0 3
    %1184 = vperm.xlu0 %1183, %v119
    %v1185 = vpop.permute.xlu0 %1184
    %1187 = vset.pattern.permute.xlu0 3
    %1188 = vperm.xlu0 %1187, %v120
    %v1189 = vpop.permute.xlu0 %1188
    %1191 = vset.pattern.permute.xlu0 3
    %1192 = vperm.xlu0 %1191, %v121
    %v1193 = vpop.permute.xlu0 %1192
    %1195 = vset.pattern.permute.xlu0 3
    %1196 = vperm.xlu0 %1195, %v122
    %v1197 = vpop.permute.xlu0 %1196
    %1199 = vset.pattern.permute.xlu0 3
    %1200 = vperm.xlu0 %1199, %v123
    %v1201 = vpop.permute.xlu0 %1200
    %1203 = vset.pattern.permute.xlu0 3
    %1204 = vperm.xlu0 %1203, %v124
    %v1205 = vpop.permute.xlu0 %1204
    %1207 = vset.pattern.permute.xlu0 3
    %1208 = vperm.xlu0 %1207, %v125
    %v1209 = vpop.permute.xlu0 %1208
    %1211 = vset.pattern.permute.xlu0 3
    %1212 = vperm.xlu0 %1211, %v126
    %v1213 = vpop.permute.xlu0 %1212
    %1215 = vset.pattern.permute.xlu0 3
    %1216 = vperm.xlu0 %1215, %v127
    %v1217 = vpop.permute.xlu0 %1216
    %1219 = vset.pattern.permute.xlu0 3
    %1220 = vperm.xlu0 %1219, %v128
    %v1221 = vpop.permute.xlu0 %1220
    %1223 = vset.pattern.permute.xlu0 3
    %1224 = vperm.xlu0 %1223, %v129
    %v1225 = vpop.permute.xlu0 %1224
    %1227 = vset.pattern.permute.xlu0 3
    %1228 = vperm.xlu0 %1227, %v130
    %v1229 = vpop.permute.xlu0 %1228
    %1231 = vset.pattern.permute.xlu0 3
    %1232 = vperm.xlu0 %1231, %v131
    %v1233 = vpop.permute.xlu0 %1232
    %1235 = vset.pattern.permute.xlu0 3
    %1236 = vperm.xlu0 %1235, %v132
    %v1237 = vpop.permute.xlu0 %1236
    %1239 = vset.pattern.permute.xlu0 3
    %1240 = vperm.xlu0 %1239, %v133
    %v1241 = vpop.permute.xlu0 %1240
    %1243 = vset.pattern.permute.xlu0 3
    %1244 = vperm.xlu0 %1243, %v134
    %v1245 = vpop.permute.xlu0 %1244
    %1247 = vset.pattern.permute.xlu0 3
    %1248 = vperm.xlu0 %1247, %v135
    %v1249 = vpop.permute.xlu0 %1248
    %1251 = vset.pattern.permute.xlu0 3
    %1252 = vperm.xlu0 %1251, %v136
    %v1253 = vpop.permute.xlu0 %1252
    %1255 = vset.pattern.permute.xlu0 3
    %1256 = vperm.xlu0 %1255, %v137
    %v1257 = vpop.permute.xlu0 %1256
    %1259 = vset.pattern.permute.xlu0 3
    %1260 = vperm.xlu0 %1259, %v138
    %v1261 = vpop.permute.xlu0 %1260
    %1263 = vset.pattern.permute.xlu0 3
    %1264 = vperm.xlu0 %1263, %v139
    %v1265 = vpop.permute.xlu0 %1264
    %1267 = vset.pattern.permute.xlu0 3
    %1268 = vperm.xlu0 %1267, %v140
    %v1269 = vpop.permute.xlu0 %1268
    %1271 = vset.pattern.permute.xlu0 3
    %1272 = vperm.xlu0 %1271, %v141
    %v1273 = vpop.permute.xlu0 %1272
    %1275 = vset.pattern.permute.xlu0 3
    %1276 = vperm.xlu0 %1275, %v142
    %v1277 = vpop.permute.xlu0 %1276
    %1279 = vset.pattern.permute.xlu0 3
    %1280 = vperm.xlu0 %1279, %v143
    %v1281 = vpop.permute.xlu0 %1280
    %1283 = vset.pattern.permute.xlu0 3
    %1284 = vperm.xlu0 %1283, %v144
    %v1285 = vpop.permute.xlu0 %1284
    %1287 = vset.pattern.permute.xlu0 3
    %1288 = vperm.xlu0 %1287, %v145
    %v1289 = vpop.permute.xlu0 %1288
    %1291 = vset.pattern.permute.xlu0 3
    %1292 = vperm.xlu0 %1291, %v146
    %v1293 = vpop.permute.xlu0 %1292
    %1295 = vset.pattern.permute.xlu0 3
    %1296 = vperm.xlu0 %1295, %v147
    %v1297 = vpop.permute.xlu0 %1296
    %1299 = vset.pattern.permute.xlu0 3
    %1300 = vperm.xlu0 %1299, %v148
    %v1301 = vpop.permute.xlu0 %1300
    %1303 = vset.pattern.permute.xlu0 3
    %1304 = vperm.xlu0 %1303, %v149
    %v1305 = vpop.permute.xlu0 %1304
    %v1307 = vadd.f32 %v1181, %v1147
    %v1308 = vadd.f32 %v1185, %v1148
    %v1309 = vadd.f32 %v1189, %v1149
    %v1310 = vadd.f32 %v1193, %v1150
    %v1311 = vadd.f32 %v1197, %v1151
    %v1312 = vadd.f32 %v1201, %v1152
    %v1313 = vadd.f32 %v1205, %v1153
    %v1314 = vadd.f32 %v1209, %v1154
    %v1315 = vadd.f32 %v1213, %v1155
    %v1316 = vadd.f32 %v1217, %v1156
    %v1317 = vadd.f32 %v1221, %v1157
    %v1318 = vadd.f32 %v1225, %v1158
    %v1319 = vadd.f32 %v1229, %v1159
    %v1320 = vadd.f32 %v1233, %v1160
    %v1321 = vadd.f32 %v1237, %v1161
    %v1322 = vadd.f32 %v1241, %v1162
    %v1323 = vadd.f32 %v1245, %v1163
    %v1324 = vadd.f32 %v1249, %v1164
    %v1325 = vadd.f32 %v1253, %v1165
    %v1326 = vadd.f32 %v1257, %v1166
    %v1327 = vadd.f32 %v1261, %v1167
    %v1328 = vadd.f32 %v1265, %v1168
    %v1329 = vadd.f32 %v1269, %v1169
    %v1330 = vadd.f32 %v1273, %v1170
    %v1331 = vadd.f32 %v1277, %v1171
    %v1332 = vadd.f32 %v1281, %v1172
    %v1333 = vadd.f32 %v1285, %v1173
    %v1334 = vadd.f32 %v1289, %v1174
    %v1335 = vadd.f32 %v1293, %v1175
    %v1336 = vadd.f32 %v1297, %v1176
    %v1337 = vadd.f32 %v1301, %v1177
    %v1338 = vadd.f32 %v1305, %v1178
    %v1339 = vld [vmem:[%s1] sm:$0x1]
    %v1340 = vld [vmem:[%s2] sm:$0x1]
    %v1342 = vlaneseq
    %v1343 = vshrl.u32 %v1342, 7
    %v1344 = vsub.s32 0, %v1343
    %v1345 = vrot.slane %v1339, %v1344
    %v1347 = vsub.f32 %v118, %v1345
    %v1348 = vsub.f32 %v119, %v1345
    %v1349 = vsub.f32 %v120, %v1345
    %v1350 = vsub.f32 %v121, %v1345
    %v1351 = vsub.f32 %v122, %v1345
    %v1352 = vsub.f32 %v123, %v1345
    %v1353 = vsub.f32 %v124, %v1345
    %v1354 = vsub.f32 %v125, %v1345
    %v1355 = vsub.f32 %v126, %v1345
    %v1356 = vsub.f32 %v127, %v1345
    %v1357 = vsub.f32 %v128, %v1345
    %v1358 = vsub.f32 %v129, %v1345
    %v1359 = vsub.f32 %v130, %v1345
    %v1360 = vsub.f32 %v131, %v1345
    %v1361 = vsub.f32 %v132, %v1345
    %v1362 = vsub.f32 %v133, %v1345
    %v1363 = vsub.f32 %v134, %v1345
    %v1364 = vsub.f32 %v135, %v1345
    %v1365 = vsub.f32 %v136, %v1345
    %v1366 = vsub.f32 %v137, %v1345
    %v1367 = vsub.f32 %v138, %v1345
    %v1368 = vsub.f32 %v139, %v1345
    %v1369 = vsub.f32 %v140, %v1345
    %v1370 = vsub.f32 %v141, %v1345
    %v1371 = vsub.f32 %v142, %v1345
    %v1372 = vsub.f32 %v143, %v1345
    %v1373 = vsub.f32 %v144, %v1345
    %v1374 = vsub.f32 %v145, %v1345
    %v1375 = vsub.f32 %v146, %v1345
    %v1376 = vsub.f32 %v147, %v1345
    %v1377 = vsub.f32 %v148, %v1345
    %v1378 = vsub.f32 %v149, %v1345
    %v1380 = vlaneseq
    %v1381 = vshrl.u32 %v1380, 7
    %v1382 = vsub.s32 0, %v1381
    %v1383 = vrot.slane %v1340, %v1382
    %v1385 = vrcp.pop %v1383
    %v1386 = vmul.f32 %v1347, %v1385
    %v1387 = vmul.f32 %v1348, %v1385
    %v1388 = vmul.f32 %v1349, %v1385
    %v1389 = vmul.f32 %v1350, %v1385
    %v1390 = vmul.f32 %v1351, %v1385
    %v1391 = vmul.f32 %v1352, %v1385
    %v1392 = vmul.f32 %v1353, %v1385
    %v1393 = vmul.f32 %v1354, %v1385
    %v1394 = vmul.f32 %v1355, %v1385
    %v1395 = vmul.f32 %v1356, %v1385
    %v1396 = vmul.f32 %v1357, %v1385
    %v1397 = vmul.f32 %v1358, %v1385
    %v1398 = vmul.f32 %v1359, %v1385
    %v1399 = vmul.f32 %v1360, %v1385
    %v1400 = vmul.f32 %v1361, %v1385
    %v1401 = vmul.f32 %v1362, %v1385
    %v1402 = vmul.f32 %v1363, %v1385
    %v1403 = vmul.f32 %v1364, %v1385
    %v1404 = vmul.f32 %v1365, %v1385
    %v1405 = vmul.f32 %v1366, %v1385
    %v1406 = vmul.f32 %v1367, %v1385
    %v1407 = vmul.f32 %v1368, %v1385
    %v1408 = vmul.f32 %v1369, %v1385
    %v1409 = vmul.f32 %v1370, %v1385
    %v1410 = vmul.f32 %v1371, %v1385
    %v1411 = vmul.f32 %v1372, %v1385
    %v1412 = vmul.f32 %v1373, %v1385
    %v1413 = vmul.f32 %v1374, %v1385
    %v1414 = vmul.f32 %v1375, %v1385
    %v1415 = vmul.f32 %v1376, %v1385
    %v1416 = vmul.f32 %v1377, %v1385
    %v1417 = vmul.f32 %v1378, %v1385
    %1418 = vset.pattern.permute.xlu0 1
    %1419 = vperm.xlu0 %1418, %v1345
    %v1420 = vpop.permute.xlu0 %1419
    %v1422 = vsub.f32 %v538, %v1420
    %v1423 = vsub.f32 %v539, %v1420
    %v1424 = vsub.f32 %v540, %v1420
    %v1425 = vsub.f32 %v541, %v1420
    %v1426 = vsub.f32 %v542, %v1420
    %v1427 = vsub.f32 %v543, %v1420
    %v1428 = vsub.f32 %v544, %v1420
    %v1429 = vsub.f32 %v545, %v1420
    %v1430 = vsub.f32 %v546, %v1420
    %v1431 = vsub.f32 %v547, %v1420
    %v1432 = vsub.f32 %v548, %v1420
    %v1433 = vsub.f32 %v549, %v1420
    %v1434 = vsub.f32 %v550, %v1420
    %v1435 = vsub.f32 %v551, %v1420
    %v1436 = vsub.f32 %v552, %v1420
    %v1437 = vsub.f32 %v553, %v1420
    %v1438 = vsub.f32 %v554, %v1420
    %v1439 = vsub.f32 %v555, %v1420
    %v1440 = vsub.f32 %v556, %v1420
    %v1441 = vsub.f32 %v557, %v1420
    %v1442 = vsub.f32 %v558, %v1420
    %v1443 = vsub.f32 %v559, %v1420
    %v1444 = vsub.f32 %v560, %v1420
    %v1445 = vsub.f32 %v561, %v1420
    %v1446 = vsub.f32 %v562, %v1420
    %v1447 = vsub.f32 %v563, %v1420
    %v1448 = vsub.f32 %v564, %v1420
    %v1449 = vsub.f32 %v565, %v1420
    %v1450 = vsub.f32 %v566, %v1420
    %v1451 = vsub.f32 %v567, %v1420
    %v1452 = vsub.f32 %v568, %v1420
    %v1453 = vsub.f32 %v569, %v1420
    %1454 = vset.pattern.permute.xlu0 1
    %1455 = vperm.xlu0 %1454, %v1383
    %v1456 = vpop.permute.xlu0 %1455
    %v1458 = vrcp.pop %v1456
    %v1459 = vmul.f32 %v1422, %v1458
    %v1460 = vmul.f32 %v1423, %v1458
    %v1461 = vmul.f32 %v1424, %v1458
    %v1462 = vmul.f32 %v1425, %v1458
    %v1463 = vmul.f32 %v1426, %v1458
    %v1464 = vmul.f32 %v1427, %v1458
    %v1465 = vmul.f32 %v1428, %v1458
    %v1466 = vmul.f32 %v1429, %v1458
    %v1467 = vmul.f32 %v1430, %v1458
    %v1468 = vmul.f32 %v1431, %v1458
    %v1469 = vmul.f32 %v1432, %v1458
    %v1470 = vmul.f32 %v1433, %v1458
    %v1471 = vmul.f32 %v1434, %v1458
    %v1472 = vmul.f32 %v1435, %v1458
    %v1473 = vmul.f32 %v1436, %v1458
    %v1474 = vmul.f32 %v1437, %v1458
    %v1475 = vmul.f32 %v1438, %v1458
    %v1476 = vmul.f32 %v1439, %v1458
    %v1477 = vmul.f32 %v1440, %v1458
    %v1478 = vmul.f32 %v1441, %v1458
    %v1479 = vmul.f32 %v1442, %v1458
    %v1480 = vmul.f32 %v1443, %v1458
    %v1481 = vmul.f32 %v1444, %v1458
    %v1482 = vmul.f32 %v1445, %v1458
    %v1483 = vmul.f32 %v1446, %v1458
    %v1484 = vmul.f32 %v1447, %v1458
    %v1485 = vmul.f32 %v1448, %v1458
    %v1486 = vmul.f32 %v1449, %v1458
    %v1487 = vmul.f32 %v1450, %v1458
    %v1488 = vmul.f32 %v1451, %v1458
    %v1489 = vmul.f32 %v1452, %v1458
    %v1490 = vmul.f32 %v1453, %v1458
    %v1491 = vsub.f32 %v570, %v1420
    %v1492 = vsub.f32 %v571, %v1420
    %v1493 = vsub.f32 %v572, %v1420
    %v1494 = vsub.f32 %v573, %v1420
    %v1495 = vsub.f32 %v574, %v1420
    %v1496 = vsub.f32 %v575, %v1420
    %v1497 = vsub.f32 %v576, %v1420
    %v1498 = vsub.f32 %v577, %v1420
    %v1499 = vsub.f32 %v578, %v1420
    %v1500 = vsub.f32 %v579, %v1420
    %v1501 = vsub.f32 %v580, %v1420
    %v1502 = vsub.f32 %v581, %v1420
    %v1503 = vsub.f32 %v582, %v1420
    %v1504 = vsub.f32 %v583, %v1420
    %v1505 = vsub.f32 %v584, %v1420
    %v1506 = vsub.f32 %v585, %v1420
    %v1507 = vsub.f32 %v586, %v1420
    %v1508 = vsub.f32 %v587, %v1420
    %v1509 = vsub.f32 %v588, %v1420
    %v1510 = vsub.f32 %v589, %v1420
    %v1511 = vsub.f32 %v590, %v1420
    %v1512 = vsub.f32 %v591, %v1420
    %v1513 = vsub.f32 %v592, %v1420
    %v1514 = vsub.f32 %v593, %v1420
    %v1515 = vsub.f32 %v594, %v1420
    %v1516 = vsub.f32 %v595, %v1420
    %v1517 = vsub.f32 %v596, %v1420
    %v1518 = vsub.f32 %v597, %v1420
    %v1519 = vsub.f32 %v598, %v1420
    %v1520 = vsub.f32 %v599, %v1420
    %v1521 = vsub.f32 %v600, %v1420
    %v1522 = vsub.f32 %v601, %v1420
    %v1523 = vmul.f32 %v1491, %v1458
    %v1524 = vmul.f32 %v1492, %v1458
    %v1525 = vmul.f32 %v1493, %v1458
    %v1526 = vmul.f32 %v1494, %v1458
    %v1527 = vmul.f32 %v1495, %v1458
    %v1528 = vmul.f32 %v1496, %v1458
    %v1529 = vmul.f32 %v1497, %v1458
    %v1530 = vmul.f32 %v1498, %v1458
    %v1531 = vmul.f32 %v1499, %v1458
    %v1532 = vmul.f32 %v1500, %v1458
    %v1533 = vmul.f32 %v1501, %v1458
    %v1534 = vmul.f32 %v1502, %v1458
    %v1535 = vmul.f32 %v1503, %v1458
    %v1536 = vmul.f32 %v1504, %v1458
    %v1537 = vmul.f32 %v1505, %v1458
    %v1538 = vmul.f32 %v1506, %v1458
    %v1539 = vmul.f32 %v1507, %v1458
    %v1540 = vmul.f32 %v1508, %v1458
    %v1541 = vmul.f32 %v1509, %v1458
    %v1542 = vmul.f32 %v1510, %v1458
    %v1543 = vmul.f32 %v1511, %v1458
    %v1544 = vmul.f32 %v1512, %v1458
    %v1545 = vmul.f32 %v1513, %v1458
    %v1546 = vmul.f32 %v1514, %v1458
    %v1547 = vmul.f32 %v1515, %v1458
    %v1548 = vmul.f32 %v1516, %v1458
    %v1549 = vmul.f32 %v1517, %v1458
    %v1550 = vmul.f32 %v1518, %v1458
    %v1551 = vmul.f32 %v1519, %v1458
    %v1552 = vmul.f32 %v1520, %v1458
    %v1553 = vmul.f32 %v1521, %v1458
    %v1554 = vmul.f32 %v1522, %v1458
    %1555 = vset.pattern.permute.xlu0 3
    %1556 = vperm.xlu0 %1555, %v1345
    %v1557 = vpop.permute.xlu0 %1556
    %v1559 = vsub.f32 %v1307, %v1557
    %v1560 = vsub.f32 %v1308, %v1557
    %v1561 = vsub.f32 %v1309, %v1557
    %v1562 = vsub.f32 %v1310, %v1557
    %v1563 = vsub.f32 %v1311, %v1557
    %v1564 = vsub.f32 %v1312, %v1557
    %v1565 = vsub.f32 %v1313, %v1557
    %v1566 = vsub.f32 %v1314, %v1557
    %v1567 = vsub.f32 %v1315, %v1557
    %v1568 = vsub.f32 %v1316, %v1557
    %v1569 = vsub.f32 %v1317, %v1557
    %v1570 = vsub.f32 %v1318, %v1557
    %v1571 = vsub.f32 %v1319, %v1557
    %v1572 = vsub.f32 %v1320, %v1557
    %v1573 = vsub.f32 %v1321, %v1557
    %v1574 = vsub.f32 %v1322, %v1557
    %v1575 = vsub.f32 %v1323, %v1557
    %v1576 = vsub.f32 %v1324, %v1557
    %v1577 = vsub.f32 %v1325, %v1557
    %v1578 = vsub.f32 %v1326, %v1557
    %v1579 = vsub.f32 %v1327, %v1557
    %v1580 = vsub.f32 %v1328, %v1557
    %v1581 = vsub.f32 %v1329, %v1557
    %v1582 = vsub.f32 %v1330, %v1557
    %v1583 = vsub.f32 %v1331, %v1557
    %v1584 = vsub.f32 %v1332, %v1557
    %v1585 = vsub.f32 %v1333, %v1557
    %v1586 = vsub.f32 %v1334, %v1557
    %v1587 = vsub.f32 %v1335, %v1557
    %v1588 = vsub.f32 %v1336, %v1557
    %v1589 = vsub.f32 %v1337, %v1557
    %v1590 = vsub.f32 %v1338, %v1557
    %1591 = vset.pattern.permute.xlu0 3
    %1592 = vperm.xlu0 %1591, %v1383
    %v1593 = vpop.permute.xlu0 %1592
    %v1595 = vrcp.pop %v1593
    %v1596 = vmul.f32 %v1559, %v1595
    %v1597 = vmul.f32 %v1560, %v1595
    %v1598 = vmul.f32 %v1561, %v1595
    %v1599 = vmul.f32 %v1562, %v1595
    %v1600 = vmul.f32 %v1563, %v1595
    %v1601 = vmul.f32 %v1564, %v1595
    %v1602 = vmul.f32 %v1565, %v1595
    %v1603 = vmul.f32 %v1566, %v1595
    %v1604 = vmul.f32 %v1567, %v1595
    %v1605 = vmul.f32 %v1568, %v1595
    %v1606 = vmul.f32 %v1569, %v1595
    %v1607 = vmul.f32 %v1570, %v1595
    %v1608 = vmul.f32 %v1571, %v1595
    %v1609 = vmul.f32 %v1572, %v1595
    %v1610 = vmul.f32 %v1573, %v1595
    %v1611 = vmul.f32 %v1574, %v1595
    %v1612 = vmul.f32 %v1575, %v1595
    %v1613 = vmul.f32 %v1576, %v1595
    %v1614 = vmul.f32 %v1577, %v1595
    %v1615 = vmul.f32 %v1578, %v1595
    %v1616 = vmul.f32 %v1579, %v1595
    %v1617 = vmul.f32 %v1580, %v1595
    %v1618 = vmul.f32 %v1581, %v1595
    %v1619 = vmul.f32 %v1582, %v1595
    %v1620 = vmul.f32 %v1583, %v1595
    %v1621 = vmul.f32 %v1584, %v1595
    %v1622 = vmul.f32 %v1585, %v1595
    %v1623 = vmul.f32 %v1586, %v1595
    %v1624 = vmul.f32 %v1587, %v1595
    %v1625 = vmul.f32 %v1588, %v1595
    %v1626 = vmul.f32 %v1589, %v1595
    %v1627 = vmul.f32 %v1590, %v1595
    %v1628 = vld [vmem:[#allocation2] sm:$0x3f]
    %v1629 = vld [vmem:[%s4] sm:$0xff]
    %v1630 = vld [vmem:[%s4 + $0x8] sm:$0xf]
    %vm1631 = vcmask 97280
    %v1633 = vsel %vm1631, %v1459, 0
    %v1636 = vsel %vm1631, %v1460, 0
    %v1639 = vsel %vm1631, %v1461, 0
    %v1642 = vsel %vm1631, %v1462, 0
    %v1645 = vsel %vm1631, %v1463, 0
    %v1648 = vsel %vm1631, %v1464, 0
    %v1651 = vsel %vm1631, %v1465, 0
    %v1654 = vsel %vm1631, %v1466, 0
    %v1657 = vsel %vm1631, %v1467, 0
    %v1660 = vsel %vm1631, %v1468, 0
    %v1663 = vsel %vm1631, %v1469, 0
    %v1666 = vsel %vm1631, %v1470, 0
    %v1669 = vsel %vm1631, %v1471, 0
    %v1672 = vsel %vm1631, %v1472, 0
    %v1675 = vsel %vm1631, %v1473, 0
    %v1678 = vsel %vm1631, %v1474, 0
    %v1681 = vsel %vm1631, %v1475, 0
    %v1684 = vsel %vm1631, %v1476, 0
    %v1687 = vsel %vm1631, %v1477, 0
    %v1690 = vsel %vm1631, %v1478, 0
    %v1693 = vsel %vm1631, %v1479, 0
    %v1696 = vsel %vm1631, %v1480, 0
    %v1699 = vsel %vm1631, %v1481, 0
    %v1702 = vsel %vm1631, %v1482, 0
    %v1705 = vsel %vm1631, %v1483, 0
    %v1708 = vsel %vm1631, %v1484, 0
    %v1711 = vsel %vm1631, %v1485, 0
    %v1714 = vsel %vm1631, %v1486, 0
    %v1717 = vsel %vm1631, %v1487, 0
    %v1720 = vsel %vm1631, %v1488, 0
    %v1723 = vsel %vm1631, %v1489, 0
    %v1726 = vsel %vm1631, %v1490, 0
    %vm1728 = vcmask 1043456
    %v1730 = vsel %vm1728, %v1630, 0
    %1732 = vmatprep.subr.mxu0 0.0
    %1733 = vmatpush1.msra.mxu0 %v1629
    %1734 = vmatprep.subr.mxu0 0.0
    %1735 = vmatpush1.msra.mxu0 %v1730
    %1736 = vmatprep.subr.mxu0 0.0
    %1737 = vmatpush1.msra.mxu0 0.0
    %1738 = vmatprep.subr.mxu0 0.0
    %1739 = vmatpush1.msra.mxu0 0.0
    %1740 = vmatprep.subr.mxu0 0.0
    %1741 = vmatpush1.msra.mxu0 0.0
    %1742 = vmatprep.subr.mxu0 0.0
    %1743 = vmatpush1.msra.mxu0 0.0
    %1744 = vmatprep.subr.mxu0 0.0
    %1745 = vmatpush1.msra.mxu0 0.0
    %1746 = vmatprep.subr.mxu0 0.0
    %1747 = vmatpush1.msra.mxu0 0.0
    %1748 = vmatprep.subr.mxu0 0.0
    %1749 = vmatpush1.msra.mxu0 0.0
    %1750 = vmatprep.subr.mxu0 0.0
    %1751 = vmatpush1.msra.mxu0 0.0
    %1752 = vmatprep.subr.mxu0 0.0
    %1753 = vmatpush1.msra.mxu0 0.0
    %1754 = vmatprep.subr.mxu0 0.0
    %1755 = vmatpush1.msra.mxu0 0.0
    %1756 = vmatprep.subr.mxu0 0.0
    %1757 = vmatpush1.msra.mxu0 0.0
    %1758 = vmatprep.subr.mxu0 0.0
    %1759 = vmatpush1.msra.mxu0 0.0
    %1760 = vmatprep.subr.mxu0 0.0
    %1761 = vmatpush1.msra.mxu0 0.0
    %1762 = vmatprep.subr.mxu0 0.0
    %1763 = vmatpush1.msra.mxu0 0.0
    %1764 = vmatprep.subr.mxu0 0.0
    %1765 = vmatpush1.msra.mxu0 0.0
    %1766 = vmatprep.subr.mxu0 0.0
    %1767 = vmatpush1.msra.mxu0 0.0
    %1768 = vmatprep.subr.mxu0 0.0
    %1769 = vmatpush1.msra.mxu0 0.0
    %1770 = vmatprep.subr.mxu0 0.0
    %1771 = vmatpush1.msra.mxu0 0.0
    %1772 = vmatprep.subr.mxu0 0.0
    %1773 = vmatpush1.msra.mxu0 0.0
    %1774 = vmatprep.subr.mxu0 0.0
    %1775 = vmatpush1.msra.mxu0 0.0
    %1776 = vmatprep.subr.mxu0 0.0
    %1777 = vmatpush1.msra.mxu0 0.0
    %1778 = vmatprep.subr.mxu0 0.0
    %1779 = vmatpush1.msra.mxu0 0.0
    %1780 = vmatprep.subr.mxu0 0.0
    %1781 = vmatpush1.msra.mxu0 0.0
    %1782 = vmatprep.subr.mxu0 0.0
    %1783 = vmatpush1.msra.mxu0 0.0
    %1784 = vmatprep.subr.mxu0 0.0
    %1785 = vmatpush1.msra.mxu0 0.0
    %1786 = vmatprep.subr.mxu0 0.0
    %1787 = vmatpush1.msra.mxu0 0.0
    %1788 = vmatprep.subr.mxu0 0.0
    %1789 = vmatpush1.msra.mxu0 0.0
    %1790 = vmatprep.subr.mxu0 0.0
    %1791 = vmatpush1.msra.mxu0 0.0
    %1792 = vmatprep.subr.mxu0 0.0
    %1793 = vmatpush1.msra.mxu0 0.0
    %1794 = vmatprep.subr.mxu0 0.0
    %1795 = vmatpush1.msra.mxu0 0.0
    %1796 = vmatprep.mubr.f32.mxu0 0.0
    %1797 = vmatmul.mubr.f32.gmra.mrb[0].mxu0 %v1633
    %v1798 = vpop.f32.mrb[0].mxu0
    %v1799 = vadd.f32 0.0, %v1798
    %v1800 = vpop.f32.mrb[0].mxu0
    %1801 = vmatprep.mubr.f32.mxu0 0.0
    %1802 = vmatmul.mubr.f32.gmra.mrb[0].mxu0 %v1636
    %v1803 = vpop.f32.mrb[0].mxu0
    %v1804 = vadd.f32 0.0, %v1803
    %v1805 = vpop.f32.mrb[0].mxu0
    %1806 = vmatprep.mubr.f32.mxu0 0.0
    %1807 = vmatmul.mubr.f32.gmra.mrb[0].mxu0 %v1639
    %v1808 = vpop.f32.mrb[0].mxu0
    %v1809 = vadd.f32 0.0, %v1808
    %v1810 = vpop.f32.mrb[0].mxu0
    %1811 = vmatprep.mubr.f32.mxu0 0.0
    %1812 = vmatmul.mubr.f32.gmra.mrb[0].mxu0 %v1642
    %v1813 = vpop.f32.mrb[0].mxu0
    %v1814 = vadd.f32 0.0, %v1813
    %v1815 = vpop.f32.mrb[0].mxu0
    %1816 = vmatprep.mubr.f32.mxu0 0.0
    %1817 = vmatmul.mubr.f32.gmra.mrb[0].mxu0 %v1645
    %v1818 = vpop.f32.mrb[0].mxu0
    %v1819 = vadd.f32 0.0, %v1818
    %v1820 = vpop.f32.mrb[0].mxu0
    %1821 = vmatprep.mubr.f32.mxu0 0.0
    %1822 = vmatmul.mubr.f32.gmra.mrb[0].mxu0 %v1648
    %v1823 = vpop.f32.mrb[0].mxu0
    %v1824 = vadd.f32 0.0, %v1823
    %v1825 = vpop.f32.mrb[0].mxu0
    %1826 = vmatprep.mubr.f32.mxu0 0.0
    %1827 = vmatmul.mubr.f32.gmra.mrb[0].mxu0 %v1651
    %v1828 = vpop.f32.mrb[0].mxu0
    %v1829 = vadd.f32 0.0, %v1828
    %v1830 = vpop.f32.mrb[0].mxu0
    %1831 = vmatprep.mubr.f32.mxu0 0.0
    %1832 = vmatmul.mubr.f32.gmra.mrb[0].mxu0 %v1654
    %v1833 = vpop.f32.mrb[0].mxu0
    %v1834 = vadd.f32 0.0, %v1833
    %v1835 = vpop.f32.mrb[0].mxu0
    %1836 = vmatprep.mubr.f32.mxu0 0.0
    %1837 = vmatmul.mubr.f32.gmra.mrb[0].mxu0 %v1657
    %v1838 = vpop.f32.mrb[0].mxu0
    %v1839 = vadd.f32 0.0, %v1838
    %v1840 = vpop.f32.mrb[0].mxu0
    %1841 = vmatprep.mubr.f32.mxu0 0.0
    %1842 = vmatmul.mubr.f32.gmra.mrb[0].mxu0 %v1660
    %v1843 = vpop.f32.mrb[0].mxu0
    %v1844 = vadd.f32 0.0, %v1843
    %v1845 = vpop.f32.mrb[0].mxu0
    %1846 = vmatprep.mubr.f32.mxu0 0.0
    %1847 = vmatmul.mubr.f32.gmra.mrb[0].mxu0 %v1663
    %v1848 = vpop.f32.mrb[0].mxu0
    %v1849 = vadd.f32 0.0, %v1848
    %v1850 = vpop.f32.mrb[0].mxu0
    %1851 = vmatprep.mubr.f32.mxu0 0.0
    %1852 = vmatmul.mubr.f32.gmra.mrb[0].mxu0 %v1666
    %v1853 = vpop.f32.mrb[0].mxu0
    %v1854 = vadd.f32 0.0, %v1853
    %v1855 = vpop.f32.mrb[0].mxu0
    %1856 = vmatprep.mubr.f32.mxu0 0.0
    %1857 = vmatmul.mubr.f32.gmra.mrb[0].mxu0 %v1669
    %v1858 = vpop.f32.mrb[0].mxu0
    %v1859 = vadd.f32 0.0, %v1858
    %v1860 = vpop.f32.mrb[0].mxu0
    %1861 = vmatprep.mubr.f32.mxu0 0.0
    %1862 = vmatmul.mubr.f32.gmra.mrb[0].mxu0 %v1672
    %v1863 = vpop.f32.mrb[0].mxu0
    %v1864 = vadd.f32 0.0, %v1863
    %v1865 = vpop.f32.mrb[0].mxu0
    %1866 = vmatprep.mubr.f32.mxu0 0.0
    %1867 = vmatmul.mubr.f32.gmra.mrb[0].mxu0 %v1675
    %v1868 = vpop.f32.mrb[0].mxu0
    %v1869 = vadd.f32 0.0, %v1868
    %v1870 = vpop.f32.mrb[0].mxu0
    %1871 = vmatprep.mubr.f32.mxu0 0.0
    %1872 = vmatmul.mubr.f32.gmra.mrb[0].mxu0 %v1678
    %v1873 = vpop.f32.mrb[0].mxu0
    %v1874 = vadd.f32 0.0, %v1873
    %v1875 = vpop.f32.mrb[0].mxu0
    %1876 = vmatprep.mubr.f32.mxu0 0.0
    %1877 = vmatmul.mubr.f32.gmra.mrb[0].mxu0 %v1681
    %v1878 = vpop.f32.mrb[0].mxu0
    %v1879 = vadd.f32 0.0, %v1878
    %v1880 = vpop.f32.mrb[0].mxu0
    %1881 = vmatprep.mubr.f32.mxu0 0.0
    %1882 = vmatmul.mubr.f32.gmra.mrb[0].mxu0 %v1684
    %v1883 = vpop.f32.mrb[0].mxu0
    %v1884 = vadd.f32 0.0, %v1883
    %v1885 = vpop.f32.mrb[0].mxu0
    %1886 = vmatprep.mubr.f32.mxu0 0.0
    %1887 = vmatmul.mubr.f32.gmra.mrb[0].mxu0 %v1687
    %v1888 = vpop.f32.mrb[0].mxu0
    %v1889 = vadd.f32 0.0, %v1888
    %v1890 = vpop.f32.mrb[0].mxu0
    %1891 = vmatprep.mubr.f32.mxu0 0.0
    %1892 = vmatmul.mubr.f32.gmra.mrb[0].mxu0 %v1690
    %v1893 = vpop.f32.mrb[0].mxu0
    %v1894 = vadd.f32 0.0, %v1893
    %v1895 = vpop.f32.mrb[0].mxu0
    %1896 = vmatprep.mubr.f32.mxu0 0.0
    %1897 = vmatmul.mubr.f32.gmra.mrb[0].mxu0 %v1693
    %v1898 = vpop.f32.mrb[0].mxu0
    %v1899 = vadd.f32 0.0, %v1898
    %v1900 = vpop.f32.mrb[0].mxu0
    %1901 = vmatprep.mubr.f32.mxu0 0.0
    %1902 = vmatmul.mubr.f32.gmra.mrb[0].mxu0 %v1696
    %v1903 = vpop.f32.mrb[0].mxu0
    %v1904 = vadd.f32 0.0, %v1903
    %v1905 = vpop.f32.mrb[0].mxu0
    %1906 = vmatprep.mubr.f32.mxu0 0.0
    %1907 = vmatmul.mubr.f32.gmra.mrb[0].mxu0 %v1699
    %v1908 = vpop.f32.mrb[0].mxu0
    %v1909 = vadd.f32 0.0, %v1908
    %v1910 = vpop.f32.mrb[0].mxu0
    %1911 = vmatprep.mubr.f32.mxu0 0.0
    %1912 = vmatmul.mubr.f32.gmra.mrb[0].mxu0 %v1702
    %v1913 = vpop.f32.mrb[0].mxu0
    %v1914 = vadd.f32 0.0, %v1913
    %v1915 = vpop.f32.mrb[0].mxu0
    %1916 = vmatprep.mubr.f32.mxu0 0.0
    %1917 = vmatmul.mubr.f32.gmra.mrb[0].mxu0 %v1705
    %v1918 = vpop.f32.mrb[0].mxu0
    %v1919 = vadd.f32 0.0, %v1918
    %v1920 = vpop.f32.mrb[0].mxu0
    %1921 = vmatprep.mubr.f32.mxu0 0.0
    %1922 = vmatmul.mubr.f32.gmra.mrb[0].mxu0 %v1708
    %v1923 = vpop.f32.mrb[0].mxu0
    %v1924 = vadd.f32 0.0, %v1923
    %v1925 = vpop.f32.mrb[0].mxu0
    %1926 = vmatprep.mubr.f32.mxu0 0.0
    %1927 = vmatmul.mubr.f32.gmra.mrb[0].mxu0 %v1711
    %v1928 = vpop.f32.mrb[0].mxu0
    %v1929 = vadd.f32 0.0, %v1928
    %v1930 = vpop.f32.mrb[0].mxu0
    %1931 = vmatprep.mubr.f32.mxu0 0.0
    %1932 = vmatmul.mubr.f32.gmra.mrb[0].mxu0 %v1714
    %v1933 = vpop.f32.mrb[0].mxu0
    %v1934 = vadd.f32 0.0, %v1933
    %v1935 = vpop.f32.mrb[0].mxu0
    %1936 = vmatprep.mubr.f32.mxu0 0.0
    %1937 = vmatmul.mubr.f32.gmra.mrb[0].mxu0 %v1717
    %v1938 = vpop.f32.mrb[0].mxu0
    %v1939 = vadd.f32 0.0, %v1938
    %v1940 = vpop.f32.mrb[0].mxu0
    %1941 = vmatprep.mubr.f32.mxu0 0.0
    %1942 = vmatmul.mubr.f32.gmra.mrb[0].mxu0 %v1720
    %v1943 = vpop.f32.mrb[0].mxu0
    %v1944 = vadd.f32 0.0, %v1943
    %v1945 = vpop.f32.mrb[0].mxu0
    %1946 = vmatprep.mubr.f32.mxu0 0.0
    %1947 = vmatmul.mubr.f32.gmra.mrb[0].mxu0 %v1723
    %v1948 = vpop.f32.mrb[0].mxu0
    %v1949 = vadd.f32 0.0, %v1948
    %v1950 = vpop.f32.mrb[0].mxu0
    %1951 = vmatprep.mubr.f32.mxu0 0.0
    %1952 = vmatmul.mubr.f32.gmra.mrb[0].mxu0 %v1726
    %v1953 = vpop.f32.mrb[0].mxu0
    %v1954 = vadd.f32 0.0, %v1953
    %v1955 = vpop.f32.mrb[0].mxu0
    %1956 = vdwg.mxu0
    %vm1957 = vcmask 48128
    %v1959 = vsel %vm1957, %v1386, 0
    %v1962 = vsel %vm1957, %v1387, 0
    %v1965 = vsel %vm1957, %v1388, 0
    %v1968 = vsel %vm1957, %v1389, 0
    %v1971 = vsel %vm1957, %v1390, 0
    %v1974 = vsel %vm1957, %v1391, 0
    %v1977 = vsel %vm1957, %v1392, 0
    %v1980 = vsel %vm1957, %v1393, 0
    %v1983 = vsel %vm1957, %v1394, 0
    %v1986 = vsel %vm1957, %v1395, 0
    %v1989 = vsel %vm1957, %v1396, 0
    %v1992 = vsel %vm1957, %v1397, 0
    %v1995 = vsel %vm1957, %v1398, 0
    %v1998 = vsel %vm1957, %v1399, 0
    %v2001 = vsel %vm1957, %v1400, 0
    %v2004 = vsel %vm1957, %v1401, 0
    %v2007 = vsel %vm1957, %v1402, 0
    %v2010 = vsel %vm1957, %v1403, 0
    %v2013 = vsel %vm1957, %v1404, 0
    %v2016 = vsel %vm1957, %v1405, 0
    %v2019 = vsel %vm1957, %v1406, 0
    %v2022 = vsel %vm1957, %v1407, 0
    %v2025 = vsel %vm1957, %v1408, 0
    %v2028 = vsel %vm1957, %v1409, 0
    %v2031 = vsel %vm1957, %v1410, 0
    %v2034 = vsel %vm1957, %v1411, 0
    %v2037 = vsel %vm1957, %v1412, 0
    %v2040 = vsel %vm1957, %v1413, 0
    %v2043 = vsel %vm1957, %v1414, 0
    %v2046 = vsel %vm1957, %v1415, 0
    %v2049 = vsel %vm1957, %v1416, 0
    %v2052 = vsel %vm1957, %v1417, 0
    %vm2054 = vcmask 1045504
    %v2056 = vsel %vm2054, %v1628, 0
    %2058 = vmatprep.subr.mxu0 0.0
    %2059 = vmatpush1.msra.mxu0 %v2056
    %2060 = vmatprep.subr.mxu0 0.0
    %2061 = vmatpush1.msra.mxu0 0.0
    %2062 = vmatprep.subr.mxu0 0.0
    %2063 = vmatpush1.msra.mxu0 0.0
    %2064 = vmatprep.subr.mxu0 0.0
    %2065 = vmatpush1.msra.mxu0 0.0
    %2066 = vmatprep.subr.mxu0 0.0
    %2067 = vmatpush1.msra.mxu0 0.0
    %2068 = vmatprep.subr.mxu0 0.0
    %2069 = vmatpush1.msra.mxu0 0.0
    %2070 = vmatprep.subr.mxu0 0.0
    %2071 = vmatpush1.msra.mxu0 0.0
    %2072 = vmatprep.subr.mxu0 0.0
    %2073 = vmatpush1.msra.mxu0 0.0
    %2074 = vmatprep.subr.mxu0 0.0
    %2075 = vmatpush1.msra.mxu0 0.0
    %2076 = vmatprep.subr.mxu0 0.0
    %2077 = vmatpush1.msra.mxu0 0.0
    %2078 = vmatprep.subr.mxu0 0.0
    %2079 = vmatpush1.msra.mxu0 0.0
    %2080 = vmatprep.subr.mxu0 0.0
    %2081 = vmatpush1.msra.mxu0 0.0
    %2082 = vmatprep.subr.mxu0 0.0
    %2083 = vmatpush1.msra.mxu0 0.0
    %2084 = vmatprep.subr.mxu0 0.0
    %2085 = vmatpush1.msra.mxu0 0.0
    %2086 = vmatprep.subr.mxu0 0.0
    %2087 = vmatpush1.msra.mxu0 0.0
    %2088 = vmatprep.subr.mxu0 0.0
    %2089 = vmatpush1.msra.mxu0 0.0
    %2090 = vmatprep.subr.mxu0 0.0
    %2091 = vmatpush1.msra.mxu0 0.0
    %2092 = vmatprep.subr.mxu0 0.0
    %2093 = vmatpush1.msra.mxu0 0.0
    %2094 = vmatprep.subr.mxu0 0.0
    %2095 = vmatpush1.msra.mxu0 0.0
    %2096 = vmatprep.subr.mxu0 0.0
    %2097 = vmatpush1.msra.mxu0 0.0
    %2098 = vmatprep.subr.mxu0 0.0
    %2099 = vmatpush1.msra.mxu0 0.0
    %2100 = vmatprep.subr.mxu0 0.0
    %2101 = vmatpush1.msra.mxu0 0.0
    %2102 = vmatprep.subr.mxu0 0.0
    %2103 = vmatpush1.msra.mxu0 0.0
    %2104 = vmatprep.subr.mxu0 0.0
    %2105 = vmatpush1.msra.mxu0 0.0
    %2106 = vmatprep.subr.mxu0 0.0
    %2107 = vmatpush1.msra.mxu0 0.0
    %2108 = vmatprep.subr.mxu0 0.0
    %2109 = vmatpush1.msra.mxu0 0.0
    %2110 = vmatprep.subr.mxu0 0.0
    %2111 = vmatpush1.msra.mxu0 0.0
    %2112 = vmatprep.subr.mxu0 0.0
    %2113 = vmatpush1.msra.mxu0 0.0
    %2114 = vmatprep.subr.mxu0 0.0
    %2115 = vmatpush1.msra.mxu0 0.0
    %2116 = vmatprep.subr.mxu0 0.0
    %2117 = vmatpush1.msra.mxu0 0.0
    %2118 = vmatprep.subr.mxu0 0.0
    %2119 = vmatpush1.msra.mxu0 0.0
    %2120 = vmatprep.subr.mxu0 0.0
    %2121 = vmatpush1.msra.mxu0 0.0
    %2122 = vmatprep.mubr.f32.mxu0 0.0
    %2123 = vmatmul.mubr.f32.gmra.mrb[0].mxu0 %v1959
    %v2124 = vpop.f32.mrb[0].mxu0
    %v2125 = vadd.f32 %v1799, %v2124
    %v2126 = vpop.f32.mrb[0].mxu0
    %2127 = vmatprep.mubr.f32.mxu0 0.0
    %2128 = vmatmul.mubr.f32.gmra.mrb[0].mxu0 %v1962
    %v2129 = vpop.f32.mrb[0].mxu0
    %v2130 = vadd.f32 %v1804, %v2129
    %v2131 = vpop.f32.mrb[0].mxu0
    %2132 = vmatprep.mubr.f32.mxu0 0.0
    %2133 = vmatmul.mubr.f32.gmra.mrb[0].mxu0 %v1965
    %v2134 = vpop.f32.mrb[0].mxu0
    %v2135 = vadd.f32 %v1809, %v2134
    %v2136 = vpop.f32.mrb[0].mxu0
    %2137 = vmatprep.mubr.f32.mxu0 0.0
    %2138 = vmatmul.mubr.f32.gmra.mrb[0].mxu0 %v1968
    %v2139 = vpop.f32.mrb[0].mxu0
    %v2140 = vadd.f32 %v1814, %v2139
    %v2141 = vpop.f32.mrb[0].mxu0
    %2142 = vmatprep.mubr.f32.mxu0 0.0
    %2143 = vmatmul.mubr.f32.gmra.mrb[0].mxu0 %v1971
    %v2144 = vpop.f32.mrb[0].mxu0
    %v2145 = vadd.f32 %v1819, %v2144
    %v2146 = vpop.f32.mrb[0].mxu0
    %2147 = vmatprep.mubr.f32.mxu0 0.0
    %2148 = vmatmul.mubr.f32.gmra.mrb[0].mxu0 %v1974
    %v2149 = vpop.f32.mrb[0].mxu0
    %v2150 = vadd.f32 %v1824, %v2149
    %v2151 = vpop.f32.mrb[0].mxu0
    %2152 = vmatprep.mubr.f32.mxu0 0.0
    %2153 = vmatmul.mubr.f32.gmra.mrb[0].mxu0 %v1977
    %v2154 = vpop.f32.mrb[0].mxu0
    %v2155 = vadd.f32 %v1829, %v2154
    %v2156 = vpop.f32.mrb[0].mxu0
    %2157 = vmatprep.mubr.f32.mxu0 0.0
    %2158 = vmatmul.mubr.f32.gmra.mrb[0].mxu0 %v1980
    %v2159 = vpop.f32.mrb[0].mxu0
    %v2160 = vadd.f32 %v1834, %v2159
    %v2161 = vpop.f32.mrb[0].mxu0
    %2162 = vmatprep.mubr.f32.mxu0 0.0
    %2163 = vmatmul.mubr.f32.gmra.mrb[0].mxu0 %v1983
    %v2164 = vpop.f32.mrb[0].mxu0
    %v2165 = vadd.f32 %v1839, %v2164
    %v2166 = vpop.f32.mrb[0].mxu0
    %2167 = vmatprep.mubr.f32.mxu0 0.0
    %2168 = vmatmul.mubr.f32.gmra.mrb[0].mxu0 %v1986
    %v2169 = vpop.f32.mrb[0].mxu0
    %v2170 = vadd.f32 %v1844, %v2169
    %v2171 = vpop.f32.mrb[0].mxu0
    %2172 = vmatprep.mubr.f32.mxu0 0.0
    %2173 = vmatmul.mubr.f32.gmra.mrb[0].mxu0 %v1989
    %v2174 = vpop.f32.mrb[0].mxu0
    %v2175 = vadd.f32 %v1849, %v2174
    %v2176 = vpop.f32.mrb[0].mxu0
    %2177 = vmatprep.mubr.f32.mxu0 0.0
    %2178 = vmatmul.mubr.f32.gmra.mrb[0].mxu0 %v1992
    %v2179 = vpop.f32.mrb[0].mxu0
    %v2180 = vadd.f32 %v1854, %v2179
    %v2181 = vpop.f32.mrb[0].mxu0
    %2182 = vmatprep.mubr.f32.mxu0 0.0
    %2183 = vmatmul.mubr.f32.gmra.mrb[0].mxu0 %v1995
    %v2184 = vpop.f32.mrb[0].mxu0
    %v2185 = vadd.f32 %v1859, %v2184
    %v2186 = vpop.f32.mrb[0].mxu0
    %2187 = vmatprep.mubr.f32.mxu0 0.0
    %2188 = vmatmul.mubr.f32.gmra.mrb[0].mxu0 %v1998
    %v2189 = vpop.f32.mrb[0].mxu0
    %v2190 = vadd.f32 %v1864, %v2189
    %v2191 = vpop.f32.mrb[0].mxu0
    %2192 = vmatprep.mubr.f32.mxu0 0.0
    %2193 = vmatmul.mubr.f32.gmra.mrb[0].mxu0 %v2001
    %v2194 = vpop.f32.mrb[0].mxu0
    %v2195 = vadd.f32 %v1869, %v2194
    %v2196 = vpop.f32.mrb[0].mxu0
    %2197 = vmatprep.mubr.f32.mxu0 0.0
    %2198 = vmatmul.mubr.f32.gmra.mrb[0].mxu0 %v2004
    %v2199 = vpop.f32.mrb[0].mxu0
    %v2200 = vadd.f32 %v1874, %v2199
    %v2201 = vpop.f32.mrb[0].mxu0
    %2202 = vmatprep.mubr.f32.mxu0 0.0
    %2203 = vmatmul.mubr.f32.gmra.mrb[0].mxu0 %v2007
    %v2204 = vpop.f32.mrb[0].mxu0
    %v2205 = vadd.f32 %v1879, %v2204
    %v2206 = vpop.f32.mrb[0].mxu0
    %2207 = vmatprep.mubr.f32.mxu0 0.0
    %2208 = vmatmul.mubr.f32.gmra.mrb[0].mxu0 %v2010
    %v2209 = vpop.f32.mrb[0].mxu0
    %v2210 = vadd.f32 %v1884, %v2209
    %v2211 = vpop.f32.mrb[0].mxu0
    %2212 = vmatprep.mubr.f32.mxu0 0.0
    %2213 = vmatmul.mubr.f32.gmra.mrb[0].mxu0 %v2013
    %v2214 = vpop.f32.mrb[0].mxu0
    %v2215 = vadd.f32 %v1889, %v2214
    %v2216 = vpop.f32.mrb[0].mxu0
    %2217 = vmatprep.mubr.f32.mxu0 0.0
    %2218 = vmatmul.mubr.f32.gmra.mrb[0].mxu0 %v2016
    %v2219 = vpop.f32.mrb[0].mxu0
    %v2220 = vadd.f32 %v1894, %v2219
    %v2221 = vpop.f32.mrb[0].mxu0
    %2222 = vmatprep.mubr.f32.mxu0 0.0
    %2223 = vmatmul.mubr.f32.gmra.mrb[0].mxu0 %v2019
    %v2224 = vpop.f32.mrb[0].mxu0
    %v2225 = vadd.f32 %v1899, %v2224
    %v2226 = vpop.f32.mrb[0].mxu0
    %2227 = vmatprep.mubr.f32.mxu0 0.0
    %2228 = vmatmul.mubr.f32.gmra.mrb[0].mxu0 %v2022
    %v2229 = vpop.f32.mrb[0].mxu0
    %v2230 = vadd.f32 %v1904, %v2229
    %v2231 = vpop.f32.mrb[0].mxu0
    %2232 = vmatprep.mubr.f32.mxu0 0.0
    %2233 = vmatmul.mubr.f32.gmra.mrb[0].mxu0 %v2025
    %v2234 = vpop.f32.mrb[0].mxu0
    %v2235 = vadd.f32 %v1909, %v2234
    %v2236 = vpop.f32.mrb[0].mxu0
    %2237 = vmatprep.mubr.f32.mxu0 0.0
    %2238 = vmatmul.mubr.f32.gmra.mrb[0].mxu0 %v2028
    %v2239 = vpop.f32.mrb[0].mxu0
    %v2240 = vadd.f32 %v1914, %v2239
    %v2241 = vpop.f32.mrb[0].mxu0
    %2242 = vmatprep.mubr.f32.mxu0 0.0
    %2243 = vmatmul.mubr.f32.gmra.mrb[0].mxu0 %v2031
    %v2244 = vpop.f32.mrb[0].mxu0
    %v2245 = vadd.f32 %v1919, %v2244
    %v2246 = vpop.f32.mrb[0].mxu0
    %2247 = vmatprep.mubr.f32.mxu0 0.0
    %2248 = vmatmul.mubr.f32.gmra.mrb[0].mxu0 %v2034
    %v2249 = vpop.f32.mrb[0].mxu0
    %v2250 = vadd.f32 %v1924, %v2249
    %v2251 = vpop.f32.mrb[0].mxu0
    %2252 = vmatprep.mubr.f32.mxu0 0.0
    %2253 = vmatmul.mubr.f32.gmra.mrb[0].mxu0 %v2037
    %v2254 = vpop.f32.mrb[0].mxu0
    %v2255 = vadd.f32 %v1929, %v2254
    %v2256 = vpop.f32.mrb[0].mxu0
    %2257 = vmatprep.mubr.f32.mxu0 0.0
    %2258 = vmatmul.mubr.f32.gmra.mrb[0].mxu0 %v2040
    %v2259 = vpop.f32.mrb[0].mxu0
    %v2260 = vadd.f32 %v1934, %v2259
    %v2261 = vpop.f32.mrb[0].mxu0
    %2262 = vmatprep.mubr.f32.mxu0 0.0
    %2263 = vmatmul.mubr.f32.gmra.mrb[0].mxu0 %v2043
    %v2264 = vpop.f32.mrb[0].mxu0
    %v2265 = vadd.f32 %v1939, %v2264
    %v2266 = vpop.f32.mrb[0].mxu0
    %2267 = vmatprep.mubr.f32.mxu0 0.0
    %2268 = vmatmul.mubr.f32.gmra.mrb[0].mxu0 %v2046
    %v2269 = vpop.f32.mrb[0].mxu0
    %v2270 = vadd.f32 %v1944, %v2269
    %v2271 = vpop.f32.mrb[0].mxu0
    %2272 = vmatprep.mubr.f32.mxu0 0.0
    %2273 = vmatmul.mubr.f32.gmra.mrb[0].mxu0 %v2049
    %v2274 = vpop.f32.mrb[0].mxu0
    %v2275 = vadd.f32 %v1949, %v2274
    %v2276 = vpop.f32.mrb[0].mxu0
    %2277 = vmatprep.mubr.f32.mxu0 0.0
    %2278 = vmatmul.mubr.f32.gmra.mrb[0].mxu0 %v2052
    %v2279 = vpop.f32.mrb[0].mxu0
    %v2280 = vadd.f32 %v1954, %v2279
    %v2281 = vpop.f32.mrb[0].mxu0
    %2282 = vdwg.mxu0
    %v2283 = vld [vmem:[%s5] sm:$0xff]
    %v2284 = vld [vmem:[%s5 + $0x8] sm:$0xf]
    %v2286 = vsel %vm1631, %v1523, 0
    %v2289 = vsel %vm1631, %v1524, 0
    %v2292 = vsel %vm1631, %v1525, 0
    %v2295 = vsel %vm1631, %v1526, 0
    %v2298 = vsel %vm1631, %v1527, 0
    %v2301 = vsel %vm1631, %v1528, 0
    %v2304 = vsel %vm1631, %v1529, 0
    %v2307 = vsel %vm1631, %v1530, 0
    %v2310 = vsel %vm1631, %v1531, 0
    %v2313 = vsel %vm1631, %v1532, 0
    %v2316 = vsel %vm1631, %v1533, 0
    %v2319 = vsel %vm1631, %v1534, 0
    %v2322 = vsel %vm1631, %v1535, 0
    %v2325 = vsel %vm1631, %v1536, 0
    %v2328 = vsel %vm1631, %v1537, 0
    %v2331 = vsel %vm1631, %v1538, 0
    %v2334 = vsel %vm1631, %v1539, 0
    %v2337 = vsel %vm1631, %v1540, 0
    %v2340 = vsel %vm1631, %v1541, 0
    %v2343 = vsel %vm1631, %v1542, 0
    %v2346 = vsel %vm1631, %v1543, 0
    %v2349 = vsel %vm1631, %v1544, 0
    %v2352 = vsel %vm1631, %v1545, 0
    %v2355 = vsel %vm1631, %v1546, 0
    %v2358 = vsel %vm1631, %v1547, 0
    %v2361 = vsel %vm1631, %v1548, 0
    %v2364 = vsel %vm1631, %v1549, 0
    %v2367 = vsel %vm1631, %v1550, 0
    %v2370 = vsel %vm1631, %v1551, 0
    %v2373 = vsel %vm1631, %v1552, 0
    %v2376 = vsel %vm1631, %v1553, 0
    %v2379 = vsel %vm1631, %v1554, 0
    %v2382 = vsel %vm1728, %v2284, 0
    %2384 = vmatprep.subr.mxu0 0.0
    %2385 = vmatpush1.msra.mxu0 %v2283
    %2386 = vmatprep.subr.mxu0 0.0
    %2387 = vmatpush1.msra.mxu0 %v2382
    %2388 = vmatprep.subr.mxu0 0.0
    %2389 = vmatpush1.msra.mxu0 0.0
    %2390 = vmatprep.subr.mxu0 0.0
    %2391 = vmatpush1.msra.mxu0 0.0
    %2392 = vmatprep.subr.mxu0 0.0
    %2393 = vmatpush1.msra.mxu0 0.0
    %2394 = vmatprep.subr.mxu0 0.0
    %2395 = vmatpush1.msra.mxu0 0.0
    %2396 = vmatprep.subr.mxu0 0.0
    %2397 = vmatpush1.msra.mxu0 0.0
    %2398 = vmatprep.subr.mxu0 0.0
    %2399 = vmatpush1.msra.mxu0 0.0
    %2400 = vmatprep.subr.mxu0 0.0
    %2401 = vmatpush1.msra.mxu0 0.0
    %2402 = vmatprep.subr.mxu0 0.0
    %2403 = vmatpush1.msra.mxu0 0.0
    %2404 = vmatprep.subr.mxu0 0.0
    %2405 = vmatpush1.msra.mxu0 0.0
    %2406 = vmatprep.subr.mxu0 0.0
    %2407 = vmatpush1.msra.mxu0 0.0
    %2408 = vmatprep.subr.mxu0 0.0
    %2409 = vmatpush1.msra.mxu0 0.0
    %2410 = vmatprep.subr.mxu0 0.0
    %2411 = vmatpush1.msra.mxu0 0.0
    %2412 = vmatprep.subr.mxu0 0.0
    %2413 = vmatpush1.msra.mxu0 0.0
    %2414 = vmatprep.subr.mxu0 0.0
    %2415 = vmatpush1.msra.mxu0 0.0
    %2416 = vmatprep.subr.mxu0 0.0
    %2417 = vmatpush1.msra.mxu0 0.0
    %2418 = vmatprep.subr.mxu0 0.0
    %2419 = vmatpush1.msra.mxu0 0.0
    %2420 = vmatprep.subr.mxu0 0.0
    %2421 = vmatpush1.msra.mxu0 0.0
    %2422 = vmatprep.subr.mxu0 0.0
    %2423 = vmatpush1.msra.mxu0 0.0
    %2424 = vmatprep.subr.mxu0 0.0
    %2425 = vmatpush1.msra.mxu0 0.0
    %2426 = vmatprep.subr.mxu0 0.0
    %2427 = vmatpush1.msra.mxu0 0.0
    %2428 = vmatprep.subr.mxu0 0.0
    %2429 = vmatpush1.msra.mxu0 0.0
    %2430 = vmatprep.subr.mxu0 0.0
    %2431 = vmatpush1.msra.mxu0 0.0
    %2432 = vmatprep.subr.mxu0 0.0
    %2433 = vmatpush1.msra.mxu0 0.0
    %2434 = vmatprep.subr.mxu0 0.0
    %2435 = vmatpush1.msra.mxu0 0.0
    %2436 = vmatprep.subr.mxu0 0.0
    %2437 = vmatpush1.msra.mxu0 0.0
    %2438 = vmatprep.subr.mxu0 0.0
    %2439 = vmatpush1.msra.mxu0 0.0
    %2440 = vmatprep.subr.mxu0 0.0
    %2441 = vmatpush1.msra.mxu0 0.0
    %2442 = vmatprep.subr.mxu0 0.0
    %2443 = vmatpush1.msra.mxu0 0.0
    %2444 = vmatprep.subr.mxu0 0.0
    %2445 = vmatpush1.msra.mxu0 0.0
    %2446 = vmatprep.subr.mxu0 0.0
    %2447 = vmatpush1.msra.mxu0 0.0
    %2448 = vmatprep.mubr.f32.mxu0 0.0
    %2449 = vmatmul.mubr.f32.gmra.mrb[0].mxu0 %v2286
    %v2450 = vpop.f32.mrb[0].mxu0
    %v2451 = vadd.f32 0.0, %v2450
    %v2452 = vpop.f32.mrb[0].mxu0
    %2453 = vmatprep.mubr.f32.mxu0 0.0
    %2454 = vmatmul.mubr.f32.gmra.mrb[0].mxu0 %v2289
    %v2455 = vpop.f32.mrb[0].mxu0
    %v2456 = vadd.f32 0.0, %v2455
    %v2457 = vpop.f32.mrb[0].mxu0
    %2458 = vmatprep.mubr.f32.mxu0 0.0
    %2459 = vmatmul.mubr.f32.gmra.mrb[0].mxu0 %v2292
    %v2460 = vpop.f32.mrb[0].mxu0
    %v2461 = vadd.f32 0.0, %v2460
    %v2462 = vpop.f32.mrb[0].mxu0
    %2463 = vmatprep.mubr.f32.mxu0 0.0
    %2464 = vmatmul.mubr.f32.gmra.mrb[0].mxu0 %v2295
    %v2465 = vpop.f32.mrb[0].mxu0
    %v2466 = vadd.f32 0.0, %v2465
    %v2467 = vpop.f32.mrb[0].mxu0
    %2468 = vmatprep.mubr.f32.mxu0 0.0
    %2469 = vmatmul.mubr.f32.gmra.mrb[0].mxu0 %v2298
    %v2470 = vpop.f32.mrb[0].mxu0
    %v2471 = vadd.f32 0.0, %v2470
    %v2472 = vpop.f32.mrb[0].mxu0
    %2473 = vmatprep.mubr.f32.mxu0 0.0
    %2474 = vmatmul.mubr.f32.gmra.mrb[0].mxu0 %v2301
    %v2475 = vpop.f32.mrb[0].mxu0
    %v2476 = vadd.f32 0.0, %v2475
    %v2477 = vpop.f32.mrb[0].mxu0
    %2478 = vmatprep.mubr.f32.mxu0 0.0
    %2479 = vmatmul.mubr.f32.gmra.mrb[0].mxu0 %v2304
    %v2480 = vpop.f32.mrb[0].mxu0
    %v2481 = vadd.f32 0.0, %v2480
    %v2482 = vpop.f32.mrb[0].mxu0
    %2483 = vmatprep.mubr.f32.mxu0 0.0
    %2484 = vmatmul.mubr.f32.gmra.mrb[0].mxu0 %v2307
    %v2485 = vpop.f32.mrb[0].mxu0
    %v2486 = vadd.f32 0.0, %v2485
    %v2487 = vpop.f32.mrb[0].mxu0
    %2488 = vmatprep.mubr.f32.mxu0 0.0
    %2489 = vmatmul.mubr.f32.gmra.mrb[0].mxu0 %v2310
    %v2490 = vpop.f32.mrb[0].mxu0
    %v2491 = vadd.f32 0.0, %v2490
    %v2492 = vpop.f32.mrb[0].mxu0
    %2493 = vmatprep.mubr.f32.mxu0 0.0
    %2494 = vmatmul.mubr.f32.gmra.mrb[0].mxu0 %v2313
    %v2495 = vpop.f32.mrb[0].mxu0
    %v2496 = vadd.f32 0.0, %v2495
    %v2497 = vpop.f32.mrb[0].mxu0
    %2498 = vmatprep.mubr.f32.mxu0 0.0
    %2499 = vmatmul.mubr.f32.gmra.mrb[0].mxu0 %v2316
    %v2500 = vpop.f32.mrb[0].mxu0
    %v2501 = vadd.f32 0.0, %v2500
    %v2502 = vpop.f32.mrb[0].mxu0
    %2503 = vmatprep.mubr.f32.mxu0 0.0
    %2504 = vmatmul.mubr.f32.gmra.mrb[0].mxu0 %v2319
    %v2505 = vpop.f32.mrb[0].mxu0
    %v2506 = vadd.f32 0.0, %v2505
    %v2507 = vpop.f32.mrb[0].mxu0
    %2508 = vmatprep.mubr.f32.mxu0 0.0
    %2509 = vmatmul.mubr.f32.gmra.mrb[0].mxu0 %v2322
    %v2510 = vpop.f32.mrb[0].mxu0
    %v2511 = vadd.f32 0.0, %v2510
    %v2512 = vpop.f32.mrb[0].mxu0
    %2513 = vmatprep.mubr.f32.mxu0 0.0
    %2514 = vmatmul.mubr.f32.gmra.mrb[0].mxu0 %v2325
    %v2515 = vpop.f32.mrb[0].mxu0
    %v2516 = vadd.f32 0.0, %v2515
    %v2517 = vpop.f32.mrb[0].mxu0
    %2518 = vmatprep.mubr.f32.mxu0 0.0
    %2519 = vmatmul.mubr.f32.gmra.mrb[0].mxu0 %v2328
    %v2520 = vpop.f32.mrb[0].mxu0
    %v2521 = vadd.f32 0.0, %v2520
    %v2522 = vpop.f32.mrb[0].mxu0
    %2523 = vmatprep.mubr.f32.mxu0 0.0
    %2524 = vmatmul.mubr.f32.gmra.mrb[0].mxu0 %v2331
    %v2525 = vpop.f32.mrb[0].mxu0
    %v2526 = vadd.f32 0.0, %v2525
    %v2527 = vpop.f32.mrb[0].mxu0
    %2528 = vmatprep.mubr.f32.mxu0 0.0
    %2529 = vmatmul.mubr.f32.gmra.mrb[0].mxu0 %v2334
    %v2530 = vpop.f32.mrb[0].mxu0
    %v2531 = vadd.f32 0.0, %v2530
    %v2532 = vpop.f32.mrb[0].mxu0
    %2533 = vmatprep.mubr.f32.mxu0 0.0
    %2534 = vmatmul.mubr.f32.gmra.mrb[0].mxu0 %v2337
    %v2535 = vpop.f32.mrb[0].mxu0
    %v2536 = vadd.f32 0.0, %v2535
    %v2537 = vpop.f32.mrb[0].mxu0
    %2538 = vmatprep.mubr.f32.mxu0 0.0
    %2539 = vmatmul.mubr.f32.gmra.mrb[0].mxu0 %v2340
    %v2540 = vpop.f32.mrb[0].mxu0
    %v2541 = vadd.f32 0.0, %v2540
    %v2542 = vpop.f32.mrb[0].mxu0
    %2543 = vmatprep.mubr.f32.mxu0 0.0
    %2544 = vmatmul.mubr.f32.gmra.mrb[0].mxu0 %v2343
    %v2545 = vpop.f32.mrb[0].mxu0
    %v2546 = vadd.f32 0.0, %v2545
    %v2547 = vpop.f32.mrb[0].mxu0
    %2548 = vmatprep.mubr.f32.mxu0 0.0
    %2549 = vmatmul.mubr.f32.gmra.mrb[0].mxu0 %v2346
    %v2550 = vpop.f32.mrb[0].mxu0
    %v2551 = vadd.f32 0.0, %v2550
    %v2552 = vpop.f32.mrb[0].mxu0
    %2553 = vmatprep.mubr.f32.mxu0 0.0
    %2554 = vmatmul.mubr.f32.gmra.mrb[0].mxu0 %v2349
    %v2555 = vpop.f32.mrb[0].mxu0
    %v2556 = vadd.f32 0.0, %v2555
    %v2557 = vpop.f32.mrb[0].mxu0
    %2558 = vmatprep.mubr.f32.mxu0 0.0
    %2559 = vmatmul.mubr.f32.gmra.mrb[0].mxu0 %v2352
    %v2560 = vpop.f32.mrb[0].mxu0
    %v2561 = vadd.f32 0.0, %v2560
    %v2562 = vpop.f32.mrb[0].mxu0
    %2563 = vmatprep.mubr.f32.mxu0 0.0
    %2564 = vmatmul.mubr.f32.gmra.mrb[0].mxu0 %v2355
    %v2565 = vpop.f32.mrb[0].mxu0
    %v2566 = vadd.f32 0.0, %v2565
    %v2567 = vpop.f32.mrb[0].mxu0
    %2568 = vmatprep.mubr.f32.mxu0 0.0
    %2569 = vmatmul.mubr.f32.gmra.mrb[0].mxu0 %v2358
    %v2570 = vpop.f32.mrb[0].mxu0
    %v2571 = vadd.f32 0.0, %v2570
    %v2572 = vpop.f32.mrb[0].mxu0
    %2573 = vmatprep.mubr.f32.mxu0 0.0
    %2574 = vmatmul.mubr.f32.gmra.mrb[0].mxu0 %v2361
    %v2575 = vpop.f32.mrb[0].mxu0
    %v2576 = vadd.f32 0.0, %v2575
    %v2577 = vpop.f32.mrb[0].mxu0
    %2578 = vmatprep.mubr.f32.mxu0 0.0
    %2579 = vmatmul.mubr.f32.gmra.mrb[0].mxu0 %v2364
    %v2580 = vpop.f32.mrb[0].mxu0
    %v2581 = vadd.f32 0.0, %v2580
    %v2582 = vpop.f32.mrb[0].mxu0
    %2583 = vmatprep.mubr.f32.mxu0 0.0
    %2584 = vmatmul.mubr.f32.gmra.mrb[0].mxu0 %v2367
    %v2585 = vpop.f32.mrb[0].mxu0
    %v2586 = vadd.f32 0.0, %v2585
    %v2587 = vpop.f32.mrb[0].mxu0
    %2588 = vmatprep.mubr.f32.mxu0 0.0
    %2589 = vmatmul.mubr.f32.gmra.mrb[0].mxu0 %v2370
    %v2590 = vpop.f32.mrb[0].mxu0
    %v2591 = vadd.f32 0.0, %v2590
    %v2592 = vpop.f32.mrb[0].mxu0
    %2593 = vmatprep.mubr.f32.mxu0 0.0
    %2594 = vmatmul.mubr.f32.gmra.mrb[0].mxu0 %v2373
    %v2595 = vpop.f32.mrb[0].mxu0
    %v2596 = vadd.f32 0.0, %v2595
    %v2597 = vpop.f32.mrb[0].mxu0
    %2598 = vmatprep.mubr.f32.mxu0 0.0
    %2599 = vmatmul.mubr.f32.gmra.mrb[0].mxu0 %v2376
    %v2600 = vpop.f32.mrb[0].mxu0
    %v2601 = vadd.f32 0.0, %v2600
    %v2602 = vpop.f32.mrb[0].mxu0
    %2603 = vmatprep.mubr.f32.mxu0 0.0
    %2604 = vmatmul.mubr.f32.gmra.mrb[0].mxu0 %v2379
    %v2605 = vpop.f32.mrb[0].mxu0
    %v2606 = vadd.f32 0.0, %v2605
    %v2607 = vpop.f32.mrb[0].mxu0
    %2608 = vdwg.mxu0
    %v2609 = vadd.f32 %v2125, %v2451
    %v2610 = vadd.f32 %v2130, %v2456
    %v2611 = vadd.f32 %v2135, %v2461
    %v2612 = vadd.f32 %v2140, %v2466
    %v2613 = vadd.f32 %v2145, %v2471
    %v2614 = vadd.f32 %v2150, %v2476
    %v2615 = vadd.f32 %v2155, %v2481
    %v2616 = vadd.f32 %v2160, %v2486
    %v2617 = vadd.f32 %v2165, %v2491
    %v2618 = vadd.f32 %v2170, %v2496
    %v2619 = vadd.f32 %v2175, %v2501
    %v2620 = vadd.f32 %v2180, %v2506
    %v2621 = vadd.f32 %v2185, %v2511
    %v2622 = vadd.f32 %v2190, %v2516
    %v2623 = vadd.f32 %v2195, %v2521
    %v2624 = vadd.f32 %v2200, %v2526
    %v2625 = vadd.f32 %v2205, %v2531
    %v2626 = vadd.f32 %v2210, %v2536
    %v2627 = vadd.f32 %v2215, %v2541
    %v2628 = vadd.f32 %v2220, %v2546
    %v2629 = vadd.f32 %v2225, %v2551
    %v2630 = vadd.f32 %v2230, %v2556
    %v2631 = vadd.f32 %v2235, %v2561
    %v2632 = vadd.f32 %v2240, %v2566
    %v2633 = vadd.f32 %v2245, %v2571
    %v2634 = vadd.f32 %v2250, %v2576
    %v2635 = vadd.f32 %v2255, %v2581
    %v2636 = vadd.f32 %v2260, %v2586
    %v2637 = vadd.f32 %v2265, %v2591
    %v2638 = vadd.f32 %v2270, %v2596
    %v2639 = vadd.f32 %v2275, %v2601
    %v2640 = vadd.f32 %v2280, %v2606
    %v2641 = vld [vmem:[#allocation4] sm:$0xff]
    %v2642 = vld [vmem:[#allocation4 + $0x8] sm:$0xf]
    %v2644 = vsel %vm1631, %v1596, 0
    %v2647 = vsel %vm1631, %v1597, 0
    %v2650 = vsel %vm1631, %v1598, 0
    %v2653 = vsel %vm1631, %v1599, 0
    %v2656 = vsel %vm1631, %v1600, 0
    %v2659 = vsel %vm1631, %v1601, 0
    %v2662 = vsel %vm1631, %v1602, 0
    %v2665 = vsel %vm1631, %v1603, 0
    %v2668 = vsel %vm1631, %v1604, 0
    %v2671 = vsel %vm1631, %v1605, 0
    %v2674 = vsel %vm1631, %v1606, 0
    %v2677 = vsel %vm1631, %v1607, 0
    %v2680 = vsel %vm1631, %v1608, 0
    %v2683 = vsel %vm1631, %v1609, 0
    %v2686 = vsel %vm1631, %v1610, 0
    %v2689 = vsel %vm1631, %v1611, 0
    %v2692 = vsel %vm1631, %v1612, 0
    %v2695 = vsel %vm1631, %v1613, 0
    %v2698 = vsel %vm1631, %v1614, 0
    %v2701 = vsel %vm1631, %v1615, 0
    %v2704 = vsel %vm1631, %v1616, 0
    %v2707 = vsel %vm1631, %v1617, 0
    %v2710 = vsel %vm1631, %v1618, 0
    %v2713 = vsel %vm1631, %v1619, 0
    %v2716 = vsel %vm1631, %v1620, 0
    %v2719 = vsel %vm1631, %v1621, 0
    %v2722 = vsel %vm1631, %v1622, 0
    %v2725 = vsel %vm1631, %v1623, 0
    %v2728 = vsel %vm1631, %v1624, 0
    %v2731 = vsel %vm1631, %v1625, 0
    %v2734 = vsel %vm1631, %v1626, 0
    %v2737 = vsel %vm1631, %v1627, 0
    %v2740 = vsel %vm1728, %v2642, 0
    %2742 = vmatprep.subr.mxu0 0.0
    %2743 = vmatpush1.msra.mxu0 %v2641
    %2744 = vmatprep.subr.mxu0 0.0
    %2745 = vmatpush1.msra.mxu0 %v2740
    %2746 = vmatprep.subr.mxu0 0.0
    %2747 = vmatpush1.msra.mxu0 0.0
    %2748 = vmatprep.subr.mxu0 0.0
    %2749 = vmatpush1.msra.mxu0 0.0
    %2750 = vmatprep.subr.mxu0 0.0
    %2751 = vmatpush1.msra.mxu0 0.0
    %2752 = vmatprep.subr.mxu0 0.0
    %2753 = vmatpush1.msra.mxu0 0.0
    %2754 = vmatprep.subr.mxu0 0.0
    %2755 = vmatpush1.msra.mxu0 0.0
    %2756 = vmatprep.subr.mxu0 0.0
    %2757 = vmatpush1.msra.mxu0 0.0
    %2758 = vmatprep.subr.mxu0 0.0
    %2759 = vmatpush1.msra.mxu0 0.0
    %2760 = vmatprep.subr.mxu0 0.0
    %2761 = vmatpush1.msra.mxu0 0.0
    %2762 = vmatprep.subr.mxu0 0.0
    %2763 = vmatpush1.msra.mxu0 0.0
    %2764 = vmatprep.subr.mxu0 0.0
    %2765 = vmatpush1.msra.mxu0 0.0
    %2766 = vmatprep.subr.mxu0 0.0
    %2767 = vmatpush1.msra.mxu0 0.0
    %2768 = vmatprep.subr.mxu0 0.0
    %2769 = vmatpush1.msra.mxu0 0.0
    %2770 = vmatprep.subr.mxu0 0.0
    %2771 = vmatpush1.msra.mxu0 0.0
    %2772 = vmatprep.subr.mxu0 0.0
    %2773 = vmatpush1.msra.mxu0 0.0
    %2774 = vmatprep.subr.mxu0 0.0
    %2775 = vmatpush1.msra.mxu0 0.0
    %2776 = vmatprep.subr.mxu0 0.0
    %2777 = vmatpush1.msra.mxu0 0.0
    %2778 = vmatprep.subr.mxu0 0.0
    %2779 = vmatpush1.msra.mxu0 0.0
    %2780 = vmatprep.subr.mxu0 0.0
    %2781 = vmatpush1.msra.mxu0 0.0
    %2782 = vmatprep.subr.mxu0 0.0
    %2783 = vmatpush1.msra.mxu0 0.0
    %2784 = vmatprep.subr.mxu0 0.0
    %2785 = vmatpush1.msra.mxu0 0.0
    %2786 = vmatprep.subr.mxu0 0.0
    %2787 = vmatpush1.msra.mxu0 0.0
    %2788 = vmatprep.subr.mxu0 0.0
    %2789 = vmatpush1.msra.mxu0 0.0
    %2790 = vmatprep.subr.mxu0 0.0
    %2791 = vmatpush1.msra.mxu0 0.0
    %2792 = vmatprep.subr.mxu0 0.0
    %2793 = vmatpush1.msra.mxu0 0.0
    %2794 = vmatprep.subr.mxu0 0.0
    %2795 = vmatpush1.msra.mxu0 0.0
    %2796 = vmatprep.subr.mxu0 0.0
    %2797 = vmatpush1.msra.mxu0 0.0
    %2798 = vmatprep.subr.mxu0 0.0
    %2799 = vmatpush1.msra.mxu0 0.0
    %2800 = vmatprep.subr.mxu0 0.0
    %2801 = vmatpush1.msra.mxu0 0.0
    %2802 = vmatprep.subr.mxu0 0.0
    %2803 = vmatpush1.msra.mxu0 0.0
    %2804 = vmatprep.subr.mxu0 0.0
    %2805 = vmatpush1.msra.mxu0 0.0
    %2806 = vmatprep.mubr.f32.mxu0 0.0
    %2807 = vmatmul.mubr.f32.gmra.mrb[0].mxu0 %v2644
    %v2808 = vpop.f32.mrb[0].mxu0
    %v2809 = vadd.f32 0.0, %v2808
    %v2810 = vpop.f32.mrb[0].mxu0
    %2811 = vmatprep.mubr.f32.mxu0 0.0
    %2812 = vmatmul.mubr.f32.gmra.mrb[0].mxu0 %v2647
    %v2813 = vpop.f32.mrb[0].mxu0
    %v2814 = vadd.f32 0.0, %v2813
    %v2815 = vpop.f32.mrb[0].mxu0
    %2816 = vmatprep.mubr.f32.mxu0 0.0
    %2817 = vmatmul.mubr.f32.gmra.mrb[0].mxu0 %v2650
    %v2818 = vpop.f32.mrb[0].mxu0
    %v2819 = vadd.f32 0.0, %v2818
    %v2820 = vpop.f32.mrb[0].mxu0
    %2821 = vmatprep.mubr.f32.mxu0 0.0
    %2822 = vmatmul.mubr.f32.gmra.mrb[0].mxu0 %v2653
    %v2823 = vpop.f32.mrb[0].mxu0
    %v2824 = vadd.f32 0.0, %v2823
    %v2825 = vpop.f32.mrb[0].mxu0
    %2826 = vmatprep.mubr.f32.mxu0 0.0
    %2827 = vmatmul.mubr.f32.gmra.mrb[0].mxu0 %v2656
    %v2828 = vpop.f32.mrb[0].mxu0
    %v2829 = vadd.f32 0.0, %v2828
    %v2830 = vpop.f32.mrb[0].mxu0
    %2831 = vmatprep.mubr.f32.mxu0 0.0
    %2832 = vmatmul.mubr.f32.gmra.mrb[0].mxu0 %v2659
    %v2833 = vpop.f32.mrb[0].mxu0
    %v2834 = vadd.f32 0.0, %v2833
    %v2835 = vpop.f32.mrb[0].mxu0
    %2836 = vmatprep.mubr.f32.mxu0 0.0
    %2837 = vmatmul.mubr.f32.gmra.mrb[0].mxu0 %v2662
    %v2838 = vpop.f32.mrb[0].mxu0
    %v2839 = vadd.f32 0.0, %v2838
    %v2840 = vpop.f32.mrb[0].mxu0
    %2841 = vmatprep.mubr.f32.mxu0 0.0
    %2842 = vmatmul.mubr.f32.gmra.mrb[0].mxu0 %v2665
    %v2843 = vpop.f32.mrb[0].mxu0
    %v2844 = vadd.f32 0.0, %v2843
    %v2845 = vpop.f32.mrb[0].mxu0
    %2846 = vmatprep.mubr.f32.mxu0 0.0
    %2847 = vmatmul.mubr.f32.gmra.mrb[0].mxu0 %v2668
    %v2848 = vpop.f32.mrb[0].mxu0
    %v2849 = vadd.f32 0.0, %v2848
    %v2850 = vpop.f32.mrb[0].mxu0
    %2851 = vmatprep.mubr.f32.mxu0 0.0
    %2852 = vmatmul.mubr.f32.gmra.mrb[0].mxu0 %v2671
    %v2853 = vpop.f32.mrb[0].mxu0
    %v2854 = vadd.f32 0.0, %v2853
    %v2855 = vpop.f32.mrb[0].mxu0
    %2856 = vmatprep.mubr.f32.mxu0 0.0
    %2857 = vmatmul.mubr.f32.gmra.mrb[0].mxu0 %v2674
    %v2858 = vpop.f32.mrb[0].mxu0
    %v2859 = vadd.f32 0.0, %v2858
    %v2860 = vpop.f32.mrb[0].mxu0
    %2861 = vmatprep.mubr.f32.mxu0 0.0
    %2862 = vmatmul.mubr.f32.gmra.mrb[0].mxu0 %v2677
    %v2863 = vpop.f32.mrb[0].mxu0
    %v2864 = vadd.f32 0.0, %v2863
    %v2865 = vpop.f32.mrb[0].mxu0
    %2866 = vmatprep.mubr.f32.mxu0 0.0
    %2867 = vmatmul.mubr.f32.gmra.mrb[0].mxu0 %v2680
    %v2868 = vpop.f32.mrb[0].mxu0
    %v2869 = vadd.f32 0.0, %v2868
    %v2870 = vpop.f32.mrb[0].mxu0
    %2871 = vmatprep.mubr.f32.mxu0 0.0
    %2872 = vmatmul.mubr.f32.gmra.mrb[0].mxu0 %v2683
    %v2873 = vpop.f32.mrb[0].mxu0
    %v2874 = vadd.f32 0.0, %v2873
    %v2875 = vpop.f32.mrb[0].mxu0
    %2876 = vmatprep.mubr.f32.mxu0 0.0
    %2877 = vmatmul.mubr.f32.gmra.mrb[0].mxu0 %v2686
    %v2878 = vpop.f32.mrb[0].mxu0
    %v2879 = vadd.f32 0.0, %v2878
    %v2880 = vpop.f32.mrb[0].mxu0
    %2881 = vmatprep.mubr.f32.mxu0 0.0
    %2882 = vmatmul.mubr.f32.gmra.mrb[0].mxu0 %v2689
    %v2883 = vpop.f32.mrb[0].mxu0
    %v2884 = vadd.f32 0.0, %v2883
    %v2885 = vpop.f32.mrb[0].mxu0
    %2886 = vmatprep.mubr.f32.mxu0 0.0
    %2887 = vmatmul.mubr.f32.gmra.mrb[0].mxu0 %v2692
    %v2888 = vpop.f32.mrb[0].mxu0
    %v2889 = vadd.f32 0.0, %v2888
    %v2890 = vpop.f32.mrb[0].mxu0
    %2891 = vmatprep.mubr.f32.mxu0 0.0
    %2892 = vmatmul.mubr.f32.gmra.mrb[0].mxu0 %v2695
    %v2893 = vpop.f32.mrb[0].mxu0
    %v2894 = vadd.f32 0.0, %v2893
    %v2895 = vpop.f32.mrb[0].mxu0
    %2896 = vmatprep.mubr.f32.mxu0 0.0
    %2897 = vmatmul.mubr.f32.gmra.mrb[0].mxu0 %v2698
    %v2898 = vpop.f32.mrb[0].mxu0
    %v2899 = vadd.f32 0.0, %v2898
    %v2900 = vpop.f32.mrb[0].mxu0
    %2901 = vmatprep.mubr.f32.mxu0 0.0
    %2902 = vmatmul.mubr.f32.gmra.mrb[0].mxu0 %v2701
    %v2903 = vpop.f32.mrb[0].mxu0
    %v2904 = vadd.f32 0.0, %v2903
    %v2905 = vpop.f32.mrb[0].mxu0
    %2906 = vmatprep.mubr.f32.mxu0 0.0
    %2907 = vmatmul.mubr.f32.gmra.mrb[0].mxu0 %v2704
    %v2908 = vpop.f32.mrb[0].mxu0
    %v2909 = vadd.f32 0.0, %v2908
    %v2910 = vpop.f32.mrb[0].mxu0
    %2911 = vmatprep.mubr.f32.mxu0 0.0
    %2912 = vmatmul.mubr.f32.gmra.mrb[0].mxu0 %v2707
    %v2913 = vpop.f32.mrb[0].mxu0
    %v2914 = vadd.f32 0.0, %v2913
    %v2915 = vpop.f32.mrb[0].mxu0
    %2916 = vmatprep.mubr.f32.mxu0 0.0
    %2917 = vmatmul.mubr.f32.gmra.mrb[0].mxu0 %v2710
    %v2918 = vpop.f32.mrb[0].mxu0
    %v2919 = vadd.f32 0.0, %v2918
    %v2920 = vpop.f32.mrb[0].mxu0
    %2921 = vmatprep.mubr.f32.mxu0 0.0
    %2922 = vmatmul.mubr.f32.gmra.mrb[0].mxu0 %v2713
    %v2923 = vpop.f32.mrb[0].mxu0
    %v2924 = vadd.f32 0.0, %v2923
    %v2925 = vpop.f32.mrb[0].mxu0
    %2926 = vmatprep.mubr.f32.mxu0 0.0
    %2927 = vmatmul.mubr.f32.gmra.mrb[0].mxu0 %v2716
    %v2928 = vpop.f32.mrb[0].mxu0
    %v2929 = vadd.f32 0.0, %v2928
    %v2930 = vpop.f32.mrb[0].mxu0
    %2931 = vmatprep.mubr.f32.mxu0 0.0
    %2932 = vmatmul.mubr.f32.gmra.mrb[0].mxu0 %v2719
    %v2933 = vpop.f32.mrb[0].mxu0
    %v2934 = vadd.f32 0.0, %v2933
    %v2935 = vpop.f32.mrb[0].mxu0
    %2936 = vmatprep.mubr.f32.mxu0 0.0
    %2937 = vmatmul.mubr.f32.gmra.mrb[0].mxu0 %v2722
    %v2938 = vpop.f32.mrb[0].mxu0
    %v2939 = vadd.f32 0.0, %v2938
    %v2940 = vpop.f32.mrb[0].mxu0
    %2941 = vmatprep.mubr.f32.mxu0 0.0
    %2942 = vmatmul.mubr.f32.gmra.mrb[0].mxu0 %v2725
    %v2943 = vpop.f32.mrb[0].mxu0
    %v2944 = vadd.f32 0.0, %v2943
    %v2945 = vpop.f32.mrb[0].mxu0
    %2946 = vmatprep.mubr.f32.mxu0 0.0
    %2947 = vmatmul.mubr.f32.gmra.mrb[0].mxu0 %v2728
    %v2948 = vpop.f32.mrb[0].mxu0
    %v2949 = vadd.f32 0.0, %v2948
    %v2950 = vpop.f32.mrb[0].mxu0
    %2951 = vmatprep.mubr.f32.mxu0 0.0
    %2952 = vmatmul.mubr.f32.gmra.mrb[0].mxu0 %v2731
    %v2953 = vpop.f32.mrb[0].mxu0
    %v2954 = vadd.f32 0.0, %v2953
    %v2955 = vpop.f32.mrb[0].mxu0
    %2956 = vmatprep.mubr.f32.mxu0 0.0
    %2957 = vmatmul.mubr.f32.gmra.mrb[0].mxu0 %v2734
    %v2958 = vpop.f32.mrb[0].mxu0
    %v2959 = vadd.f32 0.0, %v2958
    %v2960 = vpop.f32.mrb[0].mxu0
    %2961 = vmatprep.mubr.f32.mxu0 0.0
    %2962 = vmatmul.mubr.f32.gmra.mrb[0].mxu0 %v2737
    %v2963 = vpop.f32.mrb[0].mxu0
    %v2964 = vadd.f32 0.0, %v2963
    %v2965 = vpop.f32.mrb[0].mxu0
    %2966 = vdwg.mxu0
    %v2967 = vadd.f32 %v2609, %v2809
    %v2968 = vadd.f32 %v2610, %v2814
    %v2969 = vadd.f32 %v2611, %v2819
    %v2970 = vadd.f32 %v2612, %v2824
    %v2971 = vadd.f32 %v2613, %v2829
    %v2972 = vadd.f32 %v2614, %v2834
    %v2973 = vadd.f32 %v2615, %v2839
    %v2974 = vadd.f32 %v2616, %v2844
    %v2975 = vadd.f32 %v2617, %v2849
    %v2976 = vadd.f32 %v2618, %v2854
    %v2977 = vadd.f32 %v2619, %v2859
    %v2978 = vadd.f32 %v2620, %v2864
    %v2979 = vadd.f32 %v2621, %v2869
    %v2980 = vadd.f32 %v2622, %v2874
    %v2981 = vadd.f32 %v2623, %v2879
    %v2982 = vadd.f32 %v2624, %v2884
    %v2983 = vadd.f32 %v2625, %v2889
    %v2984 = vadd.f32 %v2626, %v2894
    %v2985 = vadd.f32 %v2627, %v2899
    %v2986 = vadd.f32 %v2628, %v2904
    %v2987 = vadd.f32 %v2629, %v2909
    %v2988 = vadd.f32 %v2630, %v2914
    %v2989 = vadd.f32 %v2631, %v2919
    %v2990 = vadd.f32 %v2632, %v2924
    %v2991 = vadd.f32 %v2633, %v2929
    %v2992 = vadd.f32 %v2634, %v2934
    %v2993 = vadd.f32 %v2635, %v2939
    %v2994 = vadd.f32 %v2636, %v2944
    %v2995 = vadd.f32 %v2637, %v2949
    %v2996 = vadd.f32 %v2638, %v2954
    %v2997 = vadd.f32 %v2639, %v2959
    %v2998 = vadd.f32 %v2640, %v2964
    %v2999 = vld [vmem:[#allocation6] sm:$0x1]
    %v3001 = vlaneseq
    %v3002 = vshrl.u32 %v3001, 7
    %v3003 = vsub.s32 0, %v3002
    %v3004 = vrot.slane %v2999, %v3003
    %v3006 = vadd.f32 %v2967, %v3004
    %v3007 = vadd.f32 %v2968, %v3004
    %v3008 = vadd.f32 %v2969, %v3004
    %v3009 = vadd.f32 %v2970, %v3004
    %v3010 = vadd.f32 %v2971, %v3004
    %v3011 = vadd.f32 %v2972, %v3004
    %v3012 = vadd.f32 %v2973, %v3004
    %v3013 = vadd.f32 %v2974, %v3004
    %v3014 = vadd.f32 %v2975, %v3004
    %v3015 = vadd.f32 %v2976, %v3004
    %v3016 = vadd.f32 %v2977, %v3004
    %v3017 = vadd.f32 %v2978, %v3004
    %v3018 = vadd.f32 %v2979, %v3004
    %v3019 = vadd.f32 %v2980, %v3004
    %v3020 = vadd.f32 %v2981, %v3004
    %v3021 = vadd.f32 %v2982, %v3004
    %v3022 = vadd.f32 %v2983, %v3004
    %v3023 = vadd.f32 %v2984, %v3004
    %v3024 = vadd.f32 %v2985, %v3004
    %v3025 = vadd.f32 %v2986, %v3004
    %v3026 = vadd.f32 %v2987, %v3004
    %v3027 = vadd.f32 %v2988, %v3004
    %v3028 = vadd.f32 %v2989, %v3004
    %v3029 = vadd.f32 %v2990, %v3004
    %v3030 = vadd.f32 %v2991, %v3004
    %v3031 = vadd.f32 %v2992, %v3004
    %v3032 = vadd.f32 %v2993, %v3004
    %v3033 = vadd.f32 %v2994, %v3004
    %v3034 = vadd.f32 %v2995, %v3004
    %v3035 = vadd.f32 %v2996, %v3004
    %v3036 = vadd.f32 %v2997, %v3004
    %v3037 = vadd.f32 %v2998, %v3004
    %v3038 = vpack.c.bf16 %v3007, %v3006
    %v3039 = vpack.c.bf16 %v3009, %v3008
    %v3040 = vpack.c.bf16 %v3011, %v3010
    %v3041 = vpack.c.bf16 %v3013, %v3012
    %v3042 = vpack.c.bf16 %v3015, %v3014
    %v3043 = vpack.c.bf16 %v3017, %v3016
    %v3044 = vpack.c.bf16 %v3019, %v3018
    %v3045 = vpack.c.bf16 %v3021, %v3020
    %v3046 = vpack.c.bf16 %v3023, %v3022
    %v3047 = vpack.c.bf16 %v3025, %v3024
    %v3048 = vpack.c.bf16 %v3027, %v3026
    %v3049 = vpack.c.bf16 %v3029, %v3028
    %v3050 = vpack.c.bf16 %v3031, %v3030
    %v3051 = vpack.c.bf16 %v3033, %v3032
    %v3052 = vpack.c.bf16 %v3035, %v3034
    %v3053 = vpack.c.bf16 %v3037, %v3036
    %v3054 = vld [vmem:[%s8] sm:$0xf]
    %v3055 = vld [vmem:[%s8 + $0x4] sm:$0xf]
    %v3056 = vld [vmem:[%s8 + $0x8] sm:$0xf]
    %v3057 = vld [vmem:[%s8 + $0xc] sm:$0xf]
    %v3058 = vld [vmem:[%s8 + $0x10] sm:$0xf]
    %v3059 = vld [vmem:[%s8 + $0x14] sm:$0xf]
    %v3060 = vld [vmem:[%s8 + $0x18] sm:$0xf]
    %v3061 = vld [vmem:[%s8 + $0x1c] sm:$0xf]
    %v3062 = vld [vmem:[%s8 + $0x20] sm:$0xf]
    %v3063 = vld [vmem:[%s8 + $0x24] sm:$0xf]
    %v3064 = vld [vmem:[%s8 + $0x28] sm:$0xf]
    %v3065 = vld [vmem:[%s8 + $0x2c] sm:$0xf]
    %v3066 = vld [vmem:[%s8 + $0x30] sm:$0xf]
    %v3067 = vld [vmem:[%s8 + $0x34] sm:$0xf]
    %v3068 = vld [vmem:[%s8 + $0x38] sm:$0xf]
    %v3069 = vld [vmem:[%s8 + $0x3c] sm:$0xf]
    %v3070 = vld [vmem:[#allocation7] sm:$0x1]
    %v3071 = vlaneseq
    %v3072 = vshrl.u32 %v3071, 7
    %v3073 = vsub.s32 0, %v3072
    %v3074 = vrot.slane %v3070, %v3073
    %v3091 = vunpack.c.l.b16 %v3054
    %v3092 = vunpack.c.l.b16 %v3055
    %v3093 = vunpack.c.l.b16 %v3056
    %v3094 = vunpack.c.l.b16 %v3057
    %v3095 = vunpack.c.l.b16 %v3058
    %v3096 = vunpack.c.l.b16 %v3059
    %v3097 = vunpack.c.l.b16 %v3060
    %v3098 = vunpack.c.l.b16 %v3061
    %v3099 = vunpack.c.l.b16 %v3062
    %v3100 = vunpack.c.l.b16 %v3063
    %v3101 = vunpack.c.l.b16 %v3064
    %v3102 = vunpack.c.l.b16 %v3065
    %v3103 = vunpack.c.l.b16 %v3066
    %v3104 = vunpack.c.l.b16 %v3067
    %v3105 = vunpack.c.l.b16 %v3068
    %v3106 = vunpack.c.l.b16 %v3069
    %v3107 = vpack.c.b16 %v3092, %v3091
    %v3108 = vpack.c.b16 %v3094, %v3093
    %v3109 = vpack.c.b16 %v3096, %v3095
    %v3110 = vpack.c.b16 %v3098, %v3097
    %v3111 = vpack.c.b16 %v3100, %v3099
    %v3112 = vpack.c.b16 %v3102, %v3101
    %v3113 = vpack.c.b16 %v3104, %v3103
    %v3114 = vpack.c.b16 %v3106, %v3105
    %3123 = vmatprep.subr.bf16.mxu0 0
    %3124 = vmatpush1.bf16.msra.mxu0 %v3107
    %3125 = vmatprep.subr.bf16.mxu0 0
    %3126 = vmatpush1.bf16.msra.mxu0 %v3108
    %3127 = vmatprep.subr.bf16.mxu0 0
    %3128 = vmatpush1.bf16.msra.mxu0 %v3109
    %3129 = vmatprep.subr.bf16.mxu0 0
    %3130 = vmatpush1.bf16.msra.mxu0 %v3110
    %3131 = vmatprep.subr.bf16.mxu0 0
    %3132 = vmatpush1.bf16.msra.mxu0 %v3111
    %3133 = vmatprep.subr.bf16.mxu0 0
    %3134 = vmatpush1.bf16.msra.mxu0 %v3112
    %3135 = vmatprep.subr.bf16.mxu0 0
    %3136 = vmatpush1.bf16.msra.mxu0 %v3113
    %3137 = vmatprep.subr.bf16.mxu0 0
    %3138 = vmatpush1.bf16.msra.mxu0 %v3114
    %3139 = vmatprep.subr.bf16.mxu0 0
    %3140 = vmatpush1.bf16.msra.mxu0 0
    %3141 = vmatprep.subr.bf16.mxu0 0
    %3142 = vmatpush1.bf16.msra.mxu0 0
    %3143 = vmatprep.subr.bf16.mxu0 0
    %3144 = vmatpush1.bf16.msra.mxu0 0
    %3145 = vmatprep.subr.bf16.mxu0 0
    %3146 = vmatpush1.bf16.msra.mxu0 0
    %3147 = vmatprep.subr.bf16.mxu0 0
    %3148 = vmatpush1.bf16.msra.mxu0 0
    %3149 = vmatprep.subr.bf16.mxu0 0
    %3150 = vmatpush1.bf16.msra.mxu0 0
    %3151 = vmatprep.subr.bf16.mxu0 0
    %3152 = vmatpush1.bf16.msra.mxu0 0
    %3153 = vmatprep.subr.bf16.mxu0 0
    %3154 = vmatpush1.bf16.msra.mxu0 0
    %3155 = vmatprep.mubr.bf16.mxu0 0
    %3156 = vmatmul.mubr.bf16.gmra.mrb[0].mxu0 %v3038
    %v3157 = vpop.f32.mrb[0].mxu0
    %v3158 = vadd.f32 %v3074, %v3157
    %v3159 = vpop.f32.mrb[0].mxu0
    %v3160 = vpop.f32.mrb[0].mxu0
    %v3161 = vadd.f32 %v3074, %v3160
    %v3162 = vpop.f32.mrb[0].mxu0
    %3163 = vmatprep.mubr.bf16.mxu0 0
    %3164 = vmatmul.mubr.bf16.gmra.mrb[0].mxu0 %v3039
    %v3165 = vpop.f32.mrb[0].mxu0
    %v3166 = vadd.f32 %v3074, %v3165
    %v3167 = vpop.f32.mrb[0].mxu0
    %v3168 = vpop.f32.mrb[0].mxu0
    %v3169 = vadd.f32 %v3074, %v3168
    %v3170 = vpop.f32.mrb[0].mxu0
    %3171 = vmatprep.mubr.bf16.mxu0 0
    %3172 = vmatmul.mubr.bf16.gmra.mrb[0].mxu0 %v3040
    %v3173 = vpop.f32.mrb[0].mxu0
    %v3174 = vadd.f32 %v3074, %v3173
    %v3175 = vpop.f32.mrb[0].mxu0
    %v3176 = vpop.f32.mrb[0].mxu0
    %v3177 = vadd.f32 %v3074, %v3176
    %v3178 = vpop.f32.mrb[0].mxu0
    %3179 = vmatprep.mubr.bf16.mxu0 0
    %3180 = vmatmul.mubr.bf16.gmra.mrb[0].mxu0 %v3041
    %v3181 = vpop.f32.mrb[0].mxu0
    %v3182 = vadd.f32 %v3074, %v3181
    %v3183 = vpop.f32.mrb[0].mxu0
    %v3184 = vpop.f32.mrb[0].mxu0
    %v3185 = vadd.f32 %v3074, %v3184
    %v3186 = vpop.f32.mrb[0].mxu0
    %3187 = vmatprep.mubr.bf16.mxu0 0
    %3188 = vmatmul.mubr.bf16.gmra.mrb[0].mxu0 %v3042
    %v3189 = vpop.f32.mrb[0].mxu0
    %v3190 = vadd.f32 %v3074, %v3189
    %v3191 = vpop.f32.mrb[0].mxu0
    %v3192 = vpop.f32.mrb[0].mxu0
    %v3193 = vadd.f32 %v3074, %v3192
    %v3194 = vpop.f32.mrb[0].mxu0
    %3195 = vmatprep.mubr.bf16.mxu0 0
    %3196 = vmatmul.mubr.bf16.gmra.mrb[0].mxu0 %v3043
    %v3197 = vpop.f32.mrb[0].mxu0
    %v3198 = vadd.f32 %v3074, %v3197
    %v3199 = vpop.f32.mrb[0].mxu0
    %v3200 = vpop.f32.mrb[0].mxu0
    %v3201 = vadd.f32 %v3074, %v3200
    %v3202 = vpop.f32.mrb[0].mxu0
    %3203 = vmatprep.mubr.bf16.mxu0 0
    %3204 = vmatmul.mubr.bf16.gmra.mrb[0].mxu0 %v3044
    %v3205 = vpop.f32.mrb[0].mxu0
    %v3206 = vadd.f32 %v3074, %v3205
    %v3207 = vpop.f32.mrb[0].mxu0
    %v3208 = vpop.f32.mrb[0].mxu0
    %v3209 = vadd.f32 %v3074, %v3208
    %v3210 = vpop.f32.mrb[0].mxu0
    %3211 = vmatprep.mubr.bf16.mxu0 0
    %3212 = vmatmul.mubr.bf16.gmra.mrb[0].mxu0 %v3045
    %v3213 = vpop.f32.mrb[0].mxu0
    %v3214 = vadd.f32 %v3074, %v3213
    %v3215 = vpop.f32.mrb[0].mxu0
    %v3216 = vpop.f32.mrb[0].mxu0
    %v3217 = vadd.f32 %v3074, %v3216
    %v3218 = vpop.f32.mrb[0].mxu0
    %3219 = vmatprep.mubr.bf16.mxu0 0
    %3220 = vmatmul.mubr.bf16.gmra.mrb[0].mxu0 %v3046
    %v3221 = vpop.f32.mrb[0].mxu0
    %v3222 = vadd.f32 %v3074, %v3221
    %v3223 = vpop.f32.mrb[0].mxu0
    %v3224 = vpop.f32.mrb[0].mxu0
    %v3225 = vadd.f32 %v3074, %v3224
    %v3226 = vpop.f32.mrb[0].mxu0
    %3227 = vmatprep.mubr.bf16.mxu0 0
    %3228 = vmatmul.mubr.bf16.gmra.mrb[0].mxu0 %v3047
    %v3229 = vpop.f32.mrb[0].mxu0
    %v3230 = vadd.f32 %v3074, %v3229
    %v3231 = vpop.f32.mrb[0].mxu0
    %v3232 = vpop.f32.mrb[0].mxu0
    %v3233 = vadd.f32 %v3074, %v3232
    %v3234 = vpop.f32.mrb[0].mxu0
    %3235 = vmatprep.mubr.bf16.mxu0 0
    %3236 = vmatmul.mubr.bf16.gmra.mrb[0].mxu0 %v3048
    %v3237 = vpop.f32.mrb[0].mxu0
    %v3238 = vadd.f32 %v3074, %v3237
    %v3239 = vpop.f32.mrb[0].mxu0
    %v3240 = vpop.f32.mrb[0].mxu0
    %v3241 = vadd.f32 %v3074, %v3240
    %v3242 = vpop.f32.mrb[0].mxu0
    %3243 = vmatprep.mubr.bf16.mxu0 0
    %3244 = vmatmul.mubr.bf16.gmra.mrb[0].mxu0 %v3049
    %v3245 = vpop.f32.mrb[0].mxu0
    %v3246 = vadd.f32 %v3074, %v3245
    %v3247 = vpop.f32.mrb[0].mxu0
    %v3248 = vpop.f32.mrb[0].mxu0
    %v3249 = vadd.f32 %v3074, %v3248
    %v3250 = vpop.f32.mrb[0].mxu0
    %3251 = vmatprep.mubr.bf16.mxu0 0
    %3252 = vmatmul.mubr.bf16.gmra.mrb[0].mxu0 %v3050
    %v3253 = vpop.f32.mrb[0].mxu0
    %v3254 = vadd.f32 %v3074, %v3253
    %v3255 = vpop.f32.mrb[0].mxu0
    %v3256 = vpop.f32.mrb[0].mxu0
    %v3257 = vadd.f32 %v3074, %v3256
    %v3258 = vpop.f32.mrb[0].mxu0
    %3259 = vmatprep.mubr.bf16.mxu0 0
    %3260 = vmatmul.mubr.bf16.gmra.mrb[0].mxu0 %v3051
    %v3261 = vpop.f32.mrb[0].mxu0
    %v3262 = vadd.f32 %v3074, %v3261
    %v3263 = vpop.f32.mrb[0].mxu0
    %v3264 = vpop.f32.mrb[0].mxu0
    %v3265 = vadd.f32 %v3074, %v3264
    %v3266 = vpop.f32.mrb[0].mxu0
    %3267 = vmatprep.mubr.bf16.mxu0 0
    %3268 = vmatmul.mubr.bf16.gmra.mrb[0].mxu0 %v3052
    %v3269 = vpop.f32.mrb[0].mxu0
    %v3270 = vadd.f32 %v3074, %v3269
    %v3271 = vpop.f32.mrb[0].mxu0
    %v3272 = vpop.f32.mrb[0].mxu0
    %v3273 = vadd.f32 %v3074, %v3272
    %v3274 = vpop.f32.mrb[0].mxu0
    %3275 = vmatprep.mubr.bf16.mxu0 0
    %3276 = vmatmul.mubr.bf16.gmra.mrb[0].mxu0 %v3053
    %v3277 = vpop.f32.mrb[0].mxu0
    %v3278 = vadd.f32 %v3074, %v3277
    %v3279 = vpop.f32.mrb[0].mxu0
    %v3280 = vpop.f32.mrb[0].mxu0
    %v3281 = vadd.f32 %v3074, %v3280
    %v3282 = vpop.f32.mrb[0].mxu0
    %3283 = vdwg.mxu0
    %v3284 = vmax.f32 %v3158, 0.0
    %v3285 = vmax.f32 %v3161, 0.0
    %v3286 = vmax.f32 %v3166, 0.0
    %v3287 = vmax.f32 %v3169, 0.0
    %v3288 = vmax.f32 %v3174, 0.0
    %v3289 = vmax.f32 %v3177, 0.0
    %v3290 = vmax.f32 %v3182, 0.0
    %v3291 = vmax.f32 %v3185, 0.0
    %v3292 = vmax.f32 %v3190, 0.0
    %v3293 = vmax.f32 %v3193, 0.0
    %v3294 = vmax.f32 %v3198, 0.0
    %v3295 = vmax.f32 %v3201, 0.0
    %v3296 = vmax.f32 %v3206, 0.0
    %v3297 = vmax.f32 %v3209, 0.0
    %v3298 = vmax.f32 %v3214, 0.0
    %v3299 = vmax.f32 %v3217, 0.0
    %v3300 = vmax.f32 %v3222, 0.0
    %v3301 = vmax.f32 %v3225, 0.0
    %v3302 = vmax.f32 %v3230, 0.0
    %v3303 = vmax.f32 %v3233, 0.0
    %v3304 = vmax.f32 %v3238, 0.0
    %v3305 = vmax.f32 %v3241, 0.0
    %v3306 = vmax.f32 %v3246, 0.0
    %v3307 = vmax.f32 %v3249, 0.0
    %v3308 = vmax.f32 %v3254, 0.0
    %v3309 = vmax.f32 %v3257, 0.0
    %v3310 = vmax.f32 %v3262, 0.0
    %v3311 = vmax.f32 %v3265, 0.0
    %v3312 = vmax.f32 %v3270, 0.0
    %v3313 = vmax.f32 %v3273, 0.0
    %v3314 = vmax.f32 %v3278, 0.0
    %v3315 = vmax.f32 %v3281, 0.0
    %v3316 = vpack.c.bf16 %v3285, %v3284
    %v3317 = vpack.c.bf16 %v3287, %v3286
    %v3318 = vpack.c.bf16 %v3289, %v3288
    %v3319 = vpack.c.bf16 %v3291, %v3290
    %v3320 = vpack.c.bf16 %v3293, %v3292
    %v3321 = vpack.c.bf16 %v3295, %v3294
    %v3322 = vpack.c.bf16 %v3297, %v3296
    %v3323 = vpack.c.bf16 %v3299, %v3298
    %v3324 = vpack.c.bf16 %v3301, %v3300
    %v3325 = vpack.c.bf16 %v3303, %v3302
    %v3326 = vpack.c.bf16 %v3305, %v3304
    %v3327 = vpack.c.bf16 %v3307, %v3306
    %v3328 = vpack.c.bf16 %v3309, %v3308
    %v3329 = vpack.c.bf16 %v3311, %v3310
    %v3330 = vpack.c.bf16 %v3313, %v3312
    %v3331 = vpack.c.bf16 %v3315, %v3314
    %s3332 = scalar_lea.vmem %s8, 64
    %v3333 = vld [vmem:[%s3332] sm:$0xf]
    %v3334 = vld [vmem:[%s3332 + $0x4] sm:$0xf]
    %v3335 = vld [vmem:[%s3332 + $0x8] sm:$0xf]
    %v3336 = vld [vmem:[%s3332 + $0xc] sm:$0xf]
    %v3337 = vld [vmem:[%s3332 + $0x10] sm:$0xf]
    %v3338 = vld [vmem:[%s3332 + $0x14] sm:$0xf]
    %v3339 = vld [vmem:[%s3332 + $0x18] sm:$0xf]
    %v3340 = vld [vmem:[%s3332 + $0x1c] sm:$0xf]
    %v3341 = vld [vmem:[%s3332 + $0x20] sm:$0xf]
    %v3342 = vld [vmem:[%s3332 + $0x24] sm:$0xf]
    %v3343 = vld [vmem:[%s3332 + $0x28] sm:$0xf]
    %v3344 = vld [vmem:[%s3332 + $0x2c] sm:$0xf]
    %v3345 = vld [vmem:[%s3332 + $0x30] sm:$0xf]
    %v3346 = vld [vmem:[%s3332 + $0x34] sm:$0xf]
    %v3347 = vld [vmem:[%s3332 + $0x38] sm:$0xf]
    %v3348 = vld [vmem:[%s3332 + $0x3c] sm:$0xf]
    %v3349 = vld [vmem:[#allocation7 + $0x1] sm:$0x1]
    %v3350 = vlaneseq
    %v3351 = vshrl.u32 %v3350, 7
    %v3352 = vsub.s32 0, %v3351
    %v3353 = vrot.slane %v3349, %v3352
    %v3370 = vunpack.c.l.b16 %v3333
    %v3371 = vunpack.c.l.b16 %v3334
    %v3372 = vunpack.c.l.b16 %v3335
    %v3373 = vunpack.c.l.b16 %v3336
    %v3374 = vunpack.c.l.b16 %v3337
    %v3375 = vunpack.c.l.b16 %v3338
    %v3376 = vunpack.c.l.b16 %v3339
    %v3377 = vunpack.c.l.b16 %v3340
    %v3378 = vunpack.c.l.b16 %v3341
    %v3379 = vunpack.c.l.b16 %v3342
    %v3380 = vunpack.c.l.b16 %v3343
    %v3381 = vunpack.c.l.b16 %v3344
    %v3382 = vunpack.c.l.b16 %v3345
    %v3383 = vunpack.c.l.b16 %v3346
    %v3384 = vunpack.c.l.b16 %v3347
    %v3385 = vunpack.c.l.b16 %v3348
    %v3386 = vpack.c.b16 %v3371, %v3370
    %v3387 = vpack.c.b16 %v3373, %v3372
    %v3388 = vpack.c.b16 %v3375, %v3374
    %v3389 = vpack.c.b16 %v3377, %v3376
    %v3390 = vpack.c.b16 %v3379, %v3378
    %v3391 = vpack.c.b16 %v3381, %v3380
    %v3392 = vpack.c.b16 %v3383, %v3382
    %v3393 = vpack.c.b16 %v3385, %v3384
    %3402 = vmatprep.subr.bf16.mxu0 0
    %3403 = vmatpush1.bf16.msra.mxu0 %v3386
    %3404 = vmatprep.subr.bf16.mxu0 0
    %3405 = vmatpush1.bf16.msra.mxu0 %v3387
    %3406 = vmatprep.subr.bf16.mxu0 0
    %3407 = vmatpush1.bf16.msra.mxu0 %v3388
    %3408 = vmatprep.subr.bf16.mxu0 0
    %3409 = vmatpush1.bf16.msra.mxu0 %v3389
    %3410 = vmatprep.subr.bf16.mxu0 0
    %3411 = vmatpush1.bf16.msra.mxu0 %v3390
    %3412 = vmatprep.subr.bf16.mxu0 0
    %3413 = vmatpush1.bf16.msra.mxu0 %v3391
    %3414 = vmatprep.subr.bf16.mxu0 0
    %3415 = vmatpush1.bf16.msra.mxu0 %v3392
    %3416 = vmatprep.subr.bf16.mxu0 0
    %3417 = vmatpush1.bf16.msra.mxu0 %v3393
    %3418 = vmatprep.subr.bf16.mxu0 0
    %3419 = vmatpush1.bf16.msra.mxu0 0
    %3420 = vmatprep.subr.bf16.mxu0 0
    %3421 = vmatpush1.bf16.msra.mxu0 0
    %3422 = vmatprep.subr.bf16.mxu0 0
    %3423 = vmatpush1.bf16.msra.mxu0 0
    %3424 = vmatprep.subr.bf16.mxu0 0
    %3425 = vmatpush1.bf16.msra.mxu0 0
    %3426 = vmatprep.subr.bf16.mxu0 0
    %3427 = vmatpush1.bf16.msra.mxu0 0
    %3428 = vmatprep.subr.bf16.mxu0 0
    %3429 = vmatpush1.bf16.msra.mxu0 0
    %3430 = vmatprep.subr.bf16.mxu0 0
    %3431 = vmatpush1.bf16.msra.mxu0 0
    %3432 = vmatprep.subr.bf16.mxu0 0
    %3433 = vmatpush1.bf16.msra.mxu0 0
    %3434 = vmatprep.mubr.bf16.mxu0 0
    %3435 = vmatmul.mubr.bf16.gmra.mrb[0].mxu0 %v3316
    %v3436 = vpop.f32.mrb[0].mxu0
    %v3437 = vadd.f32 %v3353, %v3436
    %v3438 = vpop.f32.mrb[0].mxu0
    %v3439 = vpop.f32.mrb[0].mxu0
    %v3440 = vadd.f32 %v3353, %v3439
    %v3441 = vpop.f32.mrb[0].mxu0
    %3442 = vmatprep.mubr.bf16.mxu0 0
    %3443 = vmatmul.mubr.bf16.gmra.mrb[0].mxu0 %v3317
    %v3444 = vpop.f32.mrb[0].mxu0
    %v3445 = vadd.f32 %v3353, %v3444
    %v3446 = vpop.f32.mrb[0].mxu0
    %v3447 = vpop.f32.mrb[0].mxu0
    %v3448 = vadd.f32 %v3353, %v3447
    %v3449 = vpop.f32.mrb[0].mxu0
    %3450 = vmatprep.mubr.bf16.mxu0 0
    %3451 = vmatmul.mubr.bf16.gmra.mrb[0].mxu0 %v3318
    %v3452 = vpop.f32.mrb[0].mxu0
    %v3453 = vadd.f32 %v3353, %v3452
    %v3454 = vpop.f32.mrb[0].mxu0
    %v3455 = vpop.f32.mrb[0].mxu0
    %v3456 = vadd.f32 %v3353, %v3455
    %v3457 = vpop.f32.mrb[0].mxu0
    %3458 = vmatprep.mubr.bf16.mxu0 0
    %3459 = vmatmul.mubr.bf16.gmra.mrb[0].mxu0 %v3319
    %v3460 = vpop.f32.mrb[0].mxu0
    %v3461 = vadd.f32 %v3353, %v3460
    %v3462 = vpop.f32.mrb[0].mxu0
    %v3463 = vpop.f32.mrb[0].mxu0
    %v3464 = vadd.f32 %v3353, %v3463
    %v3465 = vpop.f32.mrb[0].mxu0
    %3466 = vmatprep.mubr.bf16.mxu0 0
    %3467 = vmatmul.mubr.bf16.gmra.mrb[0].mxu0 %v3320
    %v3468 = vpop.f32.mrb[0].mxu0
    %v3469 = vadd.f32 %v3353, %v3468
    %v3470 = vpop.f32.mrb[0].mxu0
    %v3471 = vpop.f32.mrb[0].mxu0
    %v3472 = vadd.f32 %v3353, %v3471
    %v3473 = vpop.f32.mrb[0].mxu0
    %3474 = vmatprep.mubr.bf16.mxu0 0
    %3475 = vmatmul.mubr.bf16.gmra.mrb[0].mxu0 %v3321
    %v3476 = vpop.f32.mrb[0].mxu0
    %v3477 = vadd.f32 %v3353, %v3476
    %v3478 = vpop.f32.mrb[0].mxu0
    %v3479 = vpop.f32.mrb[0].mxu0
    %v3480 = vadd.f32 %v3353, %v3479
    %v3481 = vpop.f32.mrb[0].mxu0
    %3482 = vmatprep.mubr.bf16.mxu0 0
    %3483 = vmatmul.mubr.bf16.gmra.mrb[0].mxu0 %v3322
    %v3484 = vpop.f32.mrb[0].mxu0
    %v3485 = vadd.f32 %v3353, %v3484
    %v3486 = vpop.f32.mrb[0].mxu0
    %v3487 = vpop.f32.mrb[0].mxu0
    %v3488 = vadd.f32 %v3353, %v3487
    %v3489 = vpop.f32.mrb[0].mxu0
    %3490 = vmatprep.mubr.bf16.mxu0 0
    %3491 = vmatmul.mubr.bf16.gmra.mrb[0].mxu0 %v3323
    %v3492 = vpop.f32.mrb[0].mxu0
    %v3493 = vadd.f32 %v3353, %v3492
    %v3494 = vpop.f32.mrb[0].mxu0
    %v3495 = vpop.f32.mrb[0].mxu0
    %v3496 = vadd.f32 %v3353, %v3495
    %v3497 = vpop.f32.mrb[0].mxu0
    %3498 = vmatprep.mubr.bf16.mxu0 0
    %3499 = vmatmul.mubr.bf16.gmra.mrb[0].mxu0 %v3324
    %v3500 = vpop.f32.mrb[0].mxu0
    %v3501 = vadd.f32 %v3353, %v3500
    %v3502 = vpop.f32.mrb[0].mxu0
    %v3503 = vpop.f32.mrb[0].mxu0
    %v3504 = vadd.f32 %v3353, %v3503
    %v3505 = vpop.f32.mrb[0].mxu0
    %3506 = vmatprep.mubr.bf16.mxu0 0
    %3507 = vmatmul.mubr.bf16.gmra.mrb[0].mxu0 %v3325
    %v3508 = vpop.f32.mrb[0].mxu0
    %v3509 = vadd.f32 %v3353, %v3508
    %v3510 = vpop.f32.mrb[0].mxu0
    %v3511 = vpop.f32.mrb[0].mxu0
    %v3512 = vadd.f32 %v3353, %v3511
    %v3513 = vpop.f32.mrb[0].mxu0
    %3514 = vmatprep.mubr.bf16.mxu0 0
    %3515 = vmatmul.mubr.bf16.gmra.mrb[0].mxu0 %v3326
    %v3516 = vpop.f32.mrb[0].mxu0
    %v3517 = vadd.f32 %v3353, %v3516
    %v3518 = vpop.f32.mrb[0].mxu0
    %v3519 = vpop.f32.mrb[0].mxu0
    %v3520 = vadd.f32 %v3353, %v3519
    %v3521 = vpop.f32.mrb[0].mxu0
    %3522 = vmatprep.mubr.bf16.mxu0 0
    %3523 = vmatmul.mubr.bf16.gmra.mrb[0].mxu0 %v3327
    %v3524 = vpop.f32.mrb[0].mxu0
    %v3525 = vadd.f32 %v3353, %v3524
    %v3526 = vpop.f32.mrb[0].mxu0
    %v3527 = vpop.f32.mrb[0].mxu0
    %v3528 = vadd.f32 %v3353, %v3527
    %v3529 = vpop.f32.mrb[0].mxu0
    %3530 = vmatprep.mubr.bf16.mxu0 0
    %3531 = vmatmul.mubr.bf16.gmra.mrb[0].mxu0 %v3328
    %v3532 = vpop.f32.mrb[0].mxu0
    %v3533 = vadd.f32 %v3353, %v3532
    %v3534 = vpop.f32.mrb[0].mxu0
    %v3535 = vpop.f32.mrb[0].mxu0
    %v3536 = vadd.f32 %v3353, %v3535
    %v3537 = vpop.f32.mrb[0].mxu0
    %3538 = vmatprep.mubr.bf16.mxu0 0
    %3539 = vmatmul.mubr.bf16.gmra.mrb[0].mxu0 %v3329
    %v3540 = vpop.f32.mrb[0].mxu0
    %v3541 = vadd.f32 %v3353, %v3540
    %v3542 = vpop.f32.mrb[0].mxu0
    %v3543 = vpop.f32.mrb[0].mxu0
    %v3544 = vadd.f32 %v3353, %v3543
    %v3545 = vpop.f32.mrb[0].mxu0
    %3546 = vmatprep.mubr.bf16.mxu0 0
    %3547 = vmatmul.mubr.bf16.gmra.mrb[0].mxu0 %v3330
    %v3548 = vpop.f32.mrb[0].mxu0
    %v3549 = vadd.f32 %v3353, %v3548
    %v3550 = vpop.f32.mrb[0].mxu0
    %v3551 = vpop.f32.mrb[0].mxu0
    %v3552 = vadd.f32 %v3353, %v3551
    %v3553 = vpop.f32.mrb[0].mxu0
    %3554 = vmatprep.mubr.bf16.mxu0 0
    %3555 = vmatmul.mubr.bf16.gmra.mrb[0].mxu0 %v3331
    %v3556 = vpop.f32.mrb[0].mxu0
    %v3557 = vadd.f32 %v3353, %v3556
    %v3558 = vpop.f32.mrb[0].mxu0
    %v3559 = vpop.f32.mrb[0].mxu0
    %v3560 = vadd.f32 %v3353, %v3559
    %v3561 = vpop.f32.mrb[0].mxu0
    %3562 = vdwg.mxu0
    %v3563 = vmax.f32 %v3437, 0.0
    %v3564 = vmax.f32 %v3440, 0.0
    %v3565 = vmax.f32 %v3445, 0.0
    %v3566 = vmax.f32 %v3448, 0.0
    %v3567 = vmax.f32 %v3453, 0.0
    %v3568 = vmax.f32 %v3456, 0.0
    %v3569 = vmax.f32 %v3461, 0.0
    %v3570 = vmax.f32 %v3464, 0.0
    %v3571 = vmax.f32 %v3469, 0.0
    %v3572 = vmax.f32 %v3472, 0.0
    %v3573 = vmax.f32 %v3477, 0.0
    %v3574 = vmax.f32 %v3480, 0.0
    %v3575 = vmax.f32 %v3485, 0.0
    %v3576 = vmax.f32 %v3488, 0.0
    %v3577 = vmax.f32 %v3493, 0.0
    %v3578 = vmax.f32 %v3496, 0.0
    %v3579 = vmax.f32 %v3501, 0.0
    %v3580 = vmax.f32 %v3504, 0.0
    %v3581 = vmax.f32 %v3509, 0.0
    %v3582 = vmax.f32 %v3512, 0.0
    %v3583 = vmax.f32 %v3517, 0.0
    %v3584 = vmax.f32 %v3520, 0.0
    %v3585 = vmax.f32 %v3525, 0.0
    %v3586 = vmax.f32 %v3528, 0.0
    %v3587 = vmax.f32 %v3533, 0.0
    %v3588 = vmax.f32 %v3536, 0.0
    %v3589 = vmax.f32 %v3541, 0.0
    %v3590 = vmax.f32 %v3544, 0.0
    %v3591 = vmax.f32 %v3549, 0.0
    %v3592 = vmax.f32 %v3552, 0.0
    %v3593 = vmax.f32 %v3557, 0.0
    %v3594 = vmax.f32 %v3560, 0.0
    %v3595 = vadd.f32 %v3563, %v3006
    %v3596 = vadd.f32 %v3564, %v3007
    %v3597 = vadd.f32 %v3565, %v3008
    %v3598 = vadd.f32 %v3566, %v3009
    %v3599 = vadd.f32 %v3567, %v3010
    %v3600 = vadd.f32 %v3568, %v3011
    %v3601 = vadd.f32 %v3569, %v3012
    %v3602 = vadd.f32 %v3570, %v3013
    %v3603 = vadd.f32 %v3571, %v3014
    %v3604 = vadd.f32 %v3572, %v3015
    %v3605 = vadd.f32 %v3573, %v3016
    %v3606 = vadd.f32 %v3574, %v3017
    %v3607 = vadd.f32 %v3575, %v3018
    %v3608 = vadd.f32 %v3576, %v3019
    %v3609 = vadd.f32 %v3577, %v3020
    %v3610 = vadd.f32 %v3578, %v3021
    %v3611 = vadd.f32 %v3579, %v3022
    %v3612 = vadd.f32 %v3580, %v3023
    %v3613 = vadd.f32 %v3581, %v3024
    %v3614 = vadd.f32 %v3582, %v3025
    %v3615 = vadd.f32 %v3583, %v3026
    %v3616 = vadd.f32 %v3584, %v3027
    %v3617 = vadd.f32 %v3585, %v3028
    %v3618 = vadd.f32 %v3586, %v3029
    %v3619 = vadd.f32 %v3587, %v3030
    %v3620 = vadd.f32 %v3588, %v3031
    %v3621 = vadd.f32 %v3589, %v3032
    %v3622 = vadd.f32 %v3590, %v3033
    %v3623 = vadd.f32 %v3591, %v3034
    %v3624 = vadd.f32 %v3592, %v3035
    %v3625 = vadd.f32 %v3593, %v3036
    %v3626 = vadd.f32 %v3594, %v3037
    %v3627 = vmax.f32 %v3595, 0.0
    %v3628 = vmax.f32 %v3596, 0.0
    %v3629 = vmax.f32 %v3597, 0.0
    %v3630 = vmax.f32 %v3598, 0.0
    %v3631 = vmax.f32 %v3599, 0.0
    %v3632 = vmax.f32 %v3600, 0.0
    %v3633 = vmax.f32 %v3601, 0.0
    %v3634 = vmax.f32 %v3602, 0.0
    %v3635 = vmax.f32 %v3603, 0.0
    %v3636 = vmax.f32 %v3604, 0.0
    %v3637 = vmax.f32 %v3605, 0.0
    %v3638 = vmax.f32 %v3606, 0.0
    %v3639 = vmax.f32 %v3607, 0.0
    %v3640 = vmax.f32 %v3608, 0.0
    %v3641 = vmax.f32 %v3609, 0.0
    %v3642 = vmax.f32 %v3610, 0.0
    %v3643 = vmax.f32 %v3611, 0.0
    %v3644 = vmax.f32 %v3612, 0.0
    %v3645 = vmax.f32 %v3613, 0.0
    %v3646 = vmax.f32 %v3614, 0.0
    %v3647 = vmax.f32 %v3615, 0.0
    %v3648 = vmax.f32 %v3616, 0.0
    %v3649 = vmax.f32 %v3617, 0.0
    %v3650 = vmax.f32 %v3618, 0.0
    %v3651 = vmax.f32 %v3619, 0.0
    %v3652 = vmax.f32 %v3620, 0.0
    %v3653 = vmax.f32 %v3621, 0.0
    %v3654 = vmax.f32 %v3622, 0.0
    %v3655 = vmax.f32 %v3623, 0.0
    %v3656 = vmax.f32 %v3624, 0.0
    %v3657 = vmax.f32 %v3625, 0.0
    %v3658 = vmax.f32 %v3626, 0.0
    %v3659 = vpack.c.bf16 %v3628, %v3627
    %v3660 = vpack.c.bf16 %v3630, %v3629
    %v3661 = vpack.c.bf16 %v3632, %v3631
    %v3662 = vpack.c.bf16 %v3634, %v3633
    %v3663 = vpack.c.bf16 %v3636, %v3635
    %v3664 = vpack.c.bf16 %v3638, %v3637
    %v3665 = vpack.c.bf16 %v3640, %v3639
    %v3666 = vpack.c.bf16 %v3642, %v3641
    %v3667 = vpack.c.bf16 %v3644, %v3643
    %v3668 = vpack.c.bf16 %v3646, %v3645
    %v3669 = vpack.c.bf16 %v3648, %v3647
    %v3670 = vpack.c.bf16 %v3650, %v3649
    %v3671 = vpack.c.bf16 %v3652, %v3651
    %v3672 = vpack.c.bf16 %v3654, %v3653
    %v3673 = vpack.c.bf16 %v3656, %v3655
    %v3674 = vpack.c.bf16 %v3658, %v3657
    %s3675 = scalar_lea.vmem %s8, 128
    %v3676 = vld [vmem:[%s3675] sm:$0xf]
    %v3677 = vld [vmem:[%s3675 + $0x4] sm:$0xf]
    %v3678 = vld [vmem:[%s3675 + $0x8] sm:$0xf]
    %v3679 = vld [vmem:[%s3675 + $0xc] sm:$0xf]
    %v3680 = vld [vmem:[%s3675 + $0x10] sm:$0xf]
    %v3681 = vld [vmem:[%s3675 + $0x14] sm:$0xf]
    %v3682 = vld [vmem:[%s3675 + $0x18] sm:$0xf]
    %v3683 = vld [vmem:[%s3675 + $0x1c] sm:$0xf]
    %v3684 = vld [vmem:[%s3675 + $0x20] sm:$0xf]
    %v3685 = vld [vmem:[%s3675 + $0x24] sm:$0xf]
    %v3686 = vld [vmem:[%s3675 + $0x28] sm:$0xf]
    %v3687 = vld [vmem:[%s3675 + $0x2c] sm:$0xf]
    %v3688 = vld [vmem:[%s3675 + $0x30] sm:$0xf]
    %v3689 = vld [vmem:[%s3675 + $0x34] sm:$0xf]
    %v3690 = vld [vmem:[%s3675 + $0x38] sm:$0xf]
    %v3691 = vld [vmem:[%s3675 + $0x3c] sm:$0xf]
    %v3692 = vld [vmem:[#allocation7 + $0x2] sm:$0x1]
    %v3693 = vlaneseq
    %v3694 = vshrl.u32 %v3693, 7
    %v3695 = vsub.s32 0, %v3694
    %v3696 = vrot.slane %v3692, %v3695
    %v3713 = vunpack.c.l.b16 %v3676
    %v3714 = vunpack.c.l.b16 %v3677
    %v3715 = vunpack.c.l.b16 %v3678
    %v3716 = vunpack.c.l.b16 %v3679
    %v3717 = vunpack.c.l.b16 %v3680
    %v3718 = vunpack.c.l.b16 %v3681
    %v3719 = vunpack.c.l.b16 %v3682
    %v3720 = vunpack.c.l.b16 %v3683
    %v3721 = vunpack.c.l.b16 %v3684
    %v3722 = vunpack.c.l.b16 %v3685
    %v3723 = vunpack.c.l.b16 %v3686
    %v3724 = vunpack.c.l.b16 %v3687
    %v3725 = vunpack.c.l.b16 %v3688
    %v3726 = vunpack.c.l.b16 %v3689
    %v3727 = vunpack.c.l.b16 %v3690
    %v3728 = vunpack.c.l.b16 %v3691
    %v3729 = vpack.c.b16 %v3714, %v3713
    %v3730 = vpack.c.b16 %v3716, %v3715
    %v3731 = vpack.c.b16 %v3718, %v3717
    %v3732 = vpack.c.b16 %v3720, %v3719
    %v3733 = vpack.c.b16 %v3722, %v3721
    %v3734 = vpack.c.b16 %v3724, %v3723
    %v3735 = vpack.c.b16 %v3726, %v3725
    %v3736 = vpack.c.b16 %v3728, %v3727
    %3745 = vmatprep.subr.bf16.mxu0 0
    %3746 = vmatpush1.bf16.msra.mxu0 %v3729
    %3747 = vmatprep.subr.bf16.mxu0 0
    %3748 = vmatpush1.bf16.msra.mxu0 %v3730
    %3749 = vmatprep.subr.bf16.mxu0 0
    %3750 = vmatpush1.bf16.msra.mxu0 %v3731
    %3751 = vmatprep.subr.bf16.mxu0 0
    %3752 = vmatpush1.bf16.msra.mxu0 %v3732
    %3753 = vmatprep.subr.bf16.mxu0 0
    %3754 = vmatpush1.bf16.msra.mxu0 %v3733
    %3755 = vmatprep.subr.bf16.mxu0 0
    %3756 = vmatpush1.bf16.msra.mxu0 %v3734
    %3757 = vmatprep.subr.bf16.mxu0 0
    %3758 = vmatpush1.bf16.msra.mxu0 %v3735
    %3759 = vmatprep.subr.bf16.mxu0 0
    %3760 = vmatpush1.bf16.msra.mxu0 %v3736
    %3761 = vmatprep.subr.bf16.mxu0 0
    %3762 = vmatpush1.bf16.msra.mxu0 0
    %3763 = vmatprep.subr.bf16.mxu0 0
    %3764 = vmatpush1.bf16.msra.mxu0 0
    %3765 = vmatprep.subr.bf16.mxu0 0
    %3766 = vmatpush1.bf16.msra.mxu0 0
    %3767 = vmatprep.subr.bf16.mxu0 0
    %3768 = vmatpush1.bf16.msra.mxu0 0
    %3769 = vmatprep.subr.bf16.mxu0 0
    %3770 = vmatpush1.bf16.msra.mxu0 0
    %3771 = vmatprep.subr.bf16.mxu0 0
    %3772 = vmatpush1.bf16.msra.mxu0 0
    %3773 = vmatprep.subr.bf16.mxu0 0
    %3774 = vmatpush1.bf16.msra.mxu0 0
    %3775 = vmatprep.subr.bf16.mxu0 0
    %3776 = vmatpush1.bf16.msra.mxu0 0
    %3777 = vmatprep.mubr.bf16.mxu0 0
    %3778 = vmatmul.mubr.bf16.gmra.mrb[0].mxu0 %v3659
    %v3779 = vpop.f32.mrb[0].mxu0
    %v3780 = vadd.f32 %v3696, %v3779
    %v3781 = vpop.f32.mrb[0].mxu0
    %v3782 = vpop.f32.mrb[0].mxu0
    %v3783 = vadd.f32 %v3696, %v3782
    %v3784 = vpop.f32.mrb[0].mxu0
    %3785 = vmatprep.mubr.bf16.mxu0 0
    %3786 = vmatmul.mubr.bf16.gmra.mrb[0].mxu0 %v3660
    %v3787 = vpop.f32.mrb[0].mxu0
    %v3788 = vadd.f32 %v3696, %v3787
    %v3789 = vpop.f32.mrb[0].mxu0
    %v3790 = vpop.f32.mrb[0].mxu0
    %v3791 = vadd.f32 %v3696, %v3790
    %v3792 = vpop.f32.mrb[0].mxu0
    %3793 = vmatprep.mubr.bf16.mxu0 0
    %3794 = vmatmul.mubr.bf16.gmra.mrb[0].mxu0 %v3661
    %v3795 = vpop.f32.mrb[0].mxu0
    %v3796 = vadd.f32 %v3696, %v3795
    %v3797 = vpop.f32.mrb[0].mxu0
    %v3798 = vpop.f32.mrb[0].mxu0
    %v3799 = vadd.f32 %v3696, %v3798
    %v3800 = vpop.f32.mrb[0].mxu0
    %3801 = vmatprep.mubr.bf16.mxu0 0
    %3802 = vmatmul.mubr.bf16.gmra.mrb[0].mxu0 %v3662
    %v3803 = vpop.f32.mrb[0].mxu0
    %v3804 = vadd.f32 %v3696, %v3803
    %v3805 = vpop.f32.mrb[0].mxu0
    %v3806 = vpop.f32.mrb[0].mxu0
    %v3807 = vadd.f32 %v3696, %v3806
    %v3808 = vpop.f32.mrb[0].mxu0
    %3809 = vmatprep.mubr.bf16.mxu0 0
    %3810 = vmatmul.mubr.bf16.gmra.mrb[0].mxu0 %v3663
    %v3811 = vpop.f32.mrb[0].mxu0
    %v3812 = vadd.f32 %v3696, %v3811
    %v3813 = vpop.f32.mrb[0].mxu0
    %v3814 = vpop.f32.mrb[0].mxu0
    %v3815 = vadd.f32 %v3696, %v3814
    %v3816 = vpop.f32.mrb[0].mxu0
    %3817 = vmatprep.mubr.bf16.mxu0 0
    %3818 = vmatmul.mubr.bf16.gmra.mrb[0].mxu0 %v3664
    %v3819 = vpop.f32.mrb[0].mxu0
    %v3820 = vadd.f32 %v3696, %v3819
    %v3821 = vpop.f32.mrb[0].mxu0
    %v3822 = vpop.f32.mrb[0].mxu0
    %v3823 = vadd.f32 %v3696, %v3822
    %v3824 = vpop.f32.mrb[0].mxu0
    %3825 = vmatprep.mubr.bf16.mxu0 0
    %3826 = vmatmul.mubr.bf16.gmra.mrb[0].mxu0 %v3665
    %v3827 = vpop.f32.mrb[0].mxu0
    %v3828 = vadd.f32 %v3696, %v3827
    %v3829 = vpop.f32.mrb[0].mxu0
    %v3830 = vpop.f32.mrb[0].mxu0
    %v3831 = vadd.f32 %v3696, %v3830
    %v3832 = vpop.f32.mrb[0].mxu0
    %3833 = vmatprep.mubr.bf16.mxu0 0
    %3834 = vmatmul.mubr.bf16.gmra.mrb[0].mxu0 %v3666
    %v3835 = vpop.f32.mrb[0].mxu0
    %v3836 = vadd.f32 %v3696, %v3835
    %v3837 = vpop.f32.mrb[0].mxu0
    %v3838 = vpop.f32.mrb[0].mxu0
    %v3839 = vadd.f32 %v3696, %v3838
    %v3840 = vpop.f32.mrb[0].mxu0
    %3841 = vmatprep.mubr.bf16.mxu0 0
    %3842 = vmatmul.mubr.bf16.gmra.mrb[0].mxu0 %v3667
    %v3843 = vpop.f32.mrb[0].mxu0
    %v3844 = vadd.f32 %v3696, %v3843
    %v3845 = vpop.f32.mrb[0].mxu0
    %v3846 = vpop.f32.mrb[0].mxu0
    %v3847 = vadd.f32 %v3696, %v3846
    %v3848 = vpop.f32.mrb[0].mxu0
    %3849 = vmatprep.mubr.bf16.mxu0 0
    %3850 = vmatmul.mubr.bf16.gmra.mrb[0].mxu0 %v3668
    %v3851 = vpop.f32.mrb[0].mxu0
    %v3852 = vadd.f32 %v3696, %v3851
    %v3853 = vpop.f32.mrb[0].mxu0
    %v3854 = vpop.f32.mrb[0].mxu0
    %v3855 = vadd.f32 %v3696, %v3854
    %v3856 = vpop.f32.mrb[0].mxu0
    %3857 = vmatprep.mubr.bf16.mxu0 0
    %3858 = vmatmul.mubr.bf16.gmra.mrb[0].mxu0 %v3669
    %v3859 = vpop.f32.mrb[0].mxu0
    %v3860 = vadd.f32 %v3696, %v3859
    %v3861 = vpop.f32.mrb[0].mxu0
    %v3862 = vpop.f32.mrb[0].mxu0
    %v3863 = vadd.f32 %v3696, %v3862
    %v3864 = vpop.f32.mrb[0].mxu0
    %3865 = vmatprep.mubr.bf16.mxu0 0
    %3866 = vmatmul.mubr.bf16.gmra.mrb[0].mxu0 %v3670
    %v3867 = vpop.f32.mrb[0].mxu0
    %v3868 = vadd.f32 %v3696, %v3867
    %v3869 = vpop.f32.mrb[0].mxu0
    %v3870 = vpop.f32.mrb[0].mxu0
    %v3871 = vadd.f32 %v3696, %v3870
    %v3872 = vpop.f32.mrb[0].mxu0
    %3873 = vmatprep.mubr.bf16.mxu0 0
    %3874 = vmatmul.mubr.bf16.gmra.mrb[0].mxu0 %v3671
    %v3875 = vpop.f32.mrb[0].mxu0
    %v3876 = vadd.f32 %v3696, %v3875
    %v3877 = vpop.f32.mrb[0].mxu0
    %v3878 = vpop.f32.mrb[0].mxu0
    %v3879 = vadd.f32 %v3696, %v3878
    %v3880 = vpop.f32.mrb[0].mxu0
    %3881 = vmatprep.mubr.bf16.mxu0 0
    %3882 = vmatmul.mubr.bf16.gmra.mrb[0].mxu0 %v3672
    %v3883 = vpop.f32.mrb[0].mxu0
    %v3884 = vadd.f32 %v3696, %v3883
    %v3885 = vpop.f32.mrb[0].mxu0
    %v3886 = vpop.f32.mrb[0].mxu0
    %v3887 = vadd.f32 %v3696, %v3886
    %v3888 = vpop.f32.mrb[0].mxu0
    %3889 = vmatprep.mubr.bf16.mxu0 0
    %3890 = vmatmul.mubr.bf16.gmra.mrb[0].mxu0 %v3673
    %v3891 = vpop.f32.mrb[0].mxu0
    %v3892 = vadd.f32 %v3696, %v3891
    %v3893 = vpop.f32.mrb[0].mxu0
    %v3894 = vpop.f32.mrb[0].mxu0
    %v3895 = vadd.f32 %v3696, %v3894
    %v3896 = vpop.f32.mrb[0].mxu0
    %3897 = vmatprep.mubr.bf16.mxu0 0
    %3898 = vmatmul.mubr.bf16.gmra.mrb[0].mxu0 %v3674
    %v3899 = vpop.f32.mrb[0].mxu0
    %v3900 = vadd.f32 %v3696, %v3899
    %v3901 = vpop.f32.mrb[0].mxu0
    %v3902 = vpop.f32.mrb[0].mxu0
    %v3903 = vadd.f32 %v3696, %v3902
    %v3904 = vpop.f32.mrb[0].mxu0
    %3905 = vdwg.mxu0
    %v3906 = vmax.f32 %v3780, 0.0
    %v3907 = vmax.f32 %v3783, 0.0
    %v3908 = vmax.f32 %v3788, 0.0
    %v3909 = vmax.f32 %v3791, 0.0
    %v3910 = vmax.f32 %v3796, 0.0
    %v3911 = vmax.f32 %v3799, 0.0
    %v3912 = vmax.f32 %v3804, 0.0
    %v3913 = vmax.f32 %v3807, 0.0
    %v3914 = vmax.f32 %v3812, 0.0
    %v3915 = vmax.f32 %v3815, 0.0
    %v3916 = vmax.f32 %v3820, 0.0
    %v3917 = vmax.f32 %v3823, 0.0
    %v3918 = vmax.f32 %v3828, 0.0
    %v3919 = vmax.f32 %v3831, 0.0
    %v3920 = vmax.f32 %v3836, 0.0
    %v3921 = vmax.f32 %v3839, 0.0
    %v3922 = vmax.f32 %v3844, 0.0
    %v3923 = vmax.f32 %v3847, 0.0
    %v3924 = vmax.f32 %v3852, 0.0
    %v3925 = vmax.f32 %v3855, 0.0
    %v3926 = vmax.f32 %v3860, 0.0
    %v3927 = vmax.f32 %v3863, 0.0
    %v3928 = vmax.f32 %v3868, 0.0
    %v3929 = vmax.f32 %v3871, 0.0
    %v3930 = vmax.f32 %v3876, 0.0
    %v3931 = vmax.f32 %v3879, 0.0
    %v3932 = vmax.f32 %v3884, 0.0
    %v3933 = vmax.f32 %v3887, 0.0
    %v3934 = vmax.f32 %v3892, 0.0
    %v3935 = vmax.f32 %v3895, 0.0
    %v3936 = vmax.f32 %v3900, 0.0
    %v3937 = vmax.f32 %v3903, 0.0
    %v3938 = vpack.c.bf16 %v3907, %v3906
    %v3939 = vpack.c.bf16 %v3909, %v3908
    %v3940 = vpack.c.bf16 %v3911, %v3910
    %v3941 = vpack.c.bf16 %v3913, %v3912
    %v3942 = vpack.c.bf16 %v3915, %v3914
    %v3943 = vpack.c.bf16 %v3917, %v3916
    %v3944 = vpack.c.bf16 %v3919, %v3918
    %v3945 = vpack.c.bf16 %v3921, %v3920
    %v3946 = vpack.c.bf16 %v3923, %v3922
    %v3947 = vpack.c.bf16 %v3925, %v3924
    %v3948 = vpack.c.bf16 %v3927, %v3926
    %v3949 = vpack.c.bf16 %v3929, %v3928
    %v3950 = vpack.c.bf16 %v3931, %v3930
    %v3951 = vpack.c.bf16 %v3933, %v3932
    %v3952 = vpack.c.bf16 %v3935, %v3934
    %v3953 = vpack.c.bf16 %v3937, %v3936
    %s3954 = scalar_lea.vmem %s8, 192
    %v3955 = vld [vmem:[%s3954] sm:$0xf]
    %v3956 = vld [vmem:[%s3954 + $0x4] sm:$0xf]
    %v3957 = vld [vmem:[%s3954 + $0x8] sm:$0xf]
    %v3958 = vld [vmem:[%s3954 + $0xc] sm:$0xf]
    %v3959 = vld [vmem:[%s3954 + $0x10] sm:$0xf]
    %v3960 = vld [vmem:[%s3954 + $0x14] sm:$0xf]
    %v3961 = vld [vmem:[%s3954 + $0x18] sm:$0xf]
    %v3962 = vld [vmem:[%s3954 + $0x1c] sm:$0xf]
    %v3963 = vld [vmem:[%s3954 + $0x20] sm:$0xf]
    %v3964 = vld [vmem:[%s3954 + $0x24] sm:$0xf]
    %v3965 = vld [vmem:[%s3954 + $0x28] sm:$0xf]
    %v3966 = vld [vmem:[%s3954 + $0x2c] sm:$0xf]
    %v3967 = vld [vmem:[%s3954 + $0x30] sm:$0xf]
    %v3968 = vld [vmem:[%s3954 + $0x34] sm:$0xf]
    %v3969 = vld [vmem:[%s3954 + $0x38] sm:$0xf]
    %v3970 = vld [vmem:[%s3954 + $0x3c] sm:$0xf]
    %v3971 = vld [vmem:[#allocation7 + $0x3] sm:$0x1]
    %v3972 = vlaneseq
    %v3973 = vshrl.u32 %v3972, 7
    %v3974 = vsub.s32 0, %v3973
    %v3975 = vrot.slane %v3971, %v3974
    %v3992 = vunpack.c.l.b16 %v3955
    %v3993 = vunpack.c.l.b16 %v3956
    %v3994 = vunpack.c.l.b16 %v3957
    %v3995 = vunpack.c.l.b16 %v3958
    %v3996 = vunpack.c.l.b16 %v3959
    %v3997 = vunpack.c.l.b16 %v3960
    %v3998 = vunpack.c.l.b16 %v3961
    %v3999 = vunpack.c.l.b16 %v3962
    %v4000 = vunpack.c.l.b16 %v3963
    %v4001 = vunpack.c.l.b16 %v3964
    %v4002 = vunpack.c.l.b16 %v3965
    %v4003 = vunpack.c.l.b16 %v3966
    %v4004 = vunpack.c.l.b16 %v3967
    %v4005 = vunpack.c.l.b16 %v3968
    %v4006 = vunpack.c.l.b16 %v3969
    %v4007 = vunpack.c.l.b16 %v3970
    %v4008 = vpack.c.b16 %v3993, %v3992
    %v4009 = vpack.c.b16 %v3995, %v3994
    %v4010 = vpack.c.b16 %v3997, %v3996
    %v4011 = vpack.c.b16 %v3999, %v3998
    %v4012 = vpack.c.b16 %v4001, %v4000
    %v4013 = vpack.c.b16 %v4003, %v4002
    %v4014 = vpack.c.b16 %v4005, %v4004
    %v4015 = vpack.c.b16 %v4007, %v4006
    %4024 = vmatprep.subr.bf16.mxu0 0
    %4025 = vmatpush1.bf16.msra.mxu0 %v4008
    %4026 = vmatprep.subr.bf16.mxu0 0
    %4027 = vmatpush1.bf16.msra.mxu0 %v4009
    %4028 = vmatprep.subr.bf16.mxu0 0
    %4029 = vmatpush1.bf16.msra.mxu0 %v4010
    %4030 = vmatprep.subr.bf16.mxu0 0
    %4031 = vmatpush1.bf16.msra.mxu0 %v4011
    %4032 = vmatprep.subr.bf16.mxu0 0
    %4033 = vmatpush1.bf16.msra.mxu0 %v4012
    %4034 = vmatprep.subr.bf16.mxu0 0
    %4035 = vmatpush1.bf16.msra.mxu0 %v4013
    %4036 = vmatprep.subr.bf16.mxu0 0
    %4037 = vmatpush1.bf16.msra.mxu0 %v4014
    %4038 = vmatprep.subr.bf16.mxu0 0
    %4039 = vmatpush1.bf16.msra.mxu0 %v4015
    %4040 = vmatprep.subr.bf16.mxu0 0
    %4041 = vmatpush1.bf16.msra.mxu0 0
    %4042 = vmatprep.subr.bf16.mxu0 0
    %4043 = vmatpush1.bf16.msra.mxu0 0
    %4044 = vmatprep.subr.bf16.mxu0 0
    %4045 = vmatpush1.bf16.msra.mxu0 0
    %4046 = vmatprep.subr.bf16.mxu0 0
    %4047 = vmatpush1.bf16.msra.mxu0 0
    %4048 = vmatprep.subr.bf16.mxu0 0
    %4049 = vmatpush1.bf16.msra.mxu0 0
    %4050 = vmatprep.subr.bf16.mxu0 0
    %4051 = vmatpush1.bf16.msra.mxu0 0
    %4052 = vmatprep.subr.bf16.mxu0 0
    %4053 = vmatpush1.bf16.msra.mxu0 0
    %4054 = vmatprep.subr.bf16.mxu0 0
    %4055 = vmatpush1.bf16.msra.mxu0 0
    %4056 = vmatprep.mubr.bf16.mxu0 0
    %4057 = vmatmul.mubr.bf16.gmra.mrb[0].mxu0 %v3938
    %v4058 = vpop.f32.mrb[0].mxu0
    %v4059 = vadd.f32 %v3975, %v4058
    %v4060 = vpop.f32.mrb[0].mxu0
    %v4061 = vpop.f32.mrb[0].mxu0
    %v4062 = vadd.f32 %v3975, %v4061
    %v4063 = vpop.f32.mrb[0].mxu0
    %4064 = vmatprep.mubr.bf16.mxu0 0
    %4065 = vmatmul.mubr.bf16.gmra.mrb[0].mxu0 %v3939
    %v4066 = vpop.f32.mrb[0].mxu0
    %v4067 = vadd.f32 %v3975, %v4066
    %v4068 = vpop.f32.mrb[0].mxu0
    %v4069 = vpop.f32.mrb[0].mxu0
    %v4070 = vadd.f32 %v3975, %v4069
    %v4071 = vpop.f32.mrb[0].mxu0
    %4072 = vmatprep.mubr.bf16.mxu0 0
    %4073 = vmatmul.mubr.bf16.gmra.mrb[0].mxu0 %v3940
    %v4074 = vpop.f32.mrb[0].mxu0
    %v4075 = vadd.f32 %v3975, %v4074
    %v4076 = vpop.f32.mrb[0].mxu0
    %v4077 = vpop.f32.mrb[0].mxu0
    %v4078 = vadd.f32 %v3975, %v4077
    %v4079 = vpop.f32.mrb[0].mxu0
    %4080 = vmatprep.mubr.bf16.mxu0 0
    %4081 = vmatmul.mubr.bf16.gmra.mrb[0].mxu0 %v3941
    %v4082 = vpop.f32.mrb[0].mxu0
    %v4083 = vadd.f32 %v3975, %v4082
    %v4084 = vpop.f32.mrb[0].mxu0
    %v4085 = vpop.f32.mrb[0].mxu0
    %v4086 = vadd.f32 %v3975, %v4085
    %v4087 = vpop.f32.mrb[0].mxu0
    %4088 = vmatprep.mubr.bf16.mxu0 0
    %4089 = vmatmul.mubr.bf16.gmra.mrb[0].mxu0 %v3942
    %v4090 = vpop.f32.mrb[0].mxu0
    %v4091 = vadd.f32 %v3975, %v4090
    %v4092 = vpop.f32.mrb[0].mxu0
    %v4093 = vpop.f32.mrb[0].mxu0
    %v4094 = vadd.f32 %v3975, %v4093
    %v4095 = vpop.f32.mrb[0].mxu0
    %4096 = vmatprep.mubr.bf16.mxu0 0
    %4097 = vmatmul.mubr.bf16.gmra.mrb[0].mxu0 %v3943
    %v4098 = vpop.f32.mrb[0].mxu0
    %v4099 = vadd.f32 %v3975, %v4098
    %v4100 = vpop.f32.mrb[0].mxu0
    %v4101 = vpop.f32.mrb[0].mxu0
    %v4102 = vadd.f32 %v3975, %v4101
    %v4103 = vpop.f32.mrb[0].mxu0
    %4104 = vmatprep.mubr.bf16.mxu0 0
    %4105 = vmatmul.mubr.bf16.gmra.mrb[0].mxu0 %v3944
    %v4106 = vpop.f32.mrb[0].mxu0
    %v4107 = vadd.f32 %v3975, %v4106
    %v4108 = vpop.f32.mrb[0].mxu0
    %v4109 = vpop.f32.mrb[0].mxu0
    %v4110 = vadd.f32 %v3975, %v4109
    %v4111 = vpop.f32.mrb[0].mxu0
    %4112 = vmatprep.mubr.bf16.mxu0 0
    %4113 = vmatmul.mubr.bf16.gmra.mrb[0].mxu0 %v3945
    %v4114 = vpop.f32.mrb[0].mxu0
    %v4115 = vadd.f32 %v3975, %v4114
    %v4116 = vpop.f32.mrb[0].mxu0
    %v4117 = vpop.f32.mrb[0].mxu0
    %v4118 = vadd.f32 %v3975, %v4117
    %v4119 = vpop.f32.mrb[0].mxu0
    %4120 = vmatprep.mubr.bf16.mxu0 0
    %4121 = vmatmul.mubr.bf16.gmra.mrb[0].mxu0 %v3946
    %v4122 = vpop.f32.mrb[0].mxu0
    %v4123 = vadd.f32 %v3975, %v4122
    %v4124 = vpop.f32.mrb[0].mxu0
    %v4125 = vpop.f32.mrb[0].mxu0
    %v4126 = vadd.f32 %v3975, %v4125
    %v4127 = vpop.f32.mrb[0].mxu0
    %4128 = vmatprep.mubr.bf16.mxu0 0
    %4129 = vmatmul.mubr.bf16.gmra.mrb[0].mxu0 %v3947
    %v4130 = vpop.f32.mrb[0].mxu0
    %v4131 = vadd.f32 %v3975, %v4130
    %v4132 = vpop.f32.mrb[0].mxu0
    %v4133 = vpop.f32.mrb[0].mxu0
    %v4134 = vadd.f32 %v3975, %v4133
    %v4135 = vpop.f32.mrb[0].mxu0
    %4136 = vmatprep.mubr.bf16.mxu0 0
    %4137 = vmatmul.mubr.bf16.gmra.mrb[0].mxu0 %v3948
    %v4138 = vpop.f32.mrb[0].mxu0
    %v4139 = vadd.f32 %v3975, %v4138
    %v4140 = vpop.f32.mrb[0].mxu0
    %v4141 = vpop.f32.mrb[0].mxu0
    %v4142 = vadd.f32 %v3975, %v4141
    %v4143 = vpop.f32.mrb[0].mxu0
    %4144 = vmatprep.mubr.bf16.mxu0 0
    %4145 = vmatmul.mubr.bf16.gmra.mrb[0].mxu0 %v3949
    %v4146 = vpop.f32.mrb[0].mxu0
    %v4147 = vadd.f32 %v3975, %v4146
    %v4148 = vpop.f32.mrb[0].mxu0
    %v4149 = vpop.f32.mrb[0].mxu0
    %v4150 = vadd.f32 %v3975, %v4149
    %v4151 = vpop.f32.mrb[0].mxu0
    %4152 = vmatprep.mubr.bf16.mxu0 0
    %4153 = vmatmul.mubr.bf16.gmra.mrb[0].mxu0 %v3950
    %v4154 = vpop.f32.mrb[0].mxu0
    %v4155 = vadd.f32 %v3975, %v4154
    %v4156 = vpop.f32.mrb[0].mxu0
    %v4157 = vpop.f32.mrb[0].mxu0
    %v4158 = vadd.f32 %v3975, %v4157
    %v4159 = vpop.f32.mrb[0].mxu0
    %4160 = vmatprep.mubr.bf16.mxu0 0
    %4161 = vmatmul.mubr.bf16.gmra.mrb[0].mxu0 %v3951
    %v4162 = vpop.f32.mrb[0].mxu0
    %v4163 = vadd.f32 %v3975, %v4162
    %v4164 = vpop.f32.mrb[0].mxu0
    %v4165 = vpop.f32.mrb[0].mxu0
    %v4166 = vadd.f32 %v3975, %v4165
    %v4167 = vpop.f32.mrb[0].mxu0
    %4168 = vmatprep.mubr.bf16.mxu0 0
    %4169 = vmatmul.mubr.bf16.gmra.mrb[0].mxu0 %v3952
    %v4170 = vpop.f32.mrb[0].mxu0
    %v4171 = vadd.f32 %v3975, %v4170
    %v4172 = vpop.f32.mrb[0].mxu0
    %v4173 = vpop.f32.mrb[0].mxu0
    %v4174 = vadd.f32 %v3975, %v4173
    %v4175 = vpop.f32.mrb[0].mxu0
    %4176 = vmatprep.mubr.bf16.mxu0 0
    %4177 = vmatmul.mubr.bf16.gmra.mrb[0].mxu0 %v3953
    %v4178 = vpop.f32.mrb[0].mxu0
    %v4179 = vadd.f32 %v3975, %v4178
    %v4180 = vpop.f32.mrb[0].mxu0
    %v4181 = vpop.f32.mrb[0].mxu0
    %v4182 = vadd.f32 %v3975, %v4181
    %v4183 = vpop.f32.mrb[0].mxu0
    %4184 = vdwg.mxu0
    %v4185 = vmax.f32 %v4059, 0.0
    %v4186 = vmax.f32 %v4062, 0.0
    %v4187 = vmax.f32 %v4067, 0.0
    %v4188 = vmax.f32 %v4070, 0.0
    %v4189 = vmax.f32 %v4075, 0.0
    %v4190 = vmax.f32 %v4078, 0.0
    %v4191 = vmax.f32 %v4083, 0.0
    %v4192 = vmax.f32 %v4086, 0.0
    %v4193 = vmax.f32 %v4091, 0.0
    %v4194 = vmax.f32 %v4094, 0.0
    %v4195 = vmax.f32 %v4099, 0.0
    %v4196 = vmax.f32 %v4102, 0.0
    %v4197 = vmax.f32 %v4107, 0.0
    %v4198 = vmax.f32 %v4110, 0.0
    %v4199 = vmax.f32 %v4115, 0.0
    %v4200 = vmax.f32 %v4118, 0.0
    %v4201 = vmax.f32 %v4123, 0.0
    %v4202 = vmax.f32 %v4126, 0.0
    %v4203 = vmax.f32 %v4131, 0.0
    %v4204 = vmax.f32 %v4134, 0.0
    %v4205 = vmax.f32 %v4139, 0.0
    %v4206 = vmax.f32 %v4142, 0.0
    %v4207 = vmax.f32 %v4147, 0.0
    %v4208 = vmax.f32 %v4150, 0.0
    %v4209 = vmax.f32 %v4155, 0.0
    %v4210 = vmax.f32 %v4158, 0.0
    %v4211 = vmax.f32 %v4163, 0.0
    %v4212 = vmax.f32 %v4166, 0.0
    %v4213 = vmax.f32 %v4171, 0.0
    %v4214 = vmax.f32 %v4174, 0.0
    %v4215 = vmax.f32 %v4179, 0.0
    %v4216 = vmax.f32 %v4182, 0.0
    %v4217 = vadd.f32 %v4185, %v3627
    %v4218 = vadd.f32 %v4186, %v3628
    %v4219 = vadd.f32 %v4187, %v3629
    %v4220 = vadd.f32 %v4188, %v3630
    %v4221 = vadd.f32 %v4189, %v3631
    %v4222 = vadd.f32 %v4190, %v3632
    %v4223 = vadd.f32 %v4191, %v3633
    %v4224 = vadd.f32 %v4192, %v3634
    %v4225 = vadd.f32 %v4193, %v3635
    %v4226 = vadd.f32 %v4194, %v3636
    %v4227 = vadd.f32 %v4195, %v3637
    %v4228 = vadd.f32 %v4196, %v3638
    %v4229 = vadd.f32 %v4197, %v3639
    %v4230 = vadd.f32 %v4198, %v3640
    %v4231 = vadd.f32 %v4199, %v3641
    %v4232 = vadd.f32 %v4200, %v3642
    %v4233 = vadd.f32 %v4201, %v3643
    %v4234 = vadd.f32 %v4202, %v3644
    %v4235 = vadd.f32 %v4203, %v3645
    %v4236 = vadd.f32 %v4204, %v3646
    %v4237 = vadd.f32 %v4205, %v3647
    %v4238 = vadd.f32 %v4206, %v3648
    %v4239 = vadd.f32 %v4207, %v3649
    %v4240 = vadd.f32 %v4208, %v3650
    %v4241 = vadd.f32 %v4209, %v3651
    %v4242 = vadd.f32 %v4210, %v3652
    %v4243 = vadd.f32 %v4211, %v3653
    %v4244 = vadd.f32 %v4212, %v3654
    %v4245 = vadd.f32 %v4213, %v3655
    %v4246 = vadd.f32 %v4214, %v3656
    %v4247 = vadd.f32 %v4215, %v3657
    %v4248 = vadd.f32 %v4216, %v3658
    %v4249 = vmax.f32 %v4217, 0.0
    %v4250 = vmax.f32 %v4218, 0.0
    %v4251 = vmax.f32 %v4219, 0.0
    %v4252 = vmax.f32 %v4220, 0.0
    %v4253 = vmax.f32 %v4221, 0.0
    %v4254 = vmax.f32 %v4222, 0.0
    %v4255 = vmax.f32 %v4223, 0.0
    %v4256 = vmax.f32 %v4224, 0.0
    %v4257 = vmax.f32 %v4225, 0.0
    %v4258 = vmax.f32 %v4226, 0.0
    %v4259 = vmax.f32 %v4227, 0.0
    %v4260 = vmax.f32 %v4228, 0.0
    %v4261 = vmax.f32 %v4229, 0.0
    %v4262 = vmax.f32 %v4230, 0.0
    %v4263 = vmax.f32 %v4231, 0.0
    %v4264 = vmax.f32 %v4232, 0.0
    %v4265 = vmax.f32 %v4233, 0.0
    %v4266 = vmax.f32 %v4234, 0.0
    %v4267 = vmax.f32 %v4235, 0.0
    %v4268 = vmax.f32 %v4236, 0.0
    %v4269 = vmax.f32 %v4237, 0.0
    %v4270 = vmax.f32 %v4238, 0.0
    %v4271 = vmax.f32 %v4239, 0.0
    %v4272 = vmax.f32 %v4240, 0.0
    %v4273 = vmax.f32 %v4241, 0.0
    %v4274 = vmax.f32 %v4242, 0.0
    %v4275 = vmax.f32 %v4243, 0.0
    %v4276 = vmax.f32 %v4244, 0.0
    %v4277 = vmax.f32 %v4245, 0.0
    %v4278 = vmax.f32 %v4246, 0.0
    %v4279 = vmax.f32 %v4247, 0.0
    %v4280 = vmax.f32 %v4248, 0.0
    %v4281 = vpack.c.bf16 %v4250, %v4249
    %v4282 = vpack.c.bf16 %v4252, %v4251
    %v4283 = vpack.c.bf16 %v4254, %v4253
    %v4284 = vpack.c.bf16 %v4256, %v4255
    %v4285 = vpack.c.bf16 %v4258, %v4257
    %v4286 = vpack.c.bf16 %v4260, %v4259
    %v4287 = vpack.c.bf16 %v4262, %v4261
    %v4288 = vpack.c.bf16 %v4264, %v4263
    %v4289 = vpack.c.bf16 %v4266, %v4265
    %v4290 = vpack.c.bf16 %v4268, %v4267
    %v4291 = vpack.c.bf16 %v4270, %v4269
    %v4292 = vpack.c.bf16 %v4272, %v4271
    %v4293 = vpack.c.bf16 %v4274, %v4273
    %v4294 = vpack.c.bf16 %v4276, %v4275
    %v4295 = vpack.c.bf16 %v4278, %v4277
    %v4296 = vpack.c.bf16 %v4280, %v4279
    %s4297 = scalar_lea.vmem %s8, 256
    %v4298 = vld [vmem:[%s4297] sm:$0xf]
    %v4299 = vld [vmem:[%s4297 + $0x4] sm:$0xf]
    %v4300 = vld [vmem:[%s4297 + $0x8] sm:$0xf]
    %v4301 = vld [vmem:[%s4297 + $0xc] sm:$0xf]
    %v4302 = vld [vmem:[%s4297 + $0x10] sm:$0xf]
    %v4303 = vld [vmem:[%s4297 + $0x14] sm:$0xf]
    %v4304 = vld [vmem:[%s4297 + $0x18] sm:$0xf]
    %v4305 = vld [vmem:[%s4297 + $0x1c] sm:$0xf]
    %v4306 = vld [vmem:[%s4297 + $0x20] sm:$0xf]
    %v4307 = vld [vmem:[%s4297 + $0x24] sm:$0xf]
    %v4308 = vld [vmem:[%s4297 + $0x28] sm:$0xf]
    %v4309 = vld [vmem:[%s4297 + $0x2c] sm:$0xf]
    %v4310 = vld [vmem:[%s4297 + $0x30] sm:$0xf]
    %v4311 = vld [vmem:[%s4297 + $0x34] sm:$0xf]
    %v4312 = vld [vmem:[%s4297 + $0x38] sm:$0xf]
    %v4313 = vld [vmem:[%s4297 + $0x3c] sm:$0xf]
    %v4314 = vld [vmem:[#allocation7 + $0x4] sm:$0x1]
    %v4315 = vlaneseq
    %v4316 = vshrl.u32 %v4315, 7
    %v4317 = vsub.s32 0, %v4316
    %v4318 = vrot.slane %v4314, %v4317
    %v4335 = vunpack.c.l.b16 %v4298
    %v4336 = vunpack.c.l.b16 %v4299
    %v4337 = vunpack.c.l.b16 %v4300
    %v4338 = vunpack.c.l.b16 %v4301
    %v4339 = vunpack.c.l.b16 %v4302
    %v4340 = vunpack.c.l.b16 %v4303
    %v4341 = vunpack.c.l.b16 %v4304
    %v4342 = vunpack.c.l.b16 %v4305
    %v4343 = vunpack.c.l.b16 %v4306
    %v4344 = vunpack.c.l.b16 %v4307
    %v4345 = vunpack.c.l.b16 %v4308
    %v4346 = vunpack.c.l.b16 %v4309
    %v4347 = vunpack.c.l.b16 %v4310
    %v4348 = vunpack.c.l.b16 %v4311
    %v4349 = vunpack.c.l.b16 %v4312
    %v4350 = vunpack.c.l.b16 %v4313
    %v4351 = vpack.c.b16 %v4336, %v4335
    %v4352 = vpack.c.b16 %v4338, %v4337
    %v4353 = vpack.c.b16 %v4340, %v4339
    %v4354 = vpack.c.b16 %v4342, %v4341
    %v4355 = vpack.c.b16 %v4344, %v4343
    %v4356 = vpack.c.b16 %v4346, %v4345
    %v4357 = vpack.c.b16 %v4348, %v4347
    %v4358 = vpack.c.b16 %v4350, %v4349
    %4367 = vmatprep.subr.bf16.mxu0 0
    %4368 = vmatpush1.bf16.msra.mxu0 %v4351
    %4369 = vmatprep.subr.bf16.mxu0 0
    %4370 = vmatpush1.bf16.msra.mxu0 %v4352
    %4371 = vmatprep.subr.bf16.mxu0 0
    %4372 = vmatpush1.bf16.msra.mxu0 %v4353
    %4373 = vmatprep.subr.bf16.mxu0 0
    %4374 = vmatpush1.bf16.msra.mxu0 %v4354
    %4375 = vmatprep.subr.bf16.mxu0 0
    %4376 = vmatpush1.bf16.msra.mxu0 %v4355
    %4377 = vmatprep.subr.bf16.mxu0 0
    %4378 = vmatpush1.bf16.msra.mxu0 %v4356
    %4379 = vmatprep.subr.bf16.mxu0 0
    %4380 = vmatpush1.bf16.msra.mxu0 %v4357
    %4381 = vmatprep.subr.bf16.mxu0 0
    %4382 = vmatpush1.bf16.msra.mxu0 %v4358
    %4383 = vmatprep.subr.bf16.mxu0 0
    %4384 = vmatpush1.bf16.msra.mxu0 0
    %4385 = vmatprep.subr.bf16.mxu0 0
    %4386 = vmatpush1.bf16.msra.mxu0 0
    %4387 = vmatprep.subr.bf16.mxu0 0
    %4388 = vmatpush1.bf16.msra.mxu0 0
    %4389 = vmatprep.subr.bf16.mxu0 0
    %4390 = vmatpush1.bf16.msra.mxu0 0
    %4391 = vmatprep.subr.bf16.mxu0 0
    %4392 = vmatpush1.bf16.msra.mxu0 0
    %4393 = vmatprep.subr.bf16.mxu0 0
    %4394 = vmatpush1.bf16.msra.mxu0 0
    %4395 = vmatprep.subr.bf16.mxu0 0
    %4396 = vmatpush1.bf16.msra.mxu0 0
    %4397 = vmatprep.subr.bf16.mxu0 0
    %4398 = vmatpush1.bf16.msra.mxu0 0
    %4399 = vmatprep.mubr.bf16.mxu0 0
    %4400 = vmatmul.mubr.bf16.gmra.mrb[0].mxu0 %v4281
    %v4401 = vpop.f32.mrb[0].mxu0
    %v4402 = vadd.f32 %v4318, %v4401
    %v4403 = vpop.f32.mrb[0].mxu0
    %v4404 = vpop.f32.mrb[0].mxu0
    %v4405 = vadd.f32 %v4318, %v4404
    %v4406 = vpop.f32.mrb[0].mxu0
    %4407 = vmatprep.mubr.bf16.mxu0 0
    %4408 = vmatmul.mubr.bf16.gmra.mrb[0].mxu0 %v4282
    %v4409 = vpop.f32.mrb[0].mxu0
    %v4410 = vadd.f32 %v4318, %v4409
    %v4411 = vpop.f32.mrb[0].mxu0
    %v4412 = vpop.f32.mrb[0].mxu0
    %v4413 = vadd.f32 %v4318, %v4412
    %v4414 = vpop.f32.mrb[0].mxu0
    %4415 = vmatprep.mubr.bf16.mxu0 0
    %4416 = vmatmul.mubr.bf16.gmra.mrb[0].mxu0 %v4283
    %v4417 = vpop.f32.mrb[0].mxu0
    %v4418 = vadd.f32 %v4318, %v4417
    %v4419 = vpop.f32.mrb[0].mxu0
    %v4420 = vpop.f32.mrb[0].mxu0
    %v4421 = vadd.f32 %v4318, %v4420
    %v4422 = vpop.f32.mrb[0].mxu0
    %4423 = vmatprep.mubr.bf16.mxu0 0
    %4424 = vmatmul.mubr.bf16.gmra.mrb[0].mxu0 %v4284
    %v4425 = vpop.f32.mrb[0].mxu0
    %v4426 = vadd.f32 %v4318, %v4425
    %v4427 = vpop.f32.mrb[0].mxu0
    %v4428 = vpop.f32.mrb[0].mxu0
    %v4429 = vadd.f32 %v4318, %v4428
    %v4430 = vpop.f32.mrb[0].mxu0
    %4431 = vmatprep.mubr.bf16.mxu0 0
    %4432 = vmatmul.mubr.bf16.gmra.mrb[0].mxu0 %v4285
    %v4433 = vpop.f32.mrb[0].mxu0
    %v4434 = vadd.f32 %v4318, %v4433
    %v4435 = vpop.f32.mrb[0].mxu0
    %v4436 = vpop.f32.mrb[0].mxu0
    %v4437 = vadd.f32 %v4318, %v4436
    %v4438 = vpop.f32.mrb[0].mxu0
    %4439 = vmatprep.mubr.bf16.mxu0 0
    %4440 = vmatmul.mubr.bf16.gmra.mrb[0].mxu0 %v4286
    %v4441 = vpop.f32.mrb[0].mxu0
    %v4442 = vadd.f32 %v4318, %v4441
    %v4443 = vpop.f32.mrb[0].mxu0
    %v4444 = vpop.f32.mrb[0].mxu0
    %v4445 = vadd.f32 %v4318, %v4444
    %v4446 = vpop.f32.mrb[0].mxu0
    %4447 = vmatprep.mubr.bf16.mxu0 0
    %4448 = vmatmul.mubr.bf16.gmra.mrb[0].mxu0 %v4287
    %v4449 = vpop.f32.mrb[0].mxu0
    %v4450 = vadd.f32 %v4318, %v4449
    %v4451 = vpop.f32.mrb[0].mxu0
    %v4452 = vpop.f32.mrb[0].mxu0
    %v4453 = vadd.f32 %v4318, %v4452
    %v4454 = vpop.f32.mrb[0].mxu0
    %4455 = vmatprep.mubr.bf16.mxu0 0
    %4456 = vmatmul.mubr.bf16.gmra.mrb[0].mxu0 %v4288
    %v4457 = vpop.f32.mrb[0].mxu0
    %v4458 = vadd.f32 %v4318, %v4457
    %v4459 = vpop.f32.mrb[0].mxu0
    %v4460 = vpop.f32.mrb[0].mxu0
    %v4461 = vadd.f32 %v4318, %v4460
    %v4462 = vpop.f32.mrb[0].mxu0
    %4463 = vmatprep.mubr.bf16.mxu0 0
    %4464 = vmatmul.mubr.bf16.gmra.mrb[0].mxu0 %v4289
    %v4465 = vpop.f32.mrb[0].mxu0
    %v4466 = vadd.f32 %v4318, %v4465
    %v4467 = vpop.f32.mrb[0].mxu0
    %v4468 = vpop.f32.mrb[0].mxu0
    %v4469 = vadd.f32 %v4318, %v4468
    %v4470 = vpop.f32.mrb[0].mxu0
    %4471 = vmatprep.mubr.bf16.mxu0 0
    %4472 = vmatmul.mubr.bf16.gmra.mrb[0].mxu0 %v4290
    %v4473 = vpop.f32.mrb[0].mxu0
    %v4474 = vadd.f32 %v4318, %v4473
    %v4475 = vpop.f32.mrb[0].mxu0
    %v4476 = vpop.f32.mrb[0].mxu0
    %v4477 = vadd.f32 %v4318, %v4476
    %v4478 = vpop.f32.mrb[0].mxu0
    %4479 = vmatprep.mubr.bf16.mxu0 0
    %4480 = vmatmul.mubr.bf16.gmra.mrb[0].mxu0 %v4291
    %v4481 = vpop.f32.mrb[0].mxu0
    %v4482 = vadd.f32 %v4318, %v4481
    %v4483 = vpop.f32.mrb[0].mxu0
    %v4484 = vpop.f32.mrb[0].mxu0
    %v4485 = vadd.f32 %v4318, %v4484
    %v4486 = vpop.f32.mrb[0].mxu0
    %4487 = vmatprep.mubr.bf16.mxu0 0
    %4488 = vmatmul.mubr.bf16.gmra.mrb[0].mxu0 %v4292
    %v4489 = vpop.f32.mrb[0].mxu0
    %v4490 = vadd.f32 %v4318, %v4489
    %v4491 = vpop.f32.mrb[0].mxu0
    %v4492 = vpop.f32.mrb[0].mxu0
    %v4493 = vadd.f32 %v4318, %v4492
    %v4494 = vpop.f32.mrb[0].mxu0
    %4495 = vmatprep.mubr.bf16.mxu0 0
    %4496 = vmatmul.mubr.bf16.gmra.mrb[0].mxu0 %v4293
    %v4497 = vpop.f32.mrb[0].mxu0
    %v4498 = vadd.f32 %v4318, %v4497
    %v4499 = vpop.f32.mrb[0].mxu0
    %v4500 = vpop.f32.mrb[0].mxu0
    %v4501 = vadd.f32 %v4318, %v4500
    %v4502 = vpop.f32.mrb[0].mxu0
    %4503 = vmatprep.mubr.bf16.mxu0 0
    %4504 = vmatmul.mubr.bf16.gmra.mrb[0].mxu0 %v4294
    %v4505 = vpop.f32.mrb[0].mxu0
    %v4506 = vadd.f32 %v4318, %v4505
    %v4507 = vpop.f32.mrb[0].mxu0
    %v4508 = vpop.f32.mrb[0].mxu0
    %v4509 = vadd.f32 %v4318, %v4508
    %v4510 = vpop.f32.mrb[0].mxu0
    %4511 = vmatprep.mubr.bf16.mxu0 0
    %4512 = vmatmul.mubr.bf16.gmra.mrb[0].mxu0 %v4295
    %v4513 = vpop.f32.mrb[0].mxu0
    %v4514 = vadd.f32 %v4318, %v4513
    %v4515 = vpop.f32.mrb[0].mxu0
    %v4516 = vpop.f32.mrb[0].mxu0
    %v4517 = vadd.f32 %v4318, %v4516
    %v4518 = vpop.f32.mrb[0].mxu0
    %4519 = vmatprep.mubr.bf16.mxu0 0
    %4520 = vmatmul.mubr.bf16.gmra.mrb[0].mxu0 %v4296
    %v4521 = vpop.f32.mrb[0].mxu0
    %v4522 = vadd.f32 %v4318, %v4521
    %v4523 = vpop.f32.mrb[0].mxu0
    %v4524 = vpop.f32.mrb[0].mxu0
    %v4525 = vadd.f32 %v4318, %v4524
    %v4526 = vpop.f32.mrb[0].mxu0
    %4527 = vdwg.mxu0
    %v4528 = vmax.f32 %v4402, 0.0
    %v4529 = vmax.f32 %v4405, 0.0
    %v4530 = vmax.f32 %v4410, 0.0
    %v4531 = vmax.f32 %v4413, 0.0
    %v4532 = vmax.f32 %v4418, 0.0
    %v4533 = vmax.f32 %v4421, 0.0
    %v4534 = vmax.f32 %v4426, 0.0
    %v4535 = vmax.f32 %v4429, 0.0
    %v4536 = vmax.f32 %v4434, 0.0
    %v4537 = vmax.f32 %v4437, 0.0
    %v4538 = vmax.f32 %v4442, 0.0
    %v4539 = vmax.f32 %v4445, 0.0
    %v4540 = vmax.f32 %v4450, 0.0
    %v4541 = vmax.f32 %v4453, 0.0
    %v4542 = vmax.f32 %v4458, 0.0
    %v4543 = vmax.f32 %v4461, 0.0
    %v4544 = vmax.f32 %v4466, 0.0
    %v4545 = vmax.f32 %v4469, 0.0
    %v4546 = vmax.f32 %v4474, 0.0
    %v4547 = vmax.f32 %v4477, 0.0
    %v4548 = vmax.f32 %v4482, 0.0
    %v4549 = vmax.f32 %v4485, 0.0
    %v4550 = vmax.f32 %v4490, 0.0
    %v4551 = vmax.f32 %v4493, 0.0
    %v4552 = vmax.f32 %v4498, 0.0
    %v4553 = vmax.f32 %v4501, 0.0
    %v4554 = vmax.f32 %v4506, 0.0
    %v4555 = vmax.f32 %v4509, 0.0
    %v4556 = vmax.f32 %v4514, 0.0
    %v4557 = vmax.f32 %v4517, 0.0
    %v4558 = vmax.f32 %v4522, 0.0
    %v4559 = vmax.f32 %v4525, 0.0
    %v4560 = vpack.c.bf16 %v4529, %v4528
    %v4561 = vpack.c.bf16 %v4531, %v4530
    %v4562 = vpack.c.bf16 %v4533, %v4532
    %v4563 = vpack.c.bf16 %v4535, %v4534
    %v4564 = vpack.c.bf16 %v4537, %v4536
    %v4565 = vpack.c.bf16 %v4539, %v4538
    %v4566 = vpack.c.bf16 %v4541, %v4540
    %v4567 = vpack.c.bf16 %v4543, %v4542
    %v4568 = vpack.c.bf16 %v4545, %v4544
    %v4569 = vpack.c.bf16 %v4547, %v4546
    %v4570 = vpack.c.bf16 %v4549, %v4548
    %v4571 = vpack.c.bf16 %v4551, %v4550
    %v4572 = vpack.c.bf16 %v4553, %v4552
    %v4573 = vpack.c.bf16 %v4555, %v4554
    %v4574 = vpack.c.bf16 %v4557, %v4556
    %v4575 = vpack.c.bf16 %v4559, %v4558
    %s4576 = scalar_lea.vmem %s8, 320
    %v4577 = vld [vmem:[%s4576] sm:$0xf]
    %v4578 = vld [vmem:[%s4576 + $0x4] sm:$0xf]
    %v4579 = vld [vmem:[%s4576 + $0x8] sm:$0xf]
    %v4580 = vld [vmem:[%s4576 + $0xc] sm:$0xf]
    %v4581 = vld [vmem:[%s4576 + $0x10] sm:$0xf]
    %v4582 = vld [vmem:[%s4576 + $0x14] sm:$0xf]
    %v4583 = vld [vmem:[%s4576 + $0x18] sm:$0xf]
    %v4584 = vld [vmem:[%s4576 + $0x1c] sm:$0xf]
    %v4585 = vld [vmem:[%s4576 + $0x20] sm:$0xf]
    %v4586 = vld [vmem:[%s4576 + $0x24] sm:$0xf]
    %v4587 = vld [vmem:[%s4576 + $0x28] sm:$0xf]
    %v4588 = vld [vmem:[%s4576 + $0x2c] sm:$0xf]
    %v4589 = vld [vmem:[%s4576 + $0x30] sm:$0xf]
    %v4590 = vld [vmem:[%s4576 + $0x34] sm:$0xf]
    %v4591 = vld [vmem:[%s4576 + $0x38] sm:$0xf]
    %v4592 = vld [vmem:[%s4576 + $0x3c] sm:$0xf]
    %v4593 = vld [vmem:[#allocation7 + $0x5] sm:$0x1]
    %v4594 = vlaneseq
    %v4595 = vshrl.u32 %v4594, 7
    %v4596 = vsub.s32 0, %v4595
    %v4597 = vrot.slane %v4593, %v4596
    %v4614 = vunpack.c.l.b16 %v4577
    %v4615 = vunpack.c.l.b16 %v4578
    %v4616 = vunpack.c.l.b16 %v4579
    %v4617 = vunpack.c.l.b16 %v4580
    %v4618 = vunpack.c.l.b16 %v4581
    %v4619 = vunpack.c.l.b16 %v4582
    %v4620 = vunpack.c.l.b16 %v4583
    %v4621 = vunpack.c.l.b16 %v4584
    %v4622 = vunpack.c.l.b16 %v4585
    %v4623 = vunpack.c.l.b16 %v4586
    %v4624 = vunpack.c.l.b16 %v4587
    %v4625 = vunpack.c.l.b16 %v4588
    %v4626 = vunpack.c.l.b16 %v4589
    %v4627 = vunpack.c.l.b16 %v4590
    %v4628 = vunpack.c.l.b16 %v4591
    %v4629 = vunpack.c.l.b16 %v4592
    %v4630 = vpack.c.b16 %v4615, %v4614
    %v4631 = vpack.c.b16 %v4617, %v4616
    %v4632 = vpack.c.b16 %v4619, %v4618
    %v4633 = vpack.c.b16 %v4621, %v4620
    %v4634 = vpack.c.b16 %v4623, %v4622
    %v4635 = vpack.c.b16 %v4625, %v4624
    %v4636 = vpack.c.b16 %v4627, %v4626
    %v4637 = vpack.c.b16 %v4629, %v4628
    %4646 = vmatprep.subr.bf16.mxu0 0
    %4647 = vmatpush1.bf16.msra.mxu0 %v4630
    %4648 = vmatprep.subr.bf16.mxu0 0
    %4649 = vmatpush1.bf16.msra.mxu0 %v4631
    %4650 = vmatprep.subr.bf16.mxu0 0
    %4651 = vmatpush1.bf16.msra.mxu0 %v4632
    %4652 = vmatprep.subr.bf16.mxu0 0
    %4653 = vmatpush1.bf16.msra.mxu0 %v4633
    %4654 = vmatprep.subr.bf16.mxu0 0
    %4655 = vmatpush1.bf16.msra.mxu0 %v4634
    %4656 = vmatprep.subr.bf16.mxu0 0
    %4657 = vmatpush1.bf16.msra.mxu0 %v4635
    %4658 = vmatprep.subr.bf16.mxu0 0
    %4659 = vmatpush1.bf16.msra.mxu0 %v4636
    %4660 = vmatprep.subr.bf16.mxu0 0
    %4661 = vmatpush1.bf16.msra.mxu0 %v4637
    %4662 = vmatprep.subr.bf16.mxu0 0
    %4663 = vmatpush1.bf16.msra.mxu0 0
    %4664 = vmatprep.subr.bf16.mxu0 0
    %4665 = vmatpush1.bf16.msra.mxu0 0
    %4666 = vmatprep.subr.bf16.mxu0 0
    %4667 = vmatpush1.bf16.msra.mxu0 0
    %4668 = vmatprep.subr.bf16.mxu0 0
    %4669 = vmatpush1.bf16.msra.mxu0 0
    %4670 = vmatprep.subr.bf16.mxu0 0
    %4671 = vmatpush1.bf16.msra.mxu0 0
    %4672 = vmatprep.subr.bf16.mxu0 0
    %4673 = vmatpush1.bf16.msra.mxu0 0
    %4674 = vmatprep.subr.bf16.mxu0 0
    %4675 = vmatpush1.bf16.msra.mxu0 0
    %4676 = vmatprep.subr.bf16.mxu0 0
    %4677 = vmatpush1.bf16.msra.mxu0 0
    %4678 = vmatprep.mubr.bf16.mxu0 0
    %4679 = vmatmul.mubr.bf16.gmra.mrb[0].mxu0 %v4560
    %v4680 = vpop.f32.mrb[0].mxu0
    %v4681 = vadd.f32 %v4597, %v4680
    %v4682 = vpop.f32.mrb[0].mxu0
    %v4683 = vpop.f32.mrb[0].mxu0
    %v4684 = vadd.f32 %v4597, %v4683
    %v4685 = vpop.f32.mrb[0].mxu0
    %4686 = vmatprep.mubr.bf16.mxu0 0
    %4687 = vmatmul.mubr.bf16.gmra.mrb[0].mxu0 %v4561
    %v4688 = vpop.f32.mrb[0].mxu0
    %v4689 = vadd.f32 %v4597, %v4688
    %v4690 = vpop.f32.mrb[0].mxu0
    %v4691 = vpop.f32.mrb[0].mxu0
    %v4692 = vadd.f32 %v4597, %v4691
    %v4693 = vpop.f32.mrb[0].mxu0
    %4694 = vmatprep.mubr.bf16.mxu0 0
    %4695 = vmatmul.mubr.bf16.gmra.mrb[0].mxu0 %v4562
    %v4696 = vpop.f32.mrb[0].mxu0
    %v4697 = vadd.f32 %v4597, %v4696
    %v4698 = vpop.f32.mrb[0].mxu0
    %v4699 = vpop.f32.mrb[0].mxu0
    %v4700 = vadd.f32 %v4597, %v4699
    %v4701 = vpop.f32.mrb[0].mxu0
    %4702 = vmatprep.mubr.bf16.mxu0 0
    %4703 = vmatmul.mubr.bf16.gmra.mrb[0].mxu0 %v4563
    %v4704 = vpop.f32.mrb[0].mxu0
    %v4705 = vadd.f32 %v4597, %v4704
    %v4706 = vpop.f32.mrb[0].mxu0
    %v4707 = vpop.f32.mrb[0].mxu0
    %v4708 = vadd.f32 %v4597, %v4707
    %v4709 = vpop.f32.mrb[0].mxu0
    %4710 = vmatprep.mubr.bf16.mxu0 0
    %4711 = vmatmul.mubr.bf16.gmra.mrb[0].mxu0 %v4564
    %v4712 = vpop.f32.mrb[0].mxu0
    %v4713 = vadd.f32 %v4597, %v4712
    %v4714 = vpop.f32.mrb[0].mxu0
    %v4715 = vpop.f32.mrb[0].mxu0
    %v4716 = vadd.f32 %v4597, %v4715
    %v4717 = vpop.f32.mrb[0].mxu0
    %4718 = vmatprep.mubr.bf16.mxu0 0
    %4719 = vmatmul.mubr.bf16.gmra.mrb[0].mxu0 %v4565
    %v4720 = vpop.f32.mrb[0].mxu0
    %v4721 = vadd.f32 %v4597, %v4720
    %v4722 = vpop.f32.mrb[0].mxu0
    %v4723 = vpop.f32.mrb[0].mxu0
    %v4724 = vadd.f32 %v4597, %v4723
    %v4725 = vpop.f32.mrb[0].mxu0
    %4726 = vmatprep.mubr.bf16.mxu0 0
    %4727 = vmatmul.mubr.bf16.gmra.mrb[0].mxu0 %v4566
    %v4728 = vpop.f32.mrb[0].mxu0
    %v4729 = vadd.f32 %v4597, %v4728
    %v4730 = vpop.f32.mrb[0].mxu0
    %v4731 = vpop.f32.mrb[0].mxu0
    %v4732 = vadd.f32 %v4597, %v4731
    %v4733 = vpop.f32.mrb[0].mxu0
    %4734 = vmatprep.mubr.bf16.mxu0 0
    %4735 = vmatmul.mubr.bf16.gmra.mrb[0].mxu0 %v4567
    %v4736 = vpop.f32.mrb[0].mxu0
    %v4737 = vadd.f32 %v4597, %v4736
    %v4738 = vpop.f32.mrb[0].mxu0
    %v4739 = vpop.f32.mrb[0].mxu0
    %v4740 = vadd.f32 %v4597, %v4739
    %v4741 = vpop.f32.mrb[0].mxu0
    %4742 = vmatprep.mubr.bf16.mxu0 0
    %4743 = vmatmul.mubr.bf16.gmra.mrb[0].mxu0 %v4568
    %v4744 = vpop.f32.mrb[0].mxu0
    %v4745 = vadd.f32 %v4597, %v4744
    %v4746 = vpop.f32.mrb[0].mxu0
    %v4747 = vpop.f32.mrb[0].mxu0
    %v4748 = vadd.f32 %v4597, %v4747
    %v4749 = vpop.f32.mrb[0].mxu0
    %4750 = vmatprep.mubr.bf16.mxu0 0
    %4751 = vmatmul.mubr.bf16.gmra.mrb[0].mxu0 %v4569
    %v4752 = vpop.f32.mrb[0].mxu0
    %v4753 = vadd.f32 %v4597, %v4752
    %v4754 = vpop.f32.mrb[0].mxu0
    %v4755 = vpop.f32.mrb[0].mxu0
    %v4756 = vadd.f32 %v4597, %v4755
    %v4757 = vpop.f32.mrb[0].mxu0
    %4758 = vmatprep.mubr.bf16.mxu0 0
    %4759 = vmatmul.mubr.bf16.gmra.mrb[0].mxu0 %v4570
    %v4760 = vpop.f32.mrb[0].mxu0
    %v4761 = vadd.f32 %v4597, %v4760
    %v4762 = vpop.f32.mrb[0].mxu0
    %v4763 = vpop.f32.mrb[0].mxu0
    %v4764 = vadd.f32 %v4597, %v4763
    %v4765 = vpop.f32.mrb[0].mxu0
    %4766 = vmatprep.mubr.bf16.mxu0 0
    %4767 = vmatmul.mubr.bf16.gmra.mrb[0].mxu0 %v4571
    %v4768 = vpop.f32.mrb[0].mxu0
    %v4769 = vadd.f32 %v4597, %v4768
    %v4770 = vpop.f32.mrb[0].mxu0
    %v4771 = vpop.f32.mrb[0].mxu0
    %v4772 = vadd.f32 %v4597, %v4771
    %v4773 = vpop.f32.mrb[0].mxu0
    %4774 = vmatprep.mubr.bf16.mxu0 0
    %4775 = vmatmul.mubr.bf16.gmra.mrb[0].mxu0 %v4572
    %v4776 = vpop.f32.mrb[0].mxu0
    %v4777 = vadd.f32 %v4597, %v4776
    %v4778 = vpop.f32.mrb[0].mxu0
    %v4779 = vpop.f32.mrb[0].mxu0
    %v4780 = vadd.f32 %v4597, %v4779
    %v4781 = vpop.f32.mrb[0].mxu0
    %4782 = vmatprep.mubr.bf16.mxu0 0
    %4783 = vmatmul.mubr.bf16.gmra.mrb[0].mxu0 %v4573
    %v4784 = vpop.f32.mrb[0].mxu0
    %v4785 = vadd.f32 %v4597, %v4784
    %v4786 = vpop.f32.mrb[0].mxu0
    %v4787 = vpop.f32.mrb[0].mxu0
    %v4788 = vadd.f32 %v4597, %v4787
    %v4789 = vpop.f32.mrb[0].mxu0
    %4790 = vmatprep.mubr.bf16.mxu0 0
    %4791 = vmatmul.mubr.bf16.gmra.mrb[0].mxu0 %v4574
    %v4792 = vpop.f32.mrb[0].mxu0
    %v4793 = vadd.f32 %v4597, %v4792
    %v4794 = vpop.f32.mrb[0].mxu0
    %v4795 = vpop.f32.mrb[0].mxu0
    %v4796 = vadd.f32 %v4597, %v4795
    %v4797 = vpop.f32.mrb[0].mxu0
    %4798 = vmatprep.mubr.bf16.mxu0 0
    %4799 = vmatmul.mubr.bf16.gmra.mrb[0].mxu0 %v4575
    %v4800 = vpop.f32.mrb[0].mxu0
    %v4801 = vadd.f32 %v4597, %v4800
    %v4802 = vpop.f32.mrb[0].mxu0
    %v4803 = vpop.f32.mrb[0].mxu0
    %v4804 = vadd.f32 %v4597, %v4803
    %v4805 = vpop.f32.mrb[0].mxu0
    %4806 = vdwg.mxu0
    %v4807 = vmax.f32 %v4681, 0.0
    %v4808 = vmax.f32 %v4684, 0.0
    %v4809 = vmax.f32 %v4689, 0.0
    %v4810 = vmax.f32 %v4692, 0.0
    %v4811 = vmax.f32 %v4697, 0.0
    %v4812 = vmax.f32 %v4700, 0.0
    %v4813 = vmax.f32 %v4705, 0.0
    %v4814 = vmax.f32 %v4708, 0.0
    %v4815 = vmax.f32 %v4713, 0.0
    %v4816 = vmax.f32 %v4716, 0.0
    %v4817 = vmax.f32 %v4721, 0.0
    %v4818 = vmax.f32 %v4724, 0.0
    %v4819 = vmax.f32 %v4729, 0.0
    %v4820 = vmax.f32 %v4732, 0.0
    %v4821 = vmax.f32 %v4737, 0.0
    %v4822 = vmax.f32 %v4740, 0.0
    %v4823 = vmax.f32 %v4745, 0.0
    %v4824 = vmax.f32 %v4748, 0.0
    %v4825 = vmax.f32 %v4753, 0.0
    %v4826 = vmax.f32 %v4756, 0.0
    %v4827 = vmax.f32 %v4761, 0.0
    %v4828 = vmax.f32 %v4764, 0.0
    %v4829 = vmax.f32 %v4769, 0.0
    %v4830 = vmax.f32 %v4772, 0.0
    %v4831 = vmax.f32 %v4777, 0.0
    %v4832 = vmax.f32 %v4780, 0.0
    %v4833 = vmax.f32 %v4785, 0.0
    %v4834 = vmax.f32 %v4788, 0.0
    %v4835 = vmax.f32 %v4793, 0.0
    %v4836 = vmax.f32 %v4796, 0.0
    %v4837 = vmax.f32 %v4801, 0.0
    %v4838 = vmax.f32 %v4804, 0.0
    %v4839 = vadd.f32 %v4807, %v4249
    %v4840 = vadd.f32 %v4808, %v4250
    %v4841 = vadd.f32 %v4809, %v4251
    %v4842 = vadd.f32 %v4810, %v4252
    %v4843 = vadd.f32 %v4811, %v4253
    %v4844 = vadd.f32 %v4812, %v4254
    %v4845 = vadd.f32 %v4813, %v4255
    %v4846 = vadd.f32 %v4814, %v4256
    %v4847 = vadd.f32 %v4815, %v4257
    %v4848 = vadd.f32 %v4816, %v4258
    %v4849 = vadd.f32 %v4817, %v4259
    %v4850 = vadd.f32 %v4818, %v4260
    %v4851 = vadd.f32 %v4819, %v4261
    %v4852 = vadd.f32 %v4820, %v4262
    %v4853 = vadd.f32 %v4821, %v4263
    %v4854 = vadd.f32 %v4822, %v4264
    %v4855 = vadd.f32 %v4823, %v4265
    %v4856 = vadd.f32 %v4824, %v4266
    %v4857 = vadd.f32 %v4825, %v4267
    %v4858 = vadd.f32 %v4826, %v4268
    %v4859 = vadd.f32 %v4827, %v4269
    %v4860 = vadd.f32 %v4828, %v4270
    %v4861 = vadd.f32 %v4829, %v4271
    %v4862 = vadd.f32 %v4830, %v4272
    %v4863 = vadd.f32 %v4831, %v4273
    %v4864 = vadd.f32 %v4832, %v4274
    %v4865 = vadd.f32 %v4833, %v4275
    %v4866 = vadd.f32 %v4834, %v4276
    %v4867 = vadd.f32 %v4835, %v4277
    %v4868 = vadd.f32 %v4836, %v4278
    %v4869 = vadd.f32 %v4837, %v4279
    %v4870 = vadd.f32 %v4838, %v4280
    %v4871 = vmax.f32 %v4839, 0.0
    %v4872 = vmax.f32 %v4840, 0.0
    %v4873 = vmax.f32 %v4841, 0.0
    %v4874 = vmax.f32 %v4842, 0.0
    %v4875 = vmax.f32 %v4843, 0.0
    %v4876 = vmax.f32 %v4844, 0.0
    %v4877 = vmax.f32 %v4845, 0.0
    %v4878 = vmax.f32 %v4846, 0.0
    %v4879 = vmax.f32 %v4847, 0.0
    %v4880 = vmax.f32 %v4848, 0.0
    %v4881 = vmax.f32 %v4849, 0.0
    %v4882 = vmax.f32 %v4850, 0.0
    %v4883 = vmax.f32 %v4851, 0.0
    %v4884 = vmax.f32 %v4852, 0.0
    %v4885 = vmax.f32 %v4853, 0.0
    %v4886 = vmax.f32 %v4854, 0.0
    %v4887 = vmax.f32 %v4855, 0.0
    %v4888 = vmax.f32 %v4856, 0.0
    %v4889 = vmax.f32 %v4857, 0.0
    %v4890 = vmax.f32 %v4858, 0.0
    %v4891 = vmax.f32 %v4859, 0.0
    %v4892 = vmax.f32 %v4860, 0.0
    %v4893 = vmax.f32 %v4861, 0.0
    %v4894 = vmax.f32 %v4862, 0.0
    %v4895 = vmax.f32 %v4863, 0.0
    %v4896 = vmax.f32 %v4864, 0.0
    %v4897 = vmax.f32 %v4865, 0.0
    %v4898 = vmax.f32 %v4866, 0.0
    %v4899 = vmax.f32 %v4867, 0.0
    %v4900 = vmax.f32 %v4868, 0.0
    %v4901 = vmax.f32 %v4869, 0.0
    %v4902 = vmax.f32 %v4870, 0.0
    %v4903 = vpack.c.bf16 %v4872, %v4871
    %v4904 = vpack.c.bf16 %v4874, %v4873
    %v4905 = vpack.c.bf16 %v4876, %v4875
    %v4906 = vpack.c.bf16 %v4878, %v4877
    %v4907 = vpack.c.bf16 %v4880, %v4879
    %v4908 = vpack.c.bf16 %v4882, %v4881
    %v4909 = vpack.c.bf16 %v4884, %v4883
    %v4910 = vpack.c.bf16 %v4886, %v4885
    %v4911 = vpack.c.bf16 %v4888, %v4887
    %v4912 = vpack.c.bf16 %v4890, %v4889
    %v4913 = vpack.c.bf16 %v4892, %v4891
    %v4914 = vpack.c.bf16 %v4894, %v4893
    %v4915 = vpack.c.bf16 %v4896, %v4895
    %v4916 = vpack.c.bf16 %v4898, %v4897
    %v4917 = vpack.c.bf16 %v4900, %v4899
    %v4918 = vpack.c.bf16 %v4902, %v4901
    %s4919 = scalar_lea.vmem %s8, 384
    %v4920 = vld [vmem:[%s4919] sm:$0xf]
    %v4921 = vld [vmem:[%s4919 + $0x4] sm:$0xf]
    %v4922 = vld [vmem:[%s4919 + $0x8] sm:$0xf]
    %v4923 = vld [vmem:[%s4919 + $0xc] sm:$0xf]
    %v4924 = vld [vmem:[%s4919 + $0x10] sm:$0xf]
    %v4925 = vld [vmem:[%s4919 + $0x14] sm:$0xf]
    %v4926 = vld [vmem:[%s4919 + $0x18] sm:$0xf]
    %v4927 = vld [vmem:[%s4919 + $0x1c] sm:$0xf]
    %v4928 = vld [vmem:[%s4919 + $0x20] sm:$0xf]
    %v4929 = vld [vmem:[%s4919 + $0x24] sm:$0xf]
    %v4930 = vld [vmem:[%s4919 + $0x28] sm:$0xf]
    %v4931 = vld [vmem:[%s4919 + $0x2c] sm:$0xf]
    %v4932 = vld [vmem:[%s4919 + $0x30] sm:$0xf]
    %v4933 = vld [vmem:[%s4919 + $0x34] sm:$0xf]
    %v4934 = vld [vmem:[%s4919 + $0x38] sm:$0xf]
    %v4935 = vld [vmem:[%s4919 + $0x3c] sm:$0xf]
    %v4936 = vld [vmem:[#allocation7 + $0x6] sm:$0x1]
    %v4937 = vlaneseq
    %v4938 = vshrl.u32 %v4937, 7
    %v4939 = vsub.s32 0, %v4938
    %v4940 = vrot.slane %v4936, %v4939
    %v4957 = vunpack.c.l.b16 %v4920
    %v4958 = vunpack.c.l.b16 %v4921
    %v4959 = vunpack.c.l.b16 %v4922
    %v4960 = vunpack.c.l.b16 %v4923
    %v4961 = vunpack.c.l.b16 %v4924
    %v4962 = vunpack.c.l.b16 %v4925
    %v4963 = vunpack.c.l.b16 %v4926
    %v4964 = vunpack.c.l.b16 %v4927
    %v4965 = vunpack.c.l.b16 %v4928
    %v4966 = vunpack.c.l.b16 %v4929
    %v4967 = vunpack.c.l.b16 %v4930
    %v4968 = vunpack.c.l.b16 %v4931
    %v4969 = vunpack.c.l.b16 %v4932
    %v4970 = vunpack.c.l.b16 %v4933
    %v4971 = vunpack.c.l.b16 %v4934
    %v4972 = vunpack.c.l.b16 %v4935
    %v4973 = vpack.c.b16 %v4958, %v4957
    %v4974 = vpack.c.b16 %v4960, %v4959
    %v4975 = vpack.c.b16 %v4962, %v4961
    %v4976 = vpack.c.b16 %v4964, %v4963
    %v4977 = vpack.c.b16 %v4966, %v4965
    %v4978 = vpack.c.b16 %v4968, %v4967
    %v4979 = vpack.c.b16 %v4970, %v4969
    %v4980 = vpack.c.b16 %v4972, %v4971
    %4989 = vmatprep.subr.bf16.mxu0 0
    %4990 = vmatpush1.bf16.msra.mxu0 %v4973
    %4991 = vmatprep.subr.bf16.mxu0 0
    %4992 = vmatpush1.bf16.msra.mxu0 %v4974
    %4993 = vmatprep.subr.bf16.mxu0 0
    %4994 = vmatpush1.bf16.msra.mxu0 %v4975
    %4995 = vmatprep.subr.bf16.mxu0 0
    %4996 = vmatpush1.bf16.msra.mxu0 %v4976
    %4997 = vmatprep.subr.bf16.mxu0 0
    %4998 = vmatpush1.bf16.msra.mxu0 %v4977
    %4999 = vmatprep.subr.bf16.mxu0 0
    %5000 = vmatpush1.bf16.msra.mxu0 %v4978
    %5001 = vmatprep.subr.bf16.mxu0 0
    %5002 = vmatpush1.bf16.msra.mxu0 %v4979
    %5003 = vmatprep.subr.bf16.mxu0 0
    %5004 = vmatpush1.bf16.msra.mxu0 %v4980
    %5005 = vmatprep.subr.bf16.mxu0 0
    %5006 = vmatpush1.bf16.msra.mxu0 0
    %5007 = vmatprep.subr.bf16.mxu0 0
    %5008 = vmatpush1.bf16.msra.mxu0 0
    %5009 = vmatprep.subr.bf16.mxu0 0
    %5010 = vmatpush1.bf16.msra.mxu0 0
    %5011 = vmatprep.subr.bf16.mxu0 0
    %5012 = vmatpush1.bf16.msra.mxu0 0
    %5013 = vmatprep.subr.bf16.mxu0 0
    %5014 = vmatpush1.bf16.msra.mxu0 0
    %5015 = vmatprep.subr.bf16.mxu0 0
    %5016 = vmatpush1.bf16.msra.mxu0 0
    %5017 = vmatprep.subr.bf16.mxu0 0
    %5018 = vmatpush1.bf16.msra.mxu0 0
    %5019 = vmatprep.subr.bf16.mxu0 0
    %5020 = vmatpush1.bf16.msra.mxu0 0
    %5021 = vmatprep.mubr.bf16.mxu0 0
    %5022 = vmatmul.mubr.bf16.gmra.mrb[0].mxu0 %v4903
    %v5023 = vpop.f32.mrb[0].mxu0
    %v5024 = vadd.f32 %v4940, %v5023
    %v5025 = vpop.f32.mrb[0].mxu0
    %v5026 = vpop.f32.mrb[0].mxu0
    %v5027 = vadd.f32 %v4940, %v5026
    %v5028 = vpop.f32.mrb[0].mxu0
    %5029 = vmatprep.mubr.bf16.mxu0 0
    %5030 = vmatmul.mubr.bf16.gmra.mrb[0].mxu0 %v4904
    %v5031 = vpop.f32.mrb[0].mxu0
    %v5032 = vadd.f32 %v4940, %v5031
    %v5033 = vpop.f32.mrb[0].mxu0
    %v5034 = vpop.f32.mrb[0].mxu0
    %v5035 = vadd.f32 %v4940, %v5034
    %v5036 = vpop.f32.mrb[0].mxu0
    %5037 = vmatprep.mubr.bf16.mxu0 0
    %5038 = vmatmul.mubr.bf16.gmra.mrb[0].mxu0 %v4905
    %v5039 = vpop.f32.mrb[0].mxu0
    %v5040 = vadd.f32 %v4940, %v5039
    %v5041 = vpop.f32.mrb[0].mxu0
    %v5042 = vpop.f32.mrb[0].mxu0
    %v5043 = vadd.f32 %v4940, %v5042
    %v5044 = vpop.f32.mrb[0].mxu0
    %5045 = vmatprep.mubr.bf16.mxu0 0
    %5046 = vmatmul.mubr.bf16.gmra.mrb[0].mxu0 %v4906
    %v5047 = vpop.f32.mrb[0].mxu0
    %v5048 = vadd.f32 %v4940, %v5047
    %v5049 = vpop.f32.mrb[0].mxu0
    %v5050 = vpop.f32.mrb[0].mxu0
    %v5051 = vadd.f32 %v4940, %v5050
    %v5052 = vpop.f32.mrb[0].mxu0
    %5053 = vmatprep.mubr.bf16.mxu0 0
    %5054 = vmatmul.mubr.bf16.gmra.mrb[0].mxu0 %v4907
    %v5055 = vpop.f32.mrb[0].mxu0
    %v5056 = vadd.f32 %v4940, %v5055
    %v5057 = vpop.f32.mrb[0].mxu0
    %v5058 = vpop.f32.mrb[0].mxu0
    %v5059 = vadd.f32 %v4940, %v5058
    %v5060 = vpop.f32.mrb[0].mxu0
    %5061 = vmatprep.mubr.bf16.mxu0 0
    %5062 = vmatmul.mubr.bf16.gmra.mrb[0].mxu0 %v4908
    %v5063 = vpop.f32.mrb[0].mxu0
    %v5064 = vadd.f32 %v4940, %v5063
    %v5065 = vpop.f32.mrb[0].mxu0
    %v5066 = vpop.f32.mrb[0].mxu0
    %v5067 = vadd.f32 %v4940, %v5066
    %v5068 = vpop.f32.mrb[0].mxu0
    %5069 = vmatprep.mubr.bf16.mxu0 0
    %5070 = vmatmul.mubr.bf16.gmra.mrb[0].mxu0 %v4909
    %v5071 = vpop.f32.mrb[0].mxu0
    %v5072 = vadd.f32 %v4940, %v5071
    %v5073 = vpop.f32.mrb[0].mxu0
    %v5074 = vpop.f32.mrb[0].mxu0
    %v5075 = vadd.f32 %v4940, %v5074
    %v5076 = vpop.f32.mrb[0].mxu0
    %5077 = vmatprep.mubr.bf16.mxu0 0
    %5078 = vmatmul.mubr.bf16.gmra.mrb[0].mxu0 %v4910
    %v5079 = vpop.f32.mrb[0].mxu0
    %v5080 = vadd.f32 %v4940, %v5079
    %v5081 = vpop.f32.mrb[0].mxu0
    %v5082 = vpop.f32.mrb[0].mxu0
    %v5083 = vadd.f32 %v4940, %v5082
    %v5084 = vpop.f32.mrb[0].mxu0
    %5085 = vmatprep.mubr.bf16.mxu0 0
    %5086 = vmatmul.mubr.bf16.gmra.mrb[0].mxu0 %v4911
    %v5087 = vpop.f32.mrb[0].mxu0
    %v5088 = vadd.f32 %v4940, %v5087
    %v5089 = vpop.f32.mrb[0].mxu0
    %v5090 = vpop.f32.mrb[0].mxu0
    %v5091 = vadd.f32 %v4940, %v5090
    %v5092 = vpop.f32.mrb[0].mxu0
    %5093 = vmatprep.mubr.bf16.mxu0 0
    %5094 = vmatmul.mubr.bf16.gmra.mrb[0].mxu0 %v4912
    %v5095 = vpop.f32.mrb[0].mxu0
    %v5096 = vadd.f32 %v4940, %v5095
    %v5097 = vpop.f32.mrb[0].mxu0
    %v5098 = vpop.f32.mrb[0].mxu0
    %v5099 = vadd.f32 %v4940, %v5098
    %v5100 = vpop.f32.mrb[0].mxu0
    %5101 = vmatprep.mubr.bf16.mxu0 0
    %5102 = vmatmul.mubr.bf16.gmra.mrb[0].mxu0 %v4913
    %v5103 = vpop.f32.mrb[0].mxu0
    %v5104 = vadd.f32 %v4940, %v5103
    %v5105 = vpop.f32.mrb[0].mxu0
    %v5106 = vpop.f32.mrb[0].mxu0
    %v5107 = vadd.f32 %v4940, %v5106
    %v5108 = vpop.f32.mrb[0].mxu0
    %5109 = vmatprep.mubr.bf16.mxu0 0
    %5110 = vmatmul.mubr.bf16.gmra.mrb[0].mxu0 %v4914
    %v5111 = vpop.f32.mrb[0].mxu0
    %v5112 = vadd.f32 %v4940, %v5111
    %v5113 = vpop.f32.mrb[0].mxu0
    %v5114 = vpop.f32.mrb[0].mxu0
    %v5115 = vadd.f32 %v4940, %v5114
    %v5116 = vpop.f32.mrb[0].mxu0
    %5117 = vmatprep.mubr.bf16.mxu0 0
    %5118 = vmatmul.mubr.bf16.gmra.mrb[0].mxu0 %v4915
    %v5119 = vpop.f32.mrb[0].mxu0
    %v5120 = vadd.f32 %v4940, %v5119
    %v5121 = vpop.f32.mrb[0].mxu0
    %v5122 = vpop.f32.mrb[0].mxu0
    %v5123 = vadd.f32 %v4940, %v5122
    %v5124 = vpop.f32.mrb[0].mxu0
    %5125 = vmatprep.mubr.bf16.mxu0 0
    %5126 = vmatmul.mubr.bf16.gmra.mrb[0].mxu0 %v4916
    %v5127 = vpop.f32.mrb[0].mxu0
    %v5128 = vadd.f32 %v4940, %v5127
    %v5129 = vpop.f32.mrb[0].mxu0
    %v5130 = vpop.f32.mrb[0].mxu0
    %v5131 = vadd.f32 %v4940, %v5130
    %v5132 = vpop.f32.mrb[0].mxu0
    %5133 = vmatprep.mubr.bf16.mxu0 0
    %5134 = vmatmul.mubr.bf16.gmra.mrb[0].mxu0 %v4917
    %v5135 = vpop.f32.mrb[0].mxu0
    %v5136 = vadd.f32 %v4940, %v5135
    %v5137 = vpop.f32.mrb[0].mxu0
    %v5138 = vpop.f32.mrb[0].mxu0
    %v5139 = vadd.f32 %v4940, %v5138
    %v5140 = vpop.f32.mrb[0].mxu0
    %5141 = vmatprep.mubr.bf16.mxu0 0
    %5142 = vmatmul.mubr.bf16.gmra.mrb[0].mxu0 %v4918
    %v5143 = vpop.f32.mrb[0].mxu0
    %v5144 = vadd.f32 %v4940, %v5143
    %v5145 = vpop.f32.mrb[0].mxu0
    %v5146 = vpop.f32.mrb[0].mxu0
    %v5147 = vadd.f32 %v4940, %v5146
    %v5148 = vpop.f32.mrb[0].mxu0
    %5149 = vdwg.mxu0
    %v5150 = vmax.f32 %v5024, 0.0
    %v5151 = vmax.f32 %v5027, 0.0
    %v5152 = vmax.f32 %v5032, 0.0
    %v5153 = vmax.f32 %v5035, 0.0
    %v5154 = vmax.f32 %v5040, 0.0
    %v5155 = vmax.f32 %v5043, 0.0
    %v5156 = vmax.f32 %v5048, 0.0
    %v5157 = vmax.f32 %v5051, 0.0
    %v5158 = vmax.f32 %v5056, 0.0
    %v5159 = vmax.f32 %v5059, 0.0
    %v5160 = vmax.f32 %v5064, 0.0
    %v5161 = vmax.f32 %v5067, 0.0
    %v5162 = vmax.f32 %v5072, 0.0
    %v5163 = vmax.f32 %v5075, 0.0
    %v5164 = vmax.f32 %v5080, 0.0
    %v5165 = vmax.f32 %v5083, 0.0
    %v5166 = vmax.f32 %v5088, 0.0
    %v5167 = vmax.f32 %v5091, 0.0
    %v5168 = vmax.f32 %v5096, 0.0
    %v5169 = vmax.f32 %v5099, 0.0
    %v5170 = vmax.f32 %v5104, 0.0
    %v5171 = vmax.f32 %v5107, 0.0
    %v5172 = vmax.f32 %v5112, 0.0
    %v5173 = vmax.f32 %v5115, 0.0
    %v5174 = vmax.f32 %v5120, 0.0
    %v5175 = vmax.f32 %v5123, 0.0
    %v5176 = vmax.f32 %v5128, 0.0
    %v5177 = vmax.f32 %v5131, 0.0
    %v5178 = vmax.f32 %v5136, 0.0
    %v5179 = vmax.f32 %v5139, 0.0
    %v5180 = vmax.f32 %v5144, 0.0
    %v5181 = vmax.f32 %v5147, 0.0
    %v5182 = vpack.c.bf16 %v5151, %v5150
    %v5183 = vpack.c.bf16 %v5153, %v5152
    %v5184 = vpack.c.bf16 %v5155, %v5154
    %v5185 = vpack.c.bf16 %v5157, %v5156
    %v5186 = vpack.c.bf16 %v5159, %v5158
    %v5187 = vpack.c.bf16 %v5161, %v5160
    %v5188 = vpack.c.bf16 %v5163, %v5162
    %v5189 = vpack.c.bf16 %v5165, %v5164
    %v5190 = vpack.c.bf16 %v5167, %v5166
    %v5191 = vpack.c.bf16 %v5169, %v5168
    %v5192 = vpack.c.bf16 %v5171, %v5170
    %v5193 = vpack.c.bf16 %v5173, %v5172
    %v5194 = vpack.c.bf16 %v5175, %v5174
    %v5195 = vpack.c.bf16 %v5177, %v5176
    %v5196 = vpack.c.bf16 %v5179, %v5178
    %v5197 = vpack.c.bf16 %v5181, %v5180
    %s5198 = scalar_lea.vmem %s8, 448
    %v5199 = vld [vmem:[%s5198] sm:$0xf]
    %v5200 = vld [vmem:[%s5198 + $0x4] sm:$0xf]
    %v5201 = vld [vmem:[%s5198 + $0x8] sm:$0xf]
    %v5202 = vld [vmem:[%s5198 + $0xc] sm:$0xf]
    %v5203 = vld [vmem:[%s5198 + $0x10] sm:$0xf]
    %v5204 = vld [vmem:[%s5198 + $0x14] sm:$0xf]
    %v5205 = vld [vmem:[%s5198 + $0x18] sm:$0xf]
    %v5206 = vld [vmem:[%s5198 + $0x1c] sm:$0xf]
    %v5207 = vld [vmem:[%s5198 + $0x20] sm:$0xf]
    %v5208 = vld [vmem:[%s5198 + $0x24] sm:$0xf]
    %v5209 = vld [vmem:[%s5198 + $0x28] sm:$0xf]
    %v5210 = vld [vmem:[%s5198 + $0x2c] sm:$0xf]
    %v5211 = vld [vmem:[%s5198 + $0x30] sm:$0xf]
    %v5212 = vld [vmem:[%s5198 + $0x34] sm:$0xf]
    %v5213 = vld [vmem:[%s5198 + $0x38] sm:$0xf]
    %v5214 = vld [vmem:[%s5198 + $0x3c] sm:$0xf]
    %v5215 = vld [vmem:[#allocation7 + $0x7] sm:$0x1]
    %v5216 = vlaneseq
    %v5217 = vshrl.u32 %v5216, 7
    %v5218 = vsub.s32 0, %v5217
    %v5219 = vrot.slane %v5215, %v5218
    %v5236 = vunpack.c.l.b16 %v5199
    %v5237 = vunpack.c.l.b16 %v5200
    %v5238 = vunpack.c.l.b16 %v5201
    %v5239 = vunpack.c.l.b16 %v5202
    %v5240 = vunpack.c.l.b16 %v5203
    %v5241 = vunpack.c.l.b16 %v5204
    %v5242 = vunpack.c.l.b16 %v5205
    %v5243 = vunpack.c.l.b16 %v5206
    %v5244 = vunpack.c.l.b16 %v5207
    %v5245 = vunpack.c.l.b16 %v5208
    %v5246 = vunpack.c.l.b16 %v5209
    %v5247 = vunpack.c.l.b16 %v5210
    %v5248 = vunpack.c.l.b16 %v5211
    %v5249 = vunpack.c.l.b16 %v5212
    %v5250 = vunpack.c.l.b16 %v5213
    %v5251 = vunpack.c.l.b16 %v5214
    %v5252 = vpack.c.b16 %v5237, %v5236
    %v5253 = vpack.c.b16 %v5239, %v5238
    %v5254 = vpack.c.b16 %v5241, %v5240
    %v5255 = vpack.c.b16 %v5243, %v5242
    %v5256 = vpack.c.b16 %v5245, %v5244
    %v5257 = vpack.c.b16 %v5247, %v5246
    %v5258 = vpack.c.b16 %v5249, %v5248
    %v5259 = vpack.c.b16 %v5251, %v5250
    %5268 = vmatprep.subr.bf16.mxu0 0
    %5269 = vmatpush1.bf16.msra.mxu0 %v5252
    %5270 = vmatprep.subr.bf16.mxu0 0
    %5271 = vmatpush1.bf16.msra.mxu0 %v5253
    %5272 = vmatprep.subr.bf16.mxu0 0
    %5273 = vmatpush1.bf16.msra.mxu0 %v5254
    %5274 = vmatprep.subr.bf16.mxu0 0
    %5275 = vmatpush1.bf16.msra.mxu0 %v5255
    %5276 = vmatprep.subr.bf16.mxu0 0
    %5277 = vmatpush1.bf16.msra.mxu0 %v5256
    %5278 = vmatprep.subr.bf16.mxu0 0
    %5279 = vmatpush1.bf16.msra.mxu0 %v5257
    %5280 = vmatprep.subr.bf16.mxu0 0
    %5281 = vmatpush1.bf16.msra.mxu0 %v5258
    %5282 = vmatprep.subr.bf16.mxu0 0
    %5283 = vmatpush1.bf16.msra.mxu0 %v5259
    %5284 = vmatprep.subr.bf16.mxu0 0
    %5285 = vmatpush1.bf16.msra.mxu0 0
    %5286 = vmatprep.subr.bf16.mxu0 0
    %5287 = vmatpush1.bf16.msra.mxu0 0
    %5288 = vmatprep.subr.bf16.mxu0 0
    %5289 = vmatpush1.bf16.msra.mxu0 0
    %5290 = vmatprep.subr.bf16.mxu0 0
    %5291 = vmatpush1.bf16.msra.mxu0 0
    %5292 = vmatprep.subr.bf16.mxu0 0
    %5293 = vmatpush1.bf16.msra.mxu0 0
    %5294 = vmatprep.subr.bf16.mxu0 0
    %5295 = vmatpush1.bf16.msra.mxu0 0
    %5296 = vmatprep.subr.bf16.mxu0 0
    %5297 = vmatpush1.bf16.msra.mxu0 0
    %5298 = vmatprep.subr.bf16.mxu0 0
    %5299 = vmatpush1.bf16.msra.mxu0 0
    %5300 = vmatprep.mubr.bf16.mxu0 0
    %5301 = vmatmul.mubr.bf16.gmra.mrb[0].mxu0 %v5182
    %v5302 = vpop.f32.mrb[0].mxu0
    %v5303 = vadd.f32 %v5219, %v5302
    %v5304 = vpop.f32.mrb[0].mxu0
    %v5305 = vpop.f32.mrb[0].mxu0
    %v5306 = vadd.f32 %v5219, %v5305
    %v5307 = vpop.f32.mrb[0].mxu0
    %5308 = vmatprep.mubr.bf16.mxu0 0
    %5309 = vmatmul.mubr.bf16.gmra.mrb[0].mxu0 %v5183
    %v5310 = vpop.f32.mrb[0].mxu0
    %v5311 = vadd.f32 %v5219, %v5310
    %v5312 = vpop.f32.mrb[0].mxu0
    %v5313 = vpop.f32.mrb[0].mxu0
    %v5314 = vadd.f32 %v5219, %v5313
    %v5315 = vpop.f32.mrb[0].mxu0
    %5316 = vmatprep.mubr.bf16.mxu0 0
    %5317 = vmatmul.mubr.bf16.gmra.mrb[0].mxu0 %v5184
    %v5318 = vpop.f32.mrb[0].mxu0
    %v5319 = vadd.f32 %v5219, %v5318
    %v5320 = vpop.f32.mrb[0].mxu0
    %v5321 = vpop.f32.mrb[0].mxu0
    %v5322 = vadd.f32 %v5219, %v5321
    %v5323 = vpop.f32.mrb[0].mxu0
    %5324 = vmatprep.mubr.bf16.mxu0 0
    %5325 = vmatmul.mubr.bf16.gmra.mrb[0].mxu0 %v5185
    %v5326 = vpop.f32.mrb[0].mxu0
    %v5327 = vadd.f32 %v5219, %v5326
    %v5328 = vpop.f32.mrb[0].mxu0
    %v5329 = vpop.f32.mrb[0].mxu0
    %v5330 = vadd.f32 %v5219, %v5329
    %v5331 = vpop.f32.mrb[0].mxu0
    %5332 = vmatprep.mubr.bf16.mxu0 0
    %5333 = vmatmul.mubr.bf16.gmra.mrb[0].mxu0 %v5186
    %v5334 = vpop.f32.mrb[0].mxu0
    %v5335 = vadd.f32 %v5219, %v5334
    %v5336 = vpop.f32.mrb[0].mxu0
    %v5337 = vpop.f32.mrb[0].mxu0
    %v5338 = vadd.f32 %v5219, %v5337
    %v5339 = vpop.f32.mrb[0].mxu0
    %5340 = vmatprep.mubr.bf16.mxu0 0
    %5341 = vmatmul.mubr.bf16.gmra.mrb[0].mxu0 %v5187
    %v5342 = vpop.f32.mrb[0].mxu0
    %v5343 = vadd.f32 %v5219, %v5342
    %v5344 = vpop.f32.mrb[0].mxu0
    %v5345 = vpop.f32.mrb[0].mxu0
    %v5346 = vadd.f32 %v5219, %v5345
    %v5347 = vpop.f32.mrb[0].mxu0
    %5348 = vmatprep.mubr.bf16.mxu0 0
    %5349 = vmatmul.mubr.bf16.gmra.mrb[0].mxu0 %v5188
    %v5350 = vpop.f32.mrb[0].mxu0
    %v5351 = vadd.f32 %v5219, %v5350
    %v5352 = vpop.f32.mrb[0].mxu0
    %v5353 = vpop.f32.mrb[0].mxu0
    %v5354 = vadd.f32 %v5219, %v5353
    %v5355 = vpop.f32.mrb[0].mxu0
    %5356 = vmatprep.mubr.bf16.mxu0 0
    %5357 = vmatmul.mubr.bf16.gmra.mrb[0].mxu0 %v5189
    %v5358 = vpop.f32.mrb[0].mxu0
    %v5359 = vadd.f32 %v5219, %v5358
    %v5360 = vpop.f32.mrb[0].mxu0
    %v5361 = vpop.f32.mrb[0].mxu0
    %v5362 = vadd.f32 %v5219, %v5361
    %v5363 = vpop.f32.mrb[0].mxu0
    %5364 = vmatprep.mubr.bf16.mxu0 0
    %5365 = vmatmul.mubr.bf16.gmra.mrb[0].mxu0 %v5190
    %v5366 = vpop.f32.mrb[0].mxu0
    %v5367 = vadd.f32 %v5219, %v5366
    %v5368 = vpop.f32.mrb[0].mxu0
    %v5369 = vpop.f32.mrb[0].mxu0
    %v5370 = vadd.f32 %v5219, %v5369
    %v5371 = vpop.f32.mrb[0].mxu0
    %5372 = vmatprep.mubr.bf16.mxu0 0
    %5373 = vmatmul.mubr.bf16.gmra.mrb[0].mxu0 %v5191
    %v5374 = vpop.f32.mrb[0].mxu0
    %v5375 = vadd.f32 %v5219, %v5374
    %v5376 = vpop.f32.mrb[0].mxu0
    %v5377 = vpop.f32.mrb[0].mxu0
    %v5378 = vadd.f32 %v5219, %v5377
    %v5379 = vpop.f32.mrb[0].mxu0
    %5380 = vmatprep.mubr.bf16.mxu0 0
    %5381 = vmatmul.mubr.bf16.gmra.mrb[0].mxu0 %v5192
    %v5382 = vpop.f32.mrb[0].mxu0
    %v5383 = vadd.f32 %v5219, %v5382
    %v5384 = vpop.f32.mrb[0].mxu0
    %v5385 = vpop.f32.mrb[0].mxu0
    %v5386 = vadd.f32 %v5219, %v5385
    %v5387 = vpop.f32.mrb[0].mxu0
    %5388 = vmatprep.mubr.bf16.mxu0 0
    %5389 = vmatmul.mubr.bf16.gmra.mrb[0].mxu0 %v5193
    %v5390 = vpop.f32.mrb[0].mxu0
    %v5391 = vadd.f32 %v5219, %v5390
    %v5392 = vpop.f32.mrb[0].mxu0
    %v5393 = vpop.f32.mrb[0].mxu0
    %v5394 = vadd.f32 %v5219, %v5393
    %v5395 = vpop.f32.mrb[0].mxu0
    %5396 = vmatprep.mubr.bf16.mxu0 0
    %5397 = vmatmul.mubr.bf16.gmra.mrb[0].mxu0 %v5194
    %v5398 = vpop.f32.mrb[0].mxu0
    %v5399 = vadd.f32 %v5219, %v5398
    %v5400 = vpop.f32.mrb[0].mxu0
    %v5401 = vpop.f32.mrb[0].mxu0
    %v5402 = vadd.f32 %v5219, %v5401
    %v5403 = vpop.f32.mrb[0].mxu0
    %5404 = vmatprep.mubr.bf16.mxu0 0
    %5405 = vmatmul.mubr.bf16.gmra.mrb[0].mxu0 %v5195
    %v5406 = vpop.f32.mrb[0].mxu0
    %v5407 = vadd.f32 %v5219, %v5406
    %v5408 = vpop.f32.mrb[0].mxu0
    %v5409 = vpop.f32.mrb[0].mxu0
    %v5410 = vadd.f32 %v5219, %v5409
    %v5411 = vpop.f32.mrb[0].mxu0
    %5412 = vmatprep.mubr.bf16.mxu0 0
    %5413 = vmatmul.mubr.bf16.gmra.mrb[0].mxu0 %v5196
    %v5414 = vpop.f32.mrb[0].mxu0
    %v5415 = vadd.f32 %v5219, %v5414
    %v5416 = vpop.f32.mrb[0].mxu0
    %v5417 = vpop.f32.mrb[0].mxu0
    %v5418 = vadd.f32 %v5219, %v5417
    %v5419 = vpop.f32.mrb[0].mxu0
    %5420 = vmatprep.mubr.bf16.mxu0 0
    %5421 = vmatmul.mubr.bf16.gmra.mrb[0].mxu0 %v5197
    %v5422 = vpop.f32.mrb[0].mxu0
    %v5423 = vadd.f32 %v5219, %v5422
    %v5424 = vpop.f32.mrb[0].mxu0
    %v5425 = vpop.f32.mrb[0].mxu0
    %v5426 = vadd.f32 %v5219, %v5425
    %v5427 = vpop.f32.mrb[0].mxu0
    %5428 = vdwg.mxu0
    %v5429 = vmax.f32 %v5303, 0.0
    %v5430 = vmax.f32 %v5306, 0.0
    %v5431 = vmax.f32 %v5311, 0.0
    %v5432 = vmax.f32 %v5314, 0.0
    %v5433 = vmax.f32 %v5319, 0.0
    %v5434 = vmax.f32 %v5322, 0.0
    %v5435 = vmax.f32 %v5327, 0.0
    %v5436 = vmax.f32 %v5330, 0.0
    %v5437 = vmax.f32 %v5335, 0.0
    %v5438 = vmax.f32 %v5338, 0.0
    %v5439 = vmax.f32 %v5343, 0.0
    %v5440 = vmax.f32 %v5346, 0.0
    %v5441 = vmax.f32 %v5351, 0.0
    %v5442 = vmax.f32 %v5354, 0.0
    %v5443 = vmax.f32 %v5359, 0.0
    %v5444 = vmax.f32 %v5362, 0.0
    %v5445 = vmax.f32 %v5367, 0.0
    %v5446 = vmax.f32 %v5370, 0.0
    %v5447 = vmax.f32 %v5375, 0.0
    %v5448 = vmax.f32 %v5378, 0.0
    %v5449 = vmax.f32 %v5383, 0.0
    %v5450 = vmax.f32 %v5386, 0.0
    %v5451 = vmax.f32 %v5391, 0.0
    %v5452 = vmax.f32 %v5394, 0.0
    %v5453 = vmax.f32 %v5399, 0.0
    %v5454 = vmax.f32 %v5402, 0.0
    %v5455 = vmax.f32 %v5407, 0.0
    %v5456 = vmax.f32 %v5410, 0.0
    %v5457 = vmax.f32 %v5415, 0.0
    %v5458 = vmax.f32 %v5418, 0.0
    %v5459 = vmax.f32 %v5423, 0.0
    %v5460 = vmax.f32 %v5426, 0.0
    %v5461 = vadd.f32 %v5429, %v4871
    %v5462 = vadd.f32 %v5430, %v4872
    %v5463 = vadd.f32 %v5431, %v4873
    %v5464 = vadd.f32 %v5432, %v4874
    %v5465 = vadd.f32 %v5433, %v4875
    %v5466 = vadd.f32 %v5434, %v4876
    %v5467 = vadd.f32 %v5435, %v4877
    %v5468 = vadd.f32 %v5436, %v4878
    %v5469 = vadd.f32 %v5437, %v4879
    %v5470 = vadd.f32 %v5438, %v4880
    %v5471 = vadd.f32 %v5439, %v4881
    %v5472 = vadd.f32 %v5440, %v4882
    %v5473 = vadd.f32 %v5441, %v4883
    %v5474 = vadd.f32 %v5442, %v4884
    %v5475 = vadd.f32 %v5443, %v4885
    %v5476 = vadd.f32 %v5444, %v4886
    %v5477 = vadd.f32 %v5445, %v4887
    %v5478 = vadd.f32 %v5446, %v4888
    %v5479 = vadd.f32 %v5447, %v4889
    %v5480 = vadd.f32 %v5448, %v4890
    %v5481 = vadd.f32 %v5449, %v4891
    %v5482 = vadd.f32 %v5450, %v4892
    %v5483 = vadd.f32 %v5451, %v4893
    %v5484 = vadd.f32 %v5452, %v4894
    %v5485 = vadd.f32 %v5453, %v4895
    %v5486 = vadd.f32 %v5454, %v4896
    %v5487 = vadd.f32 %v5455, %v4897
    %v5488 = vadd.f32 %v5456, %v4898
    %v5489 = vadd.f32 %v5457, %v4899
    %v5490 = vadd.f32 %v5458, %v4900
    %v5491 = vadd.f32 %v5459, %v4901
    %v5492 = vadd.f32 %v5460, %v4902
    %v5493 = vmax.f32 %v5461, 0.0
    %v5494 = vmax.f32 %v5462, 0.0
    %v5495 = vmax.f32 %v5463, 0.0
    %v5496 = vmax.f32 %v5464, 0.0
    %v5497 = vmax.f32 %v5465, 0.0
    %v5498 = vmax.f32 %v5466, 0.0
    %v5499 = vmax.f32 %v5467, 0.0
    %v5500 = vmax.f32 %v5468, 0.0
    %v5501 = vmax.f32 %v5469, 0.0
    %v5502 = vmax.f32 %v5470, 0.0
    %v5503 = vmax.f32 %v5471, 0.0
    %v5504 = vmax.f32 %v5472, 0.0
    %v5505 = vmax.f32 %v5473, 0.0
    %v5506 = vmax.f32 %v5474, 0.0
    %v5507 = vmax.f32 %v5475, 0.0
    %v5508 = vmax.f32 %v5476, 0.0
    %v5509 = vmax.f32 %v5477, 0.0
    %v5510 = vmax.f32 %v5478, 0.0
    %v5511 = vmax.f32 %v5479, 0.0
    %v5512 = vmax.f32 %v5480, 0.0
    %v5513 = vmax.f32 %v5481, 0.0
    %v5514 = vmax.f32 %v5482, 0.0
    %v5515 = vmax.f32 %v5483, 0.0
    %v5516 = vmax.f32 %v5484, 0.0
    %v5517 = vmax.f32 %v5485, 0.0
    %v5518 = vmax.f32 %v5486, 0.0
    %v5519 = vmax.f32 %v5487, 0.0
    %v5520 = vmax.f32 %v5488, 0.0
    %v5521 = vmax.f32 %v5489, 0.0
    %v5522 = vmax.f32 %v5490, 0.0
    %v5523 = vmax.f32 %v5491, 0.0
    %v5524 = vmax.f32 %v5492, 0.0
    %v5525 = vpack.c.bf16 %v5494, %v5493
    %v5526 = vpack.c.bf16 %v5496, %v5495
    %v5527 = vpack.c.bf16 %v5498, %v5497
    %v5528 = vpack.c.bf16 %v5500, %v5499
    %v5529 = vpack.c.bf16 %v5502, %v5501
    %v5530 = vpack.c.bf16 %v5504, %v5503
    %v5531 = vpack.c.bf16 %v5506, %v5505
    %v5532 = vpack.c.bf16 %v5508, %v5507
    %v5533 = vpack.c.bf16 %v5510, %v5509
    %v5534 = vpack.c.bf16 %v5512, %v5511
    %v5535 = vpack.c.bf16 %v5514, %v5513
    %v5536 = vpack.c.bf16 %v5516, %v5515
    %v5537 = vpack.c.bf16 %v5518, %v5517
    %v5538 = vpack.c.bf16 %v5520, %v5519
    %v5539 = vpack.c.bf16 %v5522, %v5521
    %v5540 = vpack.c.bf16 %v5524, %v5523
    %s5541 = scalar_lea.vmem %s8, 512
    %v5542 = vld [vmem:[%s5541] sm:$0xf]
    %v5543 = vld [vmem:[%s5541 + $0x4] sm:$0xf]
    %v5544 = vld [vmem:[%s5541 + $0x8] sm:$0xf]
    %v5545 = vld [vmem:[%s5541 + $0xc] sm:$0xf]
    %v5546 = vld [vmem:[%s5541 + $0x10] sm:$0xf]
    %v5547 = vld [vmem:[%s5541 + $0x14] sm:$0xf]
    %v5548 = vld [vmem:[%s5541 + $0x18] sm:$0xf]
    %v5549 = vld [vmem:[%s5541 + $0x1c] sm:$0xf]
    %v5550 = vld [vmem:[%s5541 + $0x20] sm:$0xf]
    %v5551 = vld [vmem:[%s5541 + $0x24] sm:$0xf]
    %v5552 = vld [vmem:[%s5541 + $0x28] sm:$0xf]
    %v5553 = vld [vmem:[%s5541 + $0x2c] sm:$0xf]
    %v5554 = vld [vmem:[%s5541 + $0x30] sm:$0xf]
    %v5555 = vld [vmem:[%s5541 + $0x34] sm:$0xf]
    %v5556 = vld [vmem:[%s5541 + $0x38] sm:$0xf]
    %v5557 = vld [vmem:[%s5541 + $0x3c] sm:$0xf]
    %v5558 = vld [vmem:[#allocation7 + $0x8] sm:$0x1]
    %v5559 = vlaneseq
    %v5560 = vshrl.u32 %v5559, 7
    %v5561 = vsub.s32 0, %v5560
    %v5562 = vrot.slane %v5558, %v5561
    %v5579 = vunpack.c.l.b16 %v5542
    %v5580 = vunpack.c.l.b16 %v5543
    %v5581 = vunpack.c.l.b16 %v5544
    %v5582 = vunpack.c.l.b16 %v5545
    %v5583 = vunpack.c.l.b16 %v5546
    %v5584 = vunpack.c.l.b16 %v5547
    %v5585 = vunpack.c.l.b16 %v5548
    %v5586 = vunpack.c.l.b16 %v5549
    %v5587 = vunpack.c.l.b16 %v5550
    %v5588 = vunpack.c.l.b16 %v5551
    %v5589 = vunpack.c.l.b16 %v5552
    %v5590 = vunpack.c.l.b16 %v5553
    %v5591 = vunpack.c.l.b16 %v5554
    %v5592 = vunpack.c.l.b16 %v5555
    %v5593 = vunpack.c.l.b16 %v5556
    %v5594 = vunpack.c.l.b16 %v5557
    %v5595 = vpack.c.b16 %v5580, %v5579
    %v5596 = vpack.c.b16 %v5582, %v5581
    %v5597 = vpack.c.b16 %v5584, %v5583
    %v5598 = vpack.c.b16 %v5586, %v5585
    %v5599 = vpack.c.b16 %v5588, %v5587
    %v5600 = vpack.c.b16 %v5590, %v5589
    %v5601 = vpack.c.b16 %v5592, %v5591
    %v5602 = vpack.c.b16 %v5594, %v5593
    %5611 = vmatprep.subr.bf16.mxu0 0
    %5612 = vmatpush1.bf16.msra.mxu0 %v5595
    %5613 = vmatprep.subr.bf16.mxu0 0
    %5614 = vmatpush1.bf16.msra.mxu0 %v5596
    %5615 = vmatprep.subr.bf16.mxu0 0
    %5616 = vmatpush1.bf16.msra.mxu0 %v5597
    %5617 = vmatprep.subr.bf16.mxu0 0
    %5618 = vmatpush1.bf16.msra.mxu0 %v5598
    %5619 = vmatprep.subr.bf16.mxu0 0
    %5620 = vmatpush1.bf16.msra.mxu0 %v5599
    %5621 = vmatprep.subr.bf16.mxu0 0
    %5622 = vmatpush1.bf16.msra.mxu0 %v5600
    %5623 = vmatprep.subr.bf16.mxu0 0
    %5624 = vmatpush1.bf16.msra.mxu0 %v5601
    %5625 = vmatprep.subr.bf16.mxu0 0
    %5626 = vmatpush1.bf16.msra.mxu0 %v5602
    %5627 = vmatprep.subr.bf16.mxu0 0
    %5628 = vmatpush1.bf16.msra.mxu0 0
    %5629 = vmatprep.subr.bf16.mxu0 0
    %5630 = vmatpush1.bf16.msra.mxu0 0
    %5631 = vmatprep.subr.bf16.mxu0 0
    %5632 = vmatpush1.bf16.msra.mxu0 0
    %5633 = vmatprep.subr.bf16.mxu0 0
    %5634 = vmatpush1.bf16.msra.mxu0 0
    %5635 = vmatprep.subr.bf16.mxu0 0
    %5636 = vmatpush1.bf16.msra.mxu0 0
    %5637 = vmatprep.subr.bf16.mxu0 0
    %5638 = vmatpush1.bf16.msra.mxu0 0
    %5639 = vmatprep.subr.bf16.mxu0 0
    %5640 = vmatpush1.bf16.msra.mxu0 0
    %5641 = vmatprep.subr.bf16.mxu0 0
    %5642 = vmatpush1.bf16.msra.mxu0 0
    %5643 = vmatprep.mubr.bf16.mxu0 0
    %5644 = vmatmul.mubr.bf16.gmra.mrb[0].mxu0 %v5525
    %v5645 = vpop.f32.mrb[0].mxu0
    %v5646 = vadd.f32 %v5562, %v5645
    %v5647 = vpop.f32.mrb[0].mxu0
    %v5648 = vpop.f32.mrb[0].mxu0
    %v5649 = vadd.f32 %v5562, %v5648
    %v5650 = vpop.f32.mrb[0].mxu0
    %5651 = vmatprep.mubr.bf16.mxu0 0
    %5652 = vmatmul.mubr.bf16.gmra.mrb[0].mxu0 %v5526
    %v5653 = vpop.f32.mrb[0].mxu0
    %v5654 = vadd.f32 %v5562, %v5653
    %v5655 = vpop.f32.mrb[0].mxu0
    %v5656 = vpop.f32.mrb[0].mxu0
    %v5657 = vadd.f32 %v5562, %v5656
    %v5658 = vpop.f32.mrb[0].mxu0
    %5659 = vmatprep.mubr.bf16.mxu0 0
    %5660 = vmatmul.mubr.bf16.gmra.mrb[0].mxu0 %v5527
    %v5661 = vpop.f32.mrb[0].mxu0
    %v5662 = vadd.f32 %v5562, %v5661
    %v5663 = vpop.f32.mrb[0].mxu0
    %v5664 = vpop.f32.mrb[0].mxu0
    %v5665 = vadd.f32 %v5562, %v5664
    %v5666 = vpop.f32.mrb[0].mxu0
    %5667 = vmatprep.mubr.bf16.mxu0 0
    %5668 = vmatmul.mubr.bf16.gmra.mrb[0].mxu0 %v5528
    %v5669 = vpop.f32.mrb[0].mxu0
    %v5670 = vadd.f32 %v5562, %v5669
    %v5671 = vpop.f32.mrb[0].mxu0
    %v5672 = vpop.f32.mrb[0].mxu0
    %v5673 = vadd.f32 %v5562, %v5672
    %v5674 = vpop.f32.mrb[0].mxu0
    %5675 = vmatprep.mubr.bf16.mxu0 0
    %5676 = vmatmul.mubr.bf16.gmra.mrb[0].mxu0 %v5529
    %v5677 = vpop.f32.mrb[0].mxu0
    %v5678 = vadd.f32 %v5562, %v5677
    %v5679 = vpop.f32.mrb[0].mxu0
    %v5680 = vpop.f32.mrb[0].mxu0
    %v5681 = vadd.f32 %v5562, %v5680
    %v5682 = vpop.f32.mrb[0].mxu0
    %5683 = vmatprep.mubr.bf16.mxu0 0
    %5684 = vmatmul.mubr.bf16.gmra.mrb[0].mxu0 %v5530
    %v5685 = vpop.f32.mrb[0].mxu0
    %v5686 = vadd.f32 %v5562, %v5685
    %v5687 = vpop.f32.mrb[0].mxu0
    %v5688 = vpop.f32.mrb[0].mxu0
    %v5689 = vadd.f32 %v5562, %v5688
    %v5690 = vpop.f32.mrb[0].mxu0
    %5691 = vmatprep.mubr.bf16.mxu0 0
    %5692 = vmatmul.mubr.bf16.gmra.mrb[0].mxu0 %v5531
    %v5693 = vpop.f32.mrb[0].mxu0
    %v5694 = vadd.f32 %v5562, %v5693
    %v5695 = vpop.f32.mrb[0].mxu0
    %v5696 = vpop.f32.mrb[0].mxu0
    %v5697 = vadd.f32 %v5562, %v5696
    %v5698 = vpop.f32.mrb[0].mxu0
    %5699 = vmatprep.mubr.bf16.mxu0 0
    %5700 = vmatmul.mubr.bf16.gmra.mrb[0].mxu0 %v5532
    %v5701 = vpop.f32.mrb[0].mxu0
    %v5702 = vadd.f32 %v5562, %v5701
    %v5703 = vpop.f32.mrb[0].mxu0
    %v5704 = vpop.f32.mrb[0].mxu0
    %v5705 = vadd.f32 %v5562, %v5704
    %v5706 = vpop.f32.mrb[0].mxu0
    %5707 = vmatprep.mubr.bf16.mxu0 0
    %5708 = vmatmul.mubr.bf16.gmra.mrb[0].mxu0 %v5533
    %v5709 = vpop.f32.mrb[0].mxu0
    %v5710 = vadd.f32 %v5562, %v5709
    %v5711 = vpop.f32.mrb[0].mxu0
    %v5712 = vpop.f32.mrb[0].mxu0
    %v5713 = vadd.f32 %v5562, %v5712
    %v5714 = vpop.f32.mrb[0].mxu0
    %5715 = vmatprep.mubr.bf16.mxu0 0
    %5716 = vmatmul.mubr.bf16.gmra.mrb[0].mxu0 %v5534
    %v5717 = vpop.f32.mrb[0].mxu0
    %v5718 = vadd.f32 %v5562, %v5717
    %v5719 = vpop.f32.mrb[0].mxu0
    %v5720 = vpop.f32.mrb[0].mxu0
    %v5721 = vadd.f32 %v5562, %v5720
    %v5722 = vpop.f32.mrb[0].mxu0
    %5723 = vmatprep.mubr.bf16.mxu0 0
    %5724 = vmatmul.mubr.bf16.gmra.mrb[0].mxu0 %v5535
    %v5725 = vpop.f32.mrb[0].mxu0
    %v5726 = vadd.f32 %v5562, %v5725
    %v5727 = vpop.f32.mrb[0].mxu0
    %v5728 = vpop.f32.mrb[0].mxu0
    %v5729 = vadd.f32 %v5562, %v5728
    %v5730 = vpop.f32.mrb[0].mxu0
    %5731 = vmatprep.mubr.bf16.mxu0 0
    %5732 = vmatmul.mubr.bf16.gmra.mrb[0].mxu0 %v5536
    %v5733 = vpop.f32.mrb[0].mxu0
    %v5734 = vadd.f32 %v5562, %v5733
    %v5735 = vpop.f32.mrb[0].mxu0
    %v5736 = vpop.f32.mrb[0].mxu0
    %v5737 = vadd.f32 %v5562, %v5736
    %v5738 = vpop.f32.mrb[0].mxu0
    %5739 = vmatprep.mubr.bf16.mxu0 0
    %5740 = vmatmul.mubr.bf16.gmra.mrb[0].mxu0 %v5537
    %v5741 = vpop.f32.mrb[0].mxu0
    %v5742 = vadd.f32 %v5562, %v5741
    %v5743 = vpop.f32.mrb[0].mxu0
    %v5744 = vpop.f32.mrb[0].mxu0
    %v5745 = vadd.f32 %v5562, %v5744
    %v5746 = vpop.f32.mrb[0].mxu0
    %5747 = vmatprep.mubr.bf16.mxu0 0
    %5748 = vmatmul.mubr.bf16.gmra.mrb[0].mxu0 %v5538
    %v5749 = vpop.f32.mrb[0].mxu0
    %v5750 = vadd.f32 %v5562, %v5749
    %v5751 = vpop.f32.mrb[0].mxu0
    %v5752 = vpop.f32.mrb[0].mxu0
    %v5753 = vadd.f32 %v5562, %v5752
    %v5754 = vpop.f32.mrb[0].mxu0
    %5755 = vmatprep.mubr.bf16.mxu0 0
    %5756 = vmatmul.mubr.bf16.gmra.mrb[0].mxu0 %v5539
    %v5757 = vpop.f32.mrb[0].mxu0
    %v5758 = vadd.f32 %v5562, %v5757
    %v5759 = vpop.f32.mrb[0].mxu0
    %v5760 = vpop.f32.mrb[0].mxu0
    %v5761 = vadd.f32 %v5562, %v5760
    %v5762 = vpop.f32.mrb[0].mxu0
    %5763 = vmatprep.mubr.bf16.mxu0 0
    %5764 = vmatmul.mubr.bf16.gmra.mrb[0].mxu0 %v5540
    %v5765 = vpop.f32.mrb[0].mxu0
    %v5766 = vadd.f32 %v5562, %v5765
    %v5767 = vpop.f32.mrb[0].mxu0
    %v5768 = vpop.f32.mrb[0].mxu0
    %v5769 = vadd.f32 %v5562, %v5768
    %v5770 = vpop.f32.mrb[0].mxu0
    %5771 = vdwg.mxu0
    %v5772 = vmax.f32 %v5646, 0.0
    %v5773 = vmax.f32 %v5649, 0.0
    %v5774 = vmax.f32 %v5654, 0.0
    %v5775 = vmax.f32 %v5657, 0.0
    %v5776 = vmax.f32 %v5662, 0.0
    %v5777 = vmax.f32 %v5665, 0.0
    %v5778 = vmax.f32 %v5670, 0.0
    %v5779 = vmax.f32 %v5673, 0.0
    %v5780 = vmax.f32 %v5678, 0.0
    %v5781 = vmax.f32 %v5681, 0.0
    %v5782 = vmax.f32 %v5686, 0.0
    %v5783 = vmax.f32 %v5689, 0.0
    %v5784 = vmax.f32 %v5694, 0.0
    %v5785 = vmax.f32 %v5697, 0.0
    %v5786 = vmax.f32 %v5702, 0.0
    %v5787 = vmax.f32 %v5705, 0.0
    %v5788 = vmax.f32 %v5710, 0.0
    %v5789 = vmax.f32 %v5713, 0.0
    %v5790 = vmax.f32 %v5718, 0.0
    %v5791 = vmax.f32 %v5721, 0.0
    %v5792 = vmax.f32 %v5726, 0.0
    %v5793 = vmax.f32 %v5729, 0.0
    %v5794 = vmax.f32 %v5734, 0.0
    %v5795 = vmax.f32 %v5737, 0.0
    %v5796 = vmax.f32 %v5742, 0.0
    %v5797 = vmax.f32 %v5745, 0.0
    %v5798 = vmax.f32 %v5750, 0.0
    %v5799 = vmax.f32 %v5753, 0.0
    %v5800 = vmax.f32 %v5758, 0.0
    %v5801 = vmax.f32 %v5761, 0.0
    %v5802 = vmax.f32 %v5766, 0.0
    %v5803 = vmax.f32 %v5769, 0.0
    %v5804 = vpack.c.bf16 %v5773, %v5772
    %v5805 = vpack.c.bf16 %v5775, %v5774
    %v5806 = vpack.c.bf16 %v5777, %v5776
    %v5807 = vpack.c.bf16 %v5779, %v5778
    %v5808 = vpack.c.bf16 %v5781, %v5780
    %v5809 = vpack.c.bf16 %v5783, %v5782
    %v5810 = vpack.c.bf16 %v5785, %v5784
    %v5811 = vpack.c.bf16 %v5787, %v5786
    %v5812 = vpack.c.bf16 %v5789, %v5788
    %v5813 = vpack.c.bf16 %v5791, %v5790
    %v5814 = vpack.c.bf16 %v5793, %v5792
    %v5815 = vpack.c.bf16 %v5795, %v5794
    %v5816 = vpack.c.bf16 %v5797, %v5796
    %v5817 = vpack.c.bf16 %v5799, %v5798
    %v5818 = vpack.c.bf16 %v5801, %v5800
    %v5819 = vpack.c.bf16 %v5803, %v5802
    %s5820 = scalar_lea.vmem %s8, 576
    %v5821 = vld [vmem:[%s5820] sm:$0xf]
    %v5822 = vld [vmem:[%s5820 + $0x4] sm:$0xf]
    %v5823 = vld [vmem:[%s5820 + $0x8] sm:$0xf]
    %v5824 = vld [vmem:[%s5820 + $0xc] sm:$0xf]
    %v5825 = vld [vmem:[%s5820 + $0x10] sm:$0xf]
    %v5826 = vld [vmem:[%s5820 + $0x14] sm:$0xf]
    %v5827 = vld [vmem:[%s5820 + $0x18] sm:$0xf]
    %v5828 = vld [vmem:[%s5820 + $0x1c] sm:$0xf]
    %v5829 = vld [vmem:[%s5820 + $0x20] sm:$0xf]
    %v5830 = vld [vmem:[%s5820 + $0x24] sm:$0xf]
    %v5831 = vld [vmem:[%s5820 + $0x28] sm:$0xf]
    %v5832 = vld [vmem:[%s5820 + $0x2c] sm:$0xf]
    %v5833 = vld [vmem:[%s5820 + $0x30] sm:$0xf]
    %v5834 = vld [vmem:[%s5820 + $0x34] sm:$0xf]
    %v5835 = vld [vmem:[%s5820 + $0x38] sm:$0xf]
    %v5836 = vld [vmem:[%s5820 + $0x3c] sm:$0xf]
    %v5837 = vld [vmem:[#allocation7 + $0x9] sm:$0x1]
    %v5838 = vlaneseq
    %v5839 = vshrl.u32 %v5838, 7
    %v5840 = vsub.s32 0, %v5839
    %v5841 = vrot.slane %v5837, %v5840
    %v5858 = vunpack.c.l.b16 %v5821
    %v5859 = vunpack.c.l.b16 %v5822
    %v5860 = vunpack.c.l.b16 %v5823
    %v5861 = vunpack.c.l.b16 %v5824
    %v5862 = vunpack.c.l.b16 %v5825
    %v5863 = vunpack.c.l.b16 %v5826
    %v5864 = vunpack.c.l.b16 %v5827
    %v5865 = vunpack.c.l.b16 %v5828
    %v5866 = vunpack.c.l.b16 %v5829
    %v5867 = vunpack.c.l.b16 %v5830
    %v5868 = vunpack.c.l.b16 %v5831
    %v5869 = vunpack.c.l.b16 %v5832
    %v5870 = vunpack.c.l.b16 %v5833
    %v5871 = vunpack.c.l.b16 %v5834
    %v5872 = vunpack.c.l.b16 %v5835
    %v5873 = vunpack.c.l.b16 %v5836
    %v5874 = vpack.c.b16 %v5859, %v5858
    %v5875 = vpack.c.b16 %v5861, %v5860
    %v5876 = vpack.c.b16 %v5863, %v5862
    %v5877 = vpack.c.b16 %v5865, %v5864
    %v5878 = vpack.c.b16 %v5867, %v5866
    %v5879 = vpack.c.b16 %v5869, %v5868
    %v5880 = vpack.c.b16 %v5871, %v5870
    %v5881 = vpack.c.b16 %v5873, %v5872
    %5890 = vmatprep.subr.bf16.mxu0 0
    %5891 = vmatpush1.bf16.msra.mxu0 %v5874
    %5892 = vmatprep.subr.bf16.mxu0 0
    %5893 = vmatpush1.bf16.msra.mxu0 %v5875
    %5894 = vmatprep.subr.bf16.mxu0 0
    %5895 = vmatpush1.bf16.msra.mxu0 %v5876
    %5896 = vmatprep.subr.bf16.mxu0 0
    %5897 = vmatpush1.bf16.msra.mxu0 %v5877
    %5898 = vmatprep.subr.bf16.mxu0 0
    %5899 = vmatpush1.bf16.msra.mxu0 %v5878
    %5900 = vmatprep.subr.bf16.mxu0 0
    %5901 = vmatpush1.bf16.msra.mxu0 %v5879
    %5902 = vmatprep.subr.bf16.mxu0 0
    %5903 = vmatpush1.bf16.msra.mxu0 %v5880
    %5904 = vmatprep.subr.bf16.mxu0 0
    %5905 = vmatpush1.bf16.msra.mxu0 %v5881
    %5906 = vmatprep.subr.bf16.mxu0 0
    %5907 = vmatpush1.bf16.msra.mxu0 0
    %5908 = vmatprep.subr.bf16.mxu0 0
    %5909 = vmatpush1.bf16.msra.mxu0 0
    %5910 = vmatprep.subr.bf16.mxu0 0
    %5911 = vmatpush1.bf16.msra.mxu0 0
    %5912 = vmatprep.subr.bf16.mxu0 0
    %5913 = vmatpush1.bf16.msra.mxu0 0
    %5914 = vmatprep.subr.bf16.mxu0 0
    %5915 = vmatpush1.bf16.msra.mxu0 0
    %5916 = vmatprep.subr.bf16.mxu0 0
    %5917 = vmatpush1.bf16.msra.mxu0 0
    %5918 = vmatprep.subr.bf16.mxu0 0
    %5919 = vmatpush1.bf16.msra.mxu0 0
    %5920 = vmatprep.subr.bf16.mxu0 0
    %5921 = vmatpush1.bf16.msra.mxu0 0
    %5922 = vmatprep.mubr.bf16.mxu0 0
    %5923 = vmatmul.mubr.bf16.gmra.mrb[0].mxu0 %v5804
    %v5924 = vpop.f32.mrb[0].mxu0
    %v5925 = vadd.f32 %v5841, %v5924
    %v5926 = vpop.f32.mrb[0].mxu0
    %v5927 = vpop.f32.mrb[0].mxu0
    %v5928 = vadd.f32 %v5841, %v5927
    %v5929 = vpop.f32.mrb[0].mxu0
    %5930 = vmatprep.mubr.bf16.mxu0 0
    %5931 = vmatmul.mubr.bf16.gmra.mrb[0].mxu0 %v5805
    %v5932 = vpop.f32.mrb[0].mxu0
    %v5933 = vadd.f32 %v5841, %v5932
    %v5934 = vpop.f32.mrb[0].mxu0
    %v5935 = vpop.f32.mrb[0].mxu0
    %v5936 = vadd.f32 %v5841, %v5935
    %v5937 = vpop.f32.mrb[0].mxu0
    %5938 = vmatprep.mubr.bf16.mxu0 0
    %5939 = vmatmul.mubr.bf16.gmra.mrb[0].mxu0 %v5806
    %v5940 = vpop.f32.mrb[0].mxu0
    %v5941 = vadd.f32 %v5841, %v5940
    %v5942 = vpop.f32.mrb[0].mxu0
    %v5943 = vpop.f32.mrb[0].mxu0
    %v5944 = vadd.f32 %v5841, %v5943
    %v5945 = vpop.f32.mrb[0].mxu0
    %5946 = vmatprep.mubr.bf16.mxu0 0
    %5947 = vmatmul.mubr.bf16.gmra.mrb[0].mxu0 %v5807
    %v5948 = vpop.f32.mrb[0].mxu0
    %v5949 = vadd.f32 %v5841, %v5948
    %v5950 = vpop.f32.mrb[0].mxu0
    %v5951 = vpop.f32.mrb[0].mxu0
    %v5952 = vadd.f32 %v5841, %v5951
    %v5953 = vpop.f32.mrb[0].mxu0
    %5954 = vmatprep.mubr.bf16.mxu0 0
    %5955 = vmatmul.mubr.bf16.gmra.mrb[0].mxu0 %v5808
    %v5956 = vpop.f32.mrb[0].mxu0
    %v5957 = vadd.f32 %v5841, %v5956
    %v5958 = vpop.f32.mrb[0].mxu0
    %v5959 = vpop.f32.mrb[0].mxu0
    %v5960 = vadd.f32 %v5841, %v5959
    %v5961 = vpop.f32.mrb[0].mxu0
    %5962 = vmatprep.mubr.bf16.mxu0 0
    %5963 = vmatmul.mubr.bf16.gmra.mrb[0].mxu0 %v5809
    %v5964 = vpop.f32.mrb[0].mxu0
    %v5965 = vadd.f32 %v5841, %v5964
    %v5966 = vpop.f32.mrb[0].mxu0
    %v5967 = vpop.f32.mrb[0].mxu0
    %v5968 = vadd.f32 %v5841, %v5967
    %v5969 = vpop.f32.mrb[0].mxu0
    %5970 = vmatprep.mubr.bf16.mxu0 0
    %5971 = vmatmul.mubr.bf16.gmra.mrb[0].mxu0 %v5810
    %v5972 = vpop.f32.mrb[0].mxu0
    %v5973 = vadd.f32 %v5841, %v5972
    %v5974 = vpop.f32.mrb[0].mxu0
    %v5975 = vpop.f32.mrb[0].mxu0
    %v5976 = vadd.f32 %v5841, %v5975
    %v5977 = vpop.f32.mrb[0].mxu0
    %5978 = vmatprep.mubr.bf16.mxu0 0
    %5979 = vmatmul.mubr.bf16.gmra.mrb[0].mxu0 %v5811
    %v5980 = vpop.f32.mrb[0].mxu0
    %v5981 = vadd.f32 %v5841, %v5980
    %v5982 = vpop.f32.mrb[0].mxu0
    %v5983 = vpop.f32.mrb[0].mxu0
    %v5984 = vadd.f32 %v5841, %v5983
    %v5985 = vpop.f32.mrb[0].mxu0
    %5986 = vmatprep.mubr.bf16.mxu0 0
    %5987 = vmatmul.mubr.bf16.gmra.mrb[0].mxu0 %v5812
    %v5988 = vpop.f32.mrb[0].mxu0
    %v5989 = vadd.f32 %v5841, %v5988
    %v5990 = vpop.f32.mrb[0].mxu0
    %v5991 = vpop.f32.mrb[0].mxu0
    %v5992 = vadd.f32 %v5841, %v5991
    %v5993 = vpop.f32.mrb[0].mxu0
    %5994 = vmatprep.mubr.bf16.mxu0 0
    %5995 = vmatmul.mubr.bf16.gmra.mrb[0].mxu0 %v5813
    %v5996 = vpop.f32.mrb[0].mxu0
    %v5997 = vadd.f32 %v5841, %v5996
    %v5998 = vpop.f32.mrb[0].mxu0
    %v5999 = vpop.f32.mrb[0].mxu0
    %v6000 = vadd.f32 %v5841, %v5999
    %v6001 = vpop.f32.mrb[0].mxu0
    %6002 = vmatprep.mubr.bf16.mxu0 0
    %6003 = vmatmul.mubr.bf16.gmra.mrb[0].mxu0 %v5814
    %v6004 = vpop.f32.mrb[0].mxu0
    %v6005 = vadd.f32 %v5841, %v6004
    %v6006 = vpop.f32.mrb[0].mxu0
    %v6007 = vpop.f32.mrb[0].mxu0
    %v6008 = vadd.f32 %v5841, %v6007
    %v6009 = vpop.f32.mrb[0].mxu0
    %6010 = vmatprep.mubr.bf16.mxu0 0
    %6011 = vmatmul.mubr.bf16.gmra.mrb[0].mxu0 %v5815
    %v6012 = vpop.f32.mrb[0].mxu0
    %v6013 = vadd.f32 %v5841, %v6012
    %v6014 = vpop.f32.mrb[0].mxu0
    %v6015 = vpop.f32.mrb[0].mxu0
    %v6016 = vadd.f32 %v5841, %v6015
    %v6017 = vpop.f32.mrb[0].mxu0
    %6018 = vmatprep.mubr.bf16.mxu0 0
    %6019 = vmatmul.mubr.bf16.gmra.mrb[0].mxu0 %v5816
    %v6020 = vpop.f32.mrb[0].mxu0
    %v6021 = vadd.f32 %v5841, %v6020
    %v6022 = vpop.f32.mrb[0].mxu0
    %v6023 = vpop.f32.mrb[0].mxu0
    %v6024 = vadd.f32 %v5841, %v6023
    %v6025 = vpop.f32.mrb[0].mxu0
    %6026 = vmatprep.mubr.bf16.mxu0 0
    %6027 = vmatmul.mubr.bf16.gmra.mrb[0].mxu0 %v5817
    %v6028 = vpop.f32.mrb[0].mxu0
    %v6029 = vadd.f32 %v5841, %v6028
    %v6030 = vpop.f32.mrb[0].mxu0
    %v6031 = vpop.f32.mrb[0].mxu0
    %v6032 = vadd.f32 %v5841, %v6031
    %v6033 = vpop.f32.mrb[0].mxu0
    %6034 = vmatprep.mubr.bf16.mxu0 0
    %6035 = vmatmul.mubr.bf16.gmra.mrb[0].mxu0 %v5818
    %v6036 = vpop.f32.mrb[0].mxu0
    %v6037 = vadd.f32 %v5841, %v6036
    %v6038 = vpop.f32.mrb[0].mxu0
    %v6039 = vpop.f32.mrb[0].mxu0
    %v6040 = vadd.f32 %v5841, %v6039
    %v6041 = vpop.f32.mrb[0].mxu0
    %6042 = vmatprep.mubr.bf16.mxu0 0
    %6043 = vmatmul.mubr.bf16.gmra.mrb[0].mxu0 %v5819
    %v6044 = vpop.f32.mrb[0].mxu0
    %v6045 = vadd.f32 %v5841, %v6044
    %v6046 = vpop.f32.mrb[0].mxu0
    %v6047 = vpop.f32.mrb[0].mxu0
    %v6048 = vadd.f32 %v5841, %v6047
    %v6049 = vpop.f32.mrb[0].mxu0
    %6050 = vdwg.mxu0
    %v6051 = vmax.f32 %v5925, 0.0
    %v6052 = vmax.f32 %v5928, 0.0
    %v6053 = vmax.f32 %v5933, 0.0
    %v6054 = vmax.f32 %v5936, 0.0
    %v6055 = vmax.f32 %v5941, 0.0
    %v6056 = vmax.f32 %v5944, 0.0
    %v6057 = vmax.f32 %v5949, 0.0
    %v6058 = vmax.f32 %v5952, 0.0
    %v6059 = vmax.f32 %v5957, 0.0
    %v6060 = vmax.f32 %v5960, 0.0
    %v6061 = vmax.f32 %v5965, 0.0
    %v6062 = vmax.f32 %v5968, 0.0
    %v6063 = vmax.f32 %v5973, 0.0
    %v6064 = vmax.f32 %v5976, 0.0
    %v6065 = vmax.f32 %v5981, 0.0
    %v6066 = vmax.f32 %v5984, 0.0
    %v6067 = vmax.f32 %v5989, 0.0
    %v6068 = vmax.f32 %v5992, 0.0
    %v6069 = vmax.f32 %v5997, 0.0
    %v6070 = vmax.f32 %v6000, 0.0
    %v6071 = vmax.f32 %v6005, 0.0
    %v6072 = vmax.f32 %v6008, 0.0
    %v6073 = vmax.f32 %v6013, 0.0
    %v6074 = vmax.f32 %v6016, 0.0
    %v6075 = vmax.f32 %v6021, 0.0
    %v6076 = vmax.f32 %v6024, 0.0
    %v6077 = vmax.f32 %v6029, 0.0
    %v6078 = vmax.f32 %v6032, 0.0
    %v6079 = vmax.f32 %v6037, 0.0
    %v6080 = vmax.f32 %v6040, 0.0
    %v6081 = vmax.f32 %v6045, 0.0
    %v6082 = vmax.f32 %v6048, 0.0
    %v6083 = vadd.f32 %v6051, %v5493
    %v6084 = vadd.f32 %v6052, %v5494
    %v6085 = vadd.f32 %v6053, %v5495
    %v6086 = vadd.f32 %v6054, %v5496
    %v6087 = vadd.f32 %v6055, %v5497
    %v6088 = vadd.f32 %v6056, %v5498
    %v6089 = vadd.f32 %v6057, %v5499
    %v6090 = vadd.f32 %v6058, %v5500
    %v6091 = vadd.f32 %v6059, %v5501
    %v6092 = vadd.f32 %v6060, %v5502
    %v6093 = vadd.f32 %v6061, %v5503
    %v6094 = vadd.f32 %v6062, %v5504
    %v6095 = vadd.f32 %v6063, %v5505
    %v6096 = vadd.f32 %v6064, %v5506
    %v6097 = vadd.f32 %v6065, %v5507
    %v6098 = vadd.f32 %v6066, %v5508
    %v6099 = vadd.f32 %v6067, %v5509
    %v6100 = vadd.f32 %v6068, %v5510
    %v6101 = vadd.f32 %v6069, %v5511
    %v6102 = vadd.f32 %v6070, %v5512
    %v6103 = vadd.f32 %v6071, %v5513
    %v6104 = vadd.f32 %v6072, %v5514
    %v6105 = vadd.f32 %v6073, %v5515
    %v6106 = vadd.f32 %v6074, %v5516
    %v6107 = vadd.f32 %v6075, %v5517
    %v6108 = vadd.f32 %v6076, %v5518
    %v6109 = vadd.f32 %v6077, %v5519
    %v6110 = vadd.f32 %v6078, %v5520
    %v6111 = vadd.f32 %v6079, %v5521
    %v6112 = vadd.f32 %v6080, %v5522
    %v6113 = vadd.f32 %v6081, %v5523
    %v6114 = vadd.f32 %v6082, %v5524
    %v6115 = vmax.f32 %v6083, 0.0
    %v6116 = vmax.f32 %v6084, 0.0
    %v6117 = vmax.f32 %v6085, 0.0
    %v6118 = vmax.f32 %v6086, 0.0
    %v6119 = vmax.f32 %v6087, 0.0
    %v6120 = vmax.f32 %v6088, 0.0
    %v6121 = vmax.f32 %v6089, 0.0
    %v6122 = vmax.f32 %v6090, 0.0
    %v6123 = vmax.f32 %v6091, 0.0
    %v6124 = vmax.f32 %v6092, 0.0
    %v6125 = vmax.f32 %v6093, 0.0
    %v6126 = vmax.f32 %v6094, 0.0
    %v6127 = vmax.f32 %v6095, 0.0
    %v6128 = vmax.f32 %v6096, 0.0
    %v6129 = vmax.f32 %v6097, 0.0
    %v6130 = vmax.f32 %v6098, 0.0
    %v6131 = vmax.f32 %v6099, 0.0
    %v6132 = vmax.f32 %v6100, 0.0
    %v6133 = vmax.f32 %v6101, 0.0
    %v6134 = vmax.f32 %v6102, 0.0
    %v6135 = vmax.f32 %v6103, 0.0
    %v6136 = vmax.f32 %v6104, 0.0
    %v6137 = vmax.f32 %v6105, 0.0
    %v6138 = vmax.f32 %v6106, 0.0
    %v6139 = vmax.f32 %v6107, 0.0
    %v6140 = vmax.f32 %v6108, 0.0
    %v6141 = vmax.f32 %v6109, 0.0
    %v6142 = vmax.f32 %v6110, 0.0
    %v6143 = vmax.f32 %v6111, 0.0
    %v6144 = vmax.f32 %v6112, 0.0
    %v6145 = vmax.f32 %v6113, 0.0
    %v6146 = vmax.f32 %v6114, 0.0
    %v6147 = vpack.c.bf16 %v6116, %v6115
    %v6148 = vpack.c.bf16 %v6118, %v6117
    %v6149 = vpack.c.bf16 %v6120, %v6119
    %v6150 = vpack.c.bf16 %v6122, %v6121
    %v6151 = vpack.c.bf16 %v6124, %v6123
    %v6152 = vpack.c.bf16 %v6126, %v6125
    %v6153 = vpack.c.bf16 %v6128, %v6127
    %v6154 = vpack.c.bf16 %v6130, %v6129
    %v6155 = vpack.c.bf16 %v6132, %v6131
    %v6156 = vpack.c.bf16 %v6134, %v6133
    %v6157 = vpack.c.bf16 %v6136, %v6135
    %v6158 = vpack.c.bf16 %v6138, %v6137
    %v6159 = vpack.c.bf16 %v6140, %v6139
    %v6160 = vpack.c.bf16 %v6142, %v6141
    %v6161 = vpack.c.bf16 %v6144, %v6143
    %v6162 = vpack.c.bf16 %v6146, %v6145
    %s6163 = scalar_lea.vmem %s8, 640
    %v6164 = vld [vmem:[%s6163] sm:$0xf]
    %v6165 = vld [vmem:[%s6163 + $0x4] sm:$0xf]
    %v6166 = vld [vmem:[%s6163 + $0x8] sm:$0xf]
    %v6167 = vld [vmem:[%s6163 + $0xc] sm:$0xf]
    %v6168 = vld [vmem:[%s6163 + $0x10] sm:$0xf]
    %v6169 = vld [vmem:[%s6163 + $0x14] sm:$0xf]
    %v6170 = vld [vmem:[%s6163 + $0x18] sm:$0xf]
    %v6171 = vld [vmem:[%s6163 + $0x1c] sm:$0xf]
    %v6172 = vld [vmem:[%s6163 + $0x20] sm:$0xf]
    %v6173 = vld [vmem:[%s6163 + $0x24] sm:$0xf]
    %v6174 = vld [vmem:[%s6163 + $0x28] sm:$0xf]
    %v6175 = vld [vmem:[%s6163 + $0x2c] sm:$0xf]
    %v6176 = vld [vmem:[%s6163 + $0x30] sm:$0xf]
    %v6177 = vld [vmem:[%s6163 + $0x34] sm:$0xf]
    %v6178 = vld [vmem:[%s6163 + $0x38] sm:$0xf]
    %v6179 = vld [vmem:[%s6163 + $0x3c] sm:$0xf]
    %v6180 = vld [vmem:[#allocation7 + $0xa] sm:$0x1]
    %v6181 = vlaneseq
    %v6182 = vshrl.u32 %v6181, 7
    %v6183 = vsub.s32 0, %v6182
    %v6184 = vrot.slane %v6180, %v6183
    %v6201 = vunpack.c.l.b16 %v6164
    %v6202 = vunpack.c.l.b16 %v6165
    %v6203 = vunpack.c.l.b16 %v6166
    %v6204 = vunpack.c.l.b16 %v6167
    %v6205 = vunpack.c.l.b16 %v6168
    %v6206 = vunpack.c.l.b16 %v6169
    %v6207 = vunpack.c.l.b16 %v6170
    %v6208 = vunpack.c.l.b16 %v6171
    %v6209 = vunpack.c.l.b16 %v6172
    %v6210 = vunpack.c.l.b16 %v6173
    %v6211 = vunpack.c.l.b16 %v6174
    %v6212 = vunpack.c.l.b16 %v6175
    %v6213 = vunpack.c.l.b16 %v6176
    %v6214 = vunpack.c.l.b16 %v6177
    %v6215 = vunpack.c.l.b16 %v6178
    %v6216 = vunpack.c.l.b16 %v6179
    %v6217 = vpack.c.b16 %v6202, %v6201
    %v6218 = vpack.c.b16 %v6204, %v6203
    %v6219 = vpack.c.b16 %v6206, %v6205
    %v6220 = vpack.c.b16 %v6208, %v6207
    %v6221 = vpack.c.b16 %v6210, %v6209
    %v6222 = vpack.c.b16 %v6212, %v6211
    %v6223 = vpack.c.b16 %v6214, %v6213
    %v6224 = vpack.c.b16 %v6216, %v6215
    %6233 = vmatprep.subr.bf16.mxu0 0
    %6234 = vmatpush1.bf16.msra.mxu0 %v6217
    %6235 = vmatprep.subr.bf16.mxu0 0
    %6236 = vmatpush1.bf16.msra.mxu0 %v6218
    %6237 = vmatprep.subr.bf16.mxu0 0
    %6238 = vmatpush1.bf16.msra.mxu0 %v6219
    %6239 = vmatprep.subr.bf16.mxu0 0
    %6240 = vmatpush1.bf16.msra.mxu0 %v6220
    %6241 = vmatprep.subr.bf16.mxu0 0
    %6242 = vmatpush1.bf16.msra.mxu0 %v6221
    %6243 = vmatprep.subr.bf16.mxu0 0
    %6244 = vmatpush1.bf16.msra.mxu0 %v6222
    %6245 = vmatprep.subr.bf16.mxu0 0
    %6246 = vmatpush1.bf16.msra.mxu0 %v6223
    %6247 = vmatprep.subr.bf16.mxu0 0
    %6248 = vmatpush1.bf16.msra.mxu0 %v6224
    %6249 = vmatprep.subr.bf16.mxu0 0
    %6250 = vmatpush1.bf16.msra.mxu0 0
    %6251 = vmatprep.subr.bf16.mxu0 0
    %6252 = vmatpush1.bf16.msra.mxu0 0
    %6253 = vmatprep.subr.bf16.mxu0 0
    %6254 = vmatpush1.bf16.msra.mxu0 0
    %6255 = vmatprep.subr.bf16.mxu0 0
    %6256 = vmatpush1.bf16.msra.mxu0 0
    %6257 = vmatprep.subr.bf16.mxu0 0
    %6258 = vmatpush1.bf16.msra.mxu0 0
    %6259 = vmatprep.subr.bf16.mxu0 0
    %6260 = vmatpush1.bf16.msra.mxu0 0
    %6261 = vmatprep.subr.bf16.mxu0 0
    %6262 = vmatpush1.bf16.msra.mxu0 0
    %6263 = vmatprep.subr.bf16.mxu0 0
    %6264 = vmatpush1.bf16.msra.mxu0 0
    %6265 = vmatprep.mubr.bf16.mxu0 0
    %6266 = vmatmul.mubr.bf16.gmra.mrb[0].mxu0 %v6147
    %v6267 = vpop.f32.mrb[0].mxu0
    %v6268 = vadd.f32 %v6184, %v6267
    %v6269 = vpop.f32.mrb[0].mxu0
    %v6270 = vpop.f32.mrb[0].mxu0
    %v6271 = vadd.f32 %v6184, %v6270
    %v6272 = vpop.f32.mrb[0].mxu0
    %6273 = vmatprep.mubr.bf16.mxu0 0
    %6274 = vmatmul.mubr.bf16.gmra.mrb[0].mxu0 %v6148
    %v6275 = vpop.f32.mrb[0].mxu0
    %v6276 = vadd.f32 %v6184, %v6275
    %v6277 = vpop.f32.mrb[0].mxu0
    %v6278 = vpop.f32.mrb[0].mxu0
    %v6279 = vadd.f32 %v6184, %v6278
    %v6280 = vpop.f32.mrb[0].mxu0
    %6281 = vmatprep.mubr.bf16.mxu0 0
    %6282 = vmatmul.mubr.bf16.gmra.mrb[0].mxu0 %v6149
    %v6283 = vpop.f32.mrb[0].mxu0
    %v6284 = vadd.f32 %v6184, %v6283
    %v6285 = vpop.f32.mrb[0].mxu0
    %v6286 = vpop.f32.mrb[0].mxu0
    %v6287 = vadd.f32 %v6184, %v6286
    %v6288 = vpop.f32.mrb[0].mxu0
    %6289 = vmatprep.mubr.bf16.mxu0 0
    %6290 = vmatmul.mubr.bf16.gmra.mrb[0].mxu0 %v6150
    %v6291 = vpop.f32.mrb[0].mxu0
    %v6292 = vadd.f32 %v6184, %v6291
    %v6293 = vpop.f32.mrb[0].mxu0
    %v6294 = vpop.f32.mrb[0].mxu0
    %v6295 = vadd.f32 %v6184, %v6294
    %v6296 = vpop.f32.mrb[0].mxu0
    %6297 = vmatprep.mubr.bf16.mxu0 0
    %6298 = vmatmul.mubr.bf16.gmra.mrb[0].mxu0 %v6151
    %v6299 = vpop.f32.mrb[0].mxu0
    %v6300 = vadd.f32 %v6184, %v6299
    %v6301 = vpop.f32.mrb[0].mxu0
    %v6302 = vpop.f32.mrb[0].mxu0
    %v6303 = vadd.f32 %v6184, %v6302
    %v6304 = vpop.f32.mrb[0].mxu0
    %6305 = vmatprep.mubr.bf16.mxu0 0
    %6306 = vmatmul.mubr.bf16.gmra.mrb[0].mxu0 %v6152
    %v6307 = vpop.f32.mrb[0].mxu0
    %v6308 = vadd.f32 %v6184, %v6307
    %v6309 = vpop.f32.mrb[0].mxu0
    %v6310 = vpop.f32.mrb[0].mxu0
    %v6311 = vadd.f32 %v6184, %v6310
    %v6312 = vpop.f32.mrb[0].mxu0
    %6313 = vmatprep.mubr.bf16.mxu0 0
    %6314 = vmatmul.mubr.bf16.gmra.mrb[0].mxu0 %v6153
    %v6315 = vpop.f32.mrb[0].mxu0
    %v6316 = vadd.f32 %v6184, %v6315
    %v6317 = vpop.f32.mrb[0].mxu0
    %v6318 = vpop.f32.mrb[0].mxu0
    %v6319 = vadd.f32 %v6184, %v6318
    %v6320 = vpop.f32.mrb[0].mxu0
    %6321 = vmatprep.mubr.bf16.mxu0 0
    %6322 = vmatmul.mubr.bf16.gmra.mrb[0].mxu0 %v6154
    %v6323 = vpop.f32.mrb[0].mxu0
    %v6324 = vadd.f32 %v6184, %v6323
    %v6325 = vpop.f32.mrb[0].mxu0
    %v6326 = vpop.f32.mrb[0].mxu0
    %v6327 = vadd.f32 %v6184, %v6326
    %v6328 = vpop.f32.mrb[0].mxu0
    %6329 = vmatprep.mubr.bf16.mxu0 0
    %6330 = vmatmul.mubr.bf16.gmra.mrb[0].mxu0 %v6155
    %v6331 = vpop.f32.mrb[0].mxu0
    %v6332 = vadd.f32 %v6184, %v6331
    %v6333 = vpop.f32.mrb[0].mxu0
    %v6334 = vpop.f32.mrb[0].mxu0
    %v6335 = vadd.f32 %v6184, %v6334
    %v6336 = vpop.f32.mrb[0].mxu0
    %6337 = vmatprep.mubr.bf16.mxu0 0
    %6338 = vmatmul.mubr.bf16.gmra.mrb[0].mxu0 %v6156
    %v6339 = vpop.f32.mrb[0].mxu0
    %v6340 = vadd.f32 %v6184, %v6339
    %v6341 = vpop.f32.mrb[0].mxu0
    %v6342 = vpop.f32.mrb[0].mxu0
    %v6343 = vadd.f32 %v6184, %v6342
    %v6344 = vpop.f32.mrb[0].mxu0
    %6345 = vmatprep.mubr.bf16.mxu0 0
    %6346 = vmatmul.mubr.bf16.gmra.mrb[0].mxu0 %v6157
    %v6347 = vpop.f32.mrb[0].mxu0
    %v6348 = vadd.f32 %v6184, %v6347
    %v6349 = vpop.f32.mrb[0].mxu0
    %v6350 = vpop.f32.mrb[0].mxu0
    %v6351 = vadd.f32 %v6184, %v6350
    %v6352 = vpop.f32.mrb[0].mxu0
    %6353 = vmatprep.mubr.bf16.mxu0 0
    %6354 = vmatmul.mubr.bf16.gmra.mrb[0].mxu0 %v6158
    %v6355 = vpop.f32.mrb[0].mxu0
    %v6356 = vadd.f32 %v6184, %v6355
    %v6357 = vpop.f32.mrb[0].mxu0
    %v6358 = vpop.f32.mrb[0].mxu0
    %v6359 = vadd.f32 %v6184, %v6358
    %v6360 = vpop.f32.mrb[0].mxu0
    %6361 = vmatprep.mubr.bf16.mxu0 0
    %6362 = vmatmul.mubr.bf16.gmra.mrb[0].mxu0 %v6159
    %v6363 = vpop.f32.mrb[0].mxu0
    %v6364 = vadd.f32 %v6184, %v6363
    %v6365 = vpop.f32.mrb[0].mxu0
    %v6366 = vpop.f32.mrb[0].mxu0
    %v6367 = vadd.f32 %v6184, %v6366
    %v6368 = vpop.f32.mrb[0].mxu0
    %6369 = vmatprep.mubr.bf16.mxu0 0
    %6370 = vmatmul.mubr.bf16.gmra.mrb[0].mxu0 %v6160
    %v6371 = vpop.f32.mrb[0].mxu0
    %v6372 = vadd.f32 %v6184, %v6371
    %v6373 = vpop.f32.mrb[0].mxu0
    %v6374 = vpop.f32.mrb[0].mxu0
    %v6375 = vadd.f32 %v6184, %v6374
    %v6376 = vpop.f32.mrb[0].mxu0
    %6377 = vmatprep.mubr.bf16.mxu0 0
    %6378 = vmatmul.mubr.bf16.gmra.mrb[0].mxu0 %v6161
    %v6379 = vpop.f32.mrb[0].mxu0
    %v6380 = vadd.f32 %v6184, %v6379
    %v6381 = vpop.f32.mrb[0].mxu0
    %v6382 = vpop.f32.mrb[0].mxu0
    %v6383 = vadd.f32 %v6184, %v6382
    %v6384 = vpop.f32.mrb[0].mxu0
    %6385 = vmatprep.mubr.bf16.mxu0 0
    %6386 = vmatmul.mubr.bf16.gmra.mrb[0].mxu0 %v6162
    %v6387 = vpop.f32.mrb[0].mxu0
    %v6388 = vadd.f32 %v6184, %v6387
    %v6389 = vpop.f32.mrb[0].mxu0
    %v6390 = vpop.f32.mrb[0].mxu0
    %v6391 = vadd.f32 %v6184, %v6390
    %v6392 = vpop.f32.mrb[0].mxu0
    %6393 = vdwg.mxu0
    %v6394 = vmax.f32 %v6268, 0.0
    %v6395 = vmax.f32 %v6271, 0.0
    %v6396 = vmax.f32 %v6276, 0.0
    %v6397 = vmax.f32 %v6279, 0.0
    %v6398 = vmax.f32 %v6284, 0.0
    %v6399 = vmax.f32 %v6287, 0.0
    %v6400 = vmax.f32 %v6292, 0.0
    %v6401 = vmax.f32 %v6295, 0.0
    %v6402 = vmax.f32 %v6300, 0.0
    %v6403 = vmax.f32 %v6303, 0.0
    %v6404 = vmax.f32 %v6308, 0.0
    %v6405 = vmax.f32 %v6311, 0.0
    %v6406 = vmax.f32 %v6316, 0.0
    %v6407 = vmax.f32 %v6319, 0.0
    %v6408 = vmax.f32 %v6324, 0.0
    %v6409 = vmax.f32 %v6327, 0.0
    %v6410 = vmax.f32 %v6332, 0.0
    %v6411 = vmax.f32 %v6335, 0.0
    %v6412 = vmax.f32 %v6340, 0.0
    %v6413 = vmax.f32 %v6343, 0.0
    %v6414 = vmax.f32 %v6348, 0.0
    %v6415 = vmax.f32 %v6351, 0.0
    %v6416 = vmax.f32 %v6356, 0.0
    %v6417 = vmax.f32 %v6359, 0.0
    %v6418 = vmax.f32 %v6364, 0.0
    %v6419 = vmax.f32 %v6367, 0.0
    %v6420 = vmax.f32 %v6372, 0.0
    %v6421 = vmax.f32 %v6375, 0.0
    %v6422 = vmax.f32 %v6380, 0.0
    %v6423 = vmax.f32 %v6383, 0.0
    %v6424 = vmax.f32 %v6388, 0.0
    %v6425 = vmax.f32 %v6391, 0.0
    %v6426 = vpack.c.bf16 %v6395, %v6394
    %v6427 = vpack.c.bf16 %v6397, %v6396
    %v6428 = vpack.c.bf16 %v6399, %v6398
    %v6429 = vpack.c.bf16 %v6401, %v6400
    %v6430 = vpack.c.bf16 %v6403, %v6402
    %v6431 = vpack.c.bf16 %v6405, %v6404
    %v6432 = vpack.c.bf16 %v6407, %v6406
    %v6433 = vpack.c.bf16 %v6409, %v6408
    %v6434 = vpack.c.bf16 %v6411, %v6410
    %v6435 = vpack.c.bf16 %v6413, %v6412
    %v6436 = vpack.c.bf16 %v6415, %v6414
    %v6437 = vpack.c.bf16 %v6417, %v6416
    %v6438 = vpack.c.bf16 %v6419, %v6418
    %v6439 = vpack.c.bf16 %v6421, %v6420
    %v6440 = vpack.c.bf16 %v6423, %v6422
    %v6441 = vpack.c.bf16 %v6425, %v6424
    %s6442 = scalar_lea.vmem %s8, 704
    %v6443 = vld [vmem:[%s6442] sm:$0xf]
    %v6444 = vld [vmem:[%s6442 + $0x4] sm:$0xf]
    %v6445 = vld [vmem:[%s6442 + $0x8] sm:$0xf]
    %v6446 = vld [vmem:[%s6442 + $0xc] sm:$0xf]
    %v6447 = vld [vmem:[%s6442 + $0x10] sm:$0xf]
    %v6448 = vld [vmem:[%s6442 + $0x14] sm:$0xf]
    %v6449 = vld [vmem:[%s6442 + $0x18] sm:$0xf]
    %v6450 = vld [vmem:[%s6442 + $0x1c] sm:$0xf]
    %v6451 = vld [vmem:[%s6442 + $0x20] sm:$0xf]
    %v6452 = vld [vmem:[%s6442 + $0x24] sm:$0xf]
    %v6453 = vld [vmem:[%s6442 + $0x28] sm:$0xf]
    %v6454 = vld [vmem:[%s6442 + $0x2c] sm:$0xf]
    %v6455 = vld [vmem:[%s6442 + $0x30] sm:$0xf]
    %v6456 = vld [vmem:[%s6442 + $0x34] sm:$0xf]
    %v6457 = vld [vmem:[%s6442 + $0x38] sm:$0xf]
    %v6458 = vld [vmem:[%s6442 + $0x3c] sm:$0xf]
    %v6459 = vld [vmem:[#allocation7 + $0xb] sm:$0x1]
    %v6460 = vlaneseq
    %v6461 = vshrl.u32 %v6460, 7
    %v6462 = vsub.s32 0, %v6461
    %v6463 = vrot.slane %v6459, %v6462
    %v6480 = vunpack.c.l.b16 %v6443
    %v6481 = vunpack.c.l.b16 %v6444
    %v6482 = vunpack.c.l.b16 %v6445
    %v6483 = vunpack.c.l.b16 %v6446
    %v6484 = vunpack.c.l.b16 %v6447
    %v6485 = vunpack.c.l.b16 %v6448
    %v6486 = vunpack.c.l.b16 %v6449
    %v6487 = vunpack.c.l.b16 %v6450
    %v6488 = vunpack.c.l.b16 %v6451
    %v6489 = vunpack.c.l.b16 %v6452
    %v6490 = vunpack.c.l.b16 %v6453
    %v6491 = vunpack.c.l.b16 %v6454
    %v6492 = vunpack.c.l.b16 %v6455
    %v6493 = vunpack.c.l.b16 %v6456
    %v6494 = vunpack.c.l.b16 %v6457
    %v6495 = vunpack.c.l.b16 %v6458
    %v6496 = vpack.c.b16 %v6481, %v6480
    %v6497 = vpack.c.b16 %v6483, %v6482
    %v6498 = vpack.c.b16 %v6485, %v6484
    %v6499 = vpack.c.b16 %v6487, %v6486
    %v6500 = vpack.c.b16 %v6489, %v6488
    %v6501 = vpack.c.b16 %v6491, %v6490
    %v6502 = vpack.c.b16 %v6493, %v6492
    %v6503 = vpack.c.b16 %v6495, %v6494
    %6512 = vmatprep.subr.bf16.mxu0 0
    %6513 = vmatpush1.bf16.msra.mxu0 %v6496
    %6514 = vmatprep.subr.bf16.mxu0 0
    %6515 = vmatpush1.bf16.msra.mxu0 %v6497
    %6516 = vmatprep.subr.bf16.mxu0 0
    %6517 = vmatpush1.bf16.msra.mxu0 %v6498
    %6518 = vmatprep.subr.bf16.mxu0 0
    %6519 = vmatpush1.bf16.msra.mxu0 %v6499
    %6520 = vmatprep.subr.bf16.mxu0 0
    %6521 = vmatpush1.bf16.msra.mxu0 %v6500
    %6522 = vmatprep.subr.bf16.mxu0 0
    %6523 = vmatpush1.bf16.msra.mxu0 %v6501
    %6524 = vmatprep.subr.bf16.mxu0 0
    %6525 = vmatpush1.bf16.msra.mxu0 %v6502
    %6526 = vmatprep.subr.bf16.mxu0 0
    %6527 = vmatpush1.bf16.msra.mxu0 %v6503
    %6528 = vmatprep.subr.bf16.mxu0 0
    %6529 = vmatpush1.bf16.msra.mxu0 0
    %6530 = vmatprep.subr.bf16.mxu0 0
    %6531 = vmatpush1.bf16.msra.mxu0 0
    %6532 = vmatprep.subr.bf16.mxu0 0
    %6533 = vmatpush1.bf16.msra.mxu0 0
    %6534 = vmatprep.subr.bf16.mxu0 0
    %6535 = vmatpush1.bf16.msra.mxu0 0
    %6536 = vmatprep.subr.bf16.mxu0 0
    %6537 = vmatpush1.bf16.msra.mxu0 0
    %6538 = vmatprep.subr.bf16.mxu0 0
    %6539 = vmatpush1.bf16.msra.mxu0 0
    %6540 = vmatprep.subr.bf16.mxu0 0
    %6541 = vmatpush1.bf16.msra.mxu0 0
    %6542 = vmatprep.subr.bf16.mxu0 0
    %6543 = vmatpush1.bf16.msra.mxu0 0
    %6544 = vmatprep.mubr.bf16.mxu0 0
    %6545 = vmatmul.mubr.bf16.gmra.mrb[0].mxu0 %v6426
    %v6546 = vpop.f32.mrb[0].mxu0
    %v6547 = vadd.f32 %v6463, %v6546
    %v6548 = vpop.f32.mrb[0].mxu0
    %v6549 = vpop.f32.mrb[0].mxu0
    %v6550 = vadd.f32 %v6463, %v6549
    %v6551 = vpop.f32.mrb[0].mxu0
    %6552 = vmatprep.mubr.bf16.mxu0 0
    %6553 = vmatmul.mubr.bf16.gmra.mrb[0].mxu0 %v6427
    %v6554 = vpop.f32.mrb[0].mxu0
    %v6555 = vadd.f32 %v6463, %v6554
    %v6556 = vpop.f32.mrb[0].mxu0
    %v6557 = vpop.f32.mrb[0].mxu0
    %v6558 = vadd.f32 %v6463, %v6557
    %v6559 = vpop.f32.mrb[0].mxu0
    %6560 = vmatprep.mubr.bf16.mxu0 0
    %6561 = vmatmul.mubr.bf16.gmra.mrb[0].mxu0 %v6428
    %v6562 = vpop.f32.mrb[0].mxu0
    %v6563 = vadd.f32 %v6463, %v6562
    %v6564 = vpop.f32.mrb[0].mxu0
    %v6565 = vpop.f32.mrb[0].mxu0
    %v6566 = vadd.f32 %v6463, %v6565
    %v6567 = vpop.f32.mrb[0].mxu0
    %6568 = vmatprep.mubr.bf16.mxu0 0
    %6569 = vmatmul.mubr.bf16.gmra.mrb[0].mxu0 %v6429
    %v6570 = vpop.f32.mrb[0].mxu0
    %v6571 = vadd.f32 %v6463, %v6570
    %v6572 = vpop.f32.mrb[0].mxu0
    %v6573 = vpop.f32.mrb[0].mxu0
    %v6574 = vadd.f32 %v6463, %v6573
    %v6575 = vpop.f32.mrb[0].mxu0
    %6576 = vmatprep.mubr.bf16.mxu0 0
    %6577 = vmatmul.mubr.bf16.gmra.mrb[0].mxu0 %v6430
    %v6578 = vpop.f32.mrb[0].mxu0
    %v6579 = vadd.f32 %v6463, %v6578
    %v6580 = vpop.f32.mrb[0].mxu0
    %v6581 = vpop.f32.mrb[0].mxu0
    %v6582 = vadd.f32 %v6463, %v6581
    %v6583 = vpop.f32.mrb[0].mxu0
    %6584 = vmatprep.mubr.bf16.mxu0 0
    %6585 = vmatmul.mubr.bf16.gmra.mrb[0].mxu0 %v6431
    %v6586 = vpop.f32.mrb[0].mxu0
    %v6587 = vadd.f32 %v6463, %v6586
    %v6588 = vpop.f32.mrb[0].mxu0
    %v6589 = vpop.f32.mrb[0].mxu0
    %v6590 = vadd.f32 %v6463, %v6589
    %v6591 = vpop.f32.mrb[0].mxu0
    %6592 = vmatprep.mubr.bf16.mxu0 0
    %6593 = vmatmul.mubr.bf16.gmra.mrb[0].mxu0 %v6432
    %v6594 = vpop.f32.mrb[0].mxu0
    %v6595 = vadd.f32 %v6463, %v6594
    %v6596 = vpop.f32.mrb[0].mxu0
    %v6597 = vpop.f32.mrb[0].mxu0
    %v6598 = vadd.f32 %v6463, %v6597
    %v6599 = vpop.f32.mrb[0].mxu0
    %6600 = vmatprep.mubr.bf16.mxu0 0
    %6601 = vmatmul.mubr.bf16.gmra.mrb[0].mxu0 %v6433
    %v6602 = vpop.f32.mrb[0].mxu0
    %v6603 = vadd.f32 %v6463, %v6602
    %v6604 = vpop.f32.mrb[0].mxu0
    %v6605 = vpop.f32.mrb[0].mxu0
    %v6606 = vadd.f32 %v6463, %v6605
    %v6607 = vpop.f32.mrb[0].mxu0
    %6608 = vmatprep.mubr.bf16.mxu0 0
    %6609 = vmatmul.mubr.bf16.gmra.mrb[0].mxu0 %v6434
    %v6610 = vpop.f32.mrb[0].mxu0
    %v6611 = vadd.f32 %v6463, %v6610
    %v6612 = vpop.f32.mrb[0].mxu0
    %v6613 = vpop.f32.mrb[0].mxu0
    %v6614 = vadd.f32 %v6463, %v6613
    %v6615 = vpop.f32.mrb[0].mxu0
    %6616 = vmatprep.mubr.bf16.mxu0 0
    %6617 = vmatmul.mubr.bf16.gmra.mrb[0].mxu0 %v6435
    %v6618 = vpop.f32.mrb[0].mxu0
    %v6619 = vadd.f32 %v6463, %v6618
    %v6620 = vpop.f32.mrb[0].mxu0
    %v6621 = vpop.f32.mrb[0].mxu0
    %v6622 = vadd.f32 %v6463, %v6621
    %v6623 = vpop.f32.mrb[0].mxu0
    %6624 = vmatprep.mubr.bf16.mxu0 0
    %6625 = vmatmul.mubr.bf16.gmra.mrb[0].mxu0 %v6436
    %v6626 = vpop.f32.mrb[0].mxu0
    %v6627 = vadd.f32 %v6463, %v6626
    %v6628 = vpop.f32.mrb[0].mxu0
    %v6629 = vpop.f32.mrb[0].mxu0
    %v6630 = vadd.f32 %v6463, %v6629
    %v6631 = vpop.f32.mrb[0].mxu0
    %6632 = vmatprep.mubr.bf16.mxu0 0
    %6633 = vmatmul.mubr.bf16.gmra.mrb[0].mxu0 %v6437
    %v6634 = vpop.f32.mrb[0].mxu0
    %v6635 = vadd.f32 %v6463, %v6634
    %v6636 = vpop.f32.mrb[0].mxu0
    %v6637 = vpop.f32.mrb[0].mxu0
    %v6638 = vadd.f32 %v6463, %v6637
    %v6639 = vpop.f32.mrb[0].mxu0
    %6640 = vmatprep.mubr.bf16.mxu0 0
    %6641 = vmatmul.mubr.bf16.gmra.mrb[0].mxu0 %v6438
    %v6642 = vpop.f32.mrb[0].mxu0
    %v6643 = vadd.f32 %v6463, %v6642
    %v6644 = vpop.f32.mrb[0].mxu0
    %v6645 = vpop.f32.mrb[0].mxu0
    %v6646 = vadd.f32 %v6463, %v6645
    %v6647 = vpop.f32.mrb[0].mxu0
    %6648 = vmatprep.mubr.bf16.mxu0 0
    %6649 = vmatmul.mubr.bf16.gmra.mrb[0].mxu0 %v6439
    %v6650 = vpop.f32.mrb[0].mxu0
    %v6651 = vadd.f32 %v6463, %v6650
    %v6652 = vpop.f32.mrb[0].mxu0
    %v6653 = vpop.f32.mrb[0].mxu0
    %v6654 = vadd.f32 %v6463, %v6653
    %v6655 = vpop.f32.mrb[0].mxu0
    %6656 = vmatprep.mubr.bf16.mxu0 0
    %6657 = vmatmul.mubr.bf16.gmra.mrb[0].mxu0 %v6440
    %v6658 = vpop.f32.mrb[0].mxu0
    %v6659 = vadd.f32 %v6463, %v6658
    %v6660 = vpop.f32.mrb[0].mxu0
    %v6661 = vpop.f32.mrb[0].mxu0
    %v6662 = vadd.f32 %v6463, %v6661
    %v6663 = vpop.f32.mrb[0].mxu0
    %6664 = vmatprep.mubr.bf16.mxu0 0
    %6665 = vmatmul.mubr.bf16.gmra.mrb[0].mxu0 %v6441
    %v6666 = vpop.f32.mrb[0].mxu0
    %v6667 = vadd.f32 %v6463, %v6666
    %v6668 = vpop.f32.mrb[0].mxu0
    %v6669 = vpop.f32.mrb[0].mxu0
    %v6670 = vadd.f32 %v6463, %v6669
    %v6671 = vpop.f32.mrb[0].mxu0
    %6672 = vdwg.mxu0
    %v6673 = vmax.f32 %v6547, 0.0
    %v6674 = vmax.f32 %v6550, 0.0
    %v6675 = vmax.f32 %v6555, 0.0
    %v6676 = vmax.f32 %v6558, 0.0
    %v6677 = vmax.f32 %v6563, 0.0
    %v6678 = vmax.f32 %v6566, 0.0
    %v6679 = vmax.f32 %v6571, 0.0
    %v6680 = vmax.f32 %v6574, 0.0
    %v6681 = vmax.f32 %v6579, 0.0
    %v6682 = vmax.f32 %v6582, 0.0
    %v6683 = vmax.f32 %v6587, 0.0
    %v6684 = vmax.f32 %v6590, 0.0
    %v6685 = vmax.f32 %v6595, 0.0
    %v6686 = vmax.f32 %v6598, 0.0
    %v6687 = vmax.f32 %v6603, 0.0
    %v6688 = vmax.f32 %v6606, 0.0
    %v6689 = vmax.f32 %v6611, 0.0
    %v6690 = vmax.f32 %v6614, 0.0
    %v6691 = vmax.f32 %v6619, 0.0
    %v6692 = vmax.f32 %v6622, 0.0
    %v6693 = vmax.f32 %v6627, 0.0
    %v6694 = vmax.f32 %v6630, 0.0
    %v6695 = vmax.f32 %v6635, 0.0
    %v6696 = vmax.f32 %v6638, 0.0
    %v6697 = vmax.f32 %v6643, 0.0
    %v6698 = vmax.f32 %v6646, 0.0
    %v6699 = vmax.f32 %v6651, 0.0
    %v6700 = vmax.f32 %v6654, 0.0
    %v6701 = vmax.f32 %v6659, 0.0
    %v6702 = vmax.f32 %v6662, 0.0
    %v6703 = vmax.f32 %v6667, 0.0
    %v6704 = vmax.f32 %v6670, 0.0
    %v6705 = vadd.f32 %v6673, %v6115
    %v6706 = vadd.f32 %v6674, %v6116
    %v6707 = vadd.f32 %v6675, %v6117
    %v6708 = vadd.f32 %v6676, %v6118
    %v6709 = vadd.f32 %v6677, %v6119
    %v6710 = vadd.f32 %v6678, %v6120
    %v6711 = vadd.f32 %v6679, %v6121
    %v6712 = vadd.f32 %v6680, %v6122
    %v6713 = vadd.f32 %v6681, %v6123
    %v6714 = vadd.f32 %v6682, %v6124
    %v6715 = vadd.f32 %v6683, %v6125
    %v6716 = vadd.f32 %v6684, %v6126
    %v6717 = vadd.f32 %v6685, %v6127
    %v6718 = vadd.f32 %v6686, %v6128
    %v6719 = vadd.f32 %v6687, %v6129
    %v6720 = vadd.f32 %v6688, %v6130
    %v6721 = vadd.f32 %v6689, %v6131
    %v6722 = vadd.f32 %v6690, %v6132
    %v6723 = vadd.f32 %v6691, %v6133
    %v6724 = vadd.f32 %v6692, %v6134
    %v6725 = vadd.f32 %v6693, %v6135
    %v6726 = vadd.f32 %v6694, %v6136
    %v6727 = vadd.f32 %v6695, %v6137
    %v6728 = vadd.f32 %v6696, %v6138
    %v6729 = vadd.f32 %v6697, %v6139
    %v6730 = vadd.f32 %v6698, %v6140
    %v6731 = vadd.f32 %v6699, %v6141
    %v6732 = vadd.f32 %v6700, %v6142
    %v6733 = vadd.f32 %v6701, %v6143
    %v6734 = vadd.f32 %v6702, %v6144
    %v6735 = vadd.f32 %v6703, %v6145
    %v6736 = vadd.f32 %v6704, %v6146
    %v6737 = vmax.f32 %v6705, 0.0
    %v6738 = vmax.f32 %v6706, 0.0
    %v6739 = vmax.f32 %v6707, 0.0
    %v6740 = vmax.f32 %v6708, 0.0
    %v6741 = vmax.f32 %v6709, 0.0
    %v6742 = vmax.f32 %v6710, 0.0
    %v6743 = vmax.f32 %v6711, 0.0
    %v6744 = vmax.f32 %v6712, 0.0
    %v6745 = vmax.f32 %v6713, 0.0
    %v6746 = vmax.f32 %v6714, 0.0
    %v6747 = vmax.f32 %v6715, 0.0
    %v6748 = vmax.f32 %v6716, 0.0
    %v6749 = vmax.f32 %v6717, 0.0
    %v6750 = vmax.f32 %v6718, 0.0
    %v6751 = vmax.f32 %v6719, 0.0
    %v6752 = vmax.f32 %v6720, 0.0
    %v6753 = vmax.f32 %v6721, 0.0
    %v6754 = vmax.f32 %v6722, 0.0
    %v6755 = vmax.f32 %v6723, 0.0
    %v6756 = vmax.f32 %v6724, 0.0
    %v6757 = vmax.f32 %v6725, 0.0
    %v6758 = vmax.f32 %v6726, 0.0
    %v6759 = vmax.f32 %v6727, 0.0
    %v6760 = vmax.f32 %v6728, 0.0
    %v6761 = vmax.f32 %v6729, 0.0
    %v6762 = vmax.f32 %v6730, 0.0
    %v6763 = vmax.f32 %v6731, 0.0
    %v6764 = vmax.f32 %v6732, 0.0
    %v6765 = vmax.f32 %v6733, 0.0
    %v6766 = vmax.f32 %v6734, 0.0
    %v6767 = vmax.f32 %v6735, 0.0
    %v6768 = vmax.f32 %v6736, 0.0
    %v6769 = vpack.c.bf16 %v6738, %v6737
    %v6770 = vpack.c.bf16 %v6740, %v6739
    %v6771 = vpack.c.bf16 %v6742, %v6741
    %v6772 = vpack.c.bf16 %v6744, %v6743
    %v6773 = vpack.c.bf16 %v6746, %v6745
    %v6774 = vpack.c.bf16 %v6748, %v6747
    %v6775 = vpack.c.bf16 %v6750, %v6749
    %v6776 = vpack.c.bf16 %v6752, %v6751
    %v6777 = vpack.c.bf16 %v6754, %v6753
    %v6778 = vpack.c.bf16 %v6756, %v6755
    %v6779 = vpack.c.bf16 %v6758, %v6757
    %v6780 = vpack.c.bf16 %v6760, %v6759
    %v6781 = vpack.c.bf16 %v6762, %v6761
    %v6782 = vpack.c.bf16 %v6764, %v6763
    %v6783 = vpack.c.bf16 %v6766, %v6765
    %v6784 = vpack.c.bf16 %v6768, %v6767
    %v6785 = vld [vmem:[#allocation9] sm:$0xf]
    %v6786 = vld [vmem:[#allocation9 + $0x4] sm:$0xf]
    %v6787 = vld [vmem:[#allocation9 + $0x8] sm:$0xf]
    %v6788 = vld [vmem:[#allocation9 + $0xc] sm:$0xf]
    %v6789 = vld [vmem:[#allocation9 + $0x10] sm:$0xf]
    %v6790 = vld [vmem:[#allocation9 + $0x14] sm:$0xf]
    %v6791 = vld [vmem:[#allocation9 + $0x18] sm:$0xf]
    %v6792 = vld [vmem:[#allocation9 + $0x1c] sm:$0xf]
    %v6793 = vld [vmem:[#allocation9 + $0x20] sm:$0xf]
    %v6794 = vld [vmem:[#allocation9 + $0x24] sm:$0xf]
    %v6795 = vld [vmem:[#allocation9 + $0x28] sm:$0xf]
    %v6796 = vld [vmem:[#allocation9 + $0x2c] sm:$0xf]
    %v6797 = vld [vmem:[#allocation9 + $0x30] sm:$0xf]
    %v6798 = vld [vmem:[#allocation9 + $0x34] sm:$0xf]
    %v6799 = vld [vmem:[#allocation9 + $0x38] sm:$0xf]
    %v6800 = vld [vmem:[#allocation9 + $0x3c] sm:$0xf]
    %v6801 = vld [vmem:[#allocation10] sm:$0x1]
    %v6803 = vlaneseq
    %v6804 = vshrl.u32 %v6803, 7
    %v6805 = vsub.s32 0, %v6804
    %v6806 = vrot.slane %v6801, %v6805
    %v6824 = vunpack.c.l.b16 %v6785
    %v6825 = vunpack.c.l.b16 %v6786
    %v6826 = vunpack.c.l.b16 %v6787
    %v6827 = vunpack.c.l.b16 %v6788
    %v6828 = vunpack.c.l.b16 %v6789
    %v6829 = vunpack.c.l.b16 %v6790
    %v6830 = vunpack.c.l.b16 %v6791
    %v6831 = vunpack.c.l.b16 %v6792
    %v6832 = vunpack.c.l.b16 %v6793
    %v6833 = vunpack.c.l.b16 %v6794
    %v6834 = vunpack.c.l.b16 %v6795
    %v6835 = vunpack.c.l.b16 %v6796
    %v6836 = vunpack.c.l.b16 %v6797
    %v6837 = vunpack.c.l.b16 %v6798
    %v6838 = vunpack.c.l.b16 %v6799
    %v6839 = vunpack.c.l.b16 %v6800
    %v6840 = vpack.c.b16 %v6825, %v6824
    %v6841 = vpack.c.b16 %v6827, %v6826
    %v6842 = vpack.c.b16 %v6829, %v6828
    %v6843 = vpack.c.b16 %v6831, %v6830
    %v6844 = vpack.c.b16 %v6833, %v6832
    %v6845 = vpack.c.b16 %v6835, %v6834
    %v6846 = vpack.c.b16 %v6837, %v6836
    %v6847 = vpack.c.b16 %v6839, %v6838
    %6856 = vmatprep.subr.bf16.mxu0 0
    %6857 = vmatpush1.bf16.msra.mxu0 %v6840
    %6858 = vmatprep.subr.bf16.mxu0 0
    %6859 = vmatpush1.bf16.msra.mxu0 %v6841
    %6860 = vmatprep.subr.bf16.mxu0 0
    %6861 = vmatpush1.bf16.msra.mxu0 %v6842
    %6862 = vmatprep.subr.bf16.mxu0 0
    %6863 = vmatpush1.bf16.msra.mxu0 %v6843
    %6864 = vmatprep.subr.bf16.mxu0 0
    %6865 = vmatpush1.bf16.msra.mxu0 %v6844
    %6866 = vmatprep.subr.bf16.mxu0 0
    %6867 = vmatpush1.bf16.msra.mxu0 %v6845
    %6868 = vmatprep.subr.bf16.mxu0 0
    %6869 = vmatpush1.bf16.msra.mxu0 %v6846
    %6870 = vmatprep.subr.bf16.mxu0 0
    %6871 = vmatpush1.bf16.msra.mxu0 %v6847
    %6872 = vmatprep.subr.bf16.mxu0 0
    %6873 = vmatpush1.bf16.msra.mxu0 0
    %6874 = vmatprep.subr.bf16.mxu0 0
    %6875 = vmatpush1.bf16.msra.mxu0 0
    %6876 = vmatprep.subr.bf16.mxu0 0
    %6877 = vmatpush1.bf16.msra.mxu0 0
    %6878 = vmatprep.subr.bf16.mxu0 0
    %6879 = vmatpush1.bf16.msra.mxu0 0
    %6880 = vmatprep.subr.bf16.mxu0 0
    %6881 = vmatpush1.bf16.msra.mxu0 0
    %6882 = vmatprep.subr.bf16.mxu0 0
    %6883 = vmatpush1.bf16.msra.mxu0 0
    %6884 = vmatprep.subr.bf16.mxu0 0
    %6885 = vmatpush1.bf16.msra.mxu0 0
    %6886 = vmatprep.subr.bf16.mxu0 0
    %6887 = vmatpush1.bf16.msra.mxu0 0
    %6888 = vmatprep.mubr.bf16.mxu0 0
    %6889 = vmatmul.mubr.bf16.gmra.mrb[0].mxu0 %v6769
    %v6890 = vpop.f32.mrb[0].mxu0
    %v6891 = vadd.f32 %v6806, %v6890
    %v6892 = vpop.f32.mrb[0].mxu0
    %v6893 = vpop.f32.mrb[0].mxu0
    %v6894 = vadd.f32 %v6806, %v6893
    %v6895 = vpop.f32.mrb[0].mxu0
    %6896 = vmatprep.mubr.bf16.mxu0 0
    %6897 = vmatmul.mubr.bf16.gmra.mrb[0].mxu0 %v6770
    %v6898 = vpop.f32.mrb[0].mxu0
    %v6899 = vadd.f32 %v6806, %v6898
    %v6900 = vpop.f32.mrb[0].mxu0
    %v6901 = vpop.f32.mrb[0].mxu0
    %v6902 = vadd.f32 %v6806, %v6901
    %v6903 = vpop.f32.mrb[0].mxu0
    %6904 = vmatprep.mubr.bf16.mxu0 0
    %6905 = vmatmul.mubr.bf16.gmra.mrb[0].mxu0 %v6771
    %v6906 = vpop.f32.mrb[0].mxu0
    %v6907 = vadd.f32 %v6806, %v6906
    %v6908 = vpop.f32.mrb[0].mxu0
    %v6909 = vpop.f32.mrb[0].mxu0
    %v6910 = vadd.f32 %v6806, %v6909
    %v6911 = vpop.f32.mrb[0].mxu0
    %6912 = vmatprep.mubr.bf16.mxu0 0
    %6913 = vmatmul.mubr.bf16.gmra.mrb[0].mxu0 %v6772
    %v6914 = vpop.f32.mrb[0].mxu0
    %v6915 = vadd.f32 %v6806, %v6914
    %v6916 = vpop.f32.mrb[0].mxu0
    %v6917 = vpop.f32.mrb[0].mxu0
    %v6918 = vadd.f32 %v6806, %v6917
    %v6919 = vpop.f32.mrb[0].mxu0
    %6920 = vmatprep.mubr.bf16.mxu0 0
    %6921 = vmatmul.mubr.bf16.gmra.mrb[0].mxu0 %v6773
    %v6922 = vpop.f32.mrb[0].mxu0
    %v6923 = vadd.f32 %v6806, %v6922
    %v6924 = vpop.f32.mrb[0].mxu0
    %v6925 = vpop.f32.mrb[0].mxu0
    %v6926 = vadd.f32 %v6806, %v6925
    %v6927 = vpop.f32.mrb[0].mxu0
    %6928 = vmatprep.mubr.bf16.mxu0 0
    %6929 = vmatmul.mubr.bf16.gmra.mrb[0].mxu0 %v6774
    %v6930 = vpop.f32.mrb[0].mxu0
    %v6931 = vadd.f32 %v6806, %v6930
    %v6932 = vpop.f32.mrb[0].mxu0
    %v6933 = vpop.f32.mrb[0].mxu0
    %v6934 = vadd.f32 %v6806, %v6933
    %v6935 = vpop.f32.mrb[0].mxu0
    %6936 = vmatprep.mubr.bf16.mxu0 0
    %6937 = vmatmul.mubr.bf16.gmra.mrb[0].mxu0 %v6775
    %v6938 = vpop.f32.mrb[0].mxu0
    %v6939 = vadd.f32 %v6806, %v6938
    %v6940 = vpop.f32.mrb[0].mxu0
    %v6941 = vpop.f32.mrb[0].mxu0
    %v6942 = vadd.f32 %v6806, %v6941
    %v6943 = vpop.f32.mrb[0].mxu0
    %6944 = vmatprep.mubr.bf16.mxu0 0
    %6945 = vmatmul.mubr.bf16.gmra.mrb[0].mxu0 %v6776
    %v6946 = vpop.f32.mrb[0].mxu0
    %v6947 = vadd.f32 %v6806, %v6946
    %v6948 = vpop.f32.mrb[0].mxu0
    %v6949 = vpop.f32.mrb[0].mxu0
    %v6950 = vadd.f32 %v6806, %v6949
    %v6951 = vpop.f32.mrb[0].mxu0
    %6952 = vmatprep.mubr.bf16.mxu0 0
    %6953 = vmatmul.mubr.bf16.gmra.mrb[0].mxu0 %v6777
    %v6954 = vpop.f32.mrb[0].mxu0
    %v6955 = vadd.f32 %v6806, %v6954
    %v6956 = vpop.f32.mrb[0].mxu0
    %v6957 = vpop.f32.mrb[0].mxu0
    %v6958 = vadd.f32 %v6806, %v6957
    %v6959 = vpop.f32.mrb[0].mxu0
    %6960 = vmatprep.mubr.bf16.mxu0 0
    %6961 = vmatmul.mubr.bf16.gmra.mrb[0].mxu0 %v6778
    %v6962 = vpop.f32.mrb[0].mxu0
    %v6963 = vadd.f32 %v6806, %v6962
    %v6964 = vpop.f32.mrb[0].mxu0
    %v6965 = vpop.f32.mrb[0].mxu0
    %v6966 = vadd.f32 %v6806, %v6965
    %v6967 = vpop.f32.mrb[0].mxu0
    %6968 = vmatprep.mubr.bf16.mxu0 0
    %6969 = vmatmul.mubr.bf16.gmra.mrb[0].mxu0 %v6779
    %v6970 = vpop.f32.mrb[0].mxu0
    %v6971 = vadd.f32 %v6806, %v6970
    %v6972 = vpop.f32.mrb[0].mxu0
    %v6973 = vpop.f32.mrb[0].mxu0
    %v6974 = vadd.f32 %v6806, %v6973
    %v6975 = vpop.f32.mrb[0].mxu0
    %6976 = vmatprep.mubr.bf16.mxu0 0
    %6977 = vmatmul.mubr.bf16.gmra.mrb[0].mxu0 %v6780
    %v6978 = vpop.f32.mrb[0].mxu0
    %v6979 = vadd.f32 %v6806, %v6978
    %v6980 = vpop.f32.mrb[0].mxu0
    %v6981 = vpop.f32.mrb[0].mxu0
    %v6982 = vadd.f32 %v6806, %v6981
    %v6983 = vpop.f32.mrb[0].mxu0
    %6984 = vmatprep.mubr.bf16.mxu0 0
    %6985 = vmatmul.mubr.bf16.gmra.mrb[0].mxu0 %v6781
    %v6986 = vpop.f32.mrb[0].mxu0
    %v6987 = vadd.f32 %v6806, %v6986
    %v6988 = vpop.f32.mrb[0].mxu0
    %v6989 = vpop.f32.mrb[0].mxu0
    %v6990 = vadd.f32 %v6806, %v6989
    %v6991 = vpop.f32.mrb[0].mxu0
    %6992 = vmatprep.mubr.bf16.mxu0 0
    %6993 = vmatmul.mubr.bf16.gmra.mrb[0].mxu0 %v6782
    %v6994 = vpop.f32.mrb[0].mxu0
    %v6995 = vadd.f32 %v6806, %v6994
    %v6996 = vpop.f32.mrb[0].mxu0
    %v6997 = vpop.f32.mrb[0].mxu0
    %v6998 = vadd.f32 %v6806, %v6997
    %v6999 = vpop.f32.mrb[0].mxu0
    %7000 = vmatprep.mubr.bf16.mxu0 0
    %7001 = vmatmul.mubr.bf16.gmra.mrb[0].mxu0 %v6783
    %v7002 = vpop.f32.mrb[0].mxu0
    %v7003 = vadd.f32 %v6806, %v7002
    %v7004 = vpop.f32.mrb[0].mxu0
    %v7005 = vpop.f32.mrb[0].mxu0
    %v7006 = vadd.f32 %v6806, %v7005
    %v7007 = vpop.f32.mrb[0].mxu0
    %7008 = vmatprep.mubr.bf16.mxu0 0
    %7009 = vmatmul.mubr.bf16.gmra.mrb[0].mxu0 %v6784
    %v7010 = vpop.f32.mrb[0].mxu0
    %v7011 = vadd.f32 %v6806, %v7010
    %v7012 = vpop.f32.mrb[0].mxu0
    %v7013 = vpop.f32.mrb[0].mxu0
    %v7014 = vadd.f32 %v6806, %v7013
    %v7015 = vpop.f32.mrb[0].mxu0
    %7016 = vdwg.mxu0
    %7017 = vmax.xlane.f32.xlu0 %v6891
    %v7018 = vpop.xlane.xlu0 %7017
    %7019 = vmax.xlane.f32.xlu0 %v6894
    %v7020 = vpop.xlane.xlu0 %7019
    %7021 = vmax.xlane.f32.xlu0 %v6899
    %v7022 = vpop.xlane.xlu0 %7021
    %7023 = vmax.xlane.f32.xlu0 %v6902
    %v7024 = vpop.xlane.xlu0 %7023
    %7025 = vmax.xlane.f32.xlu0 %v6907
    %v7026 = vpop.xlane.xlu0 %7025
    %7027 = vmax.xlane.f32.xlu0 %v6910
    %v7028 = vpop.xlane.xlu0 %7027
    %7029 = vmax.xlane.f32.xlu0 %v6915
    %v7030 = vpop.xlane.xlu0 %7029
    %7031 = vmax.xlane.f32.xlu0 %v6918
    %v7032 = vpop.xlane.xlu0 %7031
    %7033 = vmax.xlane.f32.xlu0 %v6923
    %v7034 = vpop.xlane.xlu0 %7033
    %7035 = vmax.xlane.f32.xlu0 %v6926
    %v7036 = vpop.xlane.xlu0 %7035
    %7037 = vmax.xlane.f32.xlu0 %v6931
    %v7038 = vpop.xlane.xlu0 %7037
    %7039 = vmax.xlane.f32.xlu0 %v6934
    %v7040 = vpop.xlane.xlu0 %7039
    %7041 = vmax.xlane.f32.xlu0 %v6939
    %v7042 = vpop.xlane.xlu0 %7041
    %7043 = vmax.xlane.f32.xlu0 %v6942
    %v7044 = vpop.xlane.xlu0 %7043
    %7045 = vmax.xlane.f32.xlu0 %v6947
    %v7046 = vpop.xlane.xlu0 %7045
    %7047 = vmax.xlane.f32.xlu0 %v6950
    %v7048 = vpop.xlane.xlu0 %7047
    %7049 = vmax.xlane.f32.xlu0 %v6955
    %v7050 = vpop.xlane.xlu0 %7049
    %7051 = vmax.xlane.f32.xlu0 %v6958
    %v7052 = vpop.xlane.xlu0 %7051
    %7053 = vmax.xlane.f32.xlu0 %v6963
    %v7054 = vpop.xlane.xlu0 %7053
    %7055 = vmax.xlane.f32.xlu0 %v6966
    %v7056 = vpop.xlane.xlu0 %7055
    %7057 = vmax.xlane.f32.xlu0 %v6971
    %v7058 = vpop.xlane.xlu0 %7057
    %7059 = vmax.xlane.f32.xlu0 %v6974
    %v7060 = vpop.xlane.xlu0 %7059
    %7061 = vmax.xlane.f32.xlu0 %v6979
    %v7062 = vpop.xlane.xlu0 %7061
    %7063 = vmax.xlane.f32.xlu0 %v6982
    %v7064 = vpop.xlane.xlu0 %7063
    %7065 = vmax.xlane.f32.xlu0 %v6987
    %v7066 = vpop.xlane.xlu0 %7065
    %7067 = vmax.xlane.f32.xlu0 %v6990
    %v7068 = vpop.xlane.xlu0 %7067
    %7069 = vmax.xlane.f32.xlu0 %v6995
    %v7070 = vpop.xlane.xlu0 %7069
    %7071 = vmax.xlane.f32.xlu0 %v6998
    %v7072 = vpop.xlane.xlu0 %7071
    %7073 = vmax.xlane.f32.xlu0 %v7003
    %v7074 = vpop.xlane.xlu0 %7073
    %7075 = vmax.xlane.f32.xlu0 %v7006
    %v7076 = vpop.xlane.xlu0 %7075
    %7077 = vmax.xlane.f32.xlu0 %v7011
    %v7078 = vpop.xlane.xlu0 %7077
    %7079 = vmax.xlane.f32.xlu0 %v7014
    %v7080 = vpop.xlane.xlu0 %7079
    %v7081 = vsub.f32 %v6891, %v7018
    %v7082 = vsub.f32 %v6894, %v7020
    %v7083 = vsub.f32 %v6899, %v7022
    %v7084 = vsub.f32 %v6902, %v7024
    %v7085 = vsub.f32 %v6907, %v7026
    %v7086 = vsub.f32 %v6910, %v7028
    %v7087 = vsub.f32 %v6915, %v7030
    %v7088 = vsub.f32 %v6918, %v7032
    %v7089 = vsub.f32 %v6923, %v7034
    %v7090 = vsub.f32 %v6926, %v7036
    %v7091 = vsub.f32 %v6931, %v7038
    %v7092 = vsub.f32 %v6934, %v7040
    %v7093 = vsub.f32 %v6939, %v7042
    %v7094 = vsub.f32 %v6942, %v7044
    %v7095 = vsub.f32 %v6947, %v7046
    %v7096 = vsub.f32 %v6950, %v7048
    %v7097 = vsub.f32 %v6955, %v7050
    %v7098 = vsub.f32 %v6958, %v7052
    %v7099 = vsub.f32 %v6963, %v7054
    %v7100 = vsub.f32 %v6966, %v7056
    %v7101 = vsub.f32 %v6971, %v7058
    %v7102 = vsub.f32 %v6974, %v7060
    %v7103 = vsub.f32 %v6979, %v7062
    %v7104 = vsub.f32 %v6982, %v7064
    %v7105 = vsub.f32 %v6987, %v7066
    %v7106 = vsub.f32 %v6990, %v7068
    %v7107 = vsub.f32 %v6995, %v7070
    %v7108 = vsub.f32 %v6998, %v7072
    %v7109 = vsub.f32 %v7003, %v7074
    %v7110 = vsub.f32 %v7006, %v7076
    %v7111 = vsub.f32 %v7011, %v7078
    %v7112 = vsub.f32 %v7014, %v7080
    %v7113 = vmul.f32 %v7081, 1.442695
    %v7114 = vpow.pop %v7113
    %v7115 = vmul.f32 %v7082, 1.442695
    %v7116 = vpow.pop %v7115
    %v7117 = vmul.f32 %v7083, 1.442695
    %v7118 = vpow.pop %v7117
    %v7119 = vmul.f32 %v7084, 1.442695
    %v7120 = vpow.pop %v7119
    %v7121 = vmul.f32 %v7085, 1.442695
    %v7122 = vpow.pop %v7121
    %v7123 = vmul.f32 %v7086, 1.442695
    %v7124 = vpow.pop %v7123
    %v7125 = vmul.f32 %v7087, 1.442695
    %v7126 = vpow.pop %v7125
    %v7127 = vmul.f32 %v7088, 1.442695
    %v7128 = vpow.pop %v7127
    %v7129 = vmul.f32 %v7089, 1.442695
    %v7130 = vpow.pop %v7129
    %v7131 = vmul.f32 %v7090, 1.442695
    %v7132 = vpow.pop %v7131
    %v7133 = vmul.f32 %v7091, 1.442695
    %v7134 = vpow.pop %v7133
    %v7135 = vmul.f32 %v7092, 1.442695
    %v7136 = vpow.pop %v7135
    %v7137 = vmul.f32 %v7093, 1.442695
    %v7138 = vpow.pop %v7137
    %v7139 = vmul.f32 %v7094, 1.442695
    %v7140 = vpow.pop %v7139
    %v7141 = vmul.f32 %v7095, 1.442695
    %v7142 = vpow.pop %v7141
    %v7143 = vmul.f32 %v7096, 1.442695
    %v7144 = vpow.pop %v7143
    %v7145 = vmul.f32 %v7097, 1.442695
    %v7146 = vpow.pop %v7145
    %v7147 = vmul.f32 %v7098, 1.442695
    %v7148 = vpow.pop %v7147
    %v7149 = vmul.f32 %v7099, 1.442695
    %v7150 = vpow.pop %v7149
    %v7151 = vmul.f32 %v7100, 1.442695
    %v7152 = vpow.pop %v7151
    %v7153 = vmul.f32 %v7101, 1.442695
    %v7154 = vpow.pop %v7153
    %v7155 = vmul.f32 %v7102, 1.442695
    %v7156 = vpow.pop %v7155
    %v7157 = vmul.f32 %v7103, 1.442695
    %v7158 = vpow.pop %v7157
    %v7159 = vmul.f32 %v7104, 1.442695
    %v7160 = vpow.pop %v7159
    %v7161 = vmul.f32 %v7105, 1.442695
    %v7162 = vpow.pop %v7161
    %v7163 = vmul.f32 %v7106, 1.442695
    %v7164 = vpow.pop %v7163
    %v7165 = vmul.f32 %v7107, 1.442695
    %v7166 = vpow.pop %v7165
    %v7167 = vmul.f32 %v7108, 1.442695
    %v7168 = vpow.pop %v7167
    %v7169 = vmul.f32 %v7109, 1.442695
    %v7170 = vpow.pop %v7169
    %v7171 = vmul.f32 %v7110, 1.442695
    %v7172 = vpow.pop %v7171
    %v7173 = vmul.f32 %v7111, 1.442695
    %v7174 = vpow.pop %v7173
    %v7175 = vmul.f32 %v7112, 1.442695
    %v7176 = vpow.pop %v7175
    %7177 = vadd.xlane.f32.xlu0 %v7114
    %v7178 = vpop.xlane.xlu0 %7177
    %7179 = vadd.xlane.f32.xlu0 %v7116
    %v7180 = vpop.xlane.xlu0 %7179
    %7181 = vadd.xlane.f32.xlu0 %v7118
    %v7182 = vpop.xlane.xlu0 %7181
    %7183 = vadd.xlane.f32.xlu0 %v7120
    %v7184 = vpop.xlane.xlu0 %7183
    %7185 = vadd.xlane.f32.xlu0 %v7122
    %v7186 = vpop.xlane.xlu0 %7185
    %7187 = vadd.xlane.f32.xlu0 %v7124
    %v7188 = vpop.xlane.xlu0 %7187
    %7189 = vadd.xlane.f32.xlu0 %v7126
    %v7190 = vpop.xlane.xlu0 %7189
    %7191 = vadd.xlane.f32.xlu0 %v7128
    %v7192 = vpop.xlane.xlu0 %7191
    %7193 = vadd.xlane.f32.xlu0 %v7130
    %v7194 = vpop.xlane.xlu0 %7193
    %7195 = vadd.xlane.f32.xlu0 %v7132
    %v7196 = vpop.xlane.xlu0 %7195
    %7197 = vadd.xlane.f32.xlu0 %v7134
    %v7198 = vpop.xlane.xlu0 %7197
    %7199 = vadd.xlane.f32.xlu0 %v7136
    %v7200 = vpop.xlane.xlu0 %7199
    %7201 = vadd.xlane.f32.xlu0 %v7138
    %v7202 = vpop.xlane.xlu0 %7201
    %7203 = vadd.xlane.f32.xlu0 %v7140
    %v7204 = vpop.xlane.xlu0 %7203
    %7205 = vadd.xlane.f32.xlu0 %v7142
    %v7206 = vpop.xlane.xlu0 %7205
    %7207 = vadd.xlane.f32.xlu0 %v7144
    %v7208 = vpop.xlane.xlu0 %7207
    %7209 = vadd.xlane.f32.xlu0 %v7146
    %v7210 = vpop.xlane.xlu0 %7209
    %7211 = vadd.xlane.f32.xlu0 %v7148
    %v7212 = vpop.xlane.xlu0 %7211
    %7213 = vadd.xlane.f32.xlu0 %v7150
    %v7214 = vpop.xlane.xlu0 %7213
    %7215 = vadd.xlane.f32.xlu0 %v7152
    %v7216 = vpop.xlane.xlu0 %7215
    %7217 = vadd.xlane.f32.xlu0 %v7154
    %v7218 = vpop.xlane.xlu0 %7217
    %7219 = vadd.xlane.f32.xlu0 %v7156
    %v7220 = vpop.xlane.xlu0 %7219
    %7221 = vadd.xlane.f32.xlu0 %v7158
    %v7222 = vpop.xlane.xlu0 %7221
    %7223 = vadd.xlane.f32.xlu0 %v7160
    %v7224 = vpop.xlane.xlu0 %7223
    %7225 = vadd.xlane.f32.xlu0 %v7162
    %v7226 = vpop.xlane.xlu0 %7225
    %7227 = vadd.xlane.f32.xlu0 %v7164
    %v7228 = vpop.xlane.xlu0 %7227
    %7229 = vadd.xlane.f32.xlu0 %v7166
    %v7230 = vpop.xlane.xlu0 %7229
    %7231 = vadd.xlane.f32.xlu0 %v7168
    %v7232 = vpop.xlane.xlu0 %7231
    %7233 = vadd.xlane.f32.xlu0 %v7170
    %v7234 = vpop.xlane.xlu0 %7233
    %7235 = vadd.xlane.f32.xlu0 %v7172
    %v7236 = vpop.xlane.xlu0 %7235
    %7237 = vadd.xlane.f32.xlu0 %v7174
    %v7238 = vpop.xlane.xlu0 %7237
    %7239 = vadd.xlane.f32.xlu0 %v7176
    %v7240 = vpop.xlane.xlu0 %7239
    %v7241 = vrcp.pop %v7178
    %v7242 = vrcp.pop %v7180
    %v7243 = vrcp.pop %v7182
    %v7244 = vrcp.pop %v7184
    %v7245 = vrcp.pop %v7186
    %v7246 = vrcp.pop %v7188
    %v7247 = vrcp.pop %v7190
    %v7248 = vrcp.pop %v7192
    %v7249 = vrcp.pop %v7194
    %v7250 = vrcp.pop %v7196
    %v7251 = vrcp.pop %v7198
    %v7252 = vrcp.pop %v7200
    %v7253 = vrcp.pop %v7202
    %v7254 = vrcp.pop %v7204
    %v7255 = vrcp.pop %v7206
    %v7256 = vrcp.pop %v7208
    %v7257 = vrcp.pop %v7210
    %v7258 = vrcp.pop %v7212
    %v7259 = vrcp.pop %v7214
    %v7260 = vrcp.pop %v7216
    %v7261 = vrcp.pop %v7218
    %v7262 = vrcp.pop %v7220
    %v7263 = vrcp.pop %v7222
    %v7264 = vrcp.pop %v7224
    %v7265 = vrcp.pop %v7226
    %v7266 = vrcp.pop %v7228
    %v7267 = vrcp.pop %v7230
    %v7268 = vrcp.pop %v7232
    %v7269 = vrcp.pop %v7234
    %v7270 = vrcp.pop %v7236
    %v7271 = vrcp.pop %v7238
    %v7272 = vrcp.pop %v7240
    %v7273 = vmul.f32 %v7241, 2.0
    %v7274 = vmul.f32 %v7242, 2.0
    %v7275 = vmul.f32 %v7243, 2.0
    %v7276 = vmul.f32 %v7244, 2.0
    %v7277 = vmul.f32 %v7245, 2.0
    %v7278 = vmul.f32 %v7246, 2.0
    %v7279 = vmul.f32 %v7247, 2.0
    %v7280 = vmul.f32 %v7248, 2.0
    %v7281 = vmul.f32 %v7249, 2.0
    %v7282 = vmul.f32 %v7250, 2.0
    %v7283 = vmul.f32 %v7251, 2.0
    %v7284 = vmul.f32 %v7252, 2.0
    %v7285 = vmul.f32 %v7253, 2.0
    %v7286 = vmul.f32 %v7254, 2.0
    %v7287 = vmul.f32 %v7255, 2.0
    %v7288 = vmul.f32 %v7256, 2.0
    %v7289 = vmul.f32 %v7257, 2.0
    %v7290 = vmul.f32 %v7258, 2.0
    %v7291 = vmul.f32 %v7259, 2.0
    %v7292 = vmul.f32 %v7260, 2.0
    %v7293 = vmul.f32 %v7261, 2.0
    %v7294 = vmul.f32 %v7262, 2.0
    %v7295 = vmul.f32 %v7263, 2.0
    %v7296 = vmul.f32 %v7264, 2.0
    %v7297 = vmul.f32 %v7265, 2.0
    %v7298 = vmul.f32 %v7266, 2.0
    %v7299 = vmul.f32 %v7267, 2.0
    %v7300 = vmul.f32 %v7268, 2.0
    %v7301 = vmul.f32 %v7269, 2.0
    %v7302 = vmul.f32 %v7270, 2.0
    %v7303 = vmul.f32 %v7271, 2.0
    %v7304 = vmul.f32 %v7272, 2.0
    %v7305 = vmul.f32 %v7114, %v7273
    %v7306 = vmul.f32 %v7116, %v7274
    %v7307 = vmul.f32 %v7118, %v7275
    %v7308 = vmul.f32 %v7120, %v7276
    %v7309 = vmul.f32 %v7122, %v7277
    %v7310 = vmul.f32 %v7124, %v7278
    %v7311 = vmul.f32 %v7126, %v7279
    %v7312 = vmul.f32 %v7128, %v7280
    %v7313 = vmul.f32 %v7130, %v7281
    %v7314 = vmul.f32 %v7132, %v7282
    %v7315 = vmul.f32 %v7134, %v7283
    %v7316 = vmul.f32 %v7136, %v7284
    %v7317 = vmul.f32 %v7138, %v7285
    %v7318 = vmul.f32 %v7140, %v7286
    %v7319 = vmul.f32 %v7142, %v7287
    %v7320 = vmul.f32 %v7144, %v7288
    %v7321 = vmul.f32 %v7146, %v7289
    %v7322 = vmul.f32 %v7148, %v7290
    %v7323 = vmul.f32 %v7150, %v7291
    %v7324 = vmul.f32 %v7152, %v7292
    %v7325 = vmul.f32 %v7154, %v7293
    %v7326 = vmul.f32 %v7156, %v7294
    %v7327 = vmul.f32 %v7158, %v7295
    %v7328 = vmul.f32 %v7160, %v7296
    %v7329 = vmul.f32 %v7162, %v7297
    %v7330 = vmul.f32 %v7164, %v7298
    %v7331 = vmul.f32 %v7166, %v7299
    %v7332 = vmul.f32 %v7168, %v7300
    %v7333 = vmul.f32 %v7170, %v7301
    %v7334 = vmul.f32 %v7172, %v7302
    %v7335 = vmul.f32 %v7174, %v7303
    %v7336 = vmul.f32 %v7176, %v7304
    %7337 = vst [vmem:[%s12] sm:$0xff] %v7305
    %7338 = vst [vmem:[%s12 + $0x8] sm:$0xff] %v7306
    %7339 = vst [vmem:[%s12 + $0x10] sm:$0xff] %v7307
    %7340 = vst [vmem:[%s12 + $0x18] sm:$0xff] %v7308
    %7341 = vst [vmem:[%s12 + $0x20] sm:$0xff] %v7309
    %7342 = vst [vmem:[%s12 + $0x28] sm:$0xff] %v7310
    %7343 = vst [vmem:[%s12 + $0x30] sm:$0xff] %v7311
    %7344 = vst [vmem:[%s12 + $0x38] sm:$0xff] %v7312
    %7345 = vst [vmem:[%s12 + $0x40] sm:$0xff] %v7313
    %7346 = vst [vmem:[%s12 + $0x48] sm:$0xff] %v7314
    %7347 = vst [vmem:[%s12 + $0x50] sm:$0xff] %v7315
    %7348 = vst [vmem:[%s12 + $0x58] sm:$0xff] %v7316
    %7349 = vst [vmem:[%s12 + $0x60] sm:$0xff] %v7317
    %7350 = vst [vmem:[%s12 + $0x68] sm:$0xff] %v7318
    %7351 = vst [vmem:[%s12 + $0x70] sm:$0xff] %v7319
    %7352 = vst [vmem:[%s12 + $0x78] sm:$0xff] %v7320
    %7353 = vst [vmem:[%s12 + $0x80] sm:$0xff] %v7321
    %7354 = vst [vmem:[%s12 + $0x88] sm:$0xff] %v7322
    %7355 = vst [vmem:[%s12 + $0x90] sm:$0xff] %v7323
    %7356 = vst [vmem:[%s12 + $0x98] sm:$0xff] %v7324
    %7357 = vst [vmem:[%s12 + $0xa0] sm:$0xff] %v7325
    %7358 = vst [vmem:[%s12 + $0xa8] sm:$0xff] %v7326
    %7359 = vst [vmem:[%s12 + $0xb0] sm:$0xff] %v7327
    %7360 = vst [vmem:[%s12 + $0xb8] sm:$0xff] %v7328
    %7361 = vst [vmem:[%s12 + $0xc0] sm:$0xff] %v7329
    %7362 = vst [vmem:[%s12 + $0xc8] sm:$0xff] %v7330
    %7363 = vst [vmem:[%s12 + $0xd0] sm:$0xff] %v7331
    %7364 = vst [vmem:[%s12 + $0xd8] sm:$0xff] %v7332
    %7365 = vst [vmem:[%s12 + $0xe0] sm:$0xff] %v7333
    %7366 = vst [vmem:[%s12 + $0xe8] sm:$0xff] %v7334
    %7367 = vst [vmem:[%s12 + $0xf0] sm:$0xff] %v7335
    %7368 = vst [vmem:[%s12 + $0xf8] sm:$0xff] %v7336
    // Predicated region
    $region74: #{pytorch_mlp_forward.1} parent=1 // pred_check
      _
    $region75: #{pytorch_mlp_forward.1} parent=1 // pred_check_branch
      %7370 = sbr.rel (0) target = $region77
    $region76: #{pytorch_mlp_forward.1} parent=1 // pred_region
      _
    $region77: #{pytorch_mlp_forward.1} parent=1 // pred_fallthru
      _
    // Predicated region
    $region78: #{pytorch_mlp_forward.1} parent=1 // pred_check
      _
    $region79: #{pytorch_mlp_forward.1} parent=1 // pred_check_branch
      %7372 = sbr.rel (0) target = $region81
    $region80: #{pytorch_mlp_forward.1} parent=1 // pred_region
      _
    $region81: #{pytorch_mlp_forward.1} parent=1 // pred_fallthru
      _
    %7373 = vsyncpa [#allocation3], 1
    %7374 = vsyncpa [#allocation5], 1
    %7375 = vsyncpa [#allocation8], 1
    %7376 = vsyncpa [#allocation11], 1

</llo_original>
